<compile_context>
chip_gen: v7x
topology: tpu7x:2x2x1
jax: 0.10.0
libtpu: 0.0.40
codegen_flags: <defaults>
</compile_context>

<pallas_src>
import functools

import jax
import jax.numpy as jnp
import numpy as np
from jax.experimental import pallas as pl
from jax.experimental.pallas import tpu as pltpu


def _conv3x3_gapped(pad_ref, chunks, w_ref, b_ref, *, m_l, m_r, HW, W, GAP,
                    off, Mg):
    """3x3 'SAME' conv over a batch-folded, gap-separated activation slab.

    `chunks` is a list of per-batch (HW, F) f32 interiors.  They are stored at
    8-aligned offsets into the flat zero-bordered f32 scratch `pad_ref`; the
    halo rows above/below and the GAP(=W) zero rows between batches were
    zeroed at kernel start and are never overwritten.  The nine taps are then
    slices of three "extended" views of the scratch (dx = -1 / 0 / +1, each
    covering rows [off-W, off+Mg+W) shifted by dx): the dy offsets are
    multiples of W, so all per-dy slices are aligned, and only the two dx!=0
    views are misaligned reads.  x-edge validity (and cross-batch flat-index
    wraparound) is handled by ONE mask multiply per shifted view.  The conv is
    a single (Mg, 9F) x (9F, N) bf16 MXU matmul with f32 accumulation + bias.
    """
    rows_ext = Mg + 2 * W
    for b, chunk in enumerate(chunks):
        s = off + b * (HW + GAP)
        pad_ref[s:s + HW, :] = chunk                       # 8-aligned stores

    base = off - W
    e_c = pad_ref[base:base + rows_ext, :].astype(jnp.bfloat16)
    e_l = (pad_ref[base - 1:base - 1 + rows_ext, :] * m_l).astype(jnp.bfloat16)
    e_r = (pad_ref[base + 1:base + 1 + rows_ext, :] * m_r).astype(jnp.bfloat16)

    taps = []
    for dy in (-1, 0, 1):
        o = (dy + 1) * W                                   # aligned (W % 8 == 0)
        for e in (e_l, e_c, e_r):                          # dx = -1, 0, +1
            taps.append(e[o:o + Mg, :])
    col = jnp.concatenate(taps, axis=1)                    # (Mg, 9F) bf16
    out = jnp.dot(col, w_ref[...], preferred_element_type=jnp.float32)
    return out + b_ref[...]


def _cls_kernel(xcol_ref, w1_ref, b1_ref, w2_ref, b2_ref, w3_ref, b3_ref,
                out_ref, pad_ref, *, H, W, BB, off):
    HW = H * W
    GAP = W
    Mg = BB * HW + (BB - 1) * GAP
    rows_ext = Mg + 2 * W
    region_rows, F = pad_ref.shape

    # Zero the y-halos and inter-batch gaps (interiors are always fully
    # overwritten below).  Re-done every grid step so the kernel stays correct
    # when the parallel batch-block axis is split across TensorCores.
    pad_ref[0:off, :] = jnp.zeros((off, F), jnp.float32)
    for b in range(BB):
        gs = off + b * (HW + GAP) + HW
        ge = off + (b + 1) * (HW + GAP) if b + 1 < BB else region_rows
        pad_ref[gs:ge, :] = jnp.zeros((ge - gs, F), jnp.float32)

    # x-edge validity masks over the extended row range: a reader at x==0 has
    # no left neighbour, x==W-1 has no right neighbour.  Built once per call.
    xj = jax.lax.broadcasted_iota(jnp.int32, (rows_ext, 1), 0) % W
    m_l = (xj != 0).astype(jnp.float32)
    m_r = (xj != W - 1).astype(jnp.float32)

    # conv1 + ReLU: im2col prebuilt in the wrapper -> ONE matmul over the
    # whole folded batch.
    h1 = jnp.dot(xcol_ref[...], w1_ref[...], preferred_element_type=jnp.float32)
    h1 = jnp.maximum(h1 + b1_ref[...], 0.0)                # (BB*HW, F), ungapped

    conv = functools.partial(_conv3x3_gapped, pad_ref, m_l=m_l, m_r=m_r,
                             HW=HW, W=W, GAP=GAP, off=off, Mg=Mg)

    # conv2 + ReLU (result is in the gapped layout).
    h2 = jnp.maximum(
        conv([h1[b * HW:(b + 1) * HW, :] for b in range(BB)], w2_ref, b2_ref),
        0.0)

    # output conv (Sigmoid is defined in the module but never applied in the
    # PyTorch forward, so it is omitted here too).
    o = conv([h2[b * (HW + GAP):b * (HW + GAP) + HW, :] for b in range(BB)],
             w3_ref, b3_ref)
    for b in range(BB):
        out_ref[b] = o[b * (HW + GAP):b * (HW + GAP) + HW, :]


def classification_model_forward(x_nchw, params, num_anchor_points, num_classes,
                                 *, num_batch_blocks=1):
    """Mirrors ClassificationModel.forward; returns (B, H*W*A, num_classes).

    num_batch_blocks=1 folds the whole batch into a single grid step (best on
    single-TensorCore v5e/v6e).  On v7x pass num_batch_blocks=2 so the
    "parallel" grid axis shards batch blocks across its two TensorCores.
    """
    w1, b1, w2, b2, w3, b3 = params
    B, Cin, H, W = x_nchw.shape
    F = w1.shape[-1]
    AC = num_anchor_points * num_classes
    HW = H * W
    assert W % 8 == 0 and HW % 8 == 0, "kernel assumes 8-aligned spatial dims"
    assert B % num_batch_blocks == 0
    BB = B // num_batch_blocks

    # NCHW -> NHWC and conv1 im2col in plain XLA (tiny Cin).  Pad the
    # contraction dim 9*Cin -> multiple of 64 so the load / matmul K is
    # lane-dense (free in the wrapper).
    x_nhwc = jnp.transpose(x_nchw, (0, 2, 3, 1))
    xp = jnp.pad(x_nhwc, ((0, 0), (1, 1), (1, 1), (0, 0)))
    cols = [xp[:, ky:ky + H, kx:kx + W, :] for ky in range(3) for kx in range(3)]
    K1 = 9 * Cin
    K1p = -(-K1 // 64) * 64
    x_col = jnp.concatenate(cols, axis=-1).reshape(B * HW, K1)
    x_col = jnp.pad(x_col, ((0, 0), (0, K1p - K1))).astype(jnp.bfloat16)

    # Fold the 3x3 taps into the contraction dim: HWIO (3,3,I,O) -> (9*I, O).
    w1c = jnp.pad(w1.reshape(K1, F), ((0, K1p - K1), (0, 0))).astype(jnp.bfloat16)
    w2c = w2.reshape(9 * F, F).astype(jnp.bfloat16)
    w3c = w3.reshape(9 * F, AC).astype(jnp.bfloat16)
    b1f = b1.astype(jnp.float32).reshape(1, F)
    b2f = b2.astype(jnp.float32).reshape(1, F)
    b3f = b3.astype(jnp.float32).reshape(1, AC)

    # Flat zero-bordered scratch: BB interiors of HW rows separated by W-row
    # zero gaps, with an 8-aligned halo of >= W+1 rows on each end.
    off = ((W + 1 + 7) // 8) * 8
    GAP = W
    Mg = BB * HW + (BB - 1) * GAP
    region_rows = 2 * off + Mg

    flops = 2 * B * HW * (K1 * F + 9 * F * F + 9 * F * AC)
    bytes_accessed = (B * HW * K1p * 2
                      + (K1p * F + 9 * F * F + 9 * F * AC) * 2
                      + (F + F + AC) * 4
                      + B * HW * AC * 4)

    kernel = functools.partial(_cls_kernel, H=H, W=W, BB=BB, off=off)

    out = pl.pallas_call(
        kernel,
        out_shape=jax.ShapeDtypeStruct((B, HW, AC), jnp.float32),
        grid=(num_batch_blocks,),
        in_specs=[
            pl.BlockSpec((BB * HW, K1p), lambda i: (i, 0)),
            pl.BlockSpec((K1p, F), lambda i: (0, 0)),
            pl.BlockSpec((1, F), lambda i: (0, 0)),
            pl.BlockSpec((9 * F, F), lambda i: (0, 0)),
            pl.BlockSpec((1, F), lambda i: (0, 0)),
            pl.BlockSpec((9 * F, AC), lambda i: (0, 0)),
            pl.BlockSpec((1, AC), lambda i: (0, 0)),
        ],
        out_specs=pl.BlockSpec((BB, HW, AC), lambda i: (i, 0, 0)),
        scratch_shapes=[pltpu.VMEM((region_rows, F), jnp.float32)],
        compiler_params=pltpu.CompilerParams(
            dimension_semantics=("parallel",),
            vmem_limit_bytes=32 * 1024 * 1024),
        cost_estimate=pl.CostEstimate(
            flops=flops, transcendentals=0, bytes_accessed=bytes_accessed),
    )(x_col, w1c, b1f, w2c, b2f, w3c, b3f)

    # (B, H*W, A*C) is already the NHWC flat element order produced by
    # permute(0,2,3,1).view(B,H,W,A,C).view(B,-1,C), so this reshape is a pure
    # metadata change (no copy).
    return out.reshape(B, HW * num_anchor_points, num_classes)


def reference_forward(x_nchw, params, num_anchor_points, num_classes):
    """Pure-JAX reference (XLA convs, f32) for correctness checking."""
    w1, b1, w2, b2, w3, b3 = params
    x = jnp.transpose(x_nchw, (0, 2, 3, 1))
    dn = ("NHWC", "HWIO", "NHWC")

    def conv(h, w, b):
        return jax.lax.conv_general_dilated(
            h, w, (1, 1), "SAME", dimension_numbers=dn,
            precision=jax.lax.Precision.HIGHEST) + b[0]

    h = jax.nn.relu(conv(x, w1, b1))
    h = jax.nn.relu(conv(h, w2, b2))
    o = conv(h, w3, b3)
    B, H, W, _ = o.shape
    return o.reshape(B, H * W * num_anchor_points, num_classes)


if __name__ == "__main__":
    # Small shapes consistent with the module's constructor:
    #   num_features_in=4, feature_size=32, num_anchor_points=4, num_classes=8
    B, Cin, H, W = 2, 4, 16, 16
    F = 32      # feature_size
    A = 4       # num_anchor_points
    C = 8       # num_classes

    key = jax.random.PRNGKey(0)
    ks = jax.random.split(key, 7)
    x = jax.random.normal(ks[0], (B, Cin, H, W), jnp.float32)
    w1 = jax.random.normal(ks[1], (3, 3, Cin, F), jnp.float32) * 0.10
    b1 = jax.random.normal(ks[2], (1, F), jnp.float32) * 0.10
    w2 = jax.random.normal(ks[3], (3, 3, F, F), jnp.float32) * 0.05
    b2 = jax.random.normal(ks[4], (1, F), jnp.float32) * 0.10
    w3 = jax.random.normal(ks[5], (3, 3, F, A * C), jnp.float32) * 0.05
    b3 = jax.random.normal(ks[6], (1, A * C), jnp.float32) * 0.10
    params = (w1, b1, w2, b2, w3, b3)

    fwd = jax.jit(classification_model_forward, static_argnums=(2, 3))
    out = jax.block_until_ready(fwd(x, params, A, C))
    assert out.shape == (B, H * W * A, C), out.shape

    ref = jax.block_until_ready(reference_forward(x, params, A, C))
    # bf16 MXU inputs with f32 accumulation -> slightly looser tolerance.
    np.testing.assert_allclose(np.asarray(out), np.asarray(ref),
                               rtol=3e-2, atol=3e-2)

    print("KERNEL_OK")
</pallas_src>

<mosaic_0001>
module attributes {stable_mosaic.version = 11 : i64} {
  func.func @_cls_kernel(%arg0: i32, %arg1: memref<512x64xbf16, #tpu.memory_space<vmem>>, %arg2: memref<64x32xbf16, #tpu.memory_space<vmem>>, %arg3: memref<1x32xf32, #tpu.memory_space<vmem>>, %arg4: memref<288x32xbf16, #tpu.memory_space<vmem>>, %arg5: memref<1x32xf32, #tpu.memory_space<vmem>>, %arg6: memref<288x32xbf16, #tpu.memory_space<vmem>>, %arg7: memref<1x32xf32, #tpu.memory_space<vmem>>, %arg8: memref<2x256x32xf32, #tpu.memory_space<vmem>>, %arg9: memref<576x32xf32, #tpu.memory_space<vmem>>) attributes {dimension_semantics = [#tpu.dimension_semantics<parallel>], iteration_bounds = array<i64: 1>, scalar_prefetch = 0 : i64, scratch_operands = 1 : i64, tpu.core_type = #tpu.core_type<tc>, window_params = [{transform_indices = @transform_0, window_bounds = array<i64: 512, 64>}, {pipeline_mode = #tpu.pipeline_mode<synchronous>, transform_indices = @transform_1, window_bounds = array<i64: 64, 32>}, {pipeline_mode = #tpu.pipeline_mode<synchronous>, transform_indices = @transform_2, window_bounds = array<i64: 1, 32>}, {pipeline_mode = #tpu.pipeline_mode<synchronous>, transform_indices = @transform_3, window_bounds = array<i64: 288, 32>}, {pipeline_mode = #tpu.pipeline_mode<synchronous>, transform_indices = @transform_4, window_bounds = array<i64: 1, 32>}, {pipeline_mode = #tpu.pipeline_mode<synchronous>, transform_indices = @transform_5, window_bounds = array<i64: 288, 32>}, {pipeline_mode = #tpu.pipeline_mode<synchronous>, transform_indices = @transform_6, window_bounds = array<i64: 1, 32>}, {transform_indices = @transform_7, window_bounds = array<i64: 2, 256, 32>}]} {
    %cst = arith.constant 0.000000e+00 : f32
    %0 = vector.broadcast %cst : f32 to vector<24x32xf32>
    %c0 = arith.constant 0 : index
    %c0_0 = arith.constant 0 : index
    %1 = vector.load %arg9[%c0, %c0_0] : memref<576x32xf32, #tpu.memory_space<vmem>>, vector<24x32xf32>
    tpu.vector_store %arg9[%c0, %c0_0], %0 {strides = array<i32>} : memref<576x32xf32, #tpu.memory_space<vmem>>, vector<24x32xf32>,
    %cst_1 = arith.constant 0.000000e+00 : f32
    %2 = vector.broadcast %cst_1 : f32 to vector<16x32xf32>
    %c280 = arith.constant 280 : index
    %c0_2 = arith.constant 0 : index
    %3 = vector.load %arg9[%c280, %c0_2] : memref<576x32xf32, #tpu.memory_space<vmem>>, vector<16x32xf32>
    tpu.vector_store %arg9[%c280, %c0_2], %2 {strides = array<i32>} : memref<576x32xf32, #tpu.memory_space<vmem>>, vector<16x32xf32>,
    %cst_3 = arith.constant 0.000000e+00 : f32
    %4 = vector.broadcast %cst_3 : f32 to vector<24x32xf32>
    %c552 = arith.constant 552 : index
    %c0_4 = arith.constant 0 : index
    %5 = vector.load %arg9[%c552, %c0_4] : memref<576x32xf32, #tpu.memory_space<vmem>>, vector<24x32xf32>
    tpu.vector_store %arg9[%c552, %c0_4], %4 {strides = array<i32>} : memref<576x32xf32, #tpu.memory_space<vmem>>, vector<24x32xf32>,
    %6 = tpu.iota {dimensions = array<i32: 0>} : vector<560x1xi32>
    %c16_i32 = arith.constant 16 : i32
    %c0_i32 = arith.constant 0 : i32
    %7 = arith.cmpi eq, %c16_i32, %c0_i32 : i32
    %c1_i32 = arith.constant 1 : i32
    %8 = arith.select %7, %c1_i32, %c16_i32 : i32
    %9 = vector.broadcast %8 : i32 to vector<560x1xi32>
    %10 = arith.remsi %6, %9 : vector<560x1xi32>
    %c0_i32_5 = arith.constant 0 : i32
    %11 = vector.broadcast %c0_i32_5 : i32 to vector<560x1xi32>
    %12 = arith.cmpi ne, %10, %11 : vector<560x1xi32>
    %c0_i32_6 = arith.constant 0 : i32
    %13 = vector.broadcast %c0_i32_6 : i32 to vector<560x1xi32>
    %14 = arith.cmpi slt, %10, %13 : vector<560x1xi32>
    %c0_i32_7 = arith.constant 0 : i32
    %15 = arith.cmpi slt, %8, %c0_i32_7 : i32
    %16 = vector.broadcast %15 : i1 to vector<560x1xi1>
    %17 = vector.broadcast %16 : vector<560x1xi1> to vector<560x1xi1>
    %18 = arith.xori %14, %17 : vector<560x1xi1>
    %19 = arith.andi %18, %12 : vector<560x1xi1>
    %20 = vector.broadcast %8 : i32 to vector<560x1xi32>
    %21 = arith.addi %10, %20 : vector<560x1xi32>
    %22 = arith.select %19, %21, %10 : vector<560x1xi1>, vector<560x1xi32>
    %c0_i32_8 = arith.constant 0 : i32
    %23 = vector.broadcast %c0_i32_8 : i32 to vector<560x1xi32>
    %24 = arith.cmpi ne, %22, %23 : vector<560x1xi32>
    %25 = arith.extui %24 : vector<560x1xi1> to vector<560x1xi32>
    %26 = arith.sitofp %25 : vector<560x1xi32> to vector<560x1xf32>
    %c15_i32 = arith.constant 15 : i32
    %27 = vector.broadcast %c15_i32 : i32 to vector<560x1xi32>
    %28 = arith.cmpi ne, %22, %27 : vector<560x1xi32>
    %29 = arith.extui %28 : vector<560x1xi1> to vector<560x1xi32>
    %30 = arith.sitofp %29 : vector<560x1xi32> to vector<560x1xf32>
    %c0_9 = arith.constant 0 : index
    %c0_10 = arith.constant 0 : index
    %31 = vector.load %arg1[%c0_9, %c0_10] : memref<512x64xbf16, #tpu.memory_space<vmem>>, vector<512x64xbf16>
    %c0_11 = arith.constant 0 : index
    %c0_12 = arith.constant 0 : index
    %32 = vector.load %arg2[%c0_11, %c0_12] : memref<64x32xbf16, #tpu.memory_space<vmem>>, vector<64x32xbf16>
    %cst_13 = arith.constant dense<0.000000e+00> : vector<512x32xf32>
    %33 = tpu.matmul %31, %32, %cst_13 {dimension_numbers = #tpu.dot_dimension_numbers<[1], [0], [0], [1], [0, 0, 1, 1], [], []>} : vector<512x64xbf16>, vector<64x32xbf16>, vector<512x32xf32> -> vector<512x32xf32>
    %c0_14 = arith.constant 0 : index
    %c0_15 = arith.constant 0 : index
    %34 = vector.load %arg3[%c0_14, %c0_15] : memref<1x32xf32, #tpu.memory_space<vmem>>, vector<1x32xf32>
    %35 = vector.broadcast %34 : vector<1x32xf32> to vector<512x32xf32>
    %36 = arith.addf %33, %35 : vector<512x32xf32>
    %cst_16 = arith.constant 0.000000e+00 : f32
    %37 = vector.broadcast %cst_16 : f32 to vector<512x32xf32>
    %38 = arith.maximumf %36, %37 : vector<512x32xf32>
    %39 = vector.extract_strided_slice %38 {offsets = [0, 0], sizes = [256, 32], strides = [1, 1]} : vector<512x32xf32> to vector<256x32xf32>
    %40 = vector.extract_strided_slice %38 {offsets = [256, 0], sizes = [256, 32], strides = [1, 1]} : vector<512x32xf32> to vector<256x32xf32>
    %c24 = arith.constant 24 : index
    %c0_17 = arith.constant 0 : index
    %41 = vector.load %arg9[%c24, %c0_17] : memref<576x32xf32, #tpu.memory_space<vmem>>, vector<256x32xf32>
    tpu.vector_store %arg9[%c24, %c0_17], %39 {strides = array<i32>} : memref<576x32xf32, #tpu.memory_space<vmem>>, vector<256x32xf32>,
    %c296 = arith.constant 296 : index
    %c0_18 = arith.constant 0 : index
    %42 = vector.load %arg9[%c296, %c0_18] : memref<576x32xf32, #tpu.memory_space<vmem>>, vector<256x32xf32>
    tpu.vector_store %arg9[%c296, %c0_18], %40 {strides = array<i32>} : memref<576x32xf32, #tpu.memory_space<vmem>>, vector<256x32xf32>,
    %c8 = arith.constant 8 : index
    %c0_19 = arith.constant 0 : index
    %43 = vector.load %arg9[%c8, %c0_19] : memref<576x32xf32, #tpu.memory_space<vmem>>, vector<560x32xf32>
    %44 = arith.truncf %43 : vector<560x32xf32> to vector<560x32xbf16>
    %c7 = arith.constant 7 : index
    %c0_20 = arith.constant 0 : index
    %45 = vector.load %arg9[%c7, %c0_20] : memref<576x32xf32, #tpu.memory_space<vmem>>, vector<560x32xf32>
    %46 = vector.broadcast %26 : vector<560x1xf32> to vector<560x32xf32>
    %47 = arith.mulf %45, %46 : vector<560x32xf32>
    %48 = arith.truncf %47 : vector<560x32xf32> to vector<560x32xbf16>
    %c9 = arith.constant 9 : index
    %c0_21 = arith.constant 0 : index
    %49 = vector.load %arg9[%c9, %c0_21] : memref<576x32xf32, #tpu.memory_space<vmem>>, vector<560x32xf32>
    %50 = vector.broadcast %30 : vector<560x1xf32> to vector<560x32xf32>
    %51 = arith.mulf %49, %50 : vector<560x32xf32>
    %52 = arith.truncf %51 : vector<560x32xf32> to vector<560x32xbf16>
    %53 = vector.extract_strided_slice %48 {offsets = [0, 0], sizes = [528, 32], strides = [1, 1]} : vector<560x32xbf16> to vector<528x32xbf16>
    %54 = vector.extract_strided_slice %44 {offsets = [0, 0], sizes = [528, 32], strides = [1, 1]} : vector<560x32xbf16> to vector<528x32xbf16>
    %55 = vector.extract_strided_slice %52 {offsets = [0, 0], sizes = [528, 32], strides = [1, 1]} : vector<560x32xbf16> to vector<528x32xbf16>
    %56 = vector.extract_strided_slice %48 {offsets = [16, 0], sizes = [528, 32], strides = [1, 1]} : vector<560x32xbf16> to vector<528x32xbf16>
    %57 = vector.extract_strided_slice %44 {offsets = [16, 0], sizes = [528, 32], strides = [1, 1]} : vector<560x32xbf16> to vector<528x32xbf16>
    %58 = vector.extract_strided_slice %52 {offsets = [16, 0], sizes = [528, 32], strides = [1, 1]} : vector<560x32xbf16> to vector<528x32xbf16>
    %59 = vector.extract_strided_slice %48 {offsets = [32, 0], sizes = [528, 32], strides = [1, 1]} : vector<560x32xbf16> to vector<528x32xbf16>
    %60 = vector.extract_strided_slice %44 {offsets = [32, 0], sizes = [528, 32], strides = [1, 1]} : vector<560x32xbf16> to vector<528x32xbf16>
    %61 = vector.extract_strided_slice %52 {offsets = [32, 0], sizes = [528, 32], strides = [1, 1]} : vector<560x32xbf16> to vector<528x32xbf16>
    %62 = tpu.concatenate %53, %54, %55, %56, %57, %58, %59, %60, %61 in 1 : vector<528x32xbf16>, vector<528x32xbf16>, vector<528x32xbf16>, vector<528x32xbf16>, vector<528x32xbf16>, vector<528x32xbf16>, vector<528x32xbf16>, vector<528x32xbf16>, vector<528x32xbf16> -> vector<528x288xbf16>
    %c0_22 = arith.constant 0 : index
    %c0_23 = arith.constant 0 : index
    %63 = vector.load %arg4[%c0_22, %c0_23] : memref<288x32xbf16, #tpu.memory_space<vmem>>, vector<288x32xbf16>
    %cst_24 = arith.constant dense<0.000000e+00> : vector<528x32xf32>
    %64 = tpu.matmul %62, %63, %cst_24 {dimension_numbers = #tpu.dot_dimension_numbers<[1], [0], [0], [1], [0, 0, 1, 1], [], []>} : vector<528x288xbf16>, vector<288x32xbf16>, vector<528x32xf32> -> vector<528x32xf32>
    %c0_25 = arith.constant 0 : index
    %c0_26 = arith.constant 0 : index
    %65 = vector.load %arg5[%c0_25, %c0_26] : memref<1x32xf32, #tpu.memory_space<vmem>>, vector<1x32xf32>
    %66 = vector.broadcast %65 : vector<1x32xf32> to vector<528x32xf32>
    %67 = arith.addf %64, %66 : vector<528x32xf32>
    %cst_27 = arith.constant 0.000000e+00 : f32
    %68 = vector.broadcast %cst_27 : f32 to vector<528x32xf32>
    %69 = arith.maximumf %67, %68 : vector<528x32xf32>
    %70 = vector.extract_strided_slice %69 {offsets = [0, 0], sizes = [256, 32], strides = [1, 1]} : vector<528x32xf32> to vector<256x32xf32>
    %71 = vector.extract_strided_slice %69 {offsets = [272, 0], sizes = [256, 32], strides = [1, 1]} : vector<528x32xf32> to vector<256x32xf32>
    %c24_28 = arith.constant 24 : index
    %c0_29 = arith.constant 0 : index
    %72 = vector.load %arg9[%c24_28, %c0_29] : memref<576x32xf32, #tpu.memory_space<vmem>>, vector<256x32xf32>
    tpu.vector_store %arg9[%c24_28, %c0_29], %70 {strides = array<i32>} : memref<576x32xf32, #tpu.memory_space<vmem>>, vector<256x32xf32>,
    %c296_30 = arith.constant 296 : index
    %c0_31 = arith.constant 0 : index
    %73 = vector.load %arg9[%c296_30, %c0_31] : memref<576x32xf32, #tpu.memory_space<vmem>>, vector<256x32xf32>
    tpu.vector_store %arg9[%c296_30, %c0_31], %71 {strides = array<i32>} : memref<576x32xf32, #tpu.memory_space<vmem>>, vector<256x32xf32>,
    %c8_32 = arith.constant 8 : index
    %c0_33 = arith.constant 0 : index
    %74 = vector.load %arg9[%c8_32, %c0_33] : memref<576x32xf32, #tpu.memory_space<vmem>>, vector<560x32xf32>
    %75 = arith.truncf %74 : vector<560x32xf32> to vector<560x32xbf16>
    %c7_34 = arith.constant 7 : index
    %c0_35 = arith.constant 0 : index
    %76 = vector.load %arg9[%c7_34, %c0_35] : memref<576x32xf32, #tpu.memory_space<vmem>>, vector<560x32xf32>
    %77 = vector.broadcast %26 : vector<560x1xf32> to vector<560x32xf32>
    %78 = arith.mulf %76, %77 : vector<560x32xf32>
    %79 = arith.truncf %78 : vector<560x32xf32> to vector<560x32xbf16>
    %c9_36 = arith.constant 9 : index
    %c0_37 = arith.constant 0 : index
    %80 = vector.load %arg9[%c9_36, %c0_37] : memref<576x32xf32, #tpu.memory_space<vmem>>, vector<560x32xf32>
    %81 = vector.broadcast %30 : vector<560x1xf32> to vector<560x32xf32>
    %82 = arith.mulf %80, %81 : vector<560x32xf32>
    %83 = arith.truncf %82 : vector<560x32xf32> to vector<560x32xbf16>
    %84 = vector.extract_strided_slice %79 {offsets = [0, 0], sizes = [528, 32], strides = [1, 1]} : vector<560x32xbf16> to vector<528x32xbf16>
    %85 = vector.extract_strided_slice %75 {offsets = [0, 0], sizes = [528, 32], strides = [1, 1]} : vector<560x32xbf16> to vector<528x32xbf16>
    %86 = vector.extract_strided_slice %83 {offsets = [0, 0], sizes = [528, 32], strides = [1, 1]} : vector<560x32xbf16> to vector<528x32xbf16>
    %87 = vector.extract_strided_slice %79 {offsets = [16, 0], sizes = [528, 32], strides = [1, 1]} : vector<560x32xbf16> to vector<528x32xbf16>
    %88 = vector.extract_strided_slice %75 {offsets = [16, 0], sizes = [528, 32], strides = [1, 1]} : vector<560x32xbf16> to vector<528x32xbf16>
    %89 = vector.extract_strided_slice %83 {offsets = [16, 0], sizes = [528, 32], strides = [1, 1]} : vector<560x32xbf16> to vector<528x32xbf16>
    %90 = vector.extract_strided_slice %79 {offsets = [32, 0], sizes = [528, 32], strides = [1, 1]} : vector<560x32xbf16> to vector<528x32xbf16>
    %91 = vector.extract_strided_slice %75 {offsets = [32, 0], sizes = [528, 32], strides = [1, 1]} : vector<560x32xbf16> to vector<528x32xbf16>
    %92 = vector.extract_strided_slice %83 {offsets = [32, 0], sizes = [528, 32], strides = [1, 1]} : vector<560x32xbf16> to vector<528x32xbf16>
    %93 = tpu.concatenate %84, %85, %86, %87, %88, %89, %90, %91, %92 in 1 : vector<528x32xbf16>, vector<528x32xbf16>, vector<528x32xbf16>, vector<528x32xbf16>, vector<528x32xbf16>, vector<528x32xbf16>, vector<528x32xbf16>, vector<528x32xbf16>, vector<528x32xbf16> -> vector<528x288xbf16>
    %c0_38 = arith.constant 0 : index
    %c0_39 = arith.constant 0 : index
    %94 = vector.load %arg6[%c0_38, %c0_39] : memref<288x32xbf16, #tpu.memory_space<vmem>>, vector<288x32xbf16>
    %cst_40 = arith.constant dense<0.000000e+00> : vector<528x32xf32>
    %95 = tpu.matmul %93, %94, %cst_40 {dimension_numbers = #tpu.dot_dimension_numbers<[1], [0], [0], [1], [0, 0, 1, 1], [], []>} : vector<528x288xbf16>, vector<288x32xbf16>, vector<528x32xf32> -> vector<528x32xf32>
    %c0_41 = arith.constant 0 : index
    %c0_42 = arith.constant 0 : index
    %96 = vector.load %arg7[%c0_41, %c0_42] : memref<1x32xf32, #tpu.memory_space<vmem>>, vector<1x32xf32>
    %97 = vector.broadcast %96 : vector<1x32xf32> to vector<528x32xf32>
    %98 = arith.addf %95, %97 : vector<528x32xf32>
    %99 = vector.extract_strided_slice %98 {offsets = [0, 0], sizes = [256, 32], strides = [1, 1]} : vector<528x32xf32> to vector<256x32xf32>
    %c0_43 = arith.constant 0 : index
    %c0_44 = arith.constant 0 : index
    %c0_45 = arith.constant 0 : index
    %100 = vector.load %arg8[%c0_43, %c0_44, %c0_45] : memref<2x256x32xf32, #tpu.memory_space<vmem>>, vector<1x256x32xf32>
    %101 = vector.shape_cast %100 : vector<1x256x32xf32> to vector<256x32xf32>
    %102 = vector.shape_cast %99 : vector<256x32xf32> to vector<1x256x32xf32>
    tpu.vector_store %arg8[%c0_43, %c0_44, %c0_45], %102 {strides = array<i32>} : memref<2x256x32xf32, #tpu.memory_space<vmem>>, vector<1x256x32xf32>,
    %103 = vector.extract_strided_slice %98 {offsets = [272, 0], sizes = [256, 32], strides = [1, 1]} : vector<528x32xf32> to vector<256x32xf32>
    %c1 = arith.constant 1 : index
    %c0_46 = arith.constant 0 : index
    %c0_47 = arith.constant 0 : index
    %104 = vector.load %arg8[%c1, %c0_46, %c0_47] : memref<2x256x32xf32, #tpu.memory_space<vmem>>, vector<1x256x32xf32>
    %105 = vector.shape_cast %104 : vector<1x256x32xf32> to vector<256x32xf32>
    %106 = vector.shape_cast %103 : vector<256x32xf32> to vector<1x256x32xf32>
    tpu.vector_store %arg8[%c1, %c0_46, %c0_47], %106 {strides = array<i32>} : memref<2x256x32xf32, #tpu.memory_space<vmem>>, vector<1x256x32xf32>,
    return
  }
  func.func @transform_0(%arg0: i32) -> (i32, i32) {
    %c0_i32 = arith.constant 0 : i32
    %c0_i32_0 = arith.constant 0 : i32
    return %arg0, %c0_i32 : i32, i32
  }
  func.func @transform_1(%arg0: i32) -> (i32, i32) {
    %c0_i32 = arith.constant 0 : i32
    %c0_i32_0 = arith.constant 0 : i32
    %c0_i32_1 = arith.constant 0 : i32
    return %c0_i32, %c0_i32_0 : i32, i32
  }
  func.func @transform_2(%arg0: i32) -> (i32, i32) {
    %c0_i32 = arith.constant 0 : i32
    %c0_i32_0 = arith.constant 0 : i32
    %c0_i32_1 = arith.constant 0 : i32
    return %c0_i32, %c0_i32_0 : i32, i32
  }
  func.func @transform_3(%arg0: i32) -> (i32, i32) {
    %c0_i32 = arith.constant 0 : i32
    %c0_i32_0 = arith.constant 0 : i32
    %c0_i32_1 = arith.constant 0 : i32
    return %c0_i32, %c0_i32_0 : i32, i32
  }
  func.func @transform_4(%arg0: i32) -> (i32, i32) {
    %c0_i32 = arith.constant 0 : i32
    %c0_i32_0 = arith.constant 0 : i32
    %c0_i32_1 = arith.constant 0 : i32
    return %c0_i32, %c0_i32_0 : i32, i32
  }
  func.func @transform_5(%arg0: i32) -> (i32, i32) {
    %c0_i32 = arith.constant 0 : i32
    %c0_i32_0 = arith.constant 0 : i32
    %c0_i32_1 = arith.constant 0 : i32
    return %c0_i32, %c0_i32_0 : i32, i32
  }
  func.func @transform_6(%arg0: i32) -> (i32, i32) {
    %c0_i32 = arith.constant 0 : i32
    %c0_i32_0 = arith.constant 0 : i32
    %c0_i32_1 = arith.constant 0 : i32
    return %c0_i32, %c0_i32_0 : i32, i32
  }
  func.func @transform_7(%arg0: i32) -> (i32, i32, i32) {
    %c0_i32 = arith.constant 0 : i32
    %c0_i32_0 = arith.constant 0 : i32
    %c0_i32_1 = arith.constant 0 : i32
    return %arg0, %c0_i32, %c0_i32_0 : i32, i32, i32
  }
}

</mosaic_0001>

<llo_original>
// kernel: classification_model_forward.1
$region0: #{classification_model_forward.1}
  #allocation0 [shape = 'u32[]', space=smem, size = 0x4, offset = 0x4, fixed_abs, tag = 'smem constant byte address 0x4 - core index']
  #allocation1 [shape = 'u32[144,128]{1,0:T(1,128)}', space=vmem, size = 0x12000, scoped, tag = 'internal scratch']
  #allocation2 [shape = 'f32[576,32]{1,0:T(8,128)}', space=vmem, size = 0x48000, scoped, tag = 'scratch operand']
  %s0 = inlined_call_operand.vmem [shape: bf16[512,64], index: 0, kind: input, shape index: {}]
  %s1 = inlined_call_operand.vmem [shape: bf16[64,32], index: 1, kind: input, shape index: {}]
  %s2 = inlined_call_operand.vmem [shape: f32[1,32], index: 2, kind: input, shape index: {}]
  %s3 = inlined_call_operand.vmem [shape: bf16[288,32], index: 3, kind: input, shape index: {}]
  %s4 = inlined_call_operand.vmem [shape: f32[1,32], index: 4, kind: input, shape index: {}]
  %s5 = inlined_call_operand.vmem [shape: bf16[288,32], index: 5, kind: input, shape index: {}]
  %s6 = inlined_call_operand.vmem [shape: f32[1,32], index: 6, kind: input, shape index: {}]
  %s7 = inlined_call_operand.vmem [shape: f32[2,256,32], index: 7, kind: output, shape index: {}]
  %s8 = sld [smem:[#allocation0]]
  $region38: #{classification_model_forward.1} parent=0
    _
  %s10 = ssub.s32 1, %s8
  %s11 = scalar_select 0, %s10, %s8
  // Predicated region
  $region2: #{classification_model_forward.1} parent=0 // pred_check
    _
  $region3: #{classification_model_forward.1} parent=0 // pred_check_branch
    %13 = sbr.rel (0) target = $region5
  $region4: #{classification_model_forward.1} parent=0 // pred_region
    _
  $region5: #{classification_model_forward.1} parent=0 // pred_fallthru
    _
  // Predicated region
  $region6: #{classification_model_forward.1} parent=0 // pred_check
    _
  $region7: #{classification_model_forward.1} parent=0 // pred_check_branch
    %15 = sbr.rel (0) target = $region9
  $region8: #{classification_model_forward.1} parent=0 // pred_region
    _
  $region9: #{classification_model_forward.1} parent=0 // pred_fallthru
    _
  // Predicated region
  $region10: #{classification_model_forward.1} parent=0 // pred_check
    _
  $region11: #{classification_model_forward.1} parent=0 // pred_check_branch
    %17 = sbr.rel (0) target = $region13
  $region12: #{classification_model_forward.1} parent=0 // pred_region
    _
  $region13: #{classification_model_forward.1} parent=0 // pred_fallthru
    _
  // Predicated region
  $region14: #{classification_model_forward.1} parent=0 // pred_check
    _
  $region15: #{classification_model_forward.1} parent=0 // pred_check_branch
    %19 = sbr.rel (0) target = $region17
  $region16: #{classification_model_forward.1} parent=0 // pred_region
    _
  $region17: #{classification_model_forward.1} parent=0 // pred_fallthru
    _
  // Predicated region
  $region18: #{classification_model_forward.1} parent=0 // pred_check
    _
  $region19: #{classification_model_forward.1} parent=0 // pred_check_branch
    %21 = sbr.rel (0) target = $region21
  $region20: #{classification_model_forward.1} parent=0 // pred_region
    _
  $region21: #{classification_model_forward.1} parent=0 // pred_fallthru
    _
  // Predicated region
  $region22: #{classification_model_forward.1} parent=0 // pred_check
    _
  $region23: #{classification_model_forward.1} parent=0 // pred_check_branch
    %23 = sbr.rel (0) target = $region25
  $region24: #{classification_model_forward.1} parent=0 // pred_region
    _
  $region25: #{classification_model_forward.1} parent=0 // pred_fallthru
    _
  // Predicated region
  $region26: #{classification_model_forward.1} parent=0 // pred_check
    _
  $region27: #{classification_model_forward.1} parent=0 // pred_check_branch
    %25 = sbr.rel (0) target = $region29
  $region28: #{classification_model_forward.1} parent=0 // pred_region
    _
  $region29: #{classification_model_forward.1} parent=0 // pred_fallthru
    _
  %vm27 = vcmask 261120
  %28 = vst.msk [vmem:[#allocation2] sm:$0xff] %vm27, 0.0
  %29 = vst.msk [vmem:[#allocation2 + $0x8] sm:$0xff] %vm27, 0.0
  %30 = vst.msk [vmem:[#allocation2 + $0x10] sm:$0xff] %vm27, 0.0
  %31 = vst.msk [vmem:[#allocation2 + $0x118] sm:$0xff] %vm27, 0.0
  %32 = vst.msk [vmem:[#allocation2 + $0x120] sm:$0xff] %vm27, 0.0
  %33 = vst.msk [vmem:[#allocation2 + $0x228] sm:$0xff] %vm27, 0.0
  %34 = vst.msk [vmem:[#allocation2 + $0x230] sm:$0xff] %vm27, 0.0
  %35 = vst.msk [vmem:[#allocation2 + $0x238] sm:$0xff] %vm27, 0.0
  %v36 = vlaneseq
  %v37 = vshrl.u32 %v36, 7
  %v38 = vadd.s32 %v37, 8
  %v39 = vadd.s32 %v37, 16
  %v40 = vadd.s32 %v37, 24
  %v41 = vadd.s32 %v37, 32
  %v42 = vadd.s32 %v37, 40
  %v43 = vadd.s32 %v37, 48
  %v44 = vadd.s32 %v37, 56
  %v45 = vadd.s32 %v37, 64
  %v46 = vadd.s32 %v37, 72
  %v47 = vadd.s32 %v37, 80
  %v48 = vadd.s32 %v37, 88
  %v49 = vadd.s32 %v37, 96
  %v50 = vadd.s32 %v37, 104
  %v51 = vadd.s32 %v37, 112
  %v52 = vadd.s32 %v37, 120
  %v53 = vadd.s32 %v37, 128
  %v54 = vadd.s32 %v37, 136
  %v55 = vadd.s32 %v37, 144
  %v56 = vadd.s32 %v37, 152
  %v57 = vadd.s32 %v37, 160
  %v58 = vadd.s32 %v37, 168
  %v59 = vadd.s32 %v37, 176
  %v60 = vadd.s32 %v37, 184
  %v61 = vadd.s32 %v37, 192
  %v62 = vadd.s32 %v37, 200
  %v63 = vadd.s32 %v37, 208
  %v64 = vadd.s32 %v37, 216
  %v65 = vadd.s32 %v37, 224
  %v66 = vadd.s32 %v37, 232
  %v67 = vadd.s32 %v37, 240
  %v68 = vadd.s32 %v37, 248
  %v69 = vadd.s32 %v37, 256
  %v70 = vadd.s32 %v37, 264
  %v71 = vadd.s32 %v37, 272
  %v72 = vadd.s32 %v37, 280
  %v73 = vadd.s32 %v37, 288
  %v74 = vadd.s32 %v37, 296
  %v75 = vadd.s32 %v37, 304
  %v76 = vadd.s32 %v37, 312
  %v77 = vadd.s32 %v37, 320
  %v78 = vadd.s32 %v37, 328
  %v79 = vadd.s32 %v37, 336
  %v80 = vadd.s32 %v37, 344
  %v81 = vadd.s32 %v37, 352
  %v82 = vadd.s32 %v37, 360
  %v83 = vadd.s32 %v37, 368
  %v84 = vadd.s32 %v37, 376
  %v85 = vadd.s32 %v37, 384
  %v86 = vadd.s32 %v37, 392
  %v87 = vadd.s32 %v37, 400
  %v88 = vadd.s32 %v37, 408
  %v89 = vadd.s32 %v37, 416
  %v90 = vadd.s32 %v37, 424
  %v91 = vadd.s32 %v37, 432
  %v92 = vadd.s32 %v37, 440
  %v93 = vadd.s32 %v37, 448
  %v94 = vadd.s32 %v37, 456
  %v95 = vadd.s32 %v37, 464
  %v96 = vadd.s32 %v37, 472
  %v97 = vadd.s32 %v37, 480
  %v98 = vadd.s32 %v37, 488
  %v99 = vadd.s32 %v37, 496
  %v100 = vadd.s32 %v37, 504
  %v101 = vadd.s32 %v37, 512
  %v102 = vadd.s32 %v37, 520
  %v103 = vadd.s32 %v37, 528
  %v104 = vadd.s32 %v37, 536
  %v105 = vadd.s32 %v37, 544
  %v106 = vadd.s32 %v37, 552
  %vm107 = vcmp.lt.s32.totalorder %v37, 0
  %v108 = vsub.s32 0, %v37
  %v109 = vsel %vm107, %v108, %v37
  %v110 = vshrl.u32 %v109, 4
  %v111 = vand.u32 %v109, 15
  %v112 = vsub.s32 0, %v111
  %v113 = vsel %vm107, %v112, %v111
  %vm114 = vcmp.lt.s32.totalorder %v38, 0
  %v115 = vsub.s32 0, %v38
  %v116 = vsel %vm114, %v115, %v38
  %v117 = vshrl.u32 %v116, 4
  %v118 = vand.u32 %v116, 15
  %v119 = vsub.s32 0, %v118
  %v120 = vsel %vm114, %v119, %v118
  %vm121 = vcmp.lt.s32.totalorder %v39, 0
  %v122 = vsub.s32 0, %v39
  %v123 = vsel %vm121, %v122, %v39
  %v124 = vshrl.u32 %v123, 4
  %v125 = vand.u32 %v123, 15
  %v126 = vsub.s32 0, %v125
  %v127 = vsel %vm121, %v126, %v125
  %vm128 = vcmp.lt.s32.totalorder %v40, 0
  %v129 = vsub.s32 0, %v40
  %v130 = vsel %vm128, %v129, %v40
  %v131 = vshrl.u32 %v130, 4
  %v132 = vand.u32 %v130, 15
  %v133 = vsub.s32 0, %v132
  %v134 = vsel %vm128, %v133, %v132
  %vm135 = vcmp.lt.s32.totalorder %v41, 0
  %v136 = vsub.s32 0, %v41
  %v137 = vsel %vm135, %v136, %v41
  %v138 = vshrl.u32 %v137, 4
  %v139 = vand.u32 %v137, 15
  %v140 = vsub.s32 0, %v139
  %v141 = vsel %vm135, %v140, %v139
  %vm142 = vcmp.lt.s32.totalorder %v42, 0
  %v143 = vsub.s32 0, %v42
  %v144 = vsel %vm142, %v143, %v42
  %v145 = vshrl.u32 %v144, 4
  %v146 = vand.u32 %v144, 15
  %v147 = vsub.s32 0, %v146
  %v148 = vsel %vm142, %v147, %v146
  %vm149 = vcmp.lt.s32.totalorder %v43, 0
  %v150 = vsub.s32 0, %v43
  %v151 = vsel %vm149, %v150, %v43
  %v152 = vshrl.u32 %v151, 4
  %v153 = vand.u32 %v151, 15
  %v154 = vsub.s32 0, %v153
  %v155 = vsel %vm149, %v154, %v153
  %vm156 = vcmp.lt.s32.totalorder %v44, 0
  %v157 = vsub.s32 0, %v44
  %v158 = vsel %vm156, %v157, %v44
  %v159 = vshrl.u32 %v158, 4
  %v160 = vand.u32 %v158, 15
  %v161 = vsub.s32 0, %v160
  %v162 = vsel %vm156, %v161, %v160
  %vm163 = vcmp.lt.s32.totalorder %v45, 0
  %v164 = vsub.s32 0, %v45
  %v165 = vsel %vm163, %v164, %v45
  %v166 = vshrl.u32 %v165, 4
  %v167 = vand.u32 %v165, 15
  %v168 = vsub.s32 0, %v167
  %v169 = vsel %vm163, %v168, %v167
  %vm170 = vcmp.lt.s32.totalorder %v46, 0
  %v171 = vsub.s32 0, %v46
  %v172 = vsel %vm170, %v171, %v46
  %v173 = vshrl.u32 %v172, 4
  %v174 = vand.u32 %v172, 15
  %v175 = vsub.s32 0, %v174
  %v176 = vsel %vm170, %v175, %v174
  %vm177 = vcmp.lt.s32.totalorder %v47, 0
  %v178 = vsub.s32 0, %v47
  %v179 = vsel %vm177, %v178, %v47
  %v180 = vshrl.u32 %v179, 4
  %v181 = vand.u32 %v179, 15
  %v182 = vsub.s32 0, %v181
  %v183 = vsel %vm177, %v182, %v181
  %vm184 = vcmp.lt.s32.totalorder %v48, 0
  %v185 = vsub.s32 0, %v48
  %v186 = vsel %vm184, %v185, %v48
  %v187 = vshrl.u32 %v186, 4
  %v188 = vand.u32 %v186, 15
  %v189 = vsub.s32 0, %v188
  %v190 = vsel %vm184, %v189, %v188
  %vm191 = vcmp.lt.s32.totalorder %v49, 0
  %v192 = vsub.s32 0, %v49
  %v193 = vsel %vm191, %v192, %v49
  %v194 = vshrl.u32 %v193, 4
  %v195 = vand.u32 %v193, 15
  %v196 = vsub.s32 0, %v195
  %v197 = vsel %vm191, %v196, %v195
  %vm198 = vcmp.lt.s32.totalorder %v50, 0
  %v199 = vsub.s32 0, %v50
  %v200 = vsel %vm198, %v199, %v50
  %v201 = vshrl.u32 %v200, 4
  %v202 = vand.u32 %v200, 15
  %v203 = vsub.s32 0, %v202
  %v204 = vsel %vm198, %v203, %v202
  %vm205 = vcmp.lt.s32.totalorder %v51, 0
  %v206 = vsub.s32 0, %v51
  %v207 = vsel %vm205, %v206, %v51
  %v208 = vshrl.u32 %v207, 4
  %v209 = vand.u32 %v207, 15
  %v210 = vsub.s32 0, %v209
  %v211 = vsel %vm205, %v210, %v209
  %vm212 = vcmp.lt.s32.totalorder %v52, 0
  %v213 = vsub.s32 0, %v52
  %v214 = vsel %vm212, %v213, %v52
  %v215 = vshrl.u32 %v214, 4
  %v216 = vand.u32 %v214, 15
  %v217 = vsub.s32 0, %v216
  %v218 = vsel %vm212, %v217, %v216
  %vm219 = vcmp.lt.s32.totalorder %v53, 0
  %v220 = vsub.s32 0, %v53
  %v221 = vsel %vm219, %v220, %v53
  %v222 = vshrl.u32 %v221, 4
  %v223 = vand.u32 %v221, 15
  %v224 = vsub.s32 0, %v223
  %v225 = vsel %vm219, %v224, %v223
  %vm226 = vcmp.lt.s32.totalorder %v54, 0
  %v227 = vsub.s32 0, %v54
  %v228 = vsel %vm226, %v227, %v54
  %v229 = vshrl.u32 %v228, 4
  %v230 = vand.u32 %v228, 15
  %v231 = vsub.s32 0, %v230
  %v232 = vsel %vm226, %v231, %v230
  %vm233 = vcmp.lt.s32.totalorder %v55, 0
  %v234 = vsub.s32 0, %v55
  %v235 = vsel %vm233, %v234, %v55
  %v236 = vshrl.u32 %v235, 4
  %v237 = vand.u32 %v235, 15
  %v238 = vsub.s32 0, %v237
  %v239 = vsel %vm233, %v238, %v237
  %vm240 = vcmp.lt.s32.totalorder %v56, 0
  %v241 = vsub.s32 0, %v56
  %v242 = vsel %vm240, %v241, %v56
  %v243 = vshrl.u32 %v242, 4
  %v244 = vand.u32 %v242, 15
  %v245 = vsub.s32 0, %v244
  %v246 = vsel %vm240, %v245, %v244
  %vm247 = vcmp.lt.s32.totalorder %v57, 0
  %v248 = vsub.s32 0, %v57
  %v249 = vsel %vm247, %v248, %v57
  %v250 = vshrl.u32 %v249, 4
  %v251 = vand.u32 %v249, 15
  %v252 = vsub.s32 0, %v251
  %v253 = vsel %vm247, %v252, %v251
  %vm254 = vcmp.lt.s32.totalorder %v58, 0
  %v255 = vsub.s32 0, %v58
  %v256 = vsel %vm254, %v255, %v58
  %v257 = vshrl.u32 %v256, 4
  %v258 = vand.u32 %v256, 15
  %v259 = vsub.s32 0, %v258
  %v260 = vsel %vm254, %v259, %v258
  %vm261 = vcmp.lt.s32.totalorder %v59, 0
  %v262 = vsub.s32 0, %v59
  %v263 = vsel %vm261, %v262, %v59
  %v264 = vshrl.u32 %v263, 4
  %v265 = vand.u32 %v263, 15
  %v266 = vsub.s32 0, %v265
  %v267 = vsel %vm261, %v266, %v265
  %vm268 = vcmp.lt.s32.totalorder %v60, 0
  %v269 = vsub.s32 0, %v60
  %v270 = vsel %vm268, %v269, %v60
  %v271 = vshrl.u32 %v270, 4
  %v272 = vand.u32 %v270, 15
  %v273 = vsub.s32 0, %v272
  %v274 = vsel %vm268, %v273, %v272
  %vm275 = vcmp.lt.s32.totalorder %v61, 0
  %v276 = vsub.s32 0, %v61
  %v277 = vsel %vm275, %v276, %v61
  %v278 = vshrl.u32 %v277, 4
  %v279 = vand.u32 %v277, 15
  %v280 = vsub.s32 0, %v279
  %v281 = vsel %vm275, %v280, %v279
  %vm282 = vcmp.lt.s32.totalorder %v62, 0
  %v283 = vsub.s32 0, %v62
  %v284 = vsel %vm282, %v283, %v62
  %v285 = vshrl.u32 %v284, 4
  %v286 = vand.u32 %v284, 15
  %v287 = vsub.s32 0, %v286
  %v288 = vsel %vm282, %v287, %v286
  %vm289 = vcmp.lt.s32.totalorder %v63, 0
  %v290 = vsub.s32 0, %v63
  %v291 = vsel %vm289, %v290, %v63
  %v292 = vshrl.u32 %v291, 4
  %v293 = vand.u32 %v291, 15
  %v294 = vsub.s32 0, %v293
  %v295 = vsel %vm289, %v294, %v293
  %vm296 = vcmp.lt.s32.totalorder %v64, 0
  %v297 = vsub.s32 0, %v64
  %v298 = vsel %vm296, %v297, %v64
  %v299 = vshrl.u32 %v298, 4
  %v300 = vand.u32 %v298, 15
  %v301 = vsub.s32 0, %v300
  %v302 = vsel %vm296, %v301, %v300
  %vm303 = vcmp.lt.s32.totalorder %v65, 0
  %v304 = vsub.s32 0, %v65
  %v305 = vsel %vm303, %v304, %v65
  %v306 = vshrl.u32 %v305, 4
  %v307 = vand.u32 %v305, 15
  %v308 = vsub.s32 0, %v307
  %v309 = vsel %vm303, %v308, %v307
  %vm310 = vcmp.lt.s32.totalorder %v66, 0
  %v311 = vsub.s32 0, %v66
  %v312 = vsel %vm310, %v311, %v66
  %v313 = vshrl.u32 %v312, 4
  %v314 = vand.u32 %v312, 15
  %v315 = vsub.s32 0, %v314
  %v316 = vsel %vm310, %v315, %v314
  %vm317 = vcmp.lt.s32.totalorder %v67, 0
  %v318 = vsub.s32 0, %v67
  %v319 = vsel %vm317, %v318, %v67
  %v320 = vshrl.u32 %v319, 4
  %v321 = vand.u32 %v319, 15
  %v322 = vsub.s32 0, %v321
  %v323 = vsel %vm317, %v322, %v321
  %vm324 = vcmp.lt.s32.totalorder %v68, 0
  %v325 = vsub.s32 0, %v68
  %v326 = vsel %vm324, %v325, %v68
  %v327 = vshrl.u32 %v326, 4
  %v328 = vand.u32 %v326, 15
  %v329 = vsub.s32 0, %v328
  %v330 = vsel %vm324, %v329, %v328
  %vm331 = vcmp.lt.s32.totalorder %v69, 0
  %v332 = vsub.s32 0, %v69
  %v333 = vsel %vm331, %v332, %v69
  %v334 = vshrl.u32 %v333, 4
  %v335 = vand.u32 %v333, 15
  %v336 = vsub.s32 0, %v335
  %v337 = vsel %vm331, %v336, %v335
  %vm338 = vcmp.lt.s32.totalorder %v70, 0
  %v339 = vsub.s32 0, %v70
  %v340 = vsel %vm338, %v339, %v70
  %v341 = vshrl.u32 %v340, 4
  %v342 = vand.u32 %v340, 15
  %v343 = vsub.s32 0, %v342
  %v344 = vsel %vm338, %v343, %v342
  %vm345 = vcmp.lt.s32.totalorder %v71, 0
  %v346 = vsub.s32 0, %v71
  %v347 = vsel %vm345, %v346, %v71
  %v348 = vshrl.u32 %v347, 4
  %v349 = vand.u32 %v347, 15
  %v350 = vsub.s32 0, %v349
  %v351 = vsel %vm345, %v350, %v349
  %vm352 = vcmp.lt.s32.totalorder %v72, 0
  %v353 = vsub.s32 0, %v72
  %v354 = vsel %vm352, %v353, %v72
  %v355 = vshrl.u32 %v354, 4
  %v356 = vand.u32 %v354, 15
  %v357 = vsub.s32 0, %v356
  %v358 = vsel %vm352, %v357, %v356
  %vm359 = vcmp.lt.s32.totalorder %v73, 0
  %v360 = vsub.s32 0, %v73
  %v361 = vsel %vm359, %v360, %v73
  %v362 = vshrl.u32 %v361, 4
  %v363 = vand.u32 %v361, 15
  %v364 = vsub.s32 0, %v363
  %v365 = vsel %vm359, %v364, %v363
  %vm366 = vcmp.lt.s32.totalorder %v74, 0
  %v367 = vsub.s32 0, %v74
  %v368 = vsel %vm366, %v367, %v74
  %v369 = vshrl.u32 %v368, 4
  %v370 = vand.u32 %v368, 15
  %v371 = vsub.s32 0, %v370
  %v372 = vsel %vm366, %v371, %v370
  %vm373 = vcmp.lt.s32.totalorder %v75, 0
  %v374 = vsub.s32 0, %v75
  %v375 = vsel %vm373, %v374, %v75
  %v376 = vshrl.u32 %v375, 4
  %v377 = vand.u32 %v375, 15
  %v378 = vsub.s32 0, %v377
  %v379 = vsel %vm373, %v378, %v377
  %vm380 = vcmp.lt.s32.totalorder %v76, 0
  %v381 = vsub.s32 0, %v76
  %v382 = vsel %vm380, %v381, %v76
  %v383 = vshrl.u32 %v382, 4
  %v384 = vand.u32 %v382, 15
  %v385 = vsub.s32 0, %v384
  %v386 = vsel %vm380, %v385, %v384
  %vm387 = vcmp.lt.s32.totalorder %v77, 0
  %v388 = vsub.s32 0, %v77
  %v389 = vsel %vm387, %v388, %v77
  %v390 = vshrl.u32 %v389, 4
  %v391 = vand.u32 %v389, 15
  %v392 = vsub.s32 0, %v391
  %v393 = vsel %vm387, %v392, %v391
  %vm394 = vcmp.lt.s32.totalorder %v78, 0
  %v395 = vsub.s32 0, %v78
  %v396 = vsel %vm394, %v395, %v78
  %v397 = vshrl.u32 %v396, 4
  %v398 = vand.u32 %v396, 15
  %v399 = vsub.s32 0, %v398
  %v400 = vsel %vm394, %v399, %v398
  %vm401 = vcmp.lt.s32.totalorder %v79, 0
  %v402 = vsub.s32 0, %v79
  %v403 = vsel %vm401, %v402, %v79
  %v404 = vshrl.u32 %v403, 4
  %v405 = vand.u32 %v403, 15
  %v406 = vsub.s32 0, %v405
  %v407 = vsel %vm401, %v406, %v405
  %vm408 = vcmp.lt.s32.totalorder %v80, 0
  %v409 = vsub.s32 0, %v80
  %v410 = vsel %vm408, %v409, %v80
  %v411 = vshrl.u32 %v410, 4
  %v412 = vand.u32 %v410, 15
  %v413 = vsub.s32 0, %v412
  %v414 = vsel %vm408, %v413, %v412
  %vm415 = vcmp.lt.s32.totalorder %v81, 0
  %v416 = vsub.s32 0, %v81
  %v417 = vsel %vm415, %v416, %v81
  %v418 = vshrl.u32 %v417, 4
  %v419 = vand.u32 %v417, 15
  %v420 = vsub.s32 0, %v419
  %v421 = vsel %vm415, %v420, %v419
  %vm422 = vcmp.lt.s32.totalorder %v82, 0
  %v423 = vsub.s32 0, %v82
  %v424 = vsel %vm422, %v423, %v82
  %v425 = vshrl.u32 %v424, 4
  %v426 = vand.u32 %v424, 15
  %v427 = vsub.s32 0, %v426
  %v428 = vsel %vm422, %v427, %v426
  %vm429 = vcmp.lt.s32.totalorder %v83, 0
  %v430 = vsub.s32 0, %v83
  %v431 = vsel %vm429, %v430, %v83
  %v432 = vshrl.u32 %v431, 4
  %v433 = vand.u32 %v431, 15
  %v434 = vsub.s32 0, %v433
  %v435 = vsel %vm429, %v434, %v433
  %vm436 = vcmp.lt.s32.totalorder %v84, 0
  %v437 = vsub.s32 0, %v84
  %v438 = vsel %vm436, %v437, %v84
  %v439 = vshrl.u32 %v438, 4
  %v440 = vand.u32 %v438, 15
  %v441 = vsub.s32 0, %v440
  %v442 = vsel %vm436, %v441, %v440
  %vm443 = vcmp.lt.s32.totalorder %v85, 0
  %v444 = vsub.s32 0, %v85
  %v445 = vsel %vm443, %v444, %v85
  %v446 = vshrl.u32 %v445, 4
  %v447 = vand.u32 %v445, 15
  %v448 = vsub.s32 0, %v447
  %v449 = vsel %vm443, %v448, %v447
  %vm450 = vcmp.lt.s32.totalorder %v86, 0
  %v451 = vsub.s32 0, %v86
  %v452 = vsel %vm450, %v451, %v86
  %v453 = vshrl.u32 %v452, 4
  %v454 = vand.u32 %v452, 15
  %v455 = vsub.s32 0, %v454
  %v456 = vsel %vm450, %v455, %v454
  %vm457 = vcmp.lt.s32.totalorder %v87, 0
  %v458 = vsub.s32 0, %v87
  %v459 = vsel %vm457, %v458, %v87
  %v460 = vshrl.u32 %v459, 4
  %v461 = vand.u32 %v459, 15
  %v462 = vsub.s32 0, %v461
  %v463 = vsel %vm457, %v462, %v461
  %vm464 = vcmp.lt.s32.totalorder %v88, 0
  %v465 = vsub.s32 0, %v88
  %v466 = vsel %vm464, %v465, %v88
  %v467 = vshrl.u32 %v466, 4
  %v468 = vand.u32 %v466, 15
  %v469 = vsub.s32 0, %v468
  %v470 = vsel %vm464, %v469, %v468
  %vm471 = vcmp.lt.s32.totalorder %v89, 0
  %v472 = vsub.s32 0, %v89
  %v473 = vsel %vm471, %v472, %v89
  %v474 = vshrl.u32 %v473, 4
  %v475 = vand.u32 %v473, 15
  %v476 = vsub.s32 0, %v475
  %v477 = vsel %vm471, %v476, %v475
  %vm478 = vcmp.lt.s32.totalorder %v90, 0
  %v479 = vsub.s32 0, %v90
  %v480 = vsel %vm478, %v479, %v90
  %v481 = vshrl.u32 %v480, 4
  %v482 = vand.u32 %v480, 15
  %v483 = vsub.s32 0, %v482
  %v484 = vsel %vm478, %v483, %v482
  %vm485 = vcmp.lt.s32.totalorder %v91, 0
  %v486 = vsub.s32 0, %v91
  %v487 = vsel %vm485, %v486, %v91
  %v488 = vshrl.u32 %v487, 4
  %v489 = vand.u32 %v487, 15
  %v490 = vsub.s32 0, %v489
  %v491 = vsel %vm485, %v490, %v489
  %vm492 = vcmp.lt.s32.totalorder %v92, 0
  %v493 = vsub.s32 0, %v92
  %v494 = vsel %vm492, %v493, %v92
  %v495 = vshrl.u32 %v494, 4
  %v496 = vand.u32 %v494, 15
  %v497 = vsub.s32 0, %v496
  %v498 = vsel %vm492, %v497, %v496
  %vm499 = vcmp.lt.s32.totalorder %v93, 0
  %v500 = vsub.s32 0, %v93
  %v501 = vsel %vm499, %v500, %v93
  %v502 = vshrl.u32 %v501, 4
  %v503 = vand.u32 %v501, 15
  %v504 = vsub.s32 0, %v503
  %v505 = vsel %vm499, %v504, %v503
  %vm506 = vcmp.lt.s32.totalorder %v94, 0
  %v507 = vsub.s32 0, %v94
  %v508 = vsel %vm506, %v507, %v94
  %v509 = vshrl.u32 %v508, 4
  %v510 = vand.u32 %v508, 15
  %v511 = vsub.s32 0, %v510
  %v512 = vsel %vm506, %v511, %v510
  %vm513 = vcmp.lt.s32.totalorder %v95, 0
  %v514 = vsub.s32 0, %v95
  %v515 = vsel %vm513, %v514, %v95
  %v516 = vshrl.u32 %v515, 4
  %v517 = vand.u32 %v515, 15
  %v518 = vsub.s32 0, %v517
  %v519 = vsel %vm513, %v518, %v517
  %vm520 = vcmp.lt.s32.totalorder %v96, 0
  %v521 = vsub.s32 0, %v96
  %v522 = vsel %vm520, %v521, %v96
  %v523 = vshrl.u32 %v522, 4
  %v524 = vand.u32 %v522, 15
  %v525 = vsub.s32 0, %v524
  %v526 = vsel %vm520, %v525, %v524
  %vm527 = vcmp.lt.s32.totalorder %v97, 0
  %v528 = vsub.s32 0, %v97
  %v529 = vsel %vm527, %v528, %v97
  %v530 = vshrl.u32 %v529, 4
  %v531 = vand.u32 %v529, 15
  %v532 = vsub.s32 0, %v531
  %v533 = vsel %vm527, %v532, %v531
  %vm534 = vcmp.lt.s32.totalorder %v98, 0
  %v535 = vsub.s32 0, %v98
  %v536 = vsel %vm534, %v535, %v98
  %v537 = vshrl.u32 %v536, 4
  %v538 = vand.u32 %v536, 15
  %v539 = vsub.s32 0, %v538
  %v540 = vsel %vm534, %v539, %v538
  %vm541 = vcmp.lt.s32.totalorder %v99, 0
  %v542 = vsub.s32 0, %v99
  %v543 = vsel %vm541, %v542, %v99
  %v544 = vshrl.u32 %v543, 4
  %v545 = vand.u32 %v543, 15
  %v546 = vsub.s32 0, %v545
  %v547 = vsel %vm541, %v546, %v545
  %vm548 = vcmp.lt.s32.totalorder %v100, 0
  %v549 = vsub.s32 0, %v100
  %v550 = vsel %vm548, %v549, %v100
  %v551 = vshrl.u32 %v550, 4
  %v552 = vand.u32 %v550, 15
  %v553 = vsub.s32 0, %v552
  %v554 = vsel %vm548, %v553, %v552
  %vm555 = vcmp.lt.s32.totalorder %v101, 0
  %v556 = vsub.s32 0, %v101
  %v557 = vsel %vm555, %v556, %v101
  %v558 = vshrl.u32 %v557, 4
  %v559 = vand.u32 %v557, 15
  %v560 = vsub.s32 0, %v559
  %v561 = vsel %vm555, %v560, %v559
  %vm562 = vcmp.lt.s32.totalorder %v102, 0
  %v563 = vsub.s32 0, %v102
  %v564 = vsel %vm562, %v563, %v102
  %v565 = vshrl.u32 %v564, 4
  %v566 = vand.u32 %v564, 15
  %v567 = vsub.s32 0, %v566
  %v568 = vsel %vm562, %v567, %v566
  %vm569 = vcmp.lt.s32.totalorder %v103, 0
  %v570 = vsub.s32 0, %v103
  %v571 = vsel %vm569, %v570, %v103
  %v572 = vshrl.u32 %v571, 4
  %v573 = vand.u32 %v571, 15
  %v574 = vsub.s32 0, %v573
  %v575 = vsel %vm569, %v574, %v573
  %vm576 = vcmp.lt.s32.totalorder %v104, 0
  %v577 = vsub.s32 0, %v104
  %v578 = vsel %vm576, %v577, %v104
  %v579 = vshrl.u32 %v578, 4
  %v580 = vand.u32 %v578, 15
  %v581 = vsub.s32 0, %v580
  %v582 = vsel %vm576, %v581, %v580
  %vm583 = vcmp.lt.s32.totalorder %v105, 0
  %v584 = vsub.s32 0, %v105
  %v585 = vsel %vm583, %v584, %v105
  %v586 = vshrl.u32 %v585, 4
  %v587 = vand.u32 %v585, 15
  %v588 = vsub.s32 0, %v587
  %v589 = vsel %vm583, %v588, %v587
  %vm590 = vcmp.lt.s32.totalorder %v106, 0
  %v591 = vsub.s32 0, %v106
  %v592 = vsel %vm590, %v591, %v106
  %v593 = vshrl.u32 %v592, 4
  %v594 = vand.u32 %v592, 15
  %v595 = vsub.s32 0, %v594
  %v596 = vsel %vm590, %v595, %v594
  %vm597 = vcmp.ne.s32.totalorder %v113, 0
  %vm598 = vcmp.ne.s32.totalorder %v120, 0
  %vm599 = vcmp.ne.s32.totalorder %v127, 0
  %vm600 = vcmp.ne.s32.totalorder %v134, 0
  %vm601 = vcmp.ne.s32.totalorder %v141, 0
  %vm602 = vcmp.ne.s32.totalorder %v148, 0
  %vm603 = vcmp.ne.s32.totalorder %v155, 0
  %vm604 = vcmp.ne.s32.totalorder %v162, 0
  %vm605 = vcmp.ne.s32.totalorder %v169, 0
  %vm606 = vcmp.ne.s32.totalorder %v176, 0
  %vm607 = vcmp.ne.s32.totalorder %v183, 0
  %vm608 = vcmp.ne.s32.totalorder %v190, 0
  %vm609 = vcmp.ne.s32.totalorder %v197, 0
  %vm610 = vcmp.ne.s32.totalorder %v204, 0
  %vm611 = vcmp.ne.s32.totalorder %v211, 0
  %vm612 = vcmp.ne.s32.totalorder %v218, 0
  %vm613 = vcmp.ne.s32.totalorder %v225, 0
  %vm614 = vcmp.ne.s32.totalorder %v232, 0
  %vm615 = vcmp.ne.s32.totalorder %v239, 0
  %vm616 = vcmp.ne.s32.totalorder %v246, 0
  %vm617 = vcmp.ne.s32.totalorder %v253, 0
  %vm618 = vcmp.ne.s32.totalorder %v260, 0
  %vm619 = vcmp.ne.s32.totalorder %v267, 0
  %vm620 = vcmp.ne.s32.totalorder %v274, 0
  %vm621 = vcmp.ne.s32.totalorder %v281, 0
  %vm622 = vcmp.ne.s32.totalorder %v288, 0
  %vm623 = vcmp.ne.s32.totalorder %v295, 0
  %vm624 = vcmp.ne.s32.totalorder %v302, 0
  %vm625 = vcmp.ne.s32.totalorder %v309, 0
  %vm626 = vcmp.ne.s32.totalorder %v316, 0
  %vm627 = vcmp.ne.s32.totalorder %v323, 0
  %vm628 = vcmp.ne.s32.totalorder %v330, 0
  %vm629 = vcmp.ne.s32.totalorder %v337, 0
  %vm630 = vcmp.ne.s32.totalorder %v344, 0
  %vm631 = vcmp.ne.s32.totalorder %v351, 0
  %vm632 = vcmp.ne.s32.totalorder %v358, 0
  %vm633 = vcmp.ne.s32.totalorder %v365, 0
  %vm634 = vcmp.ne.s32.totalorder %v372, 0
  %vm635 = vcmp.ne.s32.totalorder %v379, 0
  %vm636 = vcmp.ne.s32.totalorder %v386, 0
  %vm637 = vcmp.ne.s32.totalorder %v393, 0
  %vm638 = vcmp.ne.s32.totalorder %v400, 0
  %vm639 = vcmp.ne.s32.totalorder %v407, 0
  %vm640 = vcmp.ne.s32.totalorder %v414, 0
  %vm641 = vcmp.ne.s32.totalorder %v421, 0
  %vm642 = vcmp.ne.s32.totalorder %v428, 0
  %vm643 = vcmp.ne.s32.totalorder %v435, 0
  %vm644 = vcmp.ne.s32.totalorder %v442, 0
  %vm645 = vcmp.ne.s32.totalorder %v449, 0
  %vm646 = vcmp.ne.s32.totalorder %v456, 0
  %vm647 = vcmp.ne.s32.totalorder %v463, 0
  %vm648 = vcmp.ne.s32.totalorder %v470, 0
  %vm649 = vcmp.ne.s32.totalorder %v477, 0
  %vm650 = vcmp.ne.s32.totalorder %v484, 0
  %vm651 = vcmp.ne.s32.totalorder %v491, 0
  %vm652 = vcmp.ne.s32.totalorder %v498, 0
  %vm653 = vcmp.ne.s32.totalorder %v505, 0
  %vm654 = vcmp.ne.s32.totalorder %v512, 0
  %vm655 = vcmp.ne.s32.totalorder %v519, 0
  %vm656 = vcmp.ne.s32.totalorder %v526, 0
  %vm657 = vcmp.ne.s32.totalorder %v533, 0
  %vm658 = vcmp.ne.s32.totalorder %v540, 0
  %vm659 = vcmp.ne.s32.totalorder %v547, 0
  %vm660 = vcmp.ne.s32.totalorder %v554, 0
  %vm661 = vcmp.ne.s32.totalorder %v561, 0
  %vm662 = vcmp.ne.s32.totalorder %v568, 0
  %vm663 = vcmp.ne.s32.totalorder %v575, 0
  %vm664 = vcmp.ne.s32.totalorder %v582, 0
  %vm665 = vcmp.ne.s32.totalorder %v589, 0
  %vm666 = vcmp.ne.s32.totalorder %v596, 0
  %vm667 = vcmp.lt.s32.totalorder %v113, 0
  %vm668 = vcmp.lt.s32.totalorder %v120, 0
  %vm669 = vcmp.lt.s32.totalorder %v127, 0
  %vm670 = vcmp.lt.s32.totalorder %v134, 0
  %vm671 = vcmp.lt.s32.totalorder %v141, 0
  %vm672 = vcmp.lt.s32.totalorder %v148, 0
  %vm673 = vcmp.lt.s32.totalorder %v155, 0
  %vm674 = vcmp.lt.s32.totalorder %v162, 0
  %vm675 = vcmp.lt.s32.totalorder %v169, 0
  %vm676 = vcmp.lt.s32.totalorder %v176, 0
  %vm677 = vcmp.lt.s32.totalorder %v183, 0
  %vm678 = vcmp.lt.s32.totalorder %v190, 0
  %vm679 = vcmp.lt.s32.totalorder %v197, 0
  %vm680 = vcmp.lt.s32.totalorder %v204, 0
  %vm681 = vcmp.lt.s32.totalorder %v211, 0
  %vm682 = vcmp.lt.s32.totalorder %v218, 0
  %vm683 = vcmp.lt.s32.totalorder %v225, 0
  %vm684 = vcmp.lt.s32.totalorder %v232, 0
  %vm685 = vcmp.lt.s32.totalorder %v239, 0
  %vm686 = vcmp.lt.s32.totalorder %v246, 0
  %vm687 = vcmp.lt.s32.totalorder %v253, 0
  %vm688 = vcmp.lt.s32.totalorder %v260, 0
  %vm689 = vcmp.lt.s32.totalorder %v267, 0
  %vm690 = vcmp.lt.s32.totalorder %v274, 0
  %vm691 = vcmp.lt.s32.totalorder %v281, 0
  %vm692 = vcmp.lt.s32.totalorder %v288, 0
  %vm693 = vcmp.lt.s32.totalorder %v295, 0
  %vm694 = vcmp.lt.s32.totalorder %v302, 0
  %vm695 = vcmp.lt.s32.totalorder %v309, 0
  %vm696 = vcmp.lt.s32.totalorder %v316, 0
  %vm697 = vcmp.lt.s32.totalorder %v323, 0
  %vm698 = vcmp.lt.s32.totalorder %v330, 0
  %vm699 = vcmp.lt.s32.totalorder %v337, 0
  %vm700 = vcmp.lt.s32.totalorder %v344, 0
  %vm701 = vcmp.lt.s32.totalorder %v351, 0
  %vm702 = vcmp.lt.s32.totalorder %v358, 0
  %vm703 = vcmp.lt.s32.totalorder %v365, 0
  %vm704 = vcmp.lt.s32.totalorder %v372, 0
  %vm705 = vcmp.lt.s32.totalorder %v379, 0
  %vm706 = vcmp.lt.s32.totalorder %v386, 0
  %vm707 = vcmp.lt.s32.totalorder %v393, 0
  %vm708 = vcmp.lt.s32.totalorder %v400, 0
  %vm709 = vcmp.lt.s32.totalorder %v407, 0
  %vm710 = vcmp.lt.s32.totalorder %v414, 0
  %vm711 = vcmp.lt.s32.totalorder %v421, 0
  %vm712 = vcmp.lt.s32.totalorder %v428, 0
  %vm713 = vcmp.lt.s32.totalorder %v435, 0
  %vm714 = vcmp.lt.s32.totalorder %v442, 0
  %vm715 = vcmp.lt.s32.totalorder %v449, 0
  %vm716 = vcmp.lt.s32.totalorder %v456, 0
  %vm717 = vcmp.lt.s32.totalorder %v463, 0
  %vm718 = vcmp.lt.s32.totalorder %v470, 0
  %vm719 = vcmp.lt.s32.totalorder %v477, 0
  %vm720 = vcmp.lt.s32.totalorder %v484, 0
  %vm721 = vcmp.lt.s32.totalorder %v491, 0
  %vm722 = vcmp.lt.s32.totalorder %v498, 0
  %vm723 = vcmp.lt.s32.totalorder %v505, 0
  %vm724 = vcmp.lt.s32.totalorder %v512, 0
  %vm725 = vcmp.lt.s32.totalorder %v519, 0
  %vm726 = vcmp.lt.s32.totalorder %v526, 0
  %vm727 = vcmp.lt.s32.totalorder %v533, 0
  %vm728 = vcmp.lt.s32.totalorder %v540, 0
  %vm729 = vcmp.lt.s32.totalorder %v547, 0
  %vm730 = vcmp.lt.s32.totalorder %v554, 0
  %vm731 = vcmp.lt.s32.totalorder %v561, 0
  %vm732 = vcmp.lt.s32.totalorder %v568, 0
  %vm733 = vcmp.lt.s32.totalorder %v575, 0
  %vm734 = vcmp.lt.s32.totalorder %v582, 0
  %vm735 = vcmp.lt.s32.totalorder %v589, 0
  %vm736 = vcmp.lt.s32.totalorder %v596, 0
  %vm737 = vmand %vm667, %vm597
  %vm738 = vmand %vm668, %vm598
  %vm739 = vmand %vm669, %vm599
  %vm740 = vmand %vm670, %vm600
  %vm741 = vmand %vm671, %vm601
  %vm742 = vmand %vm672, %vm602
  %vm743 = vmand %vm673, %vm603
  %vm744 = vmand %vm674, %vm604
  %vm745 = vmand %vm675, %vm605
  %vm746 = vmand %vm676, %vm606
  %vm747 = vmand %vm677, %vm607
  %vm748 = vmand %vm678, %vm608
  %vm749 = vmand %vm679, %vm609
  %vm750 = vmand %vm680, %vm610
  %vm751 = vmand %vm681, %vm611
  %vm752 = vmand %vm682, %vm612
  %vm753 = vmand %vm683, %vm613
  %vm754 = vmand %vm684, %vm614
  %vm755 = vmand %vm685, %vm615
  %vm756 = vmand %vm686, %vm616
  %vm757 = vmand %vm687, %vm617
  %vm758 = vmand %vm688, %vm618
  %vm759 = vmand %vm689, %vm619
  %vm760 = vmand %vm690, %vm620
  %vm761 = vmand %vm691, %vm621
  %vm762 = vmand %vm692, %vm622
  %vm763 = vmand %vm693, %vm623
  %vm764 = vmand %vm694, %vm624
  %vm765 = vmand %vm695, %vm625
  %vm766 = vmand %vm696, %vm626
  %vm767 = vmand %vm697, %vm627
  %vm768 = vmand %vm698, %vm628
  %vm769 = vmand %vm699, %vm629
  %vm770 = vmand %vm700, %vm630
  %vm771 = vmand %vm701, %vm631
  %vm772 = vmand %vm702, %vm632
  %vm773 = vmand %vm703, %vm633
  %vm774 = vmand %vm704, %vm634
  %vm775 = vmand %vm705, %vm635
  %vm776 = vmand %vm706, %vm636
  %vm777 = vmand %vm707, %vm637
  %vm778 = vmand %vm708, %vm638
  %vm779 = vmand %vm709, %vm639
  %vm780 = vmand %vm710, %vm640
  %vm781 = vmand %vm711, %vm641
  %vm782 = vmand %vm712, %vm642
  %vm783 = vmand %vm713, %vm643
  %vm784 = vmand %vm714, %vm644
  %vm785 = vmand %vm715, %vm645
  %vm786 = vmand %vm716, %vm646
  %vm787 = vmand %vm717, %vm647
  %vm788 = vmand %vm718, %vm648
  %vm789 = vmand %vm719, %vm649
  %vm790 = vmand %vm720, %vm650
  %vm791 = vmand %vm721, %vm651
  %vm792 = vmand %vm722, %vm652
  %vm793 = vmand %vm723, %vm653
  %vm794 = vmand %vm724, %vm654
  %vm795 = vmand %vm725, %vm655
  %vm796 = vmand %vm726, %vm656
  %vm797 = vmand %vm727, %vm657
  %vm798 = vmand %vm728, %vm658
  %vm799 = vmand %vm729, %vm659
  %vm800 = vmand %vm730, %vm660
  %vm801 = vmand %vm731, %vm661
  %vm802 = vmand %vm732, %vm662
  %vm803 = vmand %vm733, %vm663
  %vm804 = vmand %vm734, %vm664
  %vm805 = vmand %vm735, %vm665
  %vm806 = vmand %vm736, %vm666
  %v807 = vadd.s32 %v113, 16
  %v808 = vadd.s32 %v120, 16
  %v809 = vadd.s32 %v127, 16
  %v810 = vadd.s32 %v134, 16
  %v811 = vadd.s32 %v141, 16
  %v812 = vadd.s32 %v148, 16
  %v813 = vadd.s32 %v155, 16
  %v814 = vadd.s32 %v162, 16
  %v815 = vadd.s32 %v169, 16
  %v816 = vadd.s32 %v176, 16
  %v817 = vadd.s32 %v183, 16
  %v818 = vadd.s32 %v190, 16
  %v819 = vadd.s32 %v197, 16
  %v820 = vadd.s32 %v204, 16
  %v821 = vadd.s32 %v211, 16
  %v822 = vadd.s32 %v218, 16
  %v823 = vadd.s32 %v225, 16
  %v824 = vadd.s32 %v232, 16
  %v825 = vadd.s32 %v239, 16
  %v826 = vadd.s32 %v246, 16
  %v827 = vadd.s32 %v253, 16
  %v828 = vadd.s32 %v260, 16
  %v829 = vadd.s32 %v267, 16
  %v830 = vadd.s32 %v274, 16
  %v831 = vadd.s32 %v281, 16
  %v832 = vadd.s32 %v288, 16
  %v833 = vadd.s32 %v295, 16
  %v834 = vadd.s32 %v302, 16
  %v835 = vadd.s32 %v309, 16
  %v836 = vadd.s32 %v316, 16
  %v837 = vadd.s32 %v323, 16
  %v838 = vadd.s32 %v330, 16
  %v839 = vadd.s32 %v337, 16
  %v840 = vadd.s32 %v344, 16
  %v841 = vadd.s32 %v351, 16
  %v842 = vadd.s32 %v358, 16
  %v843 = vadd.s32 %v365, 16
  %v844 = vadd.s32 %v372, 16
  %v845 = vadd.s32 %v379, 16
  %v846 = vadd.s32 %v386, 16
  %v847 = vadd.s32 %v393, 16
  %v848 = vadd.s32 %v400, 16
  %v849 = vadd.s32 %v407, 16
  %v850 = vadd.s32 %v414, 16
  %v851 = vadd.s32 %v421, 16
  %v852 = vadd.s32 %v428, 16
  %v853 = vadd.s32 %v435, 16
  %v854 = vadd.s32 %v442, 16
  %v855 = vadd.s32 %v449, 16
  %v856 = vadd.s32 %v456, 16
  %v857 = vadd.s32 %v463, 16
  %v858 = vadd.s32 %v470, 16
  %v859 = vadd.s32 %v477, 16
  %v860 = vadd.s32 %v484, 16
  %v861 = vadd.s32 %v491, 16
  %v862 = vadd.s32 %v498, 16
  %v863 = vadd.s32 %v505, 16
  %v864 = vadd.s32 %v512, 16
  %v865 = vadd.s32 %v519, 16
  %v866 = vadd.s32 %v526, 16
  %v867 = vadd.s32 %v533, 16
  %v868 = vadd.s32 %v540, 16
  %v869 = vadd.s32 %v547, 16
  %v870 = vadd.s32 %v554, 16
  %v871 = vadd.s32 %v561, 16
  %v872 = vadd.s32 %v568, 16
  %v873 = vadd.s32 %v575, 16
  %v874 = vadd.s32 %v582, 16
  %v875 = vadd.s32 %v589, 16
  %v876 = vadd.s32 %v596, 16
  %v877 = vsel %vm737, %v807, %v113
  %v878 = vsel %vm738, %v808, %v120
  %v879 = vsel %vm739, %v809, %v127
  %v880 = vsel %vm740, %v810, %v134
  %v881 = vsel %vm741, %v811, %v141
  %v882 = vsel %vm742, %v812, %v148
  %v883 = vsel %vm743, %v813, %v155
  %v884 = vsel %vm744, %v814, %v162
  %v885 = vsel %vm745, %v815, %v169
  %v886 = vsel %vm746, %v816, %v176
  %v887 = vsel %vm747, %v817, %v183
  %v888 = vsel %vm748, %v818, %v190
  %v889 = vsel %vm749, %v819, %v197
  %v890 = vsel %vm750, %v820, %v204
  %v891 = vsel %vm751, %v821, %v211
  %v892 = vsel %vm752, %v822, %v218
  %v893 = vsel %vm753, %v823, %v225
  %v894 = vsel %vm754, %v824, %v232
  %v895 = vsel %vm755, %v825, %v239
  %v896 = vsel %vm756, %v826, %v246
  %v897 = vsel %vm757, %v827, %v253
  %v898 = vsel %vm758, %v828, %v260
  %v899 = vsel %vm759, %v829, %v267
  %v900 = vsel %vm760, %v830, %v274
  %v901 = vsel %vm761, %v831, %v281
  %v902 = vsel %vm762, %v832, %v288
  %v903 = vsel %vm763, %v833, %v295
  %v904 = vsel %vm764, %v834, %v302
  %v905 = vsel %vm765, %v835, %v309
  %v906 = vsel %vm766, %v836, %v316
  %v907 = vsel %vm767, %v837, %v323
  %v908 = vsel %vm768, %v838, %v330
  %v909 = vsel %vm769, %v839, %v337
  %v910 = vsel %vm770, %v840, %v344
  %v911 = vsel %vm771, %v841, %v351
  %v912 = vsel %vm772, %v842, %v358
  %v913 = vsel %vm773, %v843, %v365
  %v914 = vsel %vm774, %v844, %v372
  %v915 = vsel %vm775, %v845, %v379
  %v916 = vsel %vm776, %v846, %v386
  %v917 = vsel %vm777, %v847, %v393
  %v918 = vsel %vm778, %v848, %v400
  %v919 = vsel %vm779, %v849, %v407
  %v920 = vsel %vm780, %v850, %v414
  %v921 = vsel %vm781, %v851, %v421
  %v922 = vsel %vm782, %v852, %v428
  %v923 = vsel %vm783, %v853, %v435
  %v924 = vsel %vm784, %v854, %v442
  %v925 = vsel %vm785, %v855, %v449
  %v926 = vsel %vm786, %v856, %v456
  %v927 = vsel %vm787, %v857, %v463
  %v928 = vsel %vm788, %v858, %v470
  %v929 = vsel %vm789, %v859, %v477
  %v930 = vsel %vm790, %v860, %v484
  %v931 = vsel %vm791, %v861, %v491
  %v932 = vsel %vm792, %v862, %v498
  %v933 = vsel %vm793, %v863, %v505
  %v934 = vsel %vm794, %v864, %v512
  %v935 = vsel %vm795, %v865, %v519
  %v936 = vsel %vm796, %v866, %v526
  %v937 = vsel %vm797, %v867, %v533
  %v938 = vsel %vm798, %v868, %v540
  %v939 = vsel %vm799, %v869, %v547
  %v940 = vsel %vm800, %v870, %v554
  %v941 = vsel %vm801, %v871, %v561
  %v942 = vsel %vm802, %v872, %v568
  %v943 = vsel %vm803, %v873, %v575
  %v944 = vsel %vm804, %v874, %v582
  %v945 = vsel %vm805, %v875, %v589
  %v946 = vsel %vm806, %v876, %v596
  %vm947 = vcmp.ne.s32.totalorder %v877, 0
  %vm948 = vcmp.ne.s32.totalorder %v878, 0
  %vm949 = vcmp.ne.s32.totalorder %v879, 0
  %vm950 = vcmp.ne.s32.totalorder %v880, 0
  %vm951 = vcmp.ne.s32.totalorder %v881, 0
  %vm952 = vcmp.ne.s32.totalorder %v882, 0
  %vm953 = vcmp.ne.s32.totalorder %v883, 0
  %vm954 = vcmp.ne.s32.totalorder %v884, 0
  %vm955 = vcmp.ne.s32.totalorder %v885, 0
  %vm956 = vcmp.ne.s32.totalorder %v886, 0
  %vm957 = vcmp.ne.s32.totalorder %v887, 0
  %vm958 = vcmp.ne.s32.totalorder %v888, 0
  %vm959 = vcmp.ne.s32.totalorder %v889, 0
  %vm960 = vcmp.ne.s32.totalorder %v890, 0
  %vm961 = vcmp.ne.s32.totalorder %v891, 0
  %vm962 = vcmp.ne.s32.totalorder %v892, 0
  %vm963 = vcmp.ne.s32.totalorder %v893, 0
  %vm964 = vcmp.ne.s32.totalorder %v894, 0
  %vm965 = vcmp.ne.s32.totalorder %v895, 0
  %vm966 = vcmp.ne.s32.totalorder %v896, 0
  %vm967 = vcmp.ne.s32.totalorder %v897, 0
  %vm968 = vcmp.ne.s32.totalorder %v898, 0
  %vm969 = vcmp.ne.s32.totalorder %v899, 0
  %vm970 = vcmp.ne.s32.totalorder %v900, 0
  %vm971 = vcmp.ne.s32.totalorder %v901, 0
  %vm972 = vcmp.ne.s32.totalorder %v902, 0
  %vm973 = vcmp.ne.s32.totalorder %v903, 0
  %vm974 = vcmp.ne.s32.totalorder %v904, 0
  %vm975 = vcmp.ne.s32.totalorder %v905, 0
  %vm976 = vcmp.ne.s32.totalorder %v906, 0
  %vm977 = vcmp.ne.s32.totalorder %v907, 0
  %vm978 = vcmp.ne.s32.totalorder %v908, 0
  %vm979 = vcmp.ne.s32.totalorder %v909, 0
  %vm980 = vcmp.ne.s32.totalorder %v910, 0
  %vm981 = vcmp.ne.s32.totalorder %v911, 0
  %vm982 = vcmp.ne.s32.totalorder %v912, 0
  %vm983 = vcmp.ne.s32.totalorder %v913, 0
  %vm984 = vcmp.ne.s32.totalorder %v914, 0
  %vm985 = vcmp.ne.s32.totalorder %v915, 0
  %vm986 = vcmp.ne.s32.totalorder %v916, 0
  %vm987 = vcmp.ne.s32.totalorder %v917, 0
  %vm988 = vcmp.ne.s32.totalorder %v918, 0
  %vm989 = vcmp.ne.s32.totalorder %v919, 0
  %vm990 = vcmp.ne.s32.totalorder %v920, 0
  %vm991 = vcmp.ne.s32.totalorder %v921, 0
  %vm992 = vcmp.ne.s32.totalorder %v922, 0
  %vm993 = vcmp.ne.s32.totalorder %v923, 0
  %vm994 = vcmp.ne.s32.totalorder %v924, 0
  %vm995 = vcmp.ne.s32.totalorder %v925, 0
  %vm996 = vcmp.ne.s32.totalorder %v926, 0
  %vm997 = vcmp.ne.s32.totalorder %v927, 0
  %vm998 = vcmp.ne.s32.totalorder %v928, 0
  %vm999 = vcmp.ne.s32.totalorder %v929, 0
  %vm1000 = vcmp.ne.s32.totalorder %v930, 0
  %vm1001 = vcmp.ne.s32.totalorder %v931, 0
  %vm1002 = vcmp.ne.s32.totalorder %v932, 0
  %vm1003 = vcmp.ne.s32.totalorder %v933, 0
  %vm1004 = vcmp.ne.s32.totalorder %v934, 0
  %vm1005 = vcmp.ne.s32.totalorder %v935, 0
  %vm1006 = vcmp.ne.s32.totalorder %v936, 0
  %vm1007 = vcmp.ne.s32.totalorder %v937, 0
  %vm1008 = vcmp.ne.s32.totalorder %v938, 0
  %vm1009 = vcmp.ne.s32.totalorder %v939, 0
  %vm1010 = vcmp.ne.s32.totalorder %v940, 0
  %vm1011 = vcmp.ne.s32.totalorder %v941, 0
  %vm1012 = vcmp.ne.s32.totalorder %v942, 0
  %vm1013 = vcmp.ne.s32.totalorder %v943, 0
  %vm1014 = vcmp.ne.s32.totalorder %v944, 0
  %vm1015 = vcmp.ne.s32.totalorder %v945, 0
  %vm1016 = vcmp.ne.s32.totalorder %v946, 0
  %v1017 = vsel %vm947, 1, 0
  %v1018 = vsel %vm948, 1, 0
  %v1019 = vsel %vm949, 1, 0
  %v1020 = vsel %vm950, 1, 0
  %v1021 = vsel %vm951, 1, 0
  %v1022 = vsel %vm952, 1, 0
  %v1023 = vsel %vm953, 1, 0
  %v1024 = vsel %vm954, 1, 0
  %v1025 = vsel %vm955, 1, 0
  %v1026 = vsel %vm956, 1, 0
  %v1027 = vsel %vm957, 1, 0
  %v1028 = vsel %vm958, 1, 0
  %v1029 = vsel %vm959, 1, 0
  %v1030 = vsel %vm960, 1, 0
  %v1031 = vsel %vm961, 1, 0
  %v1032 = vsel %vm962, 1, 0
  %v1033 = vsel %vm963, 1, 0
  %v1034 = vsel %vm964, 1, 0
  %v1035 = vsel %vm965, 1, 0
  %v1036 = vsel %vm966, 1, 0
  %v1037 = vsel %vm967, 1, 0
  %v1038 = vsel %vm968, 1, 0
  %v1039 = vsel %vm969, 1, 0
  %v1040 = vsel %vm970, 1, 0
  %v1041 = vsel %vm971, 1, 0
  %v1042 = vsel %vm972, 1, 0
  %v1043 = vsel %vm973, 1, 0
  %v1044 = vsel %vm974, 1, 0
  %v1045 = vsel %vm975, 1, 0
  %v1046 = vsel %vm976, 1, 0
  %v1047 = vsel %vm977, 1, 0
  %v1048 = vsel %vm978, 1, 0
  %v1049 = vsel %vm979, 1, 0
  %v1050 = vsel %vm980, 1, 0
  %v1051 = vsel %vm981, 1, 0
  %v1052 = vsel %vm982, 1, 0
  %v1053 = vsel %vm983, 1, 0
  %v1054 = vsel %vm984, 1, 0
  %v1055 = vsel %vm985, 1, 0
  %v1056 = vsel %vm986, 1, 0
  %v1057 = vsel %vm987, 1, 0
  %v1058 = vsel %vm988, 1, 0
  %v1059 = vsel %vm989, 1, 0
  %v1060 = vsel %vm990, 1, 0
  %v1061 = vsel %vm991, 1, 0
  %v1062 = vsel %vm992, 1, 0
  %v1063 = vsel %vm993, 1, 0
  %v1064 = vsel %vm994, 1, 0
  %v1065 = vsel %vm995, 1, 0
  %v1066 = vsel %vm996, 1, 0
  %v1067 = vsel %vm997, 1, 0
  %v1068 = vsel %vm998, 1, 0
  %v1069 = vsel %vm999, 1, 0
  %v1070 = vsel %vm1000, 1, 0
  %v1071 = vsel %vm1001, 1, 0
  %v1072 = vsel %vm1002, 1, 0
  %v1073 = vsel %vm1003, 1, 0
  %v1074 = vsel %vm1004, 1, 0
  %v1075 = vsel %vm1005, 1, 0
  %v1076 = vsel %vm1006, 1, 0
  %v1077 = vsel %vm1007, 1, 0
  %v1078 = vsel %vm1008, 1, 0
  %v1079 = vsel %vm1009, 1, 0
  %v1080 = vsel %vm1010, 1, 0
  %v1081 = vsel %vm1011, 1, 0
  %v1082 = vsel %vm1012, 1, 0
  %v1083 = vsel %vm1013, 1, 0
  %v1084 = vsel %vm1014, 1, 0
  %v1085 = vsel %vm1015, 1, 0
  %v1086 = vsel %vm1016, 1, 0
  %v1087 = vcvt.s32.f32 %v1017
  %v1088 = vcvt.s32.f32 %v1018
  %v1089 = vcvt.s32.f32 %v1019
  %v1090 = vcvt.s32.f32 %v1020
  %v1091 = vcvt.s32.f32 %v1021
  %v1092 = vcvt.s32.f32 %v1022
  %v1093 = vcvt.s32.f32 %v1023
  %v1094 = vcvt.s32.f32 %v1024
  %v1095 = vcvt.s32.f32 %v1025
  %v1096 = vcvt.s32.f32 %v1026
  %v1097 = vcvt.s32.f32 %v1027
  %v1098 = vcvt.s32.f32 %v1028
  %v1099 = vcvt.s32.f32 %v1029
  %v1100 = vcvt.s32.f32 %v1030
  %v1101 = vcvt.s32.f32 %v1031
  %v1102 = vcvt.s32.f32 %v1032
  %v1103 = vcvt.s32.f32 %v1033
  %v1104 = vcvt.s32.f32 %v1034
  %v1105 = vcvt.s32.f32 %v1035
  %v1106 = vcvt.s32.f32 %v1036
  %v1107 = vcvt.s32.f32 %v1037
  %v1108 = vcvt.s32.f32 %v1038
  %v1109 = vcvt.s32.f32 %v1039
  %v1110 = vcvt.s32.f32 %v1040
  %v1111 = vcvt.s32.f32 %v1041
  %v1112 = vcvt.s32.f32 %v1042
  %v1113 = vcvt.s32.f32 %v1043
  %v1114 = vcvt.s32.f32 %v1044
  %v1115 = vcvt.s32.f32 %v1045
  %v1116 = vcvt.s32.f32 %v1046
  %v1117 = vcvt.s32.f32 %v1047
  %v1118 = vcvt.s32.f32 %v1048
  %v1119 = vcvt.s32.f32 %v1049
  %v1120 = vcvt.s32.f32 %v1050
  %v1121 = vcvt.s32.f32 %v1051
  %v1122 = vcvt.s32.f32 %v1052
  %v1123 = vcvt.s32.f32 %v1053
  %v1124 = vcvt.s32.f32 %v1054
  %v1125 = vcvt.s32.f32 %v1055
  %v1126 = vcvt.s32.f32 %v1056
  %v1127 = vcvt.s32.f32 %v1057
  %v1128 = vcvt.s32.f32 %v1058
  %v1129 = vcvt.s32.f32 %v1059
  %v1130 = vcvt.s32.f32 %v1060
  %v1131 = vcvt.s32.f32 %v1061
  %v1132 = vcvt.s32.f32 %v1062
  %v1133 = vcvt.s32.f32 %v1063
  %v1134 = vcvt.s32.f32 %v1064
  %v1135 = vcvt.s32.f32 %v1065
  %v1136 = vcvt.s32.f32 %v1066
  %v1137 = vcvt.s32.f32 %v1067
  %v1138 = vcvt.s32.f32 %v1068
  %v1139 = vcvt.s32.f32 %v1069
  %v1140 = vcvt.s32.f32 %v1070
  %v1141 = vcvt.s32.f32 %v1071
  %v1142 = vcvt.s32.f32 %v1072
  %v1143 = vcvt.s32.f32 %v1073
  %v1144 = vcvt.s32.f32 %v1074
  %v1145 = vcvt.s32.f32 %v1075
  %v1146 = vcvt.s32.f32 %v1076
  %v1147 = vcvt.s32.f32 %v1077
  %v1148 = vcvt.s32.f32 %v1078
  %v1149 = vcvt.s32.f32 %v1079
  %v1150 = vcvt.s32.f32 %v1080
  %v1151 = vcvt.s32.f32 %v1081
  %v1152 = vcvt.s32.f32 %v1082
  %v1153 = vcvt.s32.f32 %v1083
  %v1154 = vcvt.s32.f32 %v1084
  %v1155 = vcvt.s32.f32 %v1085
  %v1156 = vcvt.s32.f32 %v1086
  %vm1157 = vcmp.ne.s32.totalorder %v877, 15
  %vm1158 = vcmp.ne.s32.totalorder %v878, 15
  %vm1159 = vcmp.ne.s32.totalorder %v879, 15
  %vm1160 = vcmp.ne.s32.totalorder %v880, 15
  %vm1161 = vcmp.ne.s32.totalorder %v881, 15
  %vm1162 = vcmp.ne.s32.totalorder %v882, 15
  %vm1163 = vcmp.ne.s32.totalorder %v883, 15
  %vm1164 = vcmp.ne.s32.totalorder %v884, 15
  %vm1165 = vcmp.ne.s32.totalorder %v885, 15
  %vm1166 = vcmp.ne.s32.totalorder %v886, 15
  %vm1167 = vcmp.ne.s32.totalorder %v887, 15
  %vm1168 = vcmp.ne.s32.totalorder %v888, 15
  %vm1169 = vcmp.ne.s32.totalorder %v889, 15
  %vm1170 = vcmp.ne.s32.totalorder %v890, 15
  %vm1171 = vcmp.ne.s32.totalorder %v891, 15
  %vm1172 = vcmp.ne.s32.totalorder %v892, 15
  %vm1173 = vcmp.ne.s32.totalorder %v893, 15
  %vm1174 = vcmp.ne.s32.totalorder %v894, 15
  %vm1175 = vcmp.ne.s32.totalorder %v895, 15
  %vm1176 = vcmp.ne.s32.totalorder %v896, 15
  %vm1177 = vcmp.ne.s32.totalorder %v897, 15
  %vm1178 = vcmp.ne.s32.totalorder %v898, 15
  %vm1179 = vcmp.ne.s32.totalorder %v899, 15
  %vm1180 = vcmp.ne.s32.totalorder %v900, 15
  %vm1181 = vcmp.ne.s32.totalorder %v901, 15
  %vm1182 = vcmp.ne.s32.totalorder %v902, 15
  %vm1183 = vcmp.ne.s32.totalorder %v903, 15
  %vm1184 = vcmp.ne.s32.totalorder %v904, 15
  %vm1185 = vcmp.ne.s32.totalorder %v905, 15
  %vm1186 = vcmp.ne.s32.totalorder %v906, 15
  %vm1187 = vcmp.ne.s32.totalorder %v907, 15
  %vm1188 = vcmp.ne.s32.totalorder %v908, 15
  %vm1189 = vcmp.ne.s32.totalorder %v909, 15
  %vm1190 = vcmp.ne.s32.totalorder %v910, 15
  %vm1191 = vcmp.ne.s32.totalorder %v911, 15
  %vm1192 = vcmp.ne.s32.totalorder %v912, 15
  %vm1193 = vcmp.ne.s32.totalorder %v913, 15
  %vm1194 = vcmp.ne.s32.totalorder %v914, 15
  %vm1195 = vcmp.ne.s32.totalorder %v915, 15
  %vm1196 = vcmp.ne.s32.totalorder %v916, 15
  %vm1197 = vcmp.ne.s32.totalorder %v917, 15
  %vm1198 = vcmp.ne.s32.totalorder %v918, 15
  %vm1199 = vcmp.ne.s32.totalorder %v919, 15
  %vm1200 = vcmp.ne.s32.totalorder %v920, 15
  %vm1201 = vcmp.ne.s32.totalorder %v921, 15
  %vm1202 = vcmp.ne.s32.totalorder %v922, 15
  %vm1203 = vcmp.ne.s32.totalorder %v923, 15
  %vm1204 = vcmp.ne.s32.totalorder %v924, 15
  %vm1205 = vcmp.ne.s32.totalorder %v925, 15
  %vm1206 = vcmp.ne.s32.totalorder %v926, 15
  %vm1207 = vcmp.ne.s32.totalorder %v927, 15
  %vm1208 = vcmp.ne.s32.totalorder %v928, 15
  %vm1209 = vcmp.ne.s32.totalorder %v929, 15
  %vm1210 = vcmp.ne.s32.totalorder %v930, 15
  %vm1211 = vcmp.ne.s32.totalorder %v931, 15
  %vm1212 = vcmp.ne.s32.totalorder %v932, 15
  %vm1213 = vcmp.ne.s32.totalorder %v933, 15
  %vm1214 = vcmp.ne.s32.totalorder %v934, 15
  %vm1215 = vcmp.ne.s32.totalorder %v935, 15
  %vm1216 = vcmp.ne.s32.totalorder %v936, 15
  %vm1217 = vcmp.ne.s32.totalorder %v937, 15
  %vm1218 = vcmp.ne.s32.totalorder %v938, 15
  %vm1219 = vcmp.ne.s32.totalorder %v939, 15
  %vm1220 = vcmp.ne.s32.totalorder %v940, 15
  %vm1221 = vcmp.ne.s32.totalorder %v941, 15
  %vm1222 = vcmp.ne.s32.totalorder %v942, 15
  %vm1223 = vcmp.ne.s32.totalorder %v943, 15
  %vm1224 = vcmp.ne.s32.totalorder %v944, 15
  %vm1225 = vcmp.ne.s32.totalorder %v945, 15
  %vm1226 = vcmp.ne.s32.totalorder %v946, 15
  %v1227 = vsel %vm1157, 1, 0
  %v1228 = vsel %vm1158, 1, 0
  %v1229 = vsel %vm1159, 1, 0
  %v1230 = vsel %vm1160, 1, 0
  %v1231 = vsel %vm1161, 1, 0
  %v1232 = vsel %vm1162, 1, 0
  %v1233 = vsel %vm1163, 1, 0
  %v1234 = vsel %vm1164, 1, 0
  %v1235 = vsel %vm1165, 1, 0
  %v1236 = vsel %vm1166, 1, 0
  %v1237 = vsel %vm1167, 1, 0
  %v1238 = vsel %vm1168, 1, 0
  %v1239 = vsel %vm1169, 1, 0
  %v1240 = vsel %vm1170, 1, 0
  %v1241 = vsel %vm1171, 1, 0
  %v1242 = vsel %vm1172, 1, 0
  %v1243 = vsel %vm1173, 1, 0
  %v1244 = vsel %vm1174, 1, 0
  %v1245 = vsel %vm1175, 1, 0
  %v1246 = vsel %vm1176, 1, 0
  %v1247 = vsel %vm1177, 1, 0
  %v1248 = vsel %vm1178, 1, 0
  %v1249 = vsel %vm1179, 1, 0
  %v1250 = vsel %vm1180, 1, 0
  %v1251 = vsel %vm1181, 1, 0
  %v1252 = vsel %vm1182, 1, 0
  %v1253 = vsel %vm1183, 1, 0
  %v1254 = vsel %vm1184, 1, 0
  %v1255 = vsel %vm1185, 1, 0
  %v1256 = vsel %vm1186, 1, 0
  %v1257 = vsel %vm1187, 1, 0
  %v1258 = vsel %vm1188, 1, 0
  %v1259 = vsel %vm1189, 1, 0
  %v1260 = vsel %vm1190, 1, 0
  %v1261 = vsel %vm1191, 1, 0
  %v1262 = vsel %vm1192, 1, 0
  %v1263 = vsel %vm1193, 1, 0
  %v1264 = vsel %vm1194, 1, 0
  %v1265 = vsel %vm1195, 1, 0
  %v1266 = vsel %vm1196, 1, 0
  %v1267 = vsel %vm1197, 1, 0
  %v1268 = vsel %vm1198, 1, 0
  %v1269 = vsel %vm1199, 1, 0
  %v1270 = vsel %vm1200, 1, 0
  %v1271 = vsel %vm1201, 1, 0
  %v1272 = vsel %vm1202, 1, 0
  %v1273 = vsel %vm1203, 1, 0
  %v1274 = vsel %vm1204, 1, 0
  %v1275 = vsel %vm1205, 1, 0
  %v1276 = vsel %vm1206, 1, 0
  %v1277 = vsel %vm1207, 1, 0
  %v1278 = vsel %vm1208, 1, 0
  %v1279 = vsel %vm1209, 1, 0
  %v1280 = vsel %vm1210, 1, 0
  %v1281 = vsel %vm1211, 1, 0
  %v1282 = vsel %vm1212, 1, 0
  %v1283 = vsel %vm1213, 1, 0
  %v1284 = vsel %vm1214, 1, 0
  %v1285 = vsel %vm1215, 1, 0
  %v1286 = vsel %vm1216, 1, 0
  %v1287 = vsel %vm1217, 1, 0
  %v1288 = vsel %vm1218, 1, 0
  %v1289 = vsel %vm1219, 1, 0
  %v1290 = vsel %vm1220, 1, 0
  %v1291 = vsel %vm1221, 1, 0
  %v1292 = vsel %vm1222, 1, 0
  %v1293 = vsel %vm1223, 1, 0
  %v1294 = vsel %vm1224, 1, 0
  %v1295 = vsel %vm1225, 1, 0
  %v1296 = vsel %vm1226, 1, 0
  %v1297 = vcvt.s32.f32 %v1227
  %v1298 = vcvt.s32.f32 %v1228
  %v1299 = vcvt.s32.f32 %v1229
  %v1300 = vcvt.s32.f32 %v1230
  %v1301 = vcvt.s32.f32 %v1231
  %v1302 = vcvt.s32.f32 %v1232
  %v1303 = vcvt.s32.f32 %v1233
  %v1304 = vcvt.s32.f32 %v1234
  %v1305 = vcvt.s32.f32 %v1235
  %v1306 = vcvt.s32.f32 %v1236
  %v1307 = vcvt.s32.f32 %v1237
  %v1308 = vcvt.s32.f32 %v1238
  %v1309 = vcvt.s32.f32 %v1239
  %v1310 = vcvt.s32.f32 %v1240
  %v1311 = vcvt.s32.f32 %v1241
  %v1312 = vcvt.s32.f32 %v1242
  %v1313 = vcvt.s32.f32 %v1243
  %v1314 = vcvt.s32.f32 %v1244
  %v1315 = vcvt.s32.f32 %v1245
  %v1316 = vcvt.s32.f32 %v1246
  %v1317 = vcvt.s32.f32 %v1247
  %v1318 = vcvt.s32.f32 %v1248
  %v1319 = vcvt.s32.f32 %v1249
  %v1320 = vcvt.s32.f32 %v1250
  %v1321 = vcvt.s32.f32 %v1251
  %v1322 = vcvt.s32.f32 %v1252
  %v1323 = vcvt.s32.f32 %v1253
  %v1324 = vcvt.s32.f32 %v1254
  %v1325 = vcvt.s32.f32 %v1255
  %v1326 = vcvt.s32.f32 %v1256
  %v1327 = vcvt.s32.f32 %v1257
  %v1328 = vcvt.s32.f32 %v1258
  %v1329 = vcvt.s32.f32 %v1259
  %v1330 = vcvt.s32.f32 %v1260
  %v1331 = vcvt.s32.f32 %v1261
  %v1332 = vcvt.s32.f32 %v1262
  %v1333 = vcvt.s32.f32 %v1263
  %v1334 = vcvt.s32.f32 %v1264
  %v1335 = vcvt.s32.f32 %v1265
  %v1336 = vcvt.s32.f32 %v1266
  %v1337 = vcvt.s32.f32 %v1267
  %v1338 = vcvt.s32.f32 %v1268
  %v1339 = vcvt.s32.f32 %v1269
  %v1340 = vcvt.s32.f32 %v1270
  %v1341 = vcvt.s32.f32 %v1271
  %v1342 = vcvt.s32.f32 %v1272
  %v1343 = vcvt.s32.f32 %v1273
  %v1344 = vcvt.s32.f32 %v1274
  %v1345 = vcvt.s32.f32 %v1275
  %v1346 = vcvt.s32.f32 %v1276
  %v1347 = vcvt.s32.f32 %v1277
  %v1348 = vcvt.s32.f32 %v1278
  %v1349 = vcvt.s32.f32 %v1279
  %v1350 = vcvt.s32.f32 %v1280
  %v1351 = vcvt.s32.f32 %v1281
  %v1352 = vcvt.s32.f32 %v1282
  %v1353 = vcvt.s32.f32 %v1283
  %v1354 = vcvt.s32.f32 %v1284
  %v1355 = vcvt.s32.f32 %v1285
  %v1356 = vcvt.s32.f32 %v1286
  %v1357 = vcvt.s32.f32 %v1287
  %v1358 = vcvt.s32.f32 %v1288
  %v1359 = vcvt.s32.f32 %v1289
  %v1360 = vcvt.s32.f32 %v1290
  %v1361 = vcvt.s32.f32 %v1291
  %v1362 = vcvt.s32.f32 %v1292
  %v1363 = vcvt.s32.f32 %v1293
  %v1364 = vcvt.s32.f32 %v1294
  %v1365 = vcvt.s32.f32 %v1295
  %v1366 = vcvt.s32.f32 %v1296
  %v1367 = vld [vmem:[%s0] sm:$0xf]
  %v1368 = vld [vmem:[%s0 + $0x4] sm:$0xf]
  %v1369 = vld [vmem:[%s0 + $0x8] sm:$0xf]
  %v1370 = vld [vmem:[%s0 + $0xc] sm:$0xf]
  %v1371 = vld [vmem:[%s0 + $0x10] sm:$0xf]
  %v1372 = vld [vmem:[%s0 + $0x14] sm:$0xf]
  %v1373 = vld [vmem:[%s0 + $0x18] sm:$0xf]
  %v1374 = vld [vmem:[%s0 + $0x1c] sm:$0xf]
  %v1375 = vld [vmem:[%s0 + $0x20] sm:$0xf]
  %v1376 = vld [vmem:[%s0 + $0x24] sm:$0xf]
  %v1377 = vld [vmem:[%s0 + $0x28] sm:$0xf]
  %v1378 = vld [vmem:[%s0 + $0x2c] sm:$0xf]
  %v1379 = vld [vmem:[%s0 + $0x30] sm:$0xf]
  %v1380 = vld [vmem:[%s0 + $0x34] sm:$0xf]
  %v1381 = vld [vmem:[%s0 + $0x38] sm:$0xf]
  %v1382 = vld [vmem:[%s0 + $0x3c] sm:$0xf]
  %v1383 = vld [vmem:[%s0 + $0x40] sm:$0xf]
  %v1384 = vld [vmem:[%s0 + $0x44] sm:$0xf]
  %v1385 = vld [vmem:[%s0 + $0x48] sm:$0xf]
  %v1386 = vld [vmem:[%s0 + $0x4c] sm:$0xf]
  %v1387 = vld [vmem:[%s0 + $0x50] sm:$0xf]
  %v1388 = vld [vmem:[%s0 + $0x54] sm:$0xf]
  %v1389 = vld [vmem:[%s0 + $0x58] sm:$0xf]
  %v1390 = vld [vmem:[%s0 + $0x5c] sm:$0xf]
  %v1391 = vld [vmem:[%s0 + $0x60] sm:$0xf]
  %v1392 = vld [vmem:[%s0 + $0x64] sm:$0xf]
  %v1393 = vld [vmem:[%s0 + $0x68] sm:$0xf]
  %v1394 = vld [vmem:[%s0 + $0x6c] sm:$0xf]
  %v1395 = vld [vmem:[%s0 + $0x70] sm:$0xf]
  %v1396 = vld [vmem:[%s0 + $0x74] sm:$0xf]
  %v1397 = vld [vmem:[%s0 + $0x78] sm:$0xf]
  %v1398 = vld [vmem:[%s0 + $0x7c] sm:$0xf]
  %v1399 = vld [vmem:[%s0 + $0x80] sm:$0xf]
  %v1400 = vld [vmem:[%s0 + $0x84] sm:$0xf]
  %v1401 = vld [vmem:[%s0 + $0x88] sm:$0xf]
  %v1402 = vld [vmem:[%s0 + $0x8c] sm:$0xf]
  %v1403 = vld [vmem:[%s0 + $0x90] sm:$0xf]
  %v1404 = vld [vmem:[%s0 + $0x94] sm:$0xf]
  %v1405 = vld [vmem:[%s0 + $0x98] sm:$0xf]
  %v1406 = vld [vmem:[%s0 + $0x9c] sm:$0xf]
  %v1407 = vld [vmem:[%s0 + $0xa0] sm:$0xf]
  %v1408 = vld [vmem:[%s0 + $0xa4] sm:$0xf]
  %v1409 = vld [vmem:[%s0 + $0xa8] sm:$0xf]
  %v1410 = vld [vmem:[%s0 + $0xac] sm:$0xf]
  %v1411 = vld [vmem:[%s0 + $0xb0] sm:$0xf]
  %v1412 = vld [vmem:[%s0 + $0xb4] sm:$0xf]
  %v1413 = vld [vmem:[%s0 + $0xb8] sm:$0xf]
  %v1414 = vld [vmem:[%s0 + $0xbc] sm:$0xf]
  %v1415 = vld [vmem:[%s0 + $0xc0] sm:$0xf]
  %v1416 = vld [vmem:[%s0 + $0xc4] sm:$0xf]
  %v1417 = vld [vmem:[%s0 + $0xc8] sm:$0xf]
  %v1418 = vld [vmem:[%s0 + $0xcc] sm:$0xf]
  %v1419 = vld [vmem:[%s0 + $0xd0] sm:$0xf]
  %v1420 = vld [vmem:[%s0 + $0xd4] sm:$0xf]
  %v1421 = vld [vmem:[%s0 + $0xd8] sm:$0xf]
  %v1422 = vld [vmem:[%s0 + $0xdc] sm:$0xf]
  %v1423 = vld [vmem:[%s0 + $0xe0] sm:$0xf]
  %v1424 = vld [vmem:[%s0 + $0xe4] sm:$0xf]
  %v1425 = vld [vmem:[%s0 + $0xe8] sm:$0xf]
  %v1426 = vld [vmem:[%s0 + $0xec] sm:$0xf]
  %v1427 = vld [vmem:[%s0 + $0xf0] sm:$0xf]
  %v1428 = vld [vmem:[%s0 + $0xf4] sm:$0xf]
  %v1429 = vld [vmem:[%s0 + $0xf8] sm:$0xf]
  %v1430 = vld [vmem:[%s0 + $0xfc] sm:$0xf]
  %v1431 = vld [vmem:[%s1] sm:$0xf]
  %v1432 = vld [vmem:[%s1 + $0x4] sm:$0xf]
  %v1433 = vld [vmem:[%s1 + $0x8] sm:$0xf]
  %v1434 = vld [vmem:[%s1 + $0xc] sm:$0xf]
  %v1435 = vld [vmem:[%s1 + $0x10] sm:$0xf]
  %v1436 = vld [vmem:[%s1 + $0x14] sm:$0xf]
  %v1437 = vld [vmem:[%s1 + $0x18] sm:$0xf]
  %v1438 = vld [vmem:[%s1 + $0x1c] sm:$0xf]
  %v1439 = vld [vmem:[%s2] sm:$0x1]
  %v1441 = vlaneseq
  %v1442 = vshrl.u32 %v1441, 7
  %v1443 = vsub.s32 0, %v1442
  %v1444 = vrot.slane %v1439, %v1443
  %v1510 = vunpack.c.l.b16 %v1367
  %v1511 = vunpack.c.l.b16 %v1368
  %v1512 = vunpack.c.l.b16 %v1369
  %v1513 = vunpack.c.l.b16 %v1370
  %v1514 = vunpack.c.l.b16 %v1371
  %v1515 = vunpack.c.l.b16 %v1372
  %v1516 = vunpack.c.l.b16 %v1373
  %v1517 = vunpack.c.l.b16 %v1374
  %v1518 = vunpack.c.l.b16 %v1375
  %v1519 = vunpack.c.l.b16 %v1376
  %v1520 = vunpack.c.l.b16 %v1377
  %v1521 = vunpack.c.l.b16 %v1378
  %v1522 = vunpack.c.l.b16 %v1379
  %v1523 = vunpack.c.l.b16 %v1380
  %v1524 = vunpack.c.l.b16 %v1381
  %v1525 = vunpack.c.l.b16 %v1382
  %v1526 = vunpack.c.l.b16 %v1383
  %v1527 = vunpack.c.l.b16 %v1384
  %v1528 = vunpack.c.l.b16 %v1385
  %v1529 = vunpack.c.l.b16 %v1386
  %v1530 = vunpack.c.l.b16 %v1387
  %v1531 = vunpack.c.l.b16 %v1388
  %v1532 = vunpack.c.l.b16 %v1389
  %v1533 = vunpack.c.l.b16 %v1390
  %v1534 = vunpack.c.l.b16 %v1391
  %v1535 = vunpack.c.l.b16 %v1392
  %v1536 = vunpack.c.l.b16 %v1393
  %v1537 = vunpack.c.l.b16 %v1394
  %v1538 = vunpack.c.l.b16 %v1395
  %v1539 = vunpack.c.l.b16 %v1396
  %v1540 = vunpack.c.l.b16 %v1397
  %v1541 = vunpack.c.l.b16 %v1398
  %v1542 = vunpack.c.l.b16 %v1399
  %v1543 = vunpack.c.l.b16 %v1400
  %v1544 = vunpack.c.l.b16 %v1401
  %v1545 = vunpack.c.l.b16 %v1402
  %v1546 = vunpack.c.l.b16 %v1403
  %v1547 = vunpack.c.l.b16 %v1404
  %v1548 = vunpack.c.l.b16 %v1405
  %v1549 = vunpack.c.l.b16 %v1406
  %v1550 = vunpack.c.l.b16 %v1407
  %v1551 = vunpack.c.l.b16 %v1408
  %v1552 = vunpack.c.l.b16 %v1409
  %v1553 = vunpack.c.l.b16 %v1410
  %v1554 = vunpack.c.l.b16 %v1411
  %v1555 = vunpack.c.l.b16 %v1412
  %v1556 = vunpack.c.l.b16 %v1413
  %v1557 = vunpack.c.l.b16 %v1414
  %v1558 = vunpack.c.l.b16 %v1415
  %v1559 = vunpack.c.l.b16 %v1416
  %v1560 = vunpack.c.l.b16 %v1417
  %v1561 = vunpack.c.l.b16 %v1418
  %v1562 = vunpack.c.l.b16 %v1419
  %v1563 = vunpack.c.l.b16 %v1420
  %v1564 = vunpack.c.l.b16 %v1421
  %v1565 = vunpack.c.l.b16 %v1422
  %v1566 = vunpack.c.l.b16 %v1423
  %v1567 = vunpack.c.l.b16 %v1424
  %v1568 = vunpack.c.l.b16 %v1425
  %v1569 = vunpack.c.l.b16 %v1426
  %v1570 = vunpack.c.l.b16 %v1427
  %v1571 = vunpack.c.l.b16 %v1428
  %v1572 = vunpack.c.l.b16 %v1429
  %v1573 = vunpack.c.l.b16 %v1430
  %v1574 = vpack.c.b16 %v1511, %v1510
  %v1575 = vpack.c.b16 %v1513, %v1512
  %v1576 = vpack.c.b16 %v1515, %v1514
  %v1577 = vpack.c.b16 %v1517, %v1516
  %v1578 = vpack.c.b16 %v1519, %v1518
  %v1579 = vpack.c.b16 %v1521, %v1520
  %v1580 = vpack.c.b16 %v1523, %v1522
  %v1581 = vpack.c.b16 %v1525, %v1524
  %v1582 = vpack.c.b16 %v1527, %v1526
  %v1583 = vpack.c.b16 %v1529, %v1528
  %v1584 = vpack.c.b16 %v1531, %v1530
  %v1585 = vpack.c.b16 %v1533, %v1532
  %v1586 = vpack.c.b16 %v1535, %v1534
  %v1587 = vpack.c.b16 %v1537, %v1536
  %v1588 = vpack.c.b16 %v1539, %v1538
  %v1589 = vpack.c.b16 %v1541, %v1540
  %v1590 = vpack.c.b16 %v1543, %v1542
  %v1591 = vpack.c.b16 %v1545, %v1544
  %v1592 = vpack.c.b16 %v1547, %v1546
  %v1593 = vpack.c.b16 %v1549, %v1548
  %v1594 = vpack.c.b16 %v1551, %v1550
  %v1595 = vpack.c.b16 %v1553, %v1552
  %v1596 = vpack.c.b16 %v1555, %v1554
  %v1597 = vpack.c.b16 %v1557, %v1556
  %v1598 = vpack.c.b16 %v1559, %v1558
  %v1599 = vpack.c.b16 %v1561, %v1560
  %v1600 = vpack.c.b16 %v1563, %v1562
  %v1601 = vpack.c.b16 %v1565, %v1564
  %v1602 = vpack.c.b16 %v1567, %v1566
  %v1603 = vpack.c.b16 %v1569, %v1568
  %v1604 = vpack.c.b16 %v1571, %v1570
  %v1605 = vpack.c.b16 %v1573, %v1572
  %v1614 = vunpack.c.l.b16 %v1431
  %v1615 = vunpack.c.l.b16 %v1432
  %v1616 = vunpack.c.l.b16 %v1433
  %v1617 = vunpack.c.l.b16 %v1434
  %v1618 = vunpack.c.l.b16 %v1435
  %v1619 = vunpack.c.l.b16 %v1436
  %v1620 = vunpack.c.l.b16 %v1437
  %v1621 = vunpack.c.l.b16 %v1438
  %v1622 = vpack.c.b16 %v1615, %v1614
  %v1623 = vpack.c.b16 %v1617, %v1616
  %v1624 = vpack.c.b16 %v1619, %v1618
  %v1625 = vpack.c.b16 %v1621, %v1620
  %vm1630 = vcmask 523264
  %v1632 = vsel %vm1630, %v1574, 0
  %v1635 = vsel %vm1630, %v1575, 0
  %v1638 = vsel %vm1630, %v1576, 0
  %v1641 = vsel %vm1630, %v1577, 0
  %v1644 = vsel %vm1630, %v1578, 0
  %v1647 = vsel %vm1630, %v1579, 0
  %v1650 = vsel %vm1630, %v1580, 0
  %v1653 = vsel %vm1630, %v1581, 0
  %v1656 = vsel %vm1630, %v1582, 0
  %v1659 = vsel %vm1630, %v1583, 0
  %v1662 = vsel %vm1630, %v1584, 0
  %v1665 = vsel %vm1630, %v1585, 0
  %v1668 = vsel %vm1630, %v1586, 0
  %v1671 = vsel %vm1630, %v1587, 0
  %v1674 = vsel %vm1630, %v1588, 0
  %v1677 = vsel %vm1630, %v1589, 0
  %v1680 = vsel %vm1630, %v1590, 0
  %v1683 = vsel %vm1630, %v1591, 0
  %v1686 = vsel %vm1630, %v1592, 0
  %v1689 = vsel %vm1630, %v1593, 0
  %v1692 = vsel %vm1630, %v1594, 0
  %v1695 = vsel %vm1630, %v1595, 0
  %v1698 = vsel %vm1630, %v1596, 0
  %v1701 = vsel %vm1630, %v1597, 0
  %v1704 = vsel %vm1630, %v1598, 0
  %v1707 = vsel %vm1630, %v1599, 0
  %v1710 = vsel %vm1630, %v1600, 0
  %v1713 = vsel %vm1630, %v1601, 0
  %v1716 = vsel %vm1630, %v1602, 0
  %v1719 = vsel %vm1630, %v1603, 0
  %v1722 = vsel %vm1630, %v1604, 0
  %v1725 = vsel %vm1630, %v1605, 0
  %1727 = vmatprep.subr.bf16.mxu0 0
  %1728 = vmatpush1.bf16.msra.mxu0 %v1622
  %1729 = vmatprep.subr.bf16.mxu0 0
  %1730 = vmatpush1.bf16.msra.mxu0 %v1623
  %1731 = vmatprep.subr.bf16.mxu0 0
  %1732 = vmatpush1.bf16.msra.mxu0 %v1624
  %1733 = vmatprep.subr.bf16.mxu0 0
  %1734 = vmatpush1.bf16.msra.mxu0 %v1625
  %1735 = vmatprep.subr.bf16.mxu0 0
  %1736 = vmatpush1.bf16.msra.mxu0 0
  %1737 = vmatprep.subr.bf16.mxu0 0
  %1738 = vmatpush1.bf16.msra.mxu0 0
  %1739 = vmatprep.subr.bf16.mxu0 0
  %1740 = vmatpush1.bf16.msra.mxu0 0
  %1741 = vmatprep.subr.bf16.mxu0 0
  %1742 = vmatpush1.bf16.msra.mxu0 0
  %1743 = vmatprep.subr.bf16.mxu0 0
  %1744 = vmatpush1.bf16.msra.mxu0 0
  %1745 = vmatprep.subr.bf16.mxu0 0
  %1746 = vmatpush1.bf16.msra.mxu0 0
  %1747 = vmatprep.subr.bf16.mxu0 0
  %1748 = vmatpush1.bf16.msra.mxu0 0
  %1749 = vmatprep.subr.bf16.mxu0 0
  %1750 = vmatpush1.bf16.msra.mxu0 0
  %1751 = vmatprep.subr.bf16.mxu0 0
  %1752 = vmatpush1.bf16.msra.mxu0 0
  %1753 = vmatprep.subr.bf16.mxu0 0
  %1754 = vmatpush1.bf16.msra.mxu0 0
  %1755 = vmatprep.subr.bf16.mxu0 0
  %1756 = vmatpush1.bf16.msra.mxu0 0
  %1757 = vmatprep.subr.bf16.mxu0 0
  %1758 = vmatpush1.bf16.msra.mxu0 0
  %1759 = vmatprep.mubr.bf16.mxu0 0
  %1760 = vmatmul.mubr.bf16.gmra.mrb[0].mxu0 %v1632
  %v1761 = vpop.f32.mrb[0].mxu0
  %v1762 = vadd.f32 %v1444, %v1761
  %v1763 = vpop.f32.mrb[0].mxu0
  %v1764 = vpop.f32.mrb[0].mxu0
  %v1765 = vadd.f32 %v1444, %v1764
  %v1766 = vpop.f32.mrb[0].mxu0
  %1767 = vmatprep.mubr.bf16.mxu0 0
  %1768 = vmatmul.mubr.bf16.gmra.mrb[0].mxu0 %v1635
  %v1769 = vpop.f32.mrb[0].mxu0
  %v1770 = vadd.f32 %v1444, %v1769
  %v1771 = vpop.f32.mrb[0].mxu0
  %v1772 = vpop.f32.mrb[0].mxu0
  %v1773 = vadd.f32 %v1444, %v1772
  %v1774 = vpop.f32.mrb[0].mxu0
  %1775 = vmatprep.mubr.bf16.mxu0 0
  %1776 = vmatmul.mubr.bf16.gmra.mrb[0].mxu0 %v1638
  %v1777 = vpop.f32.mrb[0].mxu0
  %v1778 = vadd.f32 %v1444, %v1777
  %v1779 = vpop.f32.mrb[0].mxu0
  %v1780 = vpop.f32.mrb[0].mxu0
  %v1781 = vadd.f32 %v1444, %v1780
  %v1782 = vpop.f32.mrb[0].mxu0
  %1783 = vmatprep.mubr.bf16.mxu0 0
  %1784 = vmatmul.mubr.bf16.gmra.mrb[0].mxu0 %v1641
  %v1785 = vpop.f32.mrb[0].mxu0
  %v1786 = vadd.f32 %v1444, %v1785
  %v1787 = vpop.f32.mrb[0].mxu0
  %v1788 = vpop.f32.mrb[0].mxu0
  %v1789 = vadd.f32 %v1444, %v1788
  %v1790 = vpop.f32.mrb[0].mxu0
  %1791 = vmatprep.mubr.bf16.mxu0 0
  %1792 = vmatmul.mubr.bf16.gmra.mrb[0].mxu0 %v1644
  %v1793 = vpop.f32.mrb[0].mxu0
  %v1794 = vadd.f32 %v1444, %v1793
  %v1795 = vpop.f32.mrb[0].mxu0
  %v1796 = vpop.f32.mrb[0].mxu0
  %v1797 = vadd.f32 %v1444, %v1796
  %v1798 = vpop.f32.mrb[0].mxu0
  %1799 = vmatprep.mubr.bf16.mxu0 0
  %1800 = vmatmul.mubr.bf16.gmra.mrb[0].mxu0 %v1647
  %v1801 = vpop.f32.mrb[0].mxu0
  %v1802 = vadd.f32 %v1444, %v1801
  %v1803 = vpop.f32.mrb[0].mxu0
  %v1804 = vpop.f32.mrb[0].mxu0
  %v1805 = vadd.f32 %v1444, %v1804
  %v1806 = vpop.f32.mrb[0].mxu0
  %1807 = vmatprep.mubr.bf16.mxu0 0
  %1808 = vmatmul.mubr.bf16.gmra.mrb[0].mxu0 %v1650
  %v1809 = vpop.f32.mrb[0].mxu0
  %v1810 = vadd.f32 %v1444, %v1809
  %v1811 = vpop.f32.mrb[0].mxu0
  %v1812 = vpop.f32.mrb[0].mxu0
  %v1813 = vadd.f32 %v1444, %v1812
  %v1814 = vpop.f32.mrb[0].mxu0
  %1815 = vmatprep.mubr.bf16.mxu0 0
  %1816 = vmatmul.mubr.bf16.gmra.mrb[0].mxu0 %v1653
  %v1817 = vpop.f32.mrb[0].mxu0
  %v1818 = vadd.f32 %v1444, %v1817
  %v1819 = vpop.f32.mrb[0].mxu0
  %v1820 = vpop.f32.mrb[0].mxu0
  %v1821 = vadd.f32 %v1444, %v1820
  %v1822 = vpop.f32.mrb[0].mxu0
  %1823 = vmatprep.mubr.bf16.mxu0 0
  %1824 = vmatmul.mubr.bf16.gmra.mrb[0].mxu0 %v1656
  %v1825 = vpop.f32.mrb[0].mxu0
  %v1826 = vadd.f32 %v1444, %v1825
  %v1827 = vpop.f32.mrb[0].mxu0
  %v1828 = vpop.f32.mrb[0].mxu0
  %v1829 = vadd.f32 %v1444, %v1828
  %v1830 = vpop.f32.mrb[0].mxu0
  %1831 = vmatprep.mubr.bf16.mxu0 0
  %1832 = vmatmul.mubr.bf16.gmra.mrb[0].mxu0 %v1659
  %v1833 = vpop.f32.mrb[0].mxu0
  %v1834 = vadd.f32 %v1444, %v1833
  %v1835 = vpop.f32.mrb[0].mxu0
  %v1836 = vpop.f32.mrb[0].mxu0
  %v1837 = vadd.f32 %v1444, %v1836
  %v1838 = vpop.f32.mrb[0].mxu0
  %1839 = vmatprep.mubr.bf16.mxu0 0
  %1840 = vmatmul.mubr.bf16.gmra.mrb[0].mxu0 %v1662
  %v1841 = vpop.f32.mrb[0].mxu0
  %v1842 = vadd.f32 %v1444, %v1841
  %v1843 = vpop.f32.mrb[0].mxu0
  %v1844 = vpop.f32.mrb[0].mxu0
  %v1845 = vadd.f32 %v1444, %v1844
  %v1846 = vpop.f32.mrb[0].mxu0
  %1847 = vmatprep.mubr.bf16.mxu0 0
  %1848 = vmatmul.mubr.bf16.gmra.mrb[0].mxu0 %v1665
  %v1849 = vpop.f32.mrb[0].mxu0
  %v1850 = vadd.f32 %v1444, %v1849
  %v1851 = vpop.f32.mrb[0].mxu0
  %v1852 = vpop.f32.mrb[0].mxu0
  %v1853 = vadd.f32 %v1444, %v1852
  %v1854 = vpop.f32.mrb[0].mxu0
  %1855 = vmatprep.mubr.bf16.mxu0 0
  %1856 = vmatmul.mubr.bf16.gmra.mrb[0].mxu0 %v1668
  %v1857 = vpop.f32.mrb[0].mxu0
  %v1858 = vadd.f32 %v1444, %v1857
  %v1859 = vpop.f32.mrb[0].mxu0
  %v1860 = vpop.f32.mrb[0].mxu0
  %v1861 = vadd.f32 %v1444, %v1860
  %v1862 = vpop.f32.mrb[0].mxu0
  %1863 = vmatprep.mubr.bf16.mxu0 0
  %1864 = vmatmul.mubr.bf16.gmra.mrb[0].mxu0 %v1671
  %v1865 = vpop.f32.mrb[0].mxu0
  %v1866 = vadd.f32 %v1444, %v1865
  %v1867 = vpop.f32.mrb[0].mxu0
  %v1868 = vpop.f32.mrb[0].mxu0
  %v1869 = vadd.f32 %v1444, %v1868
  %v1870 = vpop.f32.mrb[0].mxu0
  %1871 = vmatprep.mubr.bf16.mxu0 0
  %1872 = vmatmul.mubr.bf16.gmra.mrb[0].mxu0 %v1674
  %v1873 = vpop.f32.mrb[0].mxu0
  %v1874 = vadd.f32 %v1444, %v1873
  %v1875 = vpop.f32.mrb[0].mxu0
  %v1876 = vpop.f32.mrb[0].mxu0
  %v1877 = vadd.f32 %v1444, %v1876
  %v1878 = vpop.f32.mrb[0].mxu0
  %1879 = vmatprep.mubr.bf16.mxu0 0
  %1880 = vmatmul.mubr.bf16.gmra.mrb[0].mxu0 %v1677
  %v1881 = vpop.f32.mrb[0].mxu0
  %v1882 = vadd.f32 %v1444, %v1881
  %v1883 = vpop.f32.mrb[0].mxu0
  %v1884 = vpop.f32.mrb[0].mxu0
  %v1885 = vadd.f32 %v1444, %v1884
  %v1886 = vpop.f32.mrb[0].mxu0
  %1887 = vmatprep.mubr.bf16.mxu0 0
  %1888 = vmatmul.mubr.bf16.gmra.mrb[0].mxu0 %v1680
  %v1889 = vpop.f32.mrb[0].mxu0
  %v1890 = vadd.f32 %v1444, %v1889
  %v1891 = vpop.f32.mrb[0].mxu0
  %v1892 = vpop.f32.mrb[0].mxu0
  %v1893 = vadd.f32 %v1444, %v1892
  %v1894 = vpop.f32.mrb[0].mxu0
  %1895 = vmatprep.mubr.bf16.mxu0 0
  %1896 = vmatmul.mubr.bf16.gmra.mrb[0].mxu0 %v1683
  %v1897 = vpop.f32.mrb[0].mxu0
  %v1898 = vadd.f32 %v1444, %v1897
  %v1899 = vpop.f32.mrb[0].mxu0
  %v1900 = vpop.f32.mrb[0].mxu0
  %v1901 = vadd.f32 %v1444, %v1900
  %v1902 = vpop.f32.mrb[0].mxu0
  %1903 = vmatprep.mubr.bf16.mxu0 0
  %1904 = vmatmul.mubr.bf16.gmra.mrb[0].mxu0 %v1686
  %v1905 = vpop.f32.mrb[0].mxu0
  %v1906 = vadd.f32 %v1444, %v1905
  %v1907 = vpop.f32.mrb[0].mxu0
  %v1908 = vpop.f32.mrb[0].mxu0
  %v1909 = vadd.f32 %v1444, %v1908
  %v1910 = vpop.f32.mrb[0].mxu0
  %1911 = vmatprep.mubr.bf16.mxu0 0
  %1912 = vmatmul.mubr.bf16.gmra.mrb[0].mxu0 %v1689
  %v1913 = vpop.f32.mrb[0].mxu0
  %v1914 = vadd.f32 %v1444, %v1913
  %v1915 = vpop.f32.mrb[0].mxu0
  %v1916 = vpop.f32.mrb[0].mxu0
  %v1917 = vadd.f32 %v1444, %v1916
  %v1918 = vpop.f32.mrb[0].mxu0
  %1919 = vmatprep.mubr.bf16.mxu0 0
  %1920 = vmatmul.mubr.bf16.gmra.mrb[0].mxu0 %v1692
  %v1921 = vpop.f32.mrb[0].mxu0
  %v1922 = vadd.f32 %v1444, %v1921
  %v1923 = vpop.f32.mrb[0].mxu0
  %v1924 = vpop.f32.mrb[0].mxu0
  %v1925 = vadd.f32 %v1444, %v1924
  %v1926 = vpop.f32.mrb[0].mxu0
  %1927 = vmatprep.mubr.bf16.mxu0 0
  %1928 = vmatmul.mubr.bf16.gmra.mrb[0].mxu0 %v1695
  %v1929 = vpop.f32.mrb[0].mxu0
  %v1930 = vadd.f32 %v1444, %v1929
  %v1931 = vpop.f32.mrb[0].mxu0
  %v1932 = vpop.f32.mrb[0].mxu0
  %v1933 = vadd.f32 %v1444, %v1932
  %v1934 = vpop.f32.mrb[0].mxu0
  %1935 = vmatprep.mubr.bf16.mxu0 0
  %1936 = vmatmul.mubr.bf16.gmra.mrb[0].mxu0 %v1698
  %v1937 = vpop.f32.mrb[0].mxu0
  %v1938 = vadd.f32 %v1444, %v1937
  %v1939 = vpop.f32.mrb[0].mxu0
  %v1940 = vpop.f32.mrb[0].mxu0
  %v1941 = vadd.f32 %v1444, %v1940
  %v1942 = vpop.f32.mrb[0].mxu0
  %1943 = vmatprep.mubr.bf16.mxu0 0
  %1944 = vmatmul.mubr.bf16.gmra.mrb[0].mxu0 %v1701
  %v1945 = vpop.f32.mrb[0].mxu0
  %v1946 = vadd.f32 %v1444, %v1945
  %v1947 = vpop.f32.mrb[0].mxu0
  %v1948 = vpop.f32.mrb[0].mxu0
  %v1949 = vadd.f32 %v1444, %v1948
  %v1950 = vpop.f32.mrb[0].mxu0
  %1951 = vmatprep.mubr.bf16.mxu0 0
  %1952 = vmatmul.mubr.bf16.gmra.mrb[0].mxu0 %v1704
  %v1953 = vpop.f32.mrb[0].mxu0
  %v1954 = vadd.f32 %v1444, %v1953
  %v1955 = vpop.f32.mrb[0].mxu0
  %v1956 = vpop.f32.mrb[0].mxu0
  %v1957 = vadd.f32 %v1444, %v1956
  %v1958 = vpop.f32.mrb[0].mxu0
  %1959 = vmatprep.mubr.bf16.mxu0 0
  %1960 = vmatmul.mubr.bf16.gmra.mrb[0].mxu0 %v1707
  %v1961 = vpop.f32.mrb[0].mxu0
  %v1962 = vadd.f32 %v1444, %v1961
  %v1963 = vpop.f32.mrb[0].mxu0
  %v1964 = vpop.f32.mrb[0].mxu0
  %v1965 = vadd.f32 %v1444, %v1964
  %v1966 = vpop.f32.mrb[0].mxu0
  %1967 = vmatprep.mubr.bf16.mxu0 0
  %1968 = vmatmul.mubr.bf16.gmra.mrb[0].mxu0 %v1710
  %v1969 = vpop.f32.mrb[0].mxu0
  %v1970 = vadd.f32 %v1444, %v1969
  %v1971 = vpop.f32.mrb[0].mxu0
  %v1972 = vpop.f32.mrb[0].mxu0
  %v1973 = vadd.f32 %v1444, %v1972
  %v1974 = vpop.f32.mrb[0].mxu0
  %1975 = vmatprep.mubr.bf16.mxu0 0
  %1976 = vmatmul.mubr.bf16.gmra.mrb[0].mxu0 %v1713
  %v1977 = vpop.f32.mrb[0].mxu0
  %v1978 = vadd.f32 %v1444, %v1977
  %v1979 = vpop.f32.mrb[0].mxu0
  %v1980 = vpop.f32.mrb[0].mxu0
  %v1981 = vadd.f32 %v1444, %v1980
  %v1982 = vpop.f32.mrb[0].mxu0
  %1983 = vmatprep.mubr.bf16.mxu0 0
  %1984 = vmatmul.mubr.bf16.gmra.mrb[0].mxu0 %v1716
  %v1985 = vpop.f32.mrb[0].mxu0
  %v1986 = vadd.f32 %v1444, %v1985
  %v1987 = vpop.f32.mrb[0].mxu0
  %v1988 = vpop.f32.mrb[0].mxu0
  %v1989 = vadd.f32 %v1444, %v1988
  %v1990 = vpop.f32.mrb[0].mxu0
  %1991 = vmatprep.mubr.bf16.mxu0 0
  %1992 = vmatmul.mubr.bf16.gmra.mrb[0].mxu0 %v1719
  %v1993 = vpop.f32.mrb[0].mxu0
  %v1994 = vadd.f32 %v1444, %v1993
  %v1995 = vpop.f32.mrb[0].mxu0
  %v1996 = vpop.f32.mrb[0].mxu0
  %v1997 = vadd.f32 %v1444, %v1996
  %v1998 = vpop.f32.mrb[0].mxu0
  %1999 = vmatprep.mubr.bf16.mxu0 0
  %2000 = vmatmul.mubr.bf16.gmra.mrb[0].mxu0 %v1722
  %v2001 = vpop.f32.mrb[0].mxu0
  %v2002 = vadd.f32 %v1444, %v2001
  %v2003 = vpop.f32.mrb[0].mxu0
  %v2004 = vpop.f32.mrb[0].mxu0
  %v2005 = vadd.f32 %v1444, %v2004
  %v2006 = vpop.f32.mrb[0].mxu0
  %2007 = vmatprep.mubr.bf16.mxu0 0
  %2008 = vmatmul.mubr.bf16.gmra.mrb[0].mxu0 %v1725
  %v2009 = vpop.f32.mrb[0].mxu0
  %v2010 = vadd.f32 %v1444, %v2009
  %v2011 = vpop.f32.mrb[0].mxu0
  %v2012 = vpop.f32.mrb[0].mxu0
  %v2013 = vadd.f32 %v1444, %v2012
  %v2014 = vpop.f32.mrb[0].mxu0
  %2015 = vdwg.mxu0
  %v2016 = vmax.f32 %v1762, 0.0
  %v2017 = vmax.f32 %v1765, 0.0
  %v2018 = vmax.f32 %v1770, 0.0
  %v2019 = vmax.f32 %v1773, 0.0
  %v2020 = vmax.f32 %v1778, 0.0
  %v2021 = vmax.f32 %v1781, 0.0
  %v2022 = vmax.f32 %v1786, 0.0
  %v2023 = vmax.f32 %v1789, 0.0
  %v2024 = vmax.f32 %v1794, 0.0
  %v2025 = vmax.f32 %v1797, 0.0
  %v2026 = vmax.f32 %v1802, 0.0
  %v2027 = vmax.f32 %v1805, 0.0
  %v2028 = vmax.f32 %v1810, 0.0
  %v2029 = vmax.f32 %v1813, 0.0
  %v2030 = vmax.f32 %v1818, 0.0
  %v2031 = vmax.f32 %v1821, 0.0
  %v2032 = vmax.f32 %v1826, 0.0
  %v2033 = vmax.f32 %v1829, 0.0
  %v2034 = vmax.f32 %v1834, 0.0
  %v2035 = vmax.f32 %v1837, 0.0
  %v2036 = vmax.f32 %v1842, 0.0
  %v2037 = vmax.f32 %v1845, 0.0
  %v2038 = vmax.f32 %v1850, 0.0
  %v2039 = vmax.f32 %v1853, 0.0
  %v2040 = vmax.f32 %v1858, 0.0
  %v2041 = vmax.f32 %v1861, 0.0
  %v2042 = vmax.f32 %v1866, 0.0
  %v2043 = vmax.f32 %v1869, 0.0
  %v2044 = vmax.f32 %v1874, 0.0
  %v2045 = vmax.f32 %v1877, 0.0
  %v2046 = vmax.f32 %v1882, 0.0
  %v2047 = vmax.f32 %v1885, 0.0
  %v2048 = vmax.f32 %v1890, 0.0
  %v2049 = vmax.f32 %v1893, 0.0
  %v2050 = vmax.f32 %v1898, 0.0
  %v2051 = vmax.f32 %v1901, 0.0
  %v2052 = vmax.f32 %v1906, 0.0
  %v2053 = vmax.f32 %v1909, 0.0
  %v2054 = vmax.f32 %v1914, 0.0
  %v2055 = vmax.f32 %v1917, 0.0
  %v2056 = vmax.f32 %v1922, 0.0
  %v2057 = vmax.f32 %v1925, 0.0
  %v2058 = vmax.f32 %v1930, 0.0
  %v2059 = vmax.f32 %v1933, 0.0
  %v2060 = vmax.f32 %v1938, 0.0
  %v2061 = vmax.f32 %v1941, 0.0
  %v2062 = vmax.f32 %v1946, 0.0
  %v2063 = vmax.f32 %v1949, 0.0
  %v2064 = vmax.f32 %v1954, 0.0
  %v2065 = vmax.f32 %v1957, 0.0
  %v2066 = vmax.f32 %v1962, 0.0
  %v2067 = vmax.f32 %v1965, 0.0
  %v2068 = vmax.f32 %v1970, 0.0
  %v2069 = vmax.f32 %v1973, 0.0
  %v2070 = vmax.f32 %v1978, 0.0
  %v2071 = vmax.f32 %v1981, 0.0
  %v2072 = vmax.f32 %v1986, 0.0
  %v2073 = vmax.f32 %v1989, 0.0
  %v2074 = vmax.f32 %v1994, 0.0
  %v2075 = vmax.f32 %v1997, 0.0
  %v2076 = vmax.f32 %v2002, 0.0
  %v2077 = vmax.f32 %v2005, 0.0
  %v2078 = vmax.f32 %v2010, 0.0
  %v2079 = vmax.f32 %v2013, 0.0
  %2080 = vst.msk [vmem:[#allocation2 + $0x18] sm:$0xff] %vm27, %v2016
  %2081 = vst.msk [vmem:[#allocation2 + $0x20] sm:$0xff] %vm27, %v2017
  %2082 = vst.msk [vmem:[#allocation2 + $0x28] sm:$0xff] %vm27, %v2018
  %2083 = vst.msk [vmem:[#allocation2 + $0x30] sm:$0xff] %vm27, %v2019
  %2084 = vst.msk [vmem:[#allocation2 + $0x38] sm:$0xff] %vm27, %v2020
  %2085 = vst.msk [vmem:[#allocation2 + $0x40] sm:$0xff] %vm27, %v2021
  %2086 = vst.msk [vmem:[#allocation2 + $0x48] sm:$0xff] %vm27, %v2022
  %2087 = vst.msk [vmem:[#allocation2 + $0x50] sm:$0xff] %vm27, %v2023
  %2088 = vst.msk [vmem:[#allocation2 + $0x58] sm:$0xff] %vm27, %v2024
  %2089 = vst.msk [vmem:[#allocation2 + $0x60] sm:$0xff] %vm27, %v2025
  %2090 = vst.msk [vmem:[#allocation2 + $0x68] sm:$0xff] %vm27, %v2026
  %2091 = vst.msk [vmem:[#allocation2 + $0x70] sm:$0xff] %vm27, %v2027
  %2092 = vst.msk [vmem:[#allocation2 + $0x78] sm:$0xff] %vm27, %v2028
  %2093 = vst.msk [vmem:[#allocation2 + $0x80] sm:$0xff] %vm27, %v2029
  %2094 = vst.msk [vmem:[#allocation2 + $0x88] sm:$0xff] %vm27, %v2030
  %2095 = vst.msk [vmem:[#allocation2 + $0x90] sm:$0xff] %vm27, %v2031
  %2096 = vst.msk [vmem:[#allocation2 + $0x98] sm:$0xff] %vm27, %v2032
  %2097 = vst.msk [vmem:[#allocation2 + $0xa0] sm:$0xff] %vm27, %v2033
  %2098 = vst.msk [vmem:[#allocation2 + $0xa8] sm:$0xff] %vm27, %v2034
  %2099 = vst.msk [vmem:[#allocation2 + $0xb0] sm:$0xff] %vm27, %v2035
  %2100 = vst.msk [vmem:[#allocation2 + $0xb8] sm:$0xff] %vm27, %v2036
  %2101 = vst.msk [vmem:[#allocation2 + $0xc0] sm:$0xff] %vm27, %v2037
  %2102 = vst.msk [vmem:[#allocation2 + $0xc8] sm:$0xff] %vm27, %v2038
  %2103 = vst.msk [vmem:[#allocation2 + $0xd0] sm:$0xff] %vm27, %v2039
  %2104 = vst.msk [vmem:[#allocation2 + $0xd8] sm:$0xff] %vm27, %v2040
  %2105 = vst.msk [vmem:[#allocation2 + $0xe0] sm:$0xff] %vm27, %v2041
  %2106 = vst.msk [vmem:[#allocation2 + $0xe8] sm:$0xff] %vm27, %v2042
  %2107 = vst.msk [vmem:[#allocation2 + $0xf0] sm:$0xff] %vm27, %v2043
  %2108 = vst.msk [vmem:[#allocation2 + $0xf8] sm:$0xff] %vm27, %v2044
  %2109 = vst.msk [vmem:[#allocation2 + $0x100] sm:$0xff] %vm27, %v2045
  %2110 = vst.msk [vmem:[#allocation2 + $0x108] sm:$0xff] %vm27, %v2046
  %2111 = vst.msk [vmem:[#allocation2 + $0x110] sm:$0xff] %vm27, %v2047
  %2112 = vst.msk [vmem:[#allocation2 + $0x128] sm:$0xff] %vm27, %v2048
  %2113 = vst.msk [vmem:[#allocation2 + $0x130] sm:$0xff] %vm27, %v2049
  %2114 = vst.msk [vmem:[#allocation2 + $0x138] sm:$0xff] %vm27, %v2050
  %2115 = vst.msk [vmem:[#allocation2 + $0x140] sm:$0xff] %vm27, %v2051
  %2116 = vst.msk [vmem:[#allocation2 + $0x148] sm:$0xff] %vm27, %v2052
  %2117 = vst.msk [vmem:[#allocation2 + $0x150] sm:$0xff] %vm27, %v2053
  %2118 = vst.msk [vmem:[#allocation2 + $0x158] sm:$0xff] %vm27, %v2054
  %2119 = vst.msk [vmem:[#allocation2 + $0x160] sm:$0xff] %vm27, %v2055
  %2120 = vst.msk [vmem:[#allocation2 + $0x168] sm:$0xff] %vm27, %v2056
  %2121 = vst.msk [vmem:[#allocation2 + $0x170] sm:$0xff] %vm27, %v2057
  %2122 = vst.msk [vmem:[#allocation2 + $0x178] sm:$0xff] %vm27, %v2058
  %2123 = vst.msk [vmem:[#allocation2 + $0x180] sm:$0xff] %vm27, %v2059
  %2124 = vst.msk [vmem:[#allocation2 + $0x188] sm:$0xff] %vm27, %v2060
  %2125 = vst.msk [vmem:[#allocation2 + $0x190] sm:$0xff] %vm27, %v2061
  %2126 = vst.msk [vmem:[#allocation2 + $0x198] sm:$0xff] %vm27, %v2062
  %2127 = vst.msk [vmem:[#allocation2 + $0x1a0] sm:$0xff] %vm27, %v2063
  %2128 = vst.msk [vmem:[#allocation2 + $0x1a8] sm:$0xff] %vm27, %v2064
  %2129 = vst.msk [vmem:[#allocation2 + $0x1b0] sm:$0xff] %vm27, %v2065
  %2130 = vst.msk [vmem:[#allocation2 + $0x1b8] sm:$0xff] %vm27, %v2066
  %2131 = vst.msk [vmem:[#allocation2 + $0x1c0] sm:$0xff] %vm27, %v2067
  %2132 = vst.msk [vmem:[#allocation2 + $0x1c8] sm:$0xff] %vm27, %v2068
  %2133 = vst.msk [vmem:[#allocation2 + $0x1d0] sm:$0xff] %vm27, %v2069
  %2134 = vst.msk [vmem:[#allocation2 + $0x1d8] sm:$0xff] %vm27, %v2070
  %2135 = vst.msk [vmem:[#allocation2 + $0x1e0] sm:$0xff] %vm27, %v2071
  %2136 = vst.msk [vmem:[#allocation2 + $0x1e8] sm:$0xff] %vm27, %v2072
  %2137 = vst.msk [vmem:[#allocation2 + $0x1f0] sm:$0xff] %vm27, %v2073
  %2138 = vst.msk [vmem:[#allocation2 + $0x1f8] sm:$0xff] %vm27, %v2074
  %2139 = vst.msk [vmem:[#allocation2 + $0x200] sm:$0xff] %vm27, %v2075
  %2140 = vst.msk [vmem:[#allocation2 + $0x208] sm:$0xff] %vm27, %v2076
  %2141 = vst.msk [vmem:[#allocation2 + $0x210] sm:$0xff] %vm27, %v2077
  %2142 = vst.msk [vmem:[#allocation2 + $0x218] sm:$0xff] %vm27, %v2078
  %2143 = vst.msk [vmem:[#allocation2 + $0x220] sm:$0xff] %vm27, %v2079
  %v2144 = vld [vmem:[#allocation2 + $0x8] sm:$0xff]
  %v2145 = vld [vmem:[#allocation2 + $0x10] sm:$0xff]
  %v2146 = vld [vmem:[#allocation2 + $0x18] sm:$0xff]
  %v2147 = vld [vmem:[#allocation2 + $0x20] sm:$0xff]
  %v2148 = vld [vmem:[#allocation2 + $0x28] sm:$0xff]
  %v2149 = vld [vmem:[#allocation2 + $0x30] sm:$0xff]
  %v2150 = vld [vmem:[#allocation2 + $0x38] sm:$0xff]
  %v2151 = vld [vmem:[#allocation2 + $0x40] sm:$0xff]
  %v2152 = vld [vmem:[#allocation2 + $0x48] sm:$0xff]
  %v2153 = vld [vmem:[#allocation2 + $0x50] sm:$0xff]
  %v2154 = vld [vmem:[#allocation2 + $0x58] sm:$0xff]
  %v2155 = vld [vmem:[#allocation2 + $0x60] sm:$0xff]
  %v2156 = vld [vmem:[#allocation2 + $0x68] sm:$0xff]
  %v2157 = vld [vmem:[#allocation2 + $0x70] sm:$0xff]
  %v2158 = vld [vmem:[#allocation2 + $0x78] sm:$0xff]
  %v2159 = vld [vmem:[#allocation2 + $0x80] sm:$0xff]
  %v2160 = vld [vmem:[#allocation2 + $0x88] sm:$0xff]
  %v2161 = vld [vmem:[#allocation2 + $0x90] sm:$0xff]
  %v2162 = vld [vmem:[#allocation2 + $0x98] sm:$0xff]
  %v2163 = vld [vmem:[#allocation2 + $0xa0] sm:$0xff]
  %v2164 = vld [vmem:[#allocation2 + $0xa8] sm:$0xff]
  %v2165 = vld [vmem:[#allocation2 + $0xb0] sm:$0xff]
  %v2166 = vld [vmem:[#allocation2 + $0xb8] sm:$0xff]
  %v2167 = vld [vmem:[#allocation2 + $0xc0] sm:$0xff]
  %v2168 = vld [vmem:[#allocation2 + $0xc8] sm:$0xff]
  %v2169 = vld [vmem:[#allocation2 + $0xd0] sm:$0xff]
  %v2170 = vld [vmem:[#allocation2 + $0xd8] sm:$0xff]
  %v2171 = vld [vmem:[#allocation2 + $0xe0] sm:$0xff]
  %v2172 = vld [vmem:[#allocation2 + $0xe8] sm:$0xff]
  %v2173 = vld [vmem:[#allocation2 + $0xf0] sm:$0xff]
  %v2174 = vld [vmem:[#allocation2 + $0xf8] sm:$0xff]
  %v2175 = vld [vmem:[#allocation2 + $0x100] sm:$0xff]
  %v2176 = vld [vmem:[#allocation2 + $0x108] sm:$0xff]
  %v2177 = vld [vmem:[#allocation2 + $0x110] sm:$0xff]
  %v2178 = vld [vmem:[#allocation2 + $0x118] sm:$0xff]
  %v2179 = vld [vmem:[#allocation2 + $0x120] sm:$0xff]
  %v2180 = vld [vmem:[#allocation2 + $0x128] sm:$0xff]
  %v2181 = vld [vmem:[#allocation2 + $0x130] sm:$0xff]
  %v2182 = vld [vmem:[#allocation2 + $0x138] sm:$0xff]
  %v2183 = vld [vmem:[#allocation2 + $0x140] sm:$0xff]
  %v2184 = vld [vmem:[#allocation2 + $0x148] sm:$0xff]
  %v2185 = vld [vmem:[#allocation2 + $0x150] sm:$0xff]
  %v2186 = vld [vmem:[#allocation2 + $0x158] sm:$0xff]
  %v2187 = vld [vmem:[#allocation2 + $0x160] sm:$0xff]
  %v2188 = vld [vmem:[#allocation2 + $0x168] sm:$0xff]
  %v2189 = vld [vmem:[#allocation2 + $0x170] sm:$0xff]
  %v2190 = vld [vmem:[#allocation2 + $0x178] sm:$0xff]
  %v2191 = vld [vmem:[#allocation2 + $0x180] sm:$0xff]
  %v2192 = vld [vmem:[#allocation2 + $0x188] sm:$0xff]
  %v2193 = vld [vmem:[#allocation2 + $0x190] sm:$0xff]
  %v2194 = vld [vmem:[#allocation2 + $0x198] sm:$0xff]
  %v2195 = vld [vmem:[#allocation2 + $0x1a0] sm:$0xff]
  %v2196 = vld [vmem:[#allocation2 + $0x1a8] sm:$0xff]
  %v2197 = vld [vmem:[#allocation2 + $0x1b0] sm:$0xff]
  %v2198 = vld [vmem:[#allocation2 + $0x1b8] sm:$0xff]
  %v2199 = vld [vmem:[#allocation2 + $0x1c0] sm:$0xff]
  %v2200 = vld [vmem:[#allocation2 + $0x1c8] sm:$0xff]
  %v2201 = vld [vmem:[#allocation2 + $0x1d0] sm:$0xff]
  %v2202 = vld [vmem:[#allocation2 + $0x1d8] sm:$0xff]
  %v2203 = vld [vmem:[#allocation2 + $0x1e0] sm:$0xff]
  %v2204 = vld [vmem:[#allocation2 + $0x1e8] sm:$0xff]
  %v2205 = vld [vmem:[#allocation2 + $0x1f0] sm:$0xff]
  %v2206 = vld [vmem:[#allocation2 + $0x1f8] sm:$0xff]
  %v2207 = vld [vmem:[#allocation2 + $0x200] sm:$0xff]
  %v2208 = vld [vmem:[#allocation2 + $0x208] sm:$0xff]
  %v2209 = vld [vmem:[#allocation2 + $0x210] sm:$0xff]
  %v2210 = vld [vmem:[#allocation2 + $0x218] sm:$0xff]
  %v2211 = vld [vmem:[#allocation2 + $0x220] sm:$0xff]
  %v2212 = vld [vmem:[#allocation2 + $0x228] sm:$0xff]
  %v2213 = vld [vmem:[#allocation2 + $0x230] sm:$0xff]
  %v2214 = vpack.c.bf16 %v2145, %v2144
  %v2215 = vpack.c.bf16 %v2147, %v2146
  %v2216 = vpack.c.bf16 %v2149, %v2148
  %v2217 = vpack.c.bf16 %v2151, %v2150
  %v2218 = vpack.c.bf16 %v2153, %v2152
  %v2219 = vpack.c.bf16 %v2155, %v2154
  %v2220 = vpack.c.bf16 %v2157, %v2156
  %v2221 = vpack.c.bf16 %v2159, %v2158
  %v2222 = vpack.c.bf16 %v2161, %v2160
  %v2223 = vpack.c.bf16 %v2163, %v2162
  %v2224 = vpack.c.bf16 %v2165, %v2164
  %v2225 = vpack.c.bf16 %v2167, %v2166
  %v2226 = vpack.c.bf16 %v2169, %v2168
  %v2227 = vpack.c.bf16 %v2171, %v2170
  %v2228 = vpack.c.bf16 %v2173, %v2172
  %v2229 = vpack.c.bf16 %v2175, %v2174
  %v2230 = vpack.c.bf16 %v2177, %v2176
  %v2231 = vpack.c.bf16 %v2179, %v2178
  %v2232 = vpack.c.bf16 %v2181, %v2180
  %v2233 = vpack.c.bf16 %v2183, %v2182
  %v2234 = vpack.c.bf16 %v2185, %v2184
  %v2235 = vpack.c.bf16 %v2187, %v2186
  %v2236 = vpack.c.bf16 %v2189, %v2188
  %v2237 = vpack.c.bf16 %v2191, %v2190
  %v2238 = vpack.c.bf16 %v2193, %v2192
  %v2239 = vpack.c.bf16 %v2195, %v2194
  %v2240 = vpack.c.bf16 %v2197, %v2196
  %v2241 = vpack.c.bf16 %v2199, %v2198
  %v2242 = vpack.c.bf16 %v2201, %v2200
  %v2243 = vpack.c.bf16 %v2203, %v2202
  %v2244 = vpack.c.bf16 %v2205, %v2204
  %v2245 = vpack.c.bf16 %v2207, %v2206
  %v2246 = vpack.c.bf16 %v2209, %v2208
  %v2247 = vpack.c.bf16 %v2211, %v2210
  %v2248 = vpack.c.bf16 %v2213, %v2212
  %v2249 = vld [vmem:[#allocation2 + $0x7] sm:$0xff]
  %v2250 = vld [vmem:[#allocation2 + $0xf] sm:$0xff]
  %v2251 = vld [vmem:[#allocation2 + $0x17] sm:$0xff]
  %v2252 = vld [vmem:[#allocation2 + $0x1f] sm:$0xff]
  %v2253 = vld [vmem:[#allocation2 + $0x27] sm:$0xff]
  %v2254 = vld [vmem:[#allocation2 + $0x2f] sm:$0xff]
  %v2255 = vld [vmem:[#allocation2 + $0x37] sm:$0xff]
  %v2256 = vld [vmem:[#allocation2 + $0x3f] sm:$0xff]
  %v2257 = vld [vmem:[#allocation2 + $0x47] sm:$0xff]
  %v2258 = vld [vmem:[#allocation2 + $0x4f] sm:$0xff]
  %v2259 = vld [vmem:[#allocation2 + $0x57] sm:$0xff]
  %v2260 = vld [vmem:[#allocation2 + $0x5f] sm:$0xff]
  %v2261 = vld [vmem:[#allocation2 + $0x67] sm:$0xff]
  %v2262 = vld [vmem:[#allocation2 + $0x6f] sm:$0xff]
  %v2263 = vld [vmem:[#allocation2 + $0x77] sm:$0xff]
  %v2264 = vld [vmem:[#allocation2 + $0x7f] sm:$0xff]
  %v2265 = vld [vmem:[#allocation2 + $0x87] sm:$0xff]
  %v2266 = vld [vmem:[#allocation2 + $0x8f] sm:$0xff]
  %v2267 = vld [vmem:[#allocation2 + $0x97] sm:$0xff]
  %v2268 = vld [vmem:[#allocation2 + $0x9f] sm:$0xff]
  %v2269 = vld [vmem:[#allocation2 + $0xa7] sm:$0xff]
  %v2270 = vld [vmem:[#allocation2 + $0xaf] sm:$0xff]
  %v2271 = vld [vmem:[#allocation2 + $0xb7] sm:$0xff]
  %v2272 = vld [vmem:[#allocation2 + $0xbf] sm:$0xff]
  %v2273 = vld [vmem:[#allocation2 + $0xc7] sm:$0xff]
  %v2274 = vld [vmem:[#allocation2 + $0xcf] sm:$0xff]
  %v2275 = vld [vmem:[#allocation2 + $0xd7] sm:$0xff]
  %v2276 = vld [vmem:[#allocation2 + $0xdf] sm:$0xff]
  %v2277 = vld [vmem:[#allocation2 + $0xe7] sm:$0xff]
  %v2278 = vld [vmem:[#allocation2 + $0xef] sm:$0xff]
  %v2279 = vld [vmem:[#allocation2 + $0xf7] sm:$0xff]
  %v2280 = vld [vmem:[#allocation2 + $0xff] sm:$0xff]
  %v2281 = vld [vmem:[#allocation2 + $0x107] sm:$0xff]
  %v2282 = vld [vmem:[#allocation2 + $0x10f] sm:$0xff]
  %v2283 = vld [vmem:[#allocation2 + $0x117] sm:$0xff]
  %v2284 = vld [vmem:[#allocation2 + $0x11f] sm:$0xff]
  %v2285 = vld [vmem:[#allocation2 + $0x127] sm:$0xff]
  %v2286 = vld [vmem:[#allocation2 + $0x12f] sm:$0xff]
  %v2287 = vld [vmem:[#allocation2 + $0x137] sm:$0xff]
  %v2288 = vld [vmem:[#allocation2 + $0x13f] sm:$0xff]
  %v2289 = vld [vmem:[#allocation2 + $0x147] sm:$0xff]
  %v2290 = vld [vmem:[#allocation2 + $0x14f] sm:$0xff]
  %v2291 = vld [vmem:[#allocation2 + $0x157] sm:$0xff]
  %v2292 = vld [vmem:[#allocation2 + $0x15f] sm:$0xff]
  %v2293 = vld [vmem:[#allocation2 + $0x167] sm:$0xff]
  %v2294 = vld [vmem:[#allocation2 + $0x16f] sm:$0xff]
  %v2295 = vld [vmem:[#allocation2 + $0x177] sm:$0xff]
  %v2296 = vld [vmem:[#allocation2 + $0x17f] sm:$0xff]
  %v2297 = vld [vmem:[#allocation2 + $0x187] sm:$0xff]
  %v2298 = vld [vmem:[#allocation2 + $0x18f] sm:$0xff]
  %v2299 = vld [vmem:[#allocation2 + $0x197] sm:$0xff]
  %v2300 = vld [vmem:[#allocation2 + $0x19f] sm:$0xff]
  %v2301 = vld [vmem:[#allocation2 + $0x1a7] sm:$0xff]
  %v2302 = vld [vmem:[#allocation2 + $0x1af] sm:$0xff]
  %v2303 = vld [vmem:[#allocation2 + $0x1b7] sm:$0xff]
  %v2304 = vld [vmem:[#allocation2 + $0x1bf] sm:$0xff]
  %v2305 = vld [vmem:[#allocation2 + $0x1c7] sm:$0xff]
  %v2306 = vld [vmem:[#allocation2 + $0x1cf] sm:$0xff]
  %v2307 = vld [vmem:[#allocation2 + $0x1d7] sm:$0xff]
  %v2308 = vld [vmem:[#allocation2 + $0x1df] sm:$0xff]
  %v2309 = vld [vmem:[#allocation2 + $0x1e7] sm:$0xff]
  %v2310 = vld [vmem:[#allocation2 + $0x1ef] sm:$0xff]
  %v2311 = vld [vmem:[#allocation2 + $0x1f7] sm:$0xff]
  %v2312 = vld [vmem:[#allocation2 + $0x1ff] sm:$0xff]
  %v2313 = vld [vmem:[#allocation2 + $0x207] sm:$0xff]
  %v2314 = vld [vmem:[#allocation2 + $0x20f] sm:$0xff]
  %v2315 = vld [vmem:[#allocation2 + $0x217] sm:$0xff]
  %v2316 = vld [vmem:[#allocation2 + $0x21f] sm:$0xff]
  %v2317 = vld [vmem:[#allocation2 + $0x227] sm:$0xff]
  %v2318 = vld [vmem:[#allocation2 + $0x22f] sm:$0xff]
  %v2319 = vmul.f32 %v2249, %v1087
  %v2320 = vmul.f32 %v2250, %v1088
  %v2321 = vmul.f32 %v2251, %v1089
  %v2322 = vmul.f32 %v2252, %v1090
  %v2323 = vmul.f32 %v2253, %v1091
  %v2324 = vmul.f32 %v2254, %v1092
  %v2325 = vmul.f32 %v2255, %v1093
  %v2326 = vmul.f32 %v2256, %v1094
  %v2327 = vmul.f32 %v2257, %v1095
  %v2328 = vmul.f32 %v2258, %v1096
  %v2329 = vmul.f32 %v2259, %v1097
  %v2330 = vmul.f32 %v2260, %v1098
  %v2331 = vmul.f32 %v2261, %v1099
  %v2332 = vmul.f32 %v2262, %v1100
  %v2333 = vmul.f32 %v2263, %v1101
  %v2334 = vmul.f32 %v2264, %v1102
  %v2335 = vmul.f32 %v2265, %v1103
  %v2336 = vmul.f32 %v2266, %v1104
  %v2337 = vmul.f32 %v2267, %v1105
  %v2338 = vmul.f32 %v2268, %v1106
  %v2339 = vmul.f32 %v2269, %v1107
  %v2340 = vmul.f32 %v2270, %v1108
  %v2341 = vmul.f32 %v2271, %v1109
  %v2342 = vmul.f32 %v2272, %v1110
  %v2343 = vmul.f32 %v2273, %v1111
  %v2344 = vmul.f32 %v2274, %v1112
  %v2345 = vmul.f32 %v2275, %v1113
  %v2346 = vmul.f32 %v2276, %v1114
  %v2347 = vmul.f32 %v2277, %v1115
  %v2348 = vmul.f32 %v2278, %v1116
  %v2349 = vmul.f32 %v2279, %v1117
  %v2350 = vmul.f32 %v2280, %v1118
  %v2351 = vmul.f32 %v2281, %v1119
  %v2352 = vmul.f32 %v2282, %v1120
  %v2353 = vmul.f32 %v2283, %v1121
  %v2354 = vmul.f32 %v2284, %v1122
  %v2355 = vmul.f32 %v2285, %v1123
  %v2356 = vmul.f32 %v2286, %v1124
  %v2357 = vmul.f32 %v2287, %v1125
  %v2358 = vmul.f32 %v2288, %v1126
  %v2359 = vmul.f32 %v2289, %v1127
  %v2360 = vmul.f32 %v2290, %v1128
  %v2361 = vmul.f32 %v2291, %v1129
  %v2362 = vmul.f32 %v2292, %v1130
  %v2363 = vmul.f32 %v2293, %v1131
  %v2364 = vmul.f32 %v2294, %v1132
  %v2365 = vmul.f32 %v2295, %v1133
  %v2366 = vmul.f32 %v2296, %v1134
  %v2367 = vmul.f32 %v2297, %v1135
  %v2368 = vmul.f32 %v2298, %v1136
  %v2369 = vmul.f32 %v2299, %v1137
  %v2370 = vmul.f32 %v2300, %v1138
  %v2371 = vmul.f32 %v2301, %v1139
  %v2372 = vmul.f32 %v2302, %v1140
  %v2373 = vmul.f32 %v2303, %v1141
  %v2374 = vmul.f32 %v2304, %v1142
  %v2375 = vmul.f32 %v2305, %v1143
  %v2376 = vmul.f32 %v2306, %v1144
  %v2377 = vmul.f32 %v2307, %v1145
  %v2378 = vmul.f32 %v2308, %v1146
  %v2379 = vmul.f32 %v2309, %v1147
  %v2380 = vmul.f32 %v2310, %v1148
  %v2381 = vmul.f32 %v2311, %v1149
  %v2382 = vmul.f32 %v2312, %v1150
  %v2383 = vmul.f32 %v2313, %v1151
  %v2384 = vmul.f32 %v2314, %v1152
  %v2385 = vmul.f32 %v2315, %v1153
  %v2386 = vmul.f32 %v2316, %v1154
  %v2387 = vmul.f32 %v2317, %v1155
  %v2388 = vmul.f32 %v2318, %v1156
  %v2389 = vpack.c.bf16 %v2320, %v2319
  %v2390 = vpack.c.bf16 %v2322, %v2321
  %v2391 = vpack.c.bf16 %v2324, %v2323
  %v2392 = vpack.c.bf16 %v2326, %v2325
  %v2393 = vpack.c.bf16 %v2328, %v2327
  %v2394 = vpack.c.bf16 %v2330, %v2329
  %v2395 = vpack.c.bf16 %v2332, %v2331
  %v2396 = vpack.c.bf16 %v2334, %v2333
  %v2397 = vpack.c.bf16 %v2336, %v2335
  %v2398 = vpack.c.bf16 %v2338, %v2337
  %v2399 = vpack.c.bf16 %v2340, %v2339
  %v2400 = vpack.c.bf16 %v2342, %v2341
  %v2401 = vpack.c.bf16 %v2344, %v2343
  %v2402 = vpack.c.bf16 %v2346, %v2345
  %v2403 = vpack.c.bf16 %v2348, %v2347
  %v2404 = vpack.c.bf16 %v2350, %v2349
  %v2405 = vpack.c.bf16 %v2352, %v2351
  %v2406 = vpack.c.bf16 %v2354, %v2353
  %v2407 = vpack.c.bf16 %v2356, %v2355
  %v2408 = vpack.c.bf16 %v2358, %v2357
  %v2409 = vpack.c.bf16 %v2360, %v2359
  %v2410 = vpack.c.bf16 %v2362, %v2361
  %v2411 = vpack.c.bf16 %v2364, %v2363
  %v2412 = vpack.c.bf16 %v2366, %v2365
  %v2413 = vpack.c.bf16 %v2368, %v2367
  %v2414 = vpack.c.bf16 %v2370, %v2369
  %v2415 = vpack.c.bf16 %v2372, %v2371
  %v2416 = vpack.c.bf16 %v2374, %v2373
  %v2417 = vpack.c.bf16 %v2376, %v2375
  %v2418 = vpack.c.bf16 %v2378, %v2377
  %v2419 = vpack.c.bf16 %v2380, %v2379
  %v2420 = vpack.c.bf16 %v2382, %v2381
  %v2421 = vpack.c.bf16 %v2384, %v2383
  %v2422 = vpack.c.bf16 %v2386, %v2385
  %v2423 = vpack.c.bf16 %v2388, %v2387
  %v2424 = vld [vmem:[#allocation2 + $0x9] sm:$0xff]
  %v2425 = vld [vmem:[#allocation2 + $0x11] sm:$0xff]
  %v2426 = vld [vmem:[#allocation2 + $0x19] sm:$0xff]
  %v2427 = vld [vmem:[#allocation2 + $0x21] sm:$0xff]
  %v2428 = vld [vmem:[#allocation2 + $0x29] sm:$0xff]
  %v2429 = vld [vmem:[#allocation2 + $0x31] sm:$0xff]
  %v2430 = vld [vmem:[#allocation2 + $0x39] sm:$0xff]
  %v2431 = vld [vmem:[#allocation2 + $0x41] sm:$0xff]
  %v2432 = vld [vmem:[#allocation2 + $0x49] sm:$0xff]
  %v2433 = vld [vmem:[#allocation2 + $0x51] sm:$0xff]
  %v2434 = vld [vmem:[#allocation2 + $0x59] sm:$0xff]
  %v2435 = vld [vmem:[#allocation2 + $0x61] sm:$0xff]
  %v2436 = vld [vmem:[#allocation2 + $0x69] sm:$0xff]
  %v2437 = vld [vmem:[#allocation2 + $0x71] sm:$0xff]
  %v2438 = vld [vmem:[#allocation2 + $0x79] sm:$0xff]
  %v2439 = vld [vmem:[#allocation2 + $0x81] sm:$0xff]
  %v2440 = vld [vmem:[#allocation2 + $0x89] sm:$0xff]
  %v2441 = vld [vmem:[#allocation2 + $0x91] sm:$0xff]
  %v2442 = vld [vmem:[#allocation2 + $0x99] sm:$0xff]
  %v2443 = vld [vmem:[#allocation2 + $0xa1] sm:$0xff]
  %v2444 = vld [vmem:[#allocation2 + $0xa9] sm:$0xff]
  %v2445 = vld [vmem:[#allocation2 + $0xb1] sm:$0xff]
  %v2446 = vld [vmem:[#allocation2 + $0xb9] sm:$0xff]
  %v2447 = vld [vmem:[#allocation2 + $0xc1] sm:$0xff]
  %v2448 = vld [vmem:[#allocation2 + $0xc9] sm:$0xff]
  %v2449 = vld [vmem:[#allocation2 + $0xd1] sm:$0xff]
  %v2450 = vld [vmem:[#allocation2 + $0xd9] sm:$0xff]
  %v2451 = vld [vmem:[#allocation2 + $0xe1] sm:$0xff]
  %v2452 = vld [vmem:[#allocation2 + $0xe9] sm:$0xff]
  %v2453 = vld [vmem:[#allocation2 + $0xf1] sm:$0xff]
  %v2454 = vld [vmem:[#allocation2 + $0xf9] sm:$0xff]
  %v2455 = vld [vmem:[#allocation2 + $0x101] sm:$0xff]
  %v2456 = vld [vmem:[#allocation2 + $0x109] sm:$0xff]
  %v2457 = vld [vmem:[#allocation2 + $0x111] sm:$0xff]
  %v2458 = vld [vmem:[#allocation2 + $0x119] sm:$0xff]
  %v2459 = vld [vmem:[#allocation2 + $0x121] sm:$0xff]
  %v2460 = vld [vmem:[#allocation2 + $0x129] sm:$0xff]
  %v2461 = vld [vmem:[#allocation2 + $0x131] sm:$0xff]
  %v2462 = vld [vmem:[#allocation2 + $0x139] sm:$0xff]
  %v2463 = vld [vmem:[#allocation2 + $0x141] sm:$0xff]
  %v2464 = vld [vmem:[#allocation2 + $0x149] sm:$0xff]
  %v2465 = vld [vmem:[#allocation2 + $0x151] sm:$0xff]
  %v2466 = vld [vmem:[#allocation2 + $0x159] sm:$0xff]
  %v2467 = vld [vmem:[#allocation2 + $0x161] sm:$0xff]
  %v2468 = vld [vmem:[#allocation2 + $0x169] sm:$0xff]
  %v2469 = vld [vmem:[#allocation2 + $0x171] sm:$0xff]
  %v2470 = vld [vmem:[#allocation2 + $0x179] sm:$0xff]
  %v2471 = vld [vmem:[#allocation2 + $0x181] sm:$0xff]
  %v2472 = vld [vmem:[#allocation2 + $0x189] sm:$0xff]
  %v2473 = vld [vmem:[#allocation2 + $0x191] sm:$0xff]
  %v2474 = vld [vmem:[#allocation2 + $0x199] sm:$0xff]
  %v2475 = vld [vmem:[#allocation2 + $0x1a1] sm:$0xff]
  %v2476 = vld [vmem:[#allocation2 + $0x1a9] sm:$0xff]
  %v2477 = vld [vmem:[#allocation2 + $0x1b1] sm:$0xff]
  %v2478 = vld [vmem:[#allocation2 + $0x1b9] sm:$0xff]
  %v2479 = vld [vmem:[#allocation2 + $0x1c1] sm:$0xff]
  %v2480 = vld [vmem:[#allocation2 + $0x1c9] sm:$0xff]
  %v2481 = vld [vmem:[#allocation2 + $0x1d1] sm:$0xff]
  %v2482 = vld [vmem:[#allocation2 + $0x1d9] sm:$0xff]
  %v2483 = vld [vmem:[#allocation2 + $0x1e1] sm:$0xff]
  %v2484 = vld [vmem:[#allocation2 + $0x1e9] sm:$0xff]
  %v2485 = vld [vmem:[#allocation2 + $0x1f1] sm:$0xff]
  %v2486 = vld [vmem:[#allocation2 + $0x1f9] sm:$0xff]
  %v2487 = vld [vmem:[#allocation2 + $0x201] sm:$0xff]
  %v2488 = vld [vmem:[#allocation2 + $0x209] sm:$0xff]
  %v2489 = vld [vmem:[#allocation2 + $0x211] sm:$0xff]
  %v2490 = vld [vmem:[#allocation2 + $0x219] sm:$0xff]
  %v2491 = vld [vmem:[#allocation2 + $0x221] sm:$0xff]
  %v2492 = vld [vmem:[#allocation2 + $0x229] sm:$0xff]
  %v2493 = vld [vmem:[#allocation2 + $0x231] sm:$0xff]
  %v2494 = vmul.f32 %v2424, %v1297
  %v2495 = vmul.f32 %v2425, %v1298
  %v2496 = vmul.f32 %v2426, %v1299
  %v2497 = vmul.f32 %v2427, %v1300
  %v2498 = vmul.f32 %v2428, %v1301
  %v2499 = vmul.f32 %v2429, %v1302
  %v2500 = vmul.f32 %v2430, %v1303
  %v2501 = vmul.f32 %v2431, %v1304
  %v2502 = vmul.f32 %v2432, %v1305
  %v2503 = vmul.f32 %v2433, %v1306
  %v2504 = vmul.f32 %v2434, %v1307
  %v2505 = vmul.f32 %v2435, %v1308
  %v2506 = vmul.f32 %v2436, %v1309
  %v2507 = vmul.f32 %v2437, %v1310
  %v2508 = vmul.f32 %v2438, %v1311
  %v2509 = vmul.f32 %v2439, %v1312
  %v2510 = vmul.f32 %v2440, %v1313
  %v2511 = vmul.f32 %v2441, %v1314
  %v2512 = vmul.f32 %v2442, %v1315
  %v2513 = vmul.f32 %v2443, %v1316
  %v2514 = vmul.f32 %v2444, %v1317
  %v2515 = vmul.f32 %v2445, %v1318
  %v2516 = vmul.f32 %v2446, %v1319
  %v2517 = vmul.f32 %v2447, %v1320
  %v2518 = vmul.f32 %v2448, %v1321
  %v2519 = vmul.f32 %v2449, %v1322
  %v2520 = vmul.f32 %v2450, %v1323
  %v2521 = vmul.f32 %v2451, %v1324
  %v2522 = vmul.f32 %v2452, %v1325
  %v2523 = vmul.f32 %v2453, %v1326
  %v2524 = vmul.f32 %v2454, %v1327
  %v2525 = vmul.f32 %v2455, %v1328
  %v2526 = vmul.f32 %v2456, %v1329
  %v2527 = vmul.f32 %v2457, %v1330
  %v2528 = vmul.f32 %v2458, %v1331
  %v2529 = vmul.f32 %v2459, %v1332
  %v2530 = vmul.f32 %v2460, %v1333
  %v2531 = vmul.f32 %v2461, %v1334
  %v2532 = vmul.f32 %v2462, %v1335
  %v2533 = vmul.f32 %v2463, %v1336
  %v2534 = vmul.f32 %v2464, %v1337
  %v2535 = vmul.f32 %v2465, %v1338
  %v2536 = vmul.f32 %v2466, %v1339
  %v2537 = vmul.f32 %v2467, %v1340
  %v2538 = vmul.f32 %v2468, %v1341
  %v2539 = vmul.f32 %v2469, %v1342
  %v2540 = vmul.f32 %v2470, %v1343
  %v2541 = vmul.f32 %v2471, %v1344
  %v2542 = vmul.f32 %v2472, %v1345
  %v2543 = vmul.f32 %v2473, %v1346
  %v2544 = vmul.f32 %v2474, %v1347
  %v2545 = vmul.f32 %v2475, %v1348
  %v2546 = vmul.f32 %v2476, %v1349
  %v2547 = vmul.f32 %v2477, %v1350
  %v2548 = vmul.f32 %v2478, %v1351
  %v2549 = vmul.f32 %v2479, %v1352
  %v2550 = vmul.f32 %v2480, %v1353
  %v2551 = vmul.f32 %v2481, %v1354
  %v2552 = vmul.f32 %v2482, %v1355
  %v2553 = vmul.f32 %v2483, %v1356
  %v2554 = vmul.f32 %v2484, %v1357
  %v2555 = vmul.f32 %v2485, %v1358
  %v2556 = vmul.f32 %v2486, %v1359
  %v2557 = vmul.f32 %v2487, %v1360
  %v2558 = vmul.f32 %v2488, %v1361
  %v2559 = vmul.f32 %v2489, %v1362
  %v2560 = vmul.f32 %v2490, %v1363
  %v2561 = vmul.f32 %v2491, %v1364
  %v2562 = vmul.f32 %v2492, %v1365
  %v2563 = vmul.f32 %v2493, %v1366
  %v2564 = vpack.c.bf16 %v2495, %v2494
  %v2565 = vpack.c.bf16 %v2497, %v2496
  %v2566 = vpack.c.bf16 %v2499, %v2498
  %v2567 = vpack.c.bf16 %v2501, %v2500
  %v2568 = vpack.c.bf16 %v2503, %v2502
  %v2569 = vpack.c.bf16 %v2505, %v2504
  %v2570 = vpack.c.bf16 %v2507, %v2506
  %v2571 = vpack.c.bf16 %v2509, %v2508
  %v2572 = vpack.c.bf16 %v2511, %v2510
  %v2573 = vpack.c.bf16 %v2513, %v2512
  %v2574 = vpack.c.bf16 %v2515, %v2514
  %v2575 = vpack.c.bf16 %v2517, %v2516
  %v2576 = vpack.c.bf16 %v2519, %v2518
  %v2577 = vpack.c.bf16 %v2521, %v2520
  %v2578 = vpack.c.bf16 %v2523, %v2522
  %v2579 = vpack.c.bf16 %v2525, %v2524
  %v2580 = vpack.c.bf16 %v2527, %v2526
  %v2581 = vpack.c.bf16 %v2529, %v2528
  %v2582 = vpack.c.bf16 %v2531, %v2530
  %v2583 = vpack.c.bf16 %v2533, %v2532
  %v2584 = vpack.c.bf16 %v2535, %v2534
  %v2585 = vpack.c.bf16 %v2537, %v2536
  %v2586 = vpack.c.bf16 %v2539, %v2538
  %v2587 = vpack.c.bf16 %v2541, %v2540
  %v2588 = vpack.c.bf16 %v2543, %v2542
  %v2589 = vpack.c.bf16 %v2545, %v2544
  %v2590 = vpack.c.bf16 %v2547, %v2546
  %v2591 = vpack.c.bf16 %v2549, %v2548
  %v2592 = vpack.c.bf16 %v2551, %v2550
  %v2593 = vpack.c.bf16 %v2553, %v2552
  %v2594 = vpack.c.bf16 %v2555, %v2554
  %v2595 = vpack.c.bf16 %v2557, %v2556
  %v2596 = vpack.c.bf16 %v2559, %v2558
  %v2597 = vpack.c.bf16 %v2561, %v2560
  %v2598 = vpack.c.bf16 %v2563, %v2562
  %2632 = vrot.lane.b32.xlu0 %v2214, 32
  %v2633 = vpop.permute.xlu0 %2632
  %2634 = vrot.lane.b32.xlu0 %v2215, 32
  %v2635 = vpop.permute.xlu0 %2634
  %2636 = vrot.lane.b32.xlu0 %v2216, 32
  %v2637 = vpop.permute.xlu0 %2636
  %2638 = vrot.lane.b32.xlu0 %v2217, 32
  %v2639 = vpop.permute.xlu0 %2638
  %2640 = vrot.lane.b32.xlu0 %v2218, 32
  %v2641 = vpop.permute.xlu0 %2640
  %2642 = vrot.lane.b32.xlu0 %v2219, 32
  %v2643 = vpop.permute.xlu0 %2642
  %2644 = vrot.lane.b32.xlu0 %v2220, 32
  %v2645 = vpop.permute.xlu0 %2644
  %2646 = vrot.lane.b32.xlu0 %v2221, 32
  %v2647 = vpop.permute.xlu0 %2646
  %2648 = vrot.lane.b32.xlu0 %v2222, 32
  %v2649 = vpop.permute.xlu0 %2648
  %2650 = vrot.lane.b32.xlu0 %v2223, 32
  %v2651 = vpop.permute.xlu0 %2650
  %2652 = vrot.lane.b32.xlu0 %v2224, 32
  %v2653 = vpop.permute.xlu0 %2652
  %2654 = vrot.lane.b32.xlu0 %v2225, 32
  %v2655 = vpop.permute.xlu0 %2654
  %2656 = vrot.lane.b32.xlu0 %v2226, 32
  %v2657 = vpop.permute.xlu0 %2656
  %2658 = vrot.lane.b32.xlu0 %v2227, 32
  %v2659 = vpop.permute.xlu0 %2658
  %2660 = vrot.lane.b32.xlu0 %v2228, 32
  %v2661 = vpop.permute.xlu0 %2660
  %2662 = vrot.lane.b32.xlu0 %v2229, 32
  %v2663 = vpop.permute.xlu0 %2662
  %2664 = vrot.lane.b32.xlu0 %v2230, 32
  %v2665 = vpop.permute.xlu0 %2664
  %2666 = vrot.lane.b32.xlu0 %v2231, 32
  %v2667 = vpop.permute.xlu0 %2666
  %2668 = vrot.lane.b32.xlu0 %v2232, 32
  %v2669 = vpop.permute.xlu0 %2668
  %2670 = vrot.lane.b32.xlu0 %v2233, 32
  %v2671 = vpop.permute.xlu0 %2670
  %2672 = vrot.lane.b32.xlu0 %v2234, 32
  %v2673 = vpop.permute.xlu0 %2672
  %2674 = vrot.lane.b32.xlu0 %v2235, 32
  %v2675 = vpop.permute.xlu0 %2674
  %2676 = vrot.lane.b32.xlu0 %v2236, 32
  %v2677 = vpop.permute.xlu0 %2676
  %2678 = vrot.lane.b32.xlu0 %v2237, 32
  %v2679 = vpop.permute.xlu0 %2678
  %2680 = vrot.lane.b32.xlu0 %v2238, 32
  %v2681 = vpop.permute.xlu0 %2680
  %2682 = vrot.lane.b32.xlu0 %v2239, 32
  %v2683 = vpop.permute.xlu0 %2682
  %2684 = vrot.lane.b32.xlu0 %v2240, 32
  %v2685 = vpop.permute.xlu0 %2684
  %2686 = vrot.lane.b32.xlu0 %v2241, 32
  %v2687 = vpop.permute.xlu0 %2686
  %2688 = vrot.lane.b32.xlu0 %v2242, 32
  %v2689 = vpop.permute.xlu0 %2688
  %2690 = vrot.lane.b32.xlu0 %v2243, 32
  %v2691 = vpop.permute.xlu0 %2690
  %2692 = vrot.lane.b32.xlu0 %v2244, 32
  %v2693 = vpop.permute.xlu0 %2692
  %2694 = vrot.lane.b32.xlu0 %v2245, 32
  %v2695 = vpop.permute.xlu0 %2694
  %2696 = vrot.lane.b32.xlu0 %v2246, 32
  %v2697 = vpop.permute.xlu0 %2696
  %2731 = vrot.lane.b32.xlu0 %v2564, 64
  %v2732 = vpop.permute.xlu0 %2731
  %2733 = vrot.lane.b32.xlu0 %v2565, 64
  %v2734 = vpop.permute.xlu0 %2733
  %2735 = vrot.lane.b32.xlu0 %v2566, 64
  %v2736 = vpop.permute.xlu0 %2735
  %2737 = vrot.lane.b32.xlu0 %v2567, 64
  %v2738 = vpop.permute.xlu0 %2737
  %2739 = vrot.lane.b32.xlu0 %v2568, 64
  %v2740 = vpop.permute.xlu0 %2739
  %2741 = vrot.lane.b32.xlu0 %v2569, 64
  %v2742 = vpop.permute.xlu0 %2741
  %2743 = vrot.lane.b32.xlu0 %v2570, 64
  %v2744 = vpop.permute.xlu0 %2743
  %2745 = vrot.lane.b32.xlu0 %v2571, 64
  %v2746 = vpop.permute.xlu0 %2745
  %2747 = vrot.lane.b32.xlu0 %v2572, 64
  %v2748 = vpop.permute.xlu0 %2747
  %2749 = vrot.lane.b32.xlu0 %v2573, 64
  %v2750 = vpop.permute.xlu0 %2749
  %2751 = vrot.lane.b32.xlu0 %v2574, 64
  %v2752 = vpop.permute.xlu0 %2751
  %2753 = vrot.lane.b32.xlu0 %v2575, 64
  %v2754 = vpop.permute.xlu0 %2753
  %2755 = vrot.lane.b32.xlu0 %v2576, 64
  %v2756 = vpop.permute.xlu0 %2755
  %2757 = vrot.lane.b32.xlu0 %v2577, 64
  %v2758 = vpop.permute.xlu0 %2757
  %2759 = vrot.lane.b32.xlu0 %v2578, 64
  %v2760 = vpop.permute.xlu0 %2759
  %2761 = vrot.lane.b32.xlu0 %v2579, 64
  %v2762 = vpop.permute.xlu0 %2761
  %2763 = vrot.lane.b32.xlu0 %v2580, 64
  %v2764 = vpop.permute.xlu0 %2763
  %2765 = vrot.lane.b32.xlu0 %v2581, 64
  %v2766 = vpop.permute.xlu0 %2765
  %2767 = vrot.lane.b32.xlu0 %v2582, 64
  %v2768 = vpop.permute.xlu0 %2767
  %2769 = vrot.lane.b32.xlu0 %v2583, 64
  %v2770 = vpop.permute.xlu0 %2769
  %2771 = vrot.lane.b32.xlu0 %v2584, 64
  %v2772 = vpop.permute.xlu0 %2771
  %2773 = vrot.lane.b32.xlu0 %v2585, 64
  %v2774 = vpop.permute.xlu0 %2773
  %2775 = vrot.lane.b32.xlu0 %v2586, 64
  %v2776 = vpop.permute.xlu0 %2775
  %2777 = vrot.lane.b32.xlu0 %v2587, 64
  %v2778 = vpop.permute.xlu0 %2777
  %2779 = vrot.lane.b32.xlu0 %v2588, 64
  %v2780 = vpop.permute.xlu0 %2779
  %2781 = vrot.lane.b32.xlu0 %v2589, 64
  %v2782 = vpop.permute.xlu0 %2781
  %2783 = vrot.lane.b32.xlu0 %v2590, 64
  %v2784 = vpop.permute.xlu0 %2783
  %2785 = vrot.lane.b32.xlu0 %v2591, 64
  %v2786 = vpop.permute.xlu0 %2785
  %2787 = vrot.lane.b32.xlu0 %v2592, 64
  %v2788 = vpop.permute.xlu0 %2787
  %2789 = vrot.lane.b32.xlu0 %v2593, 64
  %v2790 = vpop.permute.xlu0 %2789
  %2791 = vrot.lane.b32.xlu0 %v2594, 64
  %v2792 = vpop.permute.xlu0 %2791
  %2793 = vrot.lane.b32.xlu0 %v2595, 64
  %v2794 = vpop.permute.xlu0 %2793
  %2795 = vrot.lane.b32.xlu0 %v2596, 64
  %v2796 = vpop.permute.xlu0 %2795
  %2830 = vrot.lane.b32.xlu0 %v2390, 96
  %v2831 = vpop.permute.xlu0 %2830
  %2832 = vrot.lane.b32.xlu0 %v2391, 96
  %v2833 = vpop.permute.xlu0 %2832
  %2834 = vrot.lane.b32.xlu0 %v2392, 96
  %v2835 = vpop.permute.xlu0 %2834
  %2836 = vrot.lane.b32.xlu0 %v2393, 96
  %v2837 = vpop.permute.xlu0 %2836
  %2838 = vrot.lane.b32.xlu0 %v2394, 96
  %v2839 = vpop.permute.xlu0 %2838
  %2840 = vrot.lane.b32.xlu0 %v2395, 96
  %v2841 = vpop.permute.xlu0 %2840
  %2842 = vrot.lane.b32.xlu0 %v2396, 96
  %v2843 = vpop.permute.xlu0 %2842
  %2844 = vrot.lane.b32.xlu0 %v2397, 96
  %v2845 = vpop.permute.xlu0 %2844
  %2846 = vrot.lane.b32.xlu0 %v2398, 96
  %v2847 = vpop.permute.xlu0 %2846
  %2848 = vrot.lane.b32.xlu0 %v2399, 96
  %v2849 = vpop.permute.xlu0 %2848
  %2850 = vrot.lane.b32.xlu0 %v2400, 96
  %v2851 = vpop.permute.xlu0 %2850
  %2852 = vrot.lane.b32.xlu0 %v2401, 96
  %v2853 = vpop.permute.xlu0 %2852
  %2854 = vrot.lane.b32.xlu0 %v2402, 96
  %v2855 = vpop.permute.xlu0 %2854
  %2856 = vrot.lane.b32.xlu0 %v2403, 96
  %v2857 = vpop.permute.xlu0 %2856
  %2858 = vrot.lane.b32.xlu0 %v2404, 96
  %v2859 = vpop.permute.xlu0 %2858
  %2860 = vrot.lane.b32.xlu0 %v2405, 96
  %v2861 = vpop.permute.xlu0 %2860
  %2862 = vrot.lane.b32.xlu0 %v2406, 96
  %v2863 = vpop.permute.xlu0 %2862
  %2864 = vrot.lane.b32.xlu0 %v2407, 96
  %v2865 = vpop.permute.xlu0 %2864
  %2866 = vrot.lane.b32.xlu0 %v2408, 96
  %v2867 = vpop.permute.xlu0 %2866
  %2868 = vrot.lane.b32.xlu0 %v2409, 96
  %v2869 = vpop.permute.xlu0 %2868
  %2870 = vrot.lane.b32.xlu0 %v2410, 96
  %v2871 = vpop.permute.xlu0 %2870
  %2872 = vrot.lane.b32.xlu0 %v2411, 96
  %v2873 = vpop.permute.xlu0 %2872
  %2874 = vrot.lane.b32.xlu0 %v2412, 96
  %v2875 = vpop.permute.xlu0 %2874
  %2876 = vrot.lane.b32.xlu0 %v2413, 96
  %v2877 = vpop.permute.xlu0 %2876
  %2878 = vrot.lane.b32.xlu0 %v2414, 96
  %v2879 = vpop.permute.xlu0 %2878
  %2880 = vrot.lane.b32.xlu0 %v2415, 96
  %v2881 = vpop.permute.xlu0 %2880
  %2882 = vrot.lane.b32.xlu0 %v2416, 96
  %v2883 = vpop.permute.xlu0 %2882
  %2884 = vrot.lane.b32.xlu0 %v2417, 96
  %v2885 = vpop.permute.xlu0 %2884
  %2886 = vrot.lane.b32.xlu0 %v2418, 96
  %v2887 = vpop.permute.xlu0 %2886
  %2888 = vrot.lane.b32.xlu0 %v2419, 96
  %v2889 = vpop.permute.xlu0 %2888
  %2890 = vrot.lane.b32.xlu0 %v2420, 96
  %v2891 = vpop.permute.xlu0 %2890
  %2892 = vrot.lane.b32.xlu0 %v2421, 96
  %v2893 = vpop.permute.xlu0 %2892
  %2894 = vrot.lane.b32.xlu0 %v2422, 96
  %v2895 = vpop.permute.xlu0 %2894
  %2897 = vrot.lane.b32.xlu0 %v2565, 32
  %v2898 = vpop.permute.xlu0 %2897
  %2899 = vrot.lane.b32.xlu0 %v2566, 32
  %v2900 = vpop.permute.xlu0 %2899
  %2901 = vrot.lane.b32.xlu0 %v2567, 32
  %v2902 = vpop.permute.xlu0 %2901
  %2903 = vrot.lane.b32.xlu0 %v2568, 32
  %v2904 = vpop.permute.xlu0 %2903
  %2905 = vrot.lane.b32.xlu0 %v2569, 32
  %v2906 = vpop.permute.xlu0 %2905
  %2907 = vrot.lane.b32.xlu0 %v2570, 32
  %v2908 = vpop.permute.xlu0 %2907
  %2909 = vrot.lane.b32.xlu0 %v2571, 32
  %v2910 = vpop.permute.xlu0 %2909
  %2911 = vrot.lane.b32.xlu0 %v2572, 32
  %v2912 = vpop.permute.xlu0 %2911
  %2913 = vrot.lane.b32.xlu0 %v2573, 32
  %v2914 = vpop.permute.xlu0 %2913
  %2915 = vrot.lane.b32.xlu0 %v2574, 32
  %v2916 = vpop.permute.xlu0 %2915
  %2917 = vrot.lane.b32.xlu0 %v2575, 32
  %v2918 = vpop.permute.xlu0 %2917
  %2919 = vrot.lane.b32.xlu0 %v2576, 32
  %v2920 = vpop.permute.xlu0 %2919
  %2921 = vrot.lane.b32.xlu0 %v2577, 32
  %v2922 = vpop.permute.xlu0 %2921
  %2923 = vrot.lane.b32.xlu0 %v2578, 32
  %v2924 = vpop.permute.xlu0 %2923
  %2925 = vrot.lane.b32.xlu0 %v2579, 32
  %v2926 = vpop.permute.xlu0 %2925
  %2927 = vrot.lane.b32.xlu0 %v2580, 32
  %v2928 = vpop.permute.xlu0 %2927
  %2929 = vrot.lane.b32.xlu0 %v2581, 32
  %v2930 = vpop.permute.xlu0 %2929
  %2931 = vrot.lane.b32.xlu0 %v2582, 32
  %v2932 = vpop.permute.xlu0 %2931
  %2933 = vrot.lane.b32.xlu0 %v2583, 32
  %v2934 = vpop.permute.xlu0 %2933
  %2935 = vrot.lane.b32.xlu0 %v2584, 32
  %v2936 = vpop.permute.xlu0 %2935
  %2937 = vrot.lane.b32.xlu0 %v2585, 32
  %v2938 = vpop.permute.xlu0 %2937
  %2939 = vrot.lane.b32.xlu0 %v2586, 32
  %v2940 = vpop.permute.xlu0 %2939
  %2941 = vrot.lane.b32.xlu0 %v2587, 32
  %v2942 = vpop.permute.xlu0 %2941
  %2943 = vrot.lane.b32.xlu0 %v2588, 32
  %v2944 = vpop.permute.xlu0 %2943
  %2945 = vrot.lane.b32.xlu0 %v2589, 32
  %v2946 = vpop.permute.xlu0 %2945
  %2947 = vrot.lane.b32.xlu0 %v2590, 32
  %v2948 = vpop.permute.xlu0 %2947
  %2949 = vrot.lane.b32.xlu0 %v2591, 32
  %v2950 = vpop.permute.xlu0 %2949
  %2951 = vrot.lane.b32.xlu0 %v2592, 32
  %v2952 = vpop.permute.xlu0 %2951
  %2953 = vrot.lane.b32.xlu0 %v2593, 32
  %v2954 = vpop.permute.xlu0 %2953
  %2955 = vrot.lane.b32.xlu0 %v2594, 32
  %v2956 = vpop.permute.xlu0 %2955
  %2957 = vrot.lane.b32.xlu0 %v2595, 32
  %v2958 = vpop.permute.xlu0 %2957
  %2959 = vrot.lane.b32.xlu0 %v2596, 32
  %v2960 = vpop.permute.xlu0 %2959
  %2961 = vrot.lane.b32.xlu0 %v2597, 32
  %v2962 = vpop.permute.xlu0 %2961
  %2964 = vrot.lane.b32.xlu0 %v2391, 64
  %v2965 = vpop.permute.xlu0 %2964
  %2966 = vrot.lane.b32.xlu0 %v2392, 64
  %v2967 = vpop.permute.xlu0 %2966
  %2968 = vrot.lane.b32.xlu0 %v2393, 64
  %v2969 = vpop.permute.xlu0 %2968
  %2970 = vrot.lane.b32.xlu0 %v2394, 64
  %v2971 = vpop.permute.xlu0 %2970
  %2972 = vrot.lane.b32.xlu0 %v2395, 64
  %v2973 = vpop.permute.xlu0 %2972
  %2974 = vrot.lane.b32.xlu0 %v2396, 64
  %v2975 = vpop.permute.xlu0 %2974
  %2976 = vrot.lane.b32.xlu0 %v2397, 64
  %v2977 = vpop.permute.xlu0 %2976
  %2978 = vrot.lane.b32.xlu0 %v2398, 64
  %v2979 = vpop.permute.xlu0 %2978
  %2980 = vrot.lane.b32.xlu0 %v2399, 64
  %v2981 = vpop.permute.xlu0 %2980
  %2982 = vrot.lane.b32.xlu0 %v2400, 64
  %v2983 = vpop.permute.xlu0 %2982
  %2984 = vrot.lane.b32.xlu0 %v2401, 64
  %v2985 = vpop.permute.xlu0 %2984
  %2986 = vrot.lane.b32.xlu0 %v2402, 64
  %v2987 = vpop.permute.xlu0 %2986
  %2988 = vrot.lane.b32.xlu0 %v2403, 64
  %v2989 = vpop.permute.xlu0 %2988
  %2990 = vrot.lane.b32.xlu0 %v2404, 64
  %v2991 = vpop.permute.xlu0 %2990
  %2992 = vrot.lane.b32.xlu0 %v2405, 64
  %v2993 = vpop.permute.xlu0 %2992
  %2994 = vrot.lane.b32.xlu0 %v2406, 64
  %v2995 = vpop.permute.xlu0 %2994
  %2996 = vrot.lane.b32.xlu0 %v2407, 64
  %v2997 = vpop.permute.xlu0 %2996
  %2998 = vrot.lane.b32.xlu0 %v2408, 64
  %v2999 = vpop.permute.xlu0 %2998
  %3000 = vrot.lane.b32.xlu0 %v2409, 64
  %v3001 = vpop.permute.xlu0 %3000
  %3002 = vrot.lane.b32.xlu0 %v2410, 64
  %v3003 = vpop.permute.xlu0 %3002
  %3004 = vrot.lane.b32.xlu0 %v2411, 64
  %v3005 = vpop.permute.xlu0 %3004
  %3006 = vrot.lane.b32.xlu0 %v2412, 64
  %v3007 = vpop.permute.xlu0 %3006
  %3008 = vrot.lane.b32.xlu0 %v2413, 64
  %v3009 = vpop.permute.xlu0 %3008
  %3010 = vrot.lane.b32.xlu0 %v2414, 64
  %v3011 = vpop.permute.xlu0 %3010
  %3012 = vrot.lane.b32.xlu0 %v2415, 64
  %v3013 = vpop.permute.xlu0 %3012
  %3014 = vrot.lane.b32.xlu0 %v2416, 64
  %v3015 = vpop.permute.xlu0 %3014
  %3016 = vrot.lane.b32.xlu0 %v2417, 64
  %v3017 = vpop.permute.xlu0 %3016
  %3018 = vrot.lane.b32.xlu0 %v2418, 64
  %v3019 = vpop.permute.xlu0 %3018
  %3020 = vrot.lane.b32.xlu0 %v2419, 64
  %v3021 = vpop.permute.xlu0 %3020
  %3022 = vrot.lane.b32.xlu0 %v2420, 64
  %v3023 = vpop.permute.xlu0 %3022
  %3024 = vrot.lane.b32.xlu0 %v2421, 64
  %v3025 = vpop.permute.xlu0 %3024
  %3026 = vrot.lane.b32.xlu0 %v2422, 64
  %v3027 = vpop.permute.xlu0 %3026
  %3028 = vrot.lane.b32.xlu0 %v2423, 64
  %v3029 = vpop.permute.xlu0 %3028
  %3032 = vrot.lane.b32.xlu0 %v2216, 96
  %v3033 = vpop.permute.xlu0 %3032
  %3034 = vrot.lane.b32.xlu0 %v2217, 96
  %v3035 = vpop.permute.xlu0 %3034
  %3036 = vrot.lane.b32.xlu0 %v2218, 96
  %v3037 = vpop.permute.xlu0 %3036
  %3038 = vrot.lane.b32.xlu0 %v2219, 96
  %v3039 = vpop.permute.xlu0 %3038
  %3040 = vrot.lane.b32.xlu0 %v2220, 96
  %v3041 = vpop.permute.xlu0 %3040
  %3042 = vrot.lane.b32.xlu0 %v2221, 96
  %v3043 = vpop.permute.xlu0 %3042
  %3044 = vrot.lane.b32.xlu0 %v2222, 96
  %v3045 = vpop.permute.xlu0 %3044
  %3046 = vrot.lane.b32.xlu0 %v2223, 96
  %v3047 = vpop.permute.xlu0 %3046
  %3048 = vrot.lane.b32.xlu0 %v2224, 96
  %v3049 = vpop.permute.xlu0 %3048
  %3050 = vrot.lane.b32.xlu0 %v2225, 96
  %v3051 = vpop.permute.xlu0 %3050
  %3052 = vrot.lane.b32.xlu0 %v2226, 96
  %v3053 = vpop.permute.xlu0 %3052
  %3054 = vrot.lane.b32.xlu0 %v2227, 96
  %v3055 = vpop.permute.xlu0 %3054
  %3056 = vrot.lane.b32.xlu0 %v2228, 96
  %v3057 = vpop.permute.xlu0 %3056
  %3058 = vrot.lane.b32.xlu0 %v2229, 96
  %v3059 = vpop.permute.xlu0 %3058
  %3060 = vrot.lane.b32.xlu0 %v2230, 96
  %v3061 = vpop.permute.xlu0 %3060
  %3062 = vrot.lane.b32.xlu0 %v2231, 96
  %v3063 = vpop.permute.xlu0 %3062
  %3064 = vrot.lane.b32.xlu0 %v2232, 96
  %v3065 = vpop.permute.xlu0 %3064
  %3066 = vrot.lane.b32.xlu0 %v2233, 96
  %v3067 = vpop.permute.xlu0 %3066
  %3068 = vrot.lane.b32.xlu0 %v2234, 96
  %v3069 = vpop.permute.xlu0 %3068
  %3070 = vrot.lane.b32.xlu0 %v2235, 96
  %v3071 = vpop.permute.xlu0 %3070
  %3072 = vrot.lane.b32.xlu0 %v2236, 96
  %v3073 = vpop.permute.xlu0 %3072
  %3074 = vrot.lane.b32.xlu0 %v2237, 96
  %v3075 = vpop.permute.xlu0 %3074
  %3076 = vrot.lane.b32.xlu0 %v2238, 96
  %v3077 = vpop.permute.xlu0 %3076
  %3078 = vrot.lane.b32.xlu0 %v2239, 96
  %v3079 = vpop.permute.xlu0 %3078
  %3080 = vrot.lane.b32.xlu0 %v2240, 96
  %v3081 = vpop.permute.xlu0 %3080
  %3082 = vrot.lane.b32.xlu0 %v2241, 96
  %v3083 = vpop.permute.xlu0 %3082
  %3084 = vrot.lane.b32.xlu0 %v2242, 96
  %v3085 = vpop.permute.xlu0 %3084
  %3086 = vrot.lane.b32.xlu0 %v2243, 96
  %v3087 = vpop.permute.xlu0 %3086
  %3088 = vrot.lane.b32.xlu0 %v2244, 96
  %v3089 = vpop.permute.xlu0 %3088
  %3090 = vrot.lane.b32.xlu0 %v2245, 96
  %v3091 = vpop.permute.xlu0 %3090
  %3092 = vrot.lane.b32.xlu0 %v2246, 96
  %v3093 = vpop.permute.xlu0 %3092
  %3094 = vrot.lane.b32.xlu0 %v2247, 96
  %v3095 = vpop.permute.xlu0 %3094
  %3096 = vrot.lane.b32.xlu0 %v2248, 96
  %v3097 = vpop.permute.xlu0 %3096
  %v3100 = vsel %vm27, %v2389, %v2633
  %v3103 = vsel %vm27, %v2390, %v2635
  %v3106 = vsel %vm27, %v2391, %v2637
  %v3109 = vsel %vm27, %v2392, %v2639
  %v3112 = vsel %vm27, %v2393, %v2641
  %v3115 = vsel %vm27, %v2394, %v2643
  %v3118 = vsel %vm27, %v2395, %v2645
  %v3121 = vsel %vm27, %v2396, %v2647
  %v3124 = vsel %vm27, %v2397, %v2649
  %v3127 = vsel %vm27, %v2398, %v2651
  %v3130 = vsel %vm27, %v2399, %v2653
  %v3133 = vsel %vm27, %v2400, %v2655
  %v3136 = vsel %vm27, %v2401, %v2657
  %v3139 = vsel %vm27, %v2402, %v2659
  %v3142 = vsel %vm27, %v2403, %v2661
  %v3145 = vsel %vm27, %v2404, %v2663
  %v3148 = vsel %vm27, %v2405, %v2665
  %v3151 = vsel %vm27, %v2406, %v2667
  %v3154 = vsel %vm27, %v2407, %v2669
  %v3157 = vsel %vm27, %v2408, %v2671
  %v3160 = vsel %vm27, %v2409, %v2673
  %v3163 = vsel %vm27, %v2410, %v2675
  %v3166 = vsel %vm27, %v2411, %v2677
  %v3169 = vsel %vm27, %v2412, %v2679
  %v3172 = vsel %vm27, %v2413, %v2681
  %v3175 = vsel %vm27, %v2414, %v2683
  %v3178 = vsel %vm27, %v2415, %v2685
  %v3181 = vsel %vm27, %v2416, %v2687
  %v3184 = vsel %vm27, %v2417, %v2689
  %v3187 = vsel %vm27, %v2418, %v2691
  %v3190 = vsel %vm27, %v2419, %v2693
  %v3193 = vsel %vm27, %v2420, %v2695
  %v3196 = vsel %vm27, %v2421, %v2697
  %v3198 = vsel %vm1630, %v3100, %v2732
  %v3200 = vsel %vm1630, %v3103, %v2734
  %v3202 = vsel %vm1630, %v3106, %v2736
  %v3204 = vsel %vm1630, %v3109, %v2738
  %v3206 = vsel %vm1630, %v3112, %v2740
  %v3208 = vsel %vm1630, %v3115, %v2742
  %v3210 = vsel %vm1630, %v3118, %v2744
  %v3212 = vsel %vm1630, %v3121, %v2746
  %v3214 = vsel %vm1630, %v3124, %v2748
  %v3216 = vsel %vm1630, %v3127, %v2750
  %v3218 = vsel %vm1630, %v3130, %v2752
  %v3220 = vsel %vm1630, %v3133, %v2754
  %v3222 = vsel %vm1630, %v3136, %v2756
  %v3224 = vsel %vm1630, %v3139, %v2758
  %v3226 = vsel %vm1630, %v3142, %v2760
  %v3228 = vsel %vm1630, %v3145, %v2762
  %v3230 = vsel %vm1630, %v3148, %v2764
  %v3232 = vsel %vm1630, %v3151, %v2766
  %v3234 = vsel %vm1630, %v3154, %v2768
  %v3236 = vsel %vm1630, %v3157, %v2770
  %v3238 = vsel %vm1630, %v3160, %v2772
  %v3240 = vsel %vm1630, %v3163, %v2774
  %v3242 = vsel %vm1630, %v3166, %v2776
  %v3244 = vsel %vm1630, %v3169, %v2778
  %v3246 = vsel %vm1630, %v3172, %v2780
  %v3248 = vsel %vm1630, %v3175, %v2782
  %v3250 = vsel %vm1630, %v3178, %v2784
  %v3252 = vsel %vm1630, %v3181, %v2786
  %v3254 = vsel %vm1630, %v3184, %v2788
  %v3256 = vsel %vm1630, %v3187, %v2790
  %v3258 = vsel %vm1630, %v3190, %v2792
  %v3260 = vsel %vm1630, %v3193, %v2794
  %v3262 = vsel %vm1630, %v3196, %v2796
  %vm3263 = vcmask 785408
  %v3265 = vsel %vm3263, %v3198, %v2831
  %v3268 = vsel %vm3263, %v3200, %v2833
  %v3271 = vsel %vm3263, %v3202, %v2835
  %v3274 = vsel %vm3263, %v3204, %v2837
  %v3277 = vsel %vm3263, %v3206, %v2839
  %v3280 = vsel %vm3263, %v3208, %v2841
  %v3283 = vsel %vm3263, %v3210, %v2843
  %v3286 = vsel %vm3263, %v3212, %v2845
  %v3289 = vsel %vm3263, %v3214, %v2847
  %v3292 = vsel %vm3263, %v3216, %v2849
  %v3295 = vsel %vm3263, %v3218, %v2851
  %v3298 = vsel %vm3263, %v3220, %v2853
  %v3301 = vsel %vm3263, %v3222, %v2855
  %v3304 = vsel %vm3263, %v3224, %v2857
  %v3307 = vsel %vm3263, %v3226, %v2859
  %v3310 = vsel %vm3263, %v3228, %v2861
  %v3313 = vsel %vm3263, %v3230, %v2863
  %v3316 = vsel %vm3263, %v3232, %v2865
  %v3319 = vsel %vm3263, %v3234, %v2867
  %v3322 = vsel %vm3263, %v3236, %v2869
  %v3325 = vsel %vm3263, %v3238, %v2871
  %v3328 = vsel %vm3263, %v3240, %v2873
  %v3331 = vsel %vm3263, %v3242, %v2875
  %v3334 = vsel %vm3263, %v3244, %v2877
  %v3337 = vsel %vm3263, %v3246, %v2879
  %v3340 = vsel %vm3263, %v3248, %v2881
  %v3343 = vsel %vm3263, %v3250, %v2883
  %v3346 = vsel %vm3263, %v3252, %v2885
  %v3349 = vsel %vm3263, %v3254, %v2887
  %v3352 = vsel %vm3263, %v3256, %v2889
  %v3355 = vsel %vm3263, %v3258, %v2891
  %v3358 = vsel %vm3263, %v3260, %v2893
  %v3361 = vsel %vm3263, %v3262, %v2895
  %v3365 = vsel %vm27, %v2215, %v2898
  %v3368 = vsel %vm27, %v2216, %v2900
  %v3371 = vsel %vm27, %v2217, %v2902
  %v3374 = vsel %vm27, %v2218, %v2904
  %v3377 = vsel %vm27, %v2219, %v2906
  %v3380 = vsel %vm27, %v2220, %v2908
  %v3383 = vsel %vm27, %v2221, %v2910
  %v3386 = vsel %vm27, %v2222, %v2912
  %v3389 = vsel %vm27, %v2223, %v2914
  %v3392 = vsel %vm27, %v2224, %v2916
  %v3395 = vsel %vm27, %v2225, %v2918
  %v3398 = vsel %vm27, %v2226, %v2920
  %v3401 = vsel %vm27, %v2227, %v2922
  %v3404 = vsel %vm27, %v2228, %v2924
  %v3407 = vsel %vm27, %v2229, %v2926
  %v3410 = vsel %vm27, %v2230, %v2928
  %v3413 = vsel %vm27, %v2231, %v2930
  %v3416 = vsel %vm27, %v2232, %v2932
  %v3419 = vsel %vm27, %v2233, %v2934
  %v3422 = vsel %vm27, %v2234, %v2936
  %v3425 = vsel %vm27, %v2235, %v2938
  %v3428 = vsel %vm27, %v2236, %v2940
  %v3431 = vsel %vm27, %v2237, %v2942
  %v3434 = vsel %vm27, %v2238, %v2944
  %v3437 = vsel %vm27, %v2239, %v2946
  %v3440 = vsel %vm27, %v2240, %v2948
  %v3443 = vsel %vm27, %v2241, %v2950
  %v3446 = vsel %vm27, %v2242, %v2952
  %v3449 = vsel %vm27, %v2243, %v2954
  %v3452 = vsel %vm27, %v2244, %v2956
  %v3455 = vsel %vm27, %v2245, %v2958
  %v3458 = vsel %vm27, %v2246, %v2960
  %v3461 = vsel %vm27, %v2247, %v2962
  %v3463 = vsel %vm1630, %v3365, %v2965
  %v3465 = vsel %vm1630, %v3368, %v2967
  %v3467 = vsel %vm1630, %v3371, %v2969
  %v3469 = vsel %vm1630, %v3374, %v2971
  %v3471 = vsel %vm1630, %v3377, %v2973
  %v3473 = vsel %vm1630, %v3380, %v2975
  %v3475 = vsel %vm1630, %v3383, %v2977
  %v3477 = vsel %vm1630, %v3386, %v2979
  %v3479 = vsel %vm1630, %v3389, %v2981
  %v3481 = vsel %vm1630, %v3392, %v2983
  %v3483 = vsel %vm1630, %v3395, %v2985
  %v3485 = vsel %vm1630, %v3398, %v2987
  %v3487 = vsel %vm1630, %v3401, %v2989
  %v3489 = vsel %vm1630, %v3404, %v2991
  %v3491 = vsel %vm1630, %v3407, %v2993
  %v3493 = vsel %vm1630, %v3410, %v2995
  %v3495 = vsel %vm1630, %v3413, %v2997
  %v3497 = vsel %vm1630, %v3416, %v2999
  %v3499 = vsel %vm1630, %v3419, %v3001
  %v3501 = vsel %vm1630, %v3422, %v3003
  %v3503 = vsel %vm1630, %v3425, %v3005
  %v3505 = vsel %vm1630, %v3428, %v3007
  %v3507 = vsel %vm1630, %v3431, %v3009
  %v3509 = vsel %vm1630, %v3434, %v3011
  %v3511 = vsel %vm1630, %v3437, %v3013
  %v3513 = vsel %vm1630, %v3440, %v3015
  %v3515 = vsel %vm1630, %v3443, %v3017
  %v3517 = vsel %vm1630, %v3446, %v3019
  %v3519 = vsel %vm1630, %v3449, %v3021
  %v3521 = vsel %vm1630, %v3452, %v3023
  %v3523 = vsel %vm1630, %v3455, %v3025
  %v3525 = vsel %vm1630, %v3458, %v3027
  %v3527 = vsel %vm1630, %v3461, %v3029
  %v3529 = vsel %vm3263, %v3463, %v3033
  %v3532 = vsel %vm3263, %v3465, %v3035
  %v3535 = vsel %vm3263, %v3467, %v3037
  %v3538 = vsel %vm3263, %v3469, %v3039
  %v3541 = vsel %vm3263, %v3471, %v3041
  %v3544 = vsel %vm3263, %v3473, %v3043
  %v3547 = vsel %vm3263, %v3475, %v3045
  %v3550 = vsel %vm3263, %v3477, %v3047
  %v3553 = vsel %vm3263, %v3479, %v3049
  %v3556 = vsel %vm3263, %v3481, %v3051
  %v3559 = vsel %vm3263, %v3483, %v3053
  %v3562 = vsel %vm3263, %v3485, %v3055
  %v3565 = vsel %vm3263, %v3487, %v3057
  %v3568 = vsel %vm3263, %v3489, %v3059
  %v3571 = vsel %vm3263, %v3491, %v3061
  %v3574 = vsel %vm3263, %v3493, %v3063
  %v3577 = vsel %vm3263, %v3495, %v3065
  %v3580 = vsel %vm3263, %v3497, %v3067
  %v3583 = vsel %vm3263, %v3499, %v3069
  %v3586 = vsel %vm3263, %v3501, %v3071
  %v3589 = vsel %vm3263, %v3503, %v3073
  %v3592 = vsel %vm3263, %v3505, %v3075
  %v3595 = vsel %vm3263, %v3507, %v3077
  %v3598 = vsel %vm3263, %v3509, %v3079
  %v3601 = vsel %vm3263, %v3511, %v3081
  %v3604 = vsel %vm3263, %v3513, %v3083
  %v3607 = vsel %vm3263, %v3515, %v3085
  %v3610 = vsel %vm3263, %v3517, %v3087
  %v3613 = vsel %vm3263, %v3519, %v3089
  %v3616 = vsel %vm3263, %v3521, %v3091
  %v3619 = vsel %vm3263, %v3523, %v3093
  %v3622 = vsel %vm3263, %v3525, %v3095
  %v3625 = vsel %vm3263, %v3527, %v3097
  %v3627 = vld [vmem:[%s3] sm:$0xf]
  %v3628 = vld [vmem:[%s3 + $0x4] sm:$0xf]
  %v3629 = vld [vmem:[%s3 + $0x8] sm:$0xf]
  %v3630 = vld [vmem:[%s3 + $0xc] sm:$0xf]
  %v3631 = vld [vmem:[%s3 + $0x10] sm:$0xf]
  %v3632 = vld [vmem:[%s3 + $0x14] sm:$0xf]
  %v3633 = vld [vmem:[%s3 + $0x18] sm:$0xf]
  %v3634 = vld [vmem:[%s3 + $0x1c] sm:$0xf]
  %v3635 = vld [vmem:[%s3 + $0x20] sm:$0xf]
  %v3636 = vld [vmem:[%s3 + $0x24] sm:$0xf]
  %v3637 = vld [vmem:[%s3 + $0x28] sm:$0xf]
  %v3638 = vld [vmem:[%s3 + $0x2c] sm:$0xf]
  %v3639 = vld [vmem:[%s3 + $0x30] sm:$0xf]
  %v3640 = vld [vmem:[%s3 + $0x34] sm:$0xf]
  %v3641 = vld [vmem:[%s3 + $0x38] sm:$0xf]
  %v3642 = vld [vmem:[%s3 + $0x3c] sm:$0xf]
  %v3643 = vld [vmem:[%s3 + $0x40] sm:$0xf]
  %v3644 = vld [vmem:[%s3 + $0x44] sm:$0xf]
  %v3645 = vld [vmem:[%s3 + $0x48] sm:$0xf]
  %v3646 = vld [vmem:[%s3 + $0x4c] sm:$0xf]
  %v3647 = vld [vmem:[%s3 + $0x50] sm:$0xf]
  %v3648 = vld [vmem:[%s3 + $0x54] sm:$0xf]
  %v3649 = vld [vmem:[%s3 + $0x58] sm:$0xf]
  %v3650 = vld [vmem:[%s3 + $0x5c] sm:$0xf]
  %v3651 = vld [vmem:[%s3 + $0x60] sm:$0xf]
  %v3652 = vld [vmem:[%s3 + $0x64] sm:$0xf]
  %v3653 = vld [vmem:[%s3 + $0x68] sm:$0xf]
  %v3654 = vld [vmem:[%s3 + $0x6c] sm:$0xf]
  %v3655 = vld [vmem:[%s3 + $0x70] sm:$0xf]
  %v3656 = vld [vmem:[%s3 + $0x74] sm:$0xf]
  %v3657 = vld [vmem:[%s3 + $0x78] sm:$0xf]
  %v3658 = vld [vmem:[%s3 + $0x7c] sm:$0xf]
  %v3659 = vld [vmem:[%s3 + $0x80] sm:$0xf]
  %v3660 = vld [vmem:[%s3 + $0x84] sm:$0xf]
  %v3661 = vld [vmem:[%s3 + $0x88] sm:$0xf]
  %v3662 = vld [vmem:[%s3 + $0x8c] sm:$0xf]
  %v3663 = vld [vmem:[%s4] sm:$0x1]
  %v3665 = vlaneseq
  %v3666 = vshrl.u32 %v3665, 7
  %v3667 = vsub.s32 0, %v3666
  %v3668 = vrot.slane %v3663, %v3667
  %v3706 = vunpack.c.l.b16 %v3627
  %v3707 = vunpack.c.l.b16 %v3628
  %v3708 = vunpack.c.l.b16 %v3629
  %v3709 = vunpack.c.l.b16 %v3630
  %v3710 = vunpack.c.l.b16 %v3631
  %v3711 = vunpack.c.l.b16 %v3632
  %v3712 = vunpack.c.l.b16 %v3633
  %v3713 = vunpack.c.l.b16 %v3634
  %v3714 = vunpack.c.l.b16 %v3635
  %v3715 = vunpack.c.l.b16 %v3636
  %v3716 = vunpack.c.l.b16 %v3637
  %v3717 = vunpack.c.l.b16 %v3638
  %v3718 = vunpack.c.l.b16 %v3639
  %v3719 = vunpack.c.l.b16 %v3640
  %v3720 = vunpack.c.l.b16 %v3641
  %v3721 = vunpack.c.l.b16 %v3642
  %v3722 = vunpack.c.l.b16 %v3643
  %v3723 = vunpack.c.l.b16 %v3644
  %v3724 = vunpack.c.l.b16 %v3645
  %v3725 = vunpack.c.l.b16 %v3646
  %v3726 = vunpack.c.l.b16 %v3647
  %v3727 = vunpack.c.l.b16 %v3648
  %v3728 = vunpack.c.l.b16 %v3649
  %v3729 = vunpack.c.l.b16 %v3650
  %v3730 = vunpack.c.l.b16 %v3651
  %v3731 = vunpack.c.l.b16 %v3652
  %v3732 = vunpack.c.l.b16 %v3653
  %v3733 = vunpack.c.l.b16 %v3654
  %v3734 = vunpack.c.l.b16 %v3655
  %v3735 = vunpack.c.l.b16 %v3656
  %v3736 = vunpack.c.l.b16 %v3657
  %v3737 = vunpack.c.l.b16 %v3658
  %v3738 = vunpack.c.l.b16 %v3659
  %v3739 = vunpack.c.l.b16 %v3660
  %v3740 = vunpack.c.l.b16 %v3661
  %v3741 = vunpack.c.l.b16 %v3662
  %v3742 = vpack.c.b16 %v3707, %v3706
  %v3743 = vpack.c.b16 %v3709, %v3708
  %v3744 = vpack.c.b16 %v3711, %v3710
  %v3745 = vpack.c.b16 %v3713, %v3712
  %v3746 = vpack.c.b16 %v3715, %v3714
  %v3747 = vpack.c.b16 %v3717, %v3716
  %v3748 = vpack.c.b16 %v3719, %v3718
  %v3749 = vpack.c.b16 %v3721, %v3720
  %v3750 = vpack.c.b16 %v3723, %v3722
  %v3751 = vpack.c.b16 %v3725, %v3724
  %v3752 = vpack.c.b16 %v3727, %v3726
  %v3753 = vpack.c.b16 %v3729, %v3728
  %v3754 = vpack.c.b16 %v3731, %v3730
  %v3755 = vpack.c.b16 %v3733, %v3732
  %v3756 = vpack.c.b16 %v3735, %v3734
  %v3757 = vpack.c.b16 %v3737, %v3736
  %v3758 = vpack.c.b16 %v3739, %v3738
  %v3759 = vpack.c.b16 %v3741, %v3740
  %v3779 = vsel %vm27, %v2566, 0
  %v3782 = vsel %vm27, %v2567, 0
  %v3785 = vsel %vm27, %v2568, 0
  %v3788 = vsel %vm27, %v2569, 0
  %v3791 = vsel %vm27, %v2570, 0
  %v3794 = vsel %vm27, %v2571, 0
  %v3797 = vsel %vm27, %v2572, 0
  %v3800 = vsel %vm27, %v2573, 0
  %v3803 = vsel %vm27, %v2574, 0
  %v3806 = vsel %vm27, %v2575, 0
  %v3809 = vsel %vm27, %v2576, 0
  %v3812 = vsel %vm27, %v2577, 0
  %v3815 = vsel %vm27, %v2578, 0
  %v3818 = vsel %vm27, %v2579, 0
  %v3821 = vsel %vm27, %v2580, 0
  %v3824 = vsel %vm27, %v2581, 0
  %v3827 = vsel %vm27, %v2582, 0
  %v3830 = vsel %vm27, %v2583, 0
  %v3833 = vsel %vm27, %v2584, 0
  %v3836 = vsel %vm27, %v2585, 0
  %v3839 = vsel %vm27, %v2586, 0
  %v3842 = vsel %vm27, %v2587, 0
  %v3845 = vsel %vm27, %v2588, 0
  %v3848 = vsel %vm27, %v2589, 0
  %v3851 = vsel %vm27, %v2590, 0
  %v3854 = vsel %vm27, %v2591, 0
  %v3857 = vsel %vm27, %v2592, 0
  %v3860 = vsel %vm27, %v2593, 0
  %v3863 = vsel %vm27, %v2594, 0
  %v3866 = vsel %vm27, %v2595, 0
  %v3869 = vsel %vm27, %v2596, 0
  %v3872 = vsel %vm27, %v2597, 0
  %v3875 = vsel %vm27, %v2598, 0
  %3877 = vmatprep.subr.bf16.mxu0 0
  %3878 = vmatpush1.bf16.msra.mxu0 %v3742
  %3879 = vmatprep.subr.bf16.mxu0 0
  %3880 = vmatpush1.bf16.msra.mxu0 %v3743
  %3881 = vmatprep.subr.bf16.mxu0 0
  %3882 = vmatpush1.bf16.msra.mxu0 %v3744
  %3883 = vmatprep.subr.bf16.mxu0 0
  %3884 = vmatpush1.bf16.msra.mxu0 %v3745
  %3885 = vmatprep.subr.bf16.mxu0 0
  %3886 = vmatpush1.bf16.msra.mxu0 %v3746
  %3887 = vmatprep.subr.bf16.mxu0 0
  %3888 = vmatpush1.bf16.msra.mxu0 %v3747
  %3889 = vmatprep.subr.bf16.mxu0 0
  %3890 = vmatpush1.bf16.msra.mxu0 %v3748
  %3891 = vmatprep.subr.bf16.mxu0 0
  %3892 = vmatpush1.bf16.msra.mxu0 %v3749
  %3893 = vmatprep.subr.bf16.mxu0 0
  %3894 = vmatpush1.bf16.msra.mxu0 %v3750
  %3895 = vmatprep.subr.bf16.mxu0 0
  %3896 = vmatpush1.bf16.msra.mxu0 %v3751
  %3897 = vmatprep.subr.bf16.mxu0 0
  %3898 = vmatpush1.bf16.msra.mxu0 %v3752
  %3899 = vmatprep.subr.bf16.mxu0 0
  %3900 = vmatpush1.bf16.msra.mxu0 %v3753
  %3901 = vmatprep.subr.bf16.mxu0 0
  %3902 = vmatpush1.bf16.msra.mxu0 %v3754
  %3903 = vmatprep.subr.bf16.mxu0 0
  %3904 = vmatpush1.bf16.msra.mxu0 %v3755
  %3905 = vmatprep.subr.bf16.mxu0 0
  %3906 = vmatpush1.bf16.msra.mxu0 %v3756
  %3907 = vmatprep.subr.bf16.mxu0 0
  %3908 = vmatpush1.bf16.msra.mxu0 %v3757
  %3909 = vmatprep.mubr.bf16.mxu0 %v3529
  %3910 = vmatmul.mubr.bf16.gmra.mrb[0].mxu0 %v3265
  %v3911 = vpop.f32.mrb[0].mxu0
  %v3912 = vadd.f32 %v3668, %v3911
  %v3913 = vpop.f32.mrb[0].mxu0
  %v3914 = vpop.f32.mrb[0].mxu0
  %v3915 = vadd.f32 %v3668, %v3914
  %v3916 = vpop.f32.mrb[0].mxu0
  %3917 = vmatprep.mubr.bf16.mxu0 %v3532
  %3918 = vmatmul.mubr.bf16.gmra.mrb[0].mxu0 %v3268
  %v3919 = vpop.f32.mrb[0].mxu0
  %v3920 = vadd.f32 %v3668, %v3919
  %v3921 = vpop.f32.mrb[0].mxu0
  %v3922 = vpop.f32.mrb[0].mxu0
  %v3923 = vadd.f32 %v3668, %v3922
  %v3924 = vpop.f32.mrb[0].mxu0
  %3925 = vmatprep.mubr.bf16.mxu0 %v3535
  %3926 = vmatmul.mubr.bf16.gmra.mrb[0].mxu0 %v3271
  %v3927 = vpop.f32.mrb[0].mxu0
  %v3928 = vadd.f32 %v3668, %v3927
  %v3929 = vpop.f32.mrb[0].mxu0
  %v3930 = vpop.f32.mrb[0].mxu0
  %v3931 = vadd.f32 %v3668, %v3930
  %v3932 = vpop.f32.mrb[0].mxu0
  %3933 = vmatprep.mubr.bf16.mxu0 %v3538
  %3934 = vmatmul.mubr.bf16.gmra.mrb[0].mxu0 %v3274
  %v3935 = vpop.f32.mrb[0].mxu0
  %v3936 = vadd.f32 %v3668, %v3935
  %v3937 = vpop.f32.mrb[0].mxu0
  %v3938 = vpop.f32.mrb[0].mxu0
  %v3939 = vadd.f32 %v3668, %v3938
  %v3940 = vpop.f32.mrb[0].mxu0
  %3941 = vmatprep.mubr.bf16.mxu0 %v3541
  %3942 = vmatmul.mubr.bf16.gmra.mrb[0].mxu0 %v3277
  %v3943 = vpop.f32.mrb[0].mxu0
  %v3944 = vadd.f32 %v3668, %v3943
  %v3945 = vpop.f32.mrb[0].mxu0
  %v3946 = vpop.f32.mrb[0].mxu0
  %v3947 = vadd.f32 %v3668, %v3946
  %v3948 = vpop.f32.mrb[0].mxu0
  %3949 = vmatprep.mubr.bf16.mxu0 %v3544
  %3950 = vmatmul.mubr.bf16.gmra.mrb[0].mxu0 %v3280
  %v3951 = vpop.f32.mrb[0].mxu0
  %v3952 = vadd.f32 %v3668, %v3951
  %v3953 = vpop.f32.mrb[0].mxu0
  %v3954 = vpop.f32.mrb[0].mxu0
  %v3955 = vadd.f32 %v3668, %v3954
  %v3956 = vpop.f32.mrb[0].mxu0
  %3957 = vmatprep.mubr.bf16.mxu0 %v3547
  %3958 = vmatmul.mubr.bf16.gmra.mrb[0].mxu0 %v3283
  %v3959 = vpop.f32.mrb[0].mxu0
  %v3960 = vadd.f32 %v3668, %v3959
  %v3961 = vpop.f32.mrb[0].mxu0
  %v3962 = vpop.f32.mrb[0].mxu0
  %v3963 = vadd.f32 %v3668, %v3962
  %v3964 = vpop.f32.mrb[0].mxu0
  %3965 = vmatprep.mubr.bf16.mxu0 %v3550
  %3966 = vmatmul.mubr.bf16.gmra.mrb[0].mxu0 %v3286
  %v3967 = vpop.f32.mrb[0].mxu0
  %v3968 = vadd.f32 %v3668, %v3967
  %v3969 = vpop.f32.mrb[0].mxu0
  %v3970 = vpop.f32.mrb[0].mxu0
  %v3971 = vadd.f32 %v3668, %v3970
  %v3972 = vpop.f32.mrb[0].mxu0
  %3973 = vmatprep.mubr.bf16.mxu0 %v3553
  %3974 = vmatmul.mubr.bf16.gmra.mrb[0].mxu0 %v3289
  %v3975 = vpop.f32.mrb[0].mxu0
  %v3976 = vadd.f32 %v3668, %v3975
  %v3977 = vpop.f32.mrb[0].mxu0
  %v3978 = vpop.f32.mrb[0].mxu0
  %v3979 = vadd.f32 %v3668, %v3978
  %v3980 = vpop.f32.mrb[0].mxu0
  %3981 = vmatprep.mubr.bf16.mxu0 %v3556
  %3982 = vmatmul.mubr.bf16.gmra.mrb[0].mxu0 %v3292
  %v3983 = vpop.f32.mrb[0].mxu0
  %v3984 = vadd.f32 %v3668, %v3983
  %v3985 = vpop.f32.mrb[0].mxu0
  %v3986 = vpop.f32.mrb[0].mxu0
  %v3987 = vadd.f32 %v3668, %v3986
  %v3988 = vpop.f32.mrb[0].mxu0
  %3989 = vmatprep.mubr.bf16.mxu0 %v3559
  %3990 = vmatmul.mubr.bf16.gmra.mrb[0].mxu0 %v3295
  %v3991 = vpop.f32.mrb[0].mxu0
  %v3992 = vadd.f32 %v3668, %v3991
  %v3993 = vpop.f32.mrb[0].mxu0
  %v3994 = vpop.f32.mrb[0].mxu0
  %v3995 = vadd.f32 %v3668, %v3994
  %v3996 = vpop.f32.mrb[0].mxu0
  %3997 = vmatprep.mubr.bf16.mxu0 %v3562
  %3998 = vmatmul.mubr.bf16.gmra.mrb[0].mxu0 %v3298
  %v3999 = vpop.f32.mrb[0].mxu0
  %v4000 = vadd.f32 %v3668, %v3999
  %v4001 = vpop.f32.mrb[0].mxu0
  %v4002 = vpop.f32.mrb[0].mxu0
  %v4003 = vadd.f32 %v3668, %v4002
  %v4004 = vpop.f32.mrb[0].mxu0
  %4005 = vmatprep.mubr.bf16.mxu0 %v3565
  %4006 = vmatmul.mubr.bf16.gmra.mrb[0].mxu0 %v3301
  %v4007 = vpop.f32.mrb[0].mxu0
  %v4008 = vadd.f32 %v3668, %v4007
  %v4009 = vpop.f32.mrb[0].mxu0
  %v4010 = vpop.f32.mrb[0].mxu0
  %v4011 = vadd.f32 %v3668, %v4010
  %v4012 = vpop.f32.mrb[0].mxu0
  %4013 = vmatprep.mubr.bf16.mxu0 %v3568
  %4014 = vmatmul.mubr.bf16.gmra.mrb[0].mxu0 %v3304
  %v4015 = vpop.f32.mrb[0].mxu0
  %v4016 = vadd.f32 %v3668, %v4015
  %v4017 = vpop.f32.mrb[0].mxu0
  %v4018 = vpop.f32.mrb[0].mxu0
  %v4019 = vadd.f32 %v3668, %v4018
  %v4020 = vpop.f32.mrb[0].mxu0
  %4021 = vmatprep.mubr.bf16.mxu0 %v3571
  %4022 = vmatmul.mubr.bf16.gmra.mrb[0].mxu0 %v3307
  %v4023 = vpop.f32.mrb[0].mxu0
  %v4024 = vadd.f32 %v3668, %v4023
  %v4025 = vpop.f32.mrb[0].mxu0
  %v4026 = vpop.f32.mrb[0].mxu0
  %v4027 = vadd.f32 %v3668, %v4026
  %v4028 = vpop.f32.mrb[0].mxu0
  %4029 = vmatprep.mubr.bf16.mxu0 %v3574
  %4030 = vmatmul.mubr.bf16.gmra.mrb[0].mxu0 %v3310
  %v4031 = vpop.f32.mrb[0].mxu0
  %v4032 = vadd.f32 %v3668, %v4031
  %v4033 = vpop.f32.mrb[0].mxu0
  %v4034 = vpop.f32.mrb[0].mxu0
  %v4035 = vadd.f32 %v3668, %v4034
  %v4036 = vpop.f32.mrb[0].mxu0
  %4037 = vmatprep.mubr.bf16.mxu0 %v3577
  %4038 = vmatmul.mubr.bf16.gmra.mrb[0].mxu0 %v3313
  %v4039 = vpop.f32.mrb[0].mxu0
  %v4040 = vpop.f32.mrb[0].mxu0
  %v4041 = vpop.f32.mrb[0].mxu0
  %v4042 = vpop.f32.mrb[0].mxu0
  %4043 = vmatprep.mubr.bf16.mxu0 %v3580
  %4044 = vmatmul.mubr.bf16.gmra.mrb[0].mxu0 %v3316
  %v4045 = vpop.f32.mrb[0].mxu0
  %v4046 = vadd.f32 %v3668, %v4045
  %v4047 = vpop.f32.mrb[0].mxu0
  %v4048 = vpop.f32.mrb[0].mxu0
  %v4049 = vadd.f32 %v3668, %v4048
  %v4050 = vpop.f32.mrb[0].mxu0
  %4051 = vmatprep.mubr.bf16.mxu0 %v3583
  %4052 = vmatmul.mubr.bf16.gmra.mrb[0].mxu0 %v3319
  %v4053 = vpop.f32.mrb[0].mxu0
  %v4054 = vadd.f32 %v3668, %v4053
  %v4055 = vpop.f32.mrb[0].mxu0
  %v4056 = vpop.f32.mrb[0].mxu0
  %v4057 = vadd.f32 %v3668, %v4056
  %v4058 = vpop.f32.mrb[0].mxu0
  %4059 = vmatprep.mubr.bf16.mxu0 %v3586
  %4060 = vmatmul.mubr.bf16.gmra.mrb[0].mxu0 %v3322
  %v4061 = vpop.f32.mrb[0].mxu0
  %v4062 = vadd.f32 %v3668, %v4061
  %v4063 = vpop.f32.mrb[0].mxu0
  %v4064 = vpop.f32.mrb[0].mxu0
  %v4065 = vadd.f32 %v3668, %v4064
  %v4066 = vpop.f32.mrb[0].mxu0
  %4067 = vmatprep.mubr.bf16.mxu0 %v3589
  %4068 = vmatmul.mubr.bf16.gmra.mrb[0].mxu0 %v3325
  %v4069 = vpop.f32.mrb[0].mxu0
  %v4070 = vadd.f32 %v3668, %v4069
  %v4071 = vpop.f32.mrb[0].mxu0
  %v4072 = vpop.f32.mrb[0].mxu0
  %v4073 = vadd.f32 %v3668, %v4072
  %v4074 = vpop.f32.mrb[0].mxu0
  %4075 = vmatprep.mubr.bf16.mxu0 %v3592
  %4076 = vmatmul.mubr.bf16.gmra.mrb[0].mxu0 %v3328
  %v4077 = vpop.f32.mrb[0].mxu0
  %v4078 = vadd.f32 %v3668, %v4077
  %v4079 = vpop.f32.mrb[0].mxu0
  %v4080 = vpop.f32.mrb[0].mxu0
  %v4081 = vadd.f32 %v3668, %v4080
  %v4082 = vpop.f32.mrb[0].mxu0
  %4083 = vmatprep.mubr.bf16.mxu0 %v3595
  %4084 = vmatmul.mubr.bf16.gmra.mrb[0].mxu0 %v3331
  %v4085 = vpop.f32.mrb[0].mxu0
  %v4086 = vadd.f32 %v3668, %v4085
  %v4087 = vpop.f32.mrb[0].mxu0
  %v4088 = vpop.f32.mrb[0].mxu0
  %v4089 = vadd.f32 %v3668, %v4088
  %v4090 = vpop.f32.mrb[0].mxu0
  %4091 = vmatprep.mubr.bf16.mxu0 %v3598
  %4092 = vmatmul.mubr.bf16.gmra.mrb[0].mxu0 %v3334
  %v4093 = vpop.f32.mrb[0].mxu0
  %v4094 = vadd.f32 %v3668, %v4093
  %v4095 = vpop.f32.mrb[0].mxu0
  %v4096 = vpop.f32.mrb[0].mxu0
  %v4097 = vadd.f32 %v3668, %v4096
  %v4098 = vpop.f32.mrb[0].mxu0
  %4099 = vmatprep.mubr.bf16.mxu0 %v3601
  %4100 = vmatmul.mubr.bf16.gmra.mrb[0].mxu0 %v3337
  %v4101 = vpop.f32.mrb[0].mxu0
  %v4102 = vadd.f32 %v3668, %v4101
  %v4103 = vpop.f32.mrb[0].mxu0
  %v4104 = vpop.f32.mrb[0].mxu0
  %v4105 = vadd.f32 %v3668, %v4104
  %v4106 = vpop.f32.mrb[0].mxu0
  %4107 = vmatprep.mubr.bf16.mxu0 %v3604
  %4108 = vmatmul.mubr.bf16.gmra.mrb[0].mxu0 %v3340
  %v4109 = vpop.f32.mrb[0].mxu0
  %v4110 = vadd.f32 %v3668, %v4109
  %v4111 = vpop.f32.mrb[0].mxu0
  %v4112 = vpop.f32.mrb[0].mxu0
  %v4113 = vadd.f32 %v3668, %v4112
  %v4114 = vpop.f32.mrb[0].mxu0
  %4115 = vmatprep.mubr.bf16.mxu0 %v3607
  %4116 = vmatmul.mubr.bf16.gmra.mrb[0].mxu0 %v3343
  %v4117 = vpop.f32.mrb[0].mxu0
  %v4118 = vadd.f32 %v3668, %v4117
  %v4119 = vpop.f32.mrb[0].mxu0
  %v4120 = vpop.f32.mrb[0].mxu0
  %v4121 = vadd.f32 %v3668, %v4120
  %v4122 = vpop.f32.mrb[0].mxu0
  %4123 = vmatprep.mubr.bf16.mxu0 %v3610
  %4124 = vmatmul.mubr.bf16.gmra.mrb[0].mxu0 %v3346
  %v4125 = vpop.f32.mrb[0].mxu0
  %v4126 = vadd.f32 %v3668, %v4125
  %v4127 = vpop.f32.mrb[0].mxu0
  %v4128 = vpop.f32.mrb[0].mxu0
  %v4129 = vadd.f32 %v3668, %v4128
  %v4130 = vpop.f32.mrb[0].mxu0
  %4131 = vmatprep.mubr.bf16.mxu0 %v3613
  %4132 = vmatmul.mubr.bf16.gmra.mrb[0].mxu0 %v3349
  %v4133 = vpop.f32.mrb[0].mxu0
  %v4134 = vadd.f32 %v3668, %v4133
  %v4135 = vpop.f32.mrb[0].mxu0
  %v4136 = vpop.f32.mrb[0].mxu0
  %v4137 = vadd.f32 %v3668, %v4136
  %v4138 = vpop.f32.mrb[0].mxu0
  %4139 = vmatprep.mubr.bf16.mxu0 %v3616
  %4140 = vmatmul.mubr.bf16.gmra.mrb[0].mxu0 %v3352
  %v4141 = vpop.f32.mrb[0].mxu0
  %v4142 = vadd.f32 %v3668, %v4141
  %v4143 = vpop.f32.mrb[0].mxu0
  %v4144 = vpop.f32.mrb[0].mxu0
  %v4145 = vadd.f32 %v3668, %v4144
  %v4146 = vpop.f32.mrb[0].mxu0
  %4147 = vmatprep.mubr.bf16.mxu0 %v3619
  %4148 = vmatmul.mubr.bf16.gmra.mrb[0].mxu0 %v3355
  %v4149 = vpop.f32.mrb[0].mxu0
  %v4150 = vadd.f32 %v3668, %v4149
  %v4151 = vpop.f32.mrb[0].mxu0
  %v4152 = vpop.f32.mrb[0].mxu0
  %v4153 = vadd.f32 %v3668, %v4152
  %v4154 = vpop.f32.mrb[0].mxu0
  %4155 = vmatprep.mubr.bf16.mxu0 %v3622
  %4156 = vmatmul.mubr.bf16.gmra.mrb[0].mxu0 %v3358
  %v4157 = vpop.f32.mrb[0].mxu0
  %v4158 = vadd.f32 %v3668, %v4157
  %v4159 = vpop.f32.mrb[0].mxu0
  %v4160 = vpop.f32.mrb[0].mxu0
  %v4161 = vadd.f32 %v3668, %v4160
  %v4162 = vpop.f32.mrb[0].mxu0
  %4163 = vmatprep.mubr.bf16.mxu0 %v3625
  %4164 = vmatmul.mubr.bf16.gmra.mrb[0].mxu0 %v3361
  %v4165 = vpop.f32.mrb[0].mxu0
  %v4166 = vadd.f32 %v3668, %v4165
  %v4167 = vpop.f32.mrb[0].mxu0
  %v4168 = vpop.f32.mrb[0].mxu0
  %v4169 = vadd.f32 %v3668, %v4168
  %v4170 = vpop.f32.mrb[0].mxu0
  %4171 = vdwg.mxu0
  %4172 = vmatprep.subr.bf16.mxu0 0
  %4173 = vmatpush1.bf16.msra.mxu0 %v3758
  %4174 = vmatprep.subr.bf16.mxu0 0
  %4175 = vmatpush1.bf16.msra.mxu0 %v3759
  %4176 = vmatprep.subr.bf16.mxu0 0
  %4177 = vmatpush1.bf16.msra.mxu0 0
  %4178 = vmatprep.subr.bf16.mxu0 0
  %4179 = vmatpush1.bf16.msra.mxu0 0
  %4180 = vmatprep.subr.bf16.mxu0 0
  %4181 = vmatpush1.bf16.msra.mxu0 0
  %4182 = vmatprep.subr.bf16.mxu0 0
  %4183 = vmatpush1.bf16.msra.mxu0 0
  %4184 = vmatprep.subr.bf16.mxu0 0
  %4185 = vmatpush1.bf16.msra.mxu0 0
  %4186 = vmatprep.subr.bf16.mxu0 0
  %4187 = vmatpush1.bf16.msra.mxu0 0
  %4188 = vmatprep.subr.bf16.mxu0 0
  %4189 = vmatpush1.bf16.msra.mxu0 0
  %4190 = vmatprep.subr.bf16.mxu0 0
  %4191 = vmatpush1.bf16.msra.mxu0 0
  %4192 = vmatprep.subr.bf16.mxu0 0
  %4193 = vmatpush1.bf16.msra.mxu0 0
  %4194 = vmatprep.subr.bf16.mxu0 0
  %4195 = vmatpush1.bf16.msra.mxu0 0
  %4196 = vmatprep.subr.bf16.mxu0 0
  %4197 = vmatpush1.bf16.msra.mxu0 0
  %4198 = vmatprep.subr.bf16.mxu0 0
  %4199 = vmatpush1.bf16.msra.mxu0 0
  %4200 = vmatprep.subr.bf16.mxu0 0
  %4201 = vmatpush1.bf16.msra.mxu0 0
  %4202 = vmatprep.subr.bf16.mxu0 0
  %4203 = vmatpush1.bf16.msra.mxu0 0
  %4204 = vmatprep.mubr.bf16.mxu0 0
  %4205 = vmatmul.mubr.bf16.gmra.mrb[0].mxu0 %v3779
  %v4206 = vpop.f32.mrb[0].mxu0
  %v4207 = vadd.f32 %v3912, %v4206
  %v4208 = vpop.f32.mrb[0].mxu0
  %v4209 = vpop.f32.mrb[0].mxu0
  %v4210 = vadd.f32 %v3915, %v4209
  %v4211 = vpop.f32.mrb[0].mxu0
  %4212 = vmatprep.mubr.bf16.mxu0 0
  %4213 = vmatmul.mubr.bf16.gmra.mrb[0].mxu0 %v3782
  %v4214 = vpop.f32.mrb[0].mxu0
  %v4215 = vadd.f32 %v3920, %v4214
  %v4216 = vpop.f32.mrb[0].mxu0
  %v4217 = vpop.f32.mrb[0].mxu0
  %v4218 = vadd.f32 %v3923, %v4217
  %v4219 = vpop.f32.mrb[0].mxu0
  %4220 = vmatprep.mubr.bf16.mxu0 0
  %4221 = vmatmul.mubr.bf16.gmra.mrb[0].mxu0 %v3785
  %v4222 = vpop.f32.mrb[0].mxu0
  %v4223 = vadd.f32 %v3928, %v4222
  %v4224 = vpop.f32.mrb[0].mxu0
  %v4225 = vpop.f32.mrb[0].mxu0
  %v4226 = vadd.f32 %v3931, %v4225
  %v4227 = vpop.f32.mrb[0].mxu0
  %4228 = vmatprep.mubr.bf16.mxu0 0
  %4229 = vmatmul.mubr.bf16.gmra.mrb[0].mxu0 %v3788
  %v4230 = vpop.f32.mrb[0].mxu0
  %v4231 = vadd.f32 %v3936, %v4230
  %v4232 = vpop.f32.mrb[0].mxu0
  %v4233 = vpop.f32.mrb[0].mxu0
  %v4234 = vadd.f32 %v3939, %v4233
  %v4235 = vpop.f32.mrb[0].mxu0
  %4236 = vmatprep.mubr.bf16.mxu0 0
  %4237 = vmatmul.mubr.bf16.gmra.mrb[0].mxu0 %v3791
  %v4238 = vpop.f32.mrb[0].mxu0
  %v4239 = vadd.f32 %v3944, %v4238
  %v4240 = vpop.f32.mrb[0].mxu0
  %v4241 = vpop.f32.mrb[0].mxu0
  %v4242 = vadd.f32 %v3947, %v4241
  %v4243 = vpop.f32.mrb[0].mxu0
  %4244 = vmatprep.mubr.bf16.mxu0 0
  %4245 = vmatmul.mubr.bf16.gmra.mrb[0].mxu0 %v3794
  %v4246 = vpop.f32.mrb[0].mxu0
  %v4247 = vadd.f32 %v3952, %v4246
  %v4248 = vpop.f32.mrb[0].mxu0
  %v4249 = vpop.f32.mrb[0].mxu0
  %v4250 = vadd.f32 %v3955, %v4249
  %v4251 = vpop.f32.mrb[0].mxu0
  %4252 = vmatprep.mubr.bf16.mxu0 0
  %4253 = vmatmul.mubr.bf16.gmra.mrb[0].mxu0 %v3797
  %v4254 = vpop.f32.mrb[0].mxu0
  %v4255 = vadd.f32 %v3960, %v4254
  %v4256 = vpop.f32.mrb[0].mxu0
  %v4257 = vpop.f32.mrb[0].mxu0
  %v4258 = vadd.f32 %v3963, %v4257
  %v4259 = vpop.f32.mrb[0].mxu0
  %4260 = vmatprep.mubr.bf16.mxu0 0
  %4261 = vmatmul.mubr.bf16.gmra.mrb[0].mxu0 %v3800
  %v4262 = vpop.f32.mrb[0].mxu0
  %v4263 = vadd.f32 %v3968, %v4262
  %v4264 = vpop.f32.mrb[0].mxu0
  %v4265 = vpop.f32.mrb[0].mxu0
  %v4266 = vadd.f32 %v3971, %v4265
  %v4267 = vpop.f32.mrb[0].mxu0
  %4268 = vmatprep.mubr.bf16.mxu0 0
  %4269 = vmatmul.mubr.bf16.gmra.mrb[0].mxu0 %v3803
  %v4270 = vpop.f32.mrb[0].mxu0
  %v4271 = vadd.f32 %v3976, %v4270
  %v4272 = vpop.f32.mrb[0].mxu0
  %v4273 = vpop.f32.mrb[0].mxu0
  %v4274 = vadd.f32 %v3979, %v4273
  %v4275 = vpop.f32.mrb[0].mxu0
  %4276 = vmatprep.mubr.bf16.mxu0 0
  %4277 = vmatmul.mubr.bf16.gmra.mrb[0].mxu0 %v3806
  %v4278 = vpop.f32.mrb[0].mxu0
  %v4279 = vadd.f32 %v3984, %v4278
  %v4280 = vpop.f32.mrb[0].mxu0
  %v4281 = vpop.f32.mrb[0].mxu0
  %v4282 = vadd.f32 %v3987, %v4281
  %v4283 = vpop.f32.mrb[0].mxu0
  %4284 = vmatprep.mubr.bf16.mxu0 0
  %4285 = vmatmul.mubr.bf16.gmra.mrb[0].mxu0 %v3809
  %v4286 = vpop.f32.mrb[0].mxu0
  %v4287 = vadd.f32 %v3992, %v4286
  %v4288 = vpop.f32.mrb[0].mxu0
  %v4289 = vpop.f32.mrb[0].mxu0
  %v4290 = vadd.f32 %v3995, %v4289
  %v4291 = vpop.f32.mrb[0].mxu0
  %4292 = vmatprep.mubr.bf16.mxu0 0
  %4293 = vmatmul.mubr.bf16.gmra.mrb[0].mxu0 %v3812
  %v4294 = vpop.f32.mrb[0].mxu0
  %v4295 = vadd.f32 %v4000, %v4294
  %v4296 = vpop.f32.mrb[0].mxu0
  %v4297 = vpop.f32.mrb[0].mxu0
  %v4298 = vadd.f32 %v4003, %v4297
  %v4299 = vpop.f32.mrb[0].mxu0
  %4300 = vmatprep.mubr.bf16.mxu0 0
  %4301 = vmatmul.mubr.bf16.gmra.mrb[0].mxu0 %v3815
  %v4302 = vpop.f32.mrb[0].mxu0
  %v4303 = vadd.f32 %v4008, %v4302
  %v4304 = vpop.f32.mrb[0].mxu0
  %v4305 = vpop.f32.mrb[0].mxu0
  %v4306 = vadd.f32 %v4011, %v4305
  %v4307 = vpop.f32.mrb[0].mxu0
  %4308 = vmatprep.mubr.bf16.mxu0 0
  %4309 = vmatmul.mubr.bf16.gmra.mrb[0].mxu0 %v3818
  %v4310 = vpop.f32.mrb[0].mxu0
  %v4311 = vadd.f32 %v4016, %v4310
  %v4312 = vpop.f32.mrb[0].mxu0
  %v4313 = vpop.f32.mrb[0].mxu0
  %v4314 = vadd.f32 %v4019, %v4313
  %v4315 = vpop.f32.mrb[0].mxu0
  %4316 = vmatprep.mubr.bf16.mxu0 0
  %4317 = vmatmul.mubr.bf16.gmra.mrb[0].mxu0 %v3821
  %v4318 = vpop.f32.mrb[0].mxu0
  %v4319 = vadd.f32 %v4024, %v4318
  %v4320 = vpop.f32.mrb[0].mxu0
  %v4321 = vpop.f32.mrb[0].mxu0
  %v4322 = vadd.f32 %v4027, %v4321
  %v4323 = vpop.f32.mrb[0].mxu0
  %4324 = vmatprep.mubr.bf16.mxu0 0
  %4325 = vmatmul.mubr.bf16.gmra.mrb[0].mxu0 %v3824
  %v4326 = vpop.f32.mrb[0].mxu0
  %v4327 = vadd.f32 %v4032, %v4326
  %v4328 = vpop.f32.mrb[0].mxu0
  %v4329 = vpop.f32.mrb[0].mxu0
  %v4330 = vadd.f32 %v4035, %v4329
  %v4331 = vpop.f32.mrb[0].mxu0
  %4332 = vmatprep.mubr.bf16.mxu0 0
  %4333 = vmatmul.mubr.bf16.gmra.mrb[0].mxu0 %v3827
  %v4334 = vpop.f32.mrb[0].mxu0
  %v4335 = vpop.f32.mrb[0].mxu0
  %v4336 = vpop.f32.mrb[0].mxu0
  %v4337 = vpop.f32.mrb[0].mxu0
  %4338 = vmatprep.mubr.bf16.mxu0 0
  %4339 = vmatmul.mubr.bf16.gmra.mrb[0].mxu0 %v3830
  %v4340 = vpop.f32.mrb[0].mxu0
  %v4341 = vadd.f32 %v4046, %v4340
  %v4342 = vpop.f32.mrb[0].mxu0
  %v4343 = vpop.f32.mrb[0].mxu0
  %v4344 = vadd.f32 %v4049, %v4343
  %v4345 = vpop.f32.mrb[0].mxu0
  %4346 = vmatprep.mubr.bf16.mxu0 0
  %4347 = vmatmul.mubr.bf16.gmra.mrb[0].mxu0 %v3833
  %v4348 = vpop.f32.mrb[0].mxu0
  %v4349 = vadd.f32 %v4054, %v4348
  %v4350 = vpop.f32.mrb[0].mxu0
  %v4351 = vpop.f32.mrb[0].mxu0
  %v4352 = vadd.f32 %v4057, %v4351
  %v4353 = vpop.f32.mrb[0].mxu0
  %4354 = vmatprep.mubr.bf16.mxu0 0
  %4355 = vmatmul.mubr.bf16.gmra.mrb[0].mxu0 %v3836
  %v4356 = vpop.f32.mrb[0].mxu0
  %v4357 = vadd.f32 %v4062, %v4356
  %v4358 = vpop.f32.mrb[0].mxu0
  %v4359 = vpop.f32.mrb[0].mxu0
  %v4360 = vadd.f32 %v4065, %v4359
  %v4361 = vpop.f32.mrb[0].mxu0
  %4362 = vmatprep.mubr.bf16.mxu0 0
  %4363 = vmatmul.mubr.bf16.gmra.mrb[0].mxu0 %v3839
  %v4364 = vpop.f32.mrb[0].mxu0
  %v4365 = vadd.f32 %v4070, %v4364
  %v4366 = vpop.f32.mrb[0].mxu0
  %v4367 = vpop.f32.mrb[0].mxu0
  %v4368 = vadd.f32 %v4073, %v4367
  %v4369 = vpop.f32.mrb[0].mxu0
  %4370 = vmatprep.mubr.bf16.mxu0 0
  %4371 = vmatmul.mubr.bf16.gmra.mrb[0].mxu0 %v3842
  %v4372 = vpop.f32.mrb[0].mxu0
  %v4373 = vadd.f32 %v4078, %v4372
  %v4374 = vpop.f32.mrb[0].mxu0
  %v4375 = vpop.f32.mrb[0].mxu0
  %v4376 = vadd.f32 %v4081, %v4375
  %v4377 = vpop.f32.mrb[0].mxu0
  %4378 = vmatprep.mubr.bf16.mxu0 0
  %4379 = vmatmul.mubr.bf16.gmra.mrb[0].mxu0 %v3845
  %v4380 = vpop.f32.mrb[0].mxu0
  %v4381 = vadd.f32 %v4086, %v4380
  %v4382 = vpop.f32.mrb[0].mxu0
  %v4383 = vpop.f32.mrb[0].mxu0
  %v4384 = vadd.f32 %v4089, %v4383
  %v4385 = vpop.f32.mrb[0].mxu0
  %4386 = vmatprep.mubr.bf16.mxu0 0
  %4387 = vmatmul.mubr.bf16.gmra.mrb[0].mxu0 %v3848
  %v4388 = vpop.f32.mrb[0].mxu0
  %v4389 = vadd.f32 %v4094, %v4388
  %v4390 = vpop.f32.mrb[0].mxu0
  %v4391 = vpop.f32.mrb[0].mxu0
  %v4392 = vadd.f32 %v4097, %v4391
  %v4393 = vpop.f32.mrb[0].mxu0
  %4394 = vmatprep.mubr.bf16.mxu0 0
  %4395 = vmatmul.mubr.bf16.gmra.mrb[0].mxu0 %v3851
  %v4396 = vpop.f32.mrb[0].mxu0
  %v4397 = vadd.f32 %v4102, %v4396
  %v4398 = vpop.f32.mrb[0].mxu0
  %v4399 = vpop.f32.mrb[0].mxu0
  %v4400 = vadd.f32 %v4105, %v4399
  %v4401 = vpop.f32.mrb[0].mxu0
  %4402 = vmatprep.mubr.bf16.mxu0 0
  %4403 = vmatmul.mubr.bf16.gmra.mrb[0].mxu0 %v3854
  %v4404 = vpop.f32.mrb[0].mxu0
  %v4405 = vadd.f32 %v4110, %v4404
  %v4406 = vpop.f32.mrb[0].mxu0
  %v4407 = vpop.f32.mrb[0].mxu0
  %v4408 = vadd.f32 %v4113, %v4407
  %v4409 = vpop.f32.mrb[0].mxu0
  %4410 = vmatprep.mubr.bf16.mxu0 0
  %4411 = vmatmul.mubr.bf16.gmra.mrb[0].mxu0 %v3857
  %v4412 = vpop.f32.mrb[0].mxu0
  %v4413 = vadd.f32 %v4118, %v4412
  %v4414 = vpop.f32.mrb[0].mxu0
  %v4415 = vpop.f32.mrb[0].mxu0
  %v4416 = vadd.f32 %v4121, %v4415
  %v4417 = vpop.f32.mrb[0].mxu0
  %4418 = vmatprep.mubr.bf16.mxu0 0
  %4419 = vmatmul.mubr.bf16.gmra.mrb[0].mxu0 %v3860
  %v4420 = vpop.f32.mrb[0].mxu0
  %v4421 = vadd.f32 %v4126, %v4420
  %v4422 = vpop.f32.mrb[0].mxu0
  %v4423 = vpop.f32.mrb[0].mxu0
  %v4424 = vadd.f32 %v4129, %v4423
  %v4425 = vpop.f32.mrb[0].mxu0
  %4426 = vmatprep.mubr.bf16.mxu0 0
  %4427 = vmatmul.mubr.bf16.gmra.mrb[0].mxu0 %v3863
  %v4428 = vpop.f32.mrb[0].mxu0
  %v4429 = vadd.f32 %v4134, %v4428
  %v4430 = vpop.f32.mrb[0].mxu0
  %v4431 = vpop.f32.mrb[0].mxu0
  %v4432 = vadd.f32 %v4137, %v4431
  %v4433 = vpop.f32.mrb[0].mxu0
  %4434 = vmatprep.mubr.bf16.mxu0 0
  %4435 = vmatmul.mubr.bf16.gmra.mrb[0].mxu0 %v3866
  %v4436 = vpop.f32.mrb[0].mxu0
  %v4437 = vadd.f32 %v4142, %v4436
  %v4438 = vpop.f32.mrb[0].mxu0
  %v4439 = vpop.f32.mrb[0].mxu0
  %v4440 = vadd.f32 %v4145, %v4439
  %v4441 = vpop.f32.mrb[0].mxu0
  %4442 = vmatprep.mubr.bf16.mxu0 0
  %4443 = vmatmul.mubr.bf16.gmra.mrb[0].mxu0 %v3869
  %v4444 = vpop.f32.mrb[0].mxu0
  %v4445 = vadd.f32 %v4150, %v4444
  %v4446 = vpop.f32.mrb[0].mxu0
  %v4447 = vpop.f32.mrb[0].mxu0
  %v4448 = vadd.f32 %v4153, %v4447
  %v4449 = vpop.f32.mrb[0].mxu0
  %4450 = vmatprep.mubr.bf16.mxu0 0
  %4451 = vmatmul.mubr.bf16.gmra.mrb[0].mxu0 %v3872
  %v4452 = vpop.f32.mrb[0].mxu0
  %v4453 = vadd.f32 %v4158, %v4452
  %v4454 = vpop.f32.mrb[0].mxu0
  %v4455 = vpop.f32.mrb[0].mxu0
  %v4456 = vadd.f32 %v4161, %v4455
  %v4457 = vpop.f32.mrb[0].mxu0
  %4458 = vmatprep.mubr.bf16.mxu0 0
  %4459 = vmatmul.mubr.bf16.gmra.mrb[0].mxu0 %v3875
  %v4460 = vpop.f32.mrb[0].mxu0
  %v4461 = vadd.f32 %v4166, %v4460
  %v4462 = vpop.f32.mrb[0].mxu0
  %v4463 = vpop.f32.mrb[0].mxu0
  %v4464 = vadd.f32 %v4169, %v4463
  %v4465 = vpop.f32.mrb[0].mxu0
  %4466 = vdwg.mxu0
  %v4467 = vmax.f32 %v4207, 0.0
  %v4468 = vmax.f32 %v4210, 0.0
  %v4469 = vmax.f32 %v4215, 0.0
  %v4470 = vmax.f32 %v4218, 0.0
  %v4471 = vmax.f32 %v4223, 0.0
  %v4472 = vmax.f32 %v4226, 0.0
  %v4473 = vmax.f32 %v4231, 0.0
  %v4474 = vmax.f32 %v4234, 0.0
  %v4475 = vmax.f32 %v4239, 0.0
  %v4476 = vmax.f32 %v4242, 0.0
  %v4477 = vmax.f32 %v4247, 0.0
  %v4478 = vmax.f32 %v4250, 0.0
  %v4479 = vmax.f32 %v4255, 0.0
  %v4480 = vmax.f32 %v4258, 0.0
  %v4481 = vmax.f32 %v4263, 0.0
  %v4482 = vmax.f32 %v4266, 0.0
  %v4483 = vmax.f32 %v4271, 0.0
  %v4484 = vmax.f32 %v4274, 0.0
  %v4485 = vmax.f32 %v4279, 0.0
  %v4486 = vmax.f32 %v4282, 0.0
  %v4487 = vmax.f32 %v4287, 0.0
  %v4488 = vmax.f32 %v4290, 0.0
  %v4489 = vmax.f32 %v4295, 0.0
  %v4490 = vmax.f32 %v4298, 0.0
  %v4491 = vmax.f32 %v4303, 0.0
  %v4492 = vmax.f32 %v4306, 0.0
  %v4493 = vmax.f32 %v4311, 0.0
  %v4494 = vmax.f32 %v4314, 0.0
  %v4495 = vmax.f32 %v4319, 0.0
  %v4496 = vmax.f32 %v4322, 0.0
  %v4497 = vmax.f32 %v4327, 0.0
  %v4498 = vmax.f32 %v4330, 0.0
  %v4499 = vmax.f32 %v4341, 0.0
  %v4500 = vmax.f32 %v4344, 0.0
  %v4501 = vmax.f32 %v4349, 0.0
  %v4502 = vmax.f32 %v4352, 0.0
  %v4503 = vmax.f32 %v4357, 0.0
  %v4504 = vmax.f32 %v4360, 0.0
  %v4505 = vmax.f32 %v4365, 0.0
  %v4506 = vmax.f32 %v4368, 0.0
  %v4507 = vmax.f32 %v4373, 0.0
  %v4508 = vmax.f32 %v4376, 0.0
  %v4509 = vmax.f32 %v4381, 0.0
  %v4510 = vmax.f32 %v4384, 0.0
  %v4511 = vmax.f32 %v4389, 0.0
  %v4512 = vmax.f32 %v4392, 0.0
  %v4513 = vmax.f32 %v4397, 0.0
  %v4514 = vmax.f32 %v4400, 0.0
  %v4515 = vmax.f32 %v4405, 0.0
  %v4516 = vmax.f32 %v4408, 0.0
  %v4517 = vmax.f32 %v4413, 0.0
  %v4518 = vmax.f32 %v4416, 0.0
  %v4519 = vmax.f32 %v4421, 0.0
  %v4520 = vmax.f32 %v4424, 0.0
  %v4521 = vmax.f32 %v4429, 0.0
  %v4522 = vmax.f32 %v4432, 0.0
  %v4523 = vmax.f32 %v4437, 0.0
  %v4524 = vmax.f32 %v4440, 0.0
  %v4525 = vmax.f32 %v4445, 0.0
  %v4526 = vmax.f32 %v4448, 0.0
  %v4527 = vmax.f32 %v4453, 0.0
  %v4528 = vmax.f32 %v4456, 0.0
  %v4529 = vmax.f32 %v4461, 0.0
  %v4530 = vmax.f32 %v4464, 0.0
  %4531 = vst.msk [vmem:[#allocation2 + $0x18] sm:$0xff] %vm27, %v4467
  %4532 = vst.msk [vmem:[#allocation2 + $0x20] sm:$0xff] %vm27, %v4468
  %4533 = vst.msk [vmem:[#allocation2 + $0x28] sm:$0xff] %vm27, %v4469
  %4534 = vst.msk [vmem:[#allocation2 + $0x30] sm:$0xff] %vm27, %v4470
  %4535 = vst.msk [vmem:[#allocation2 + $0x38] sm:$0xff] %vm27, %v4471
  %4536 = vst.msk [vmem:[#allocation2 + $0x40] sm:$0xff] %vm27, %v4472
  %4537 = vst.msk [vmem:[#allocation2 + $0x48] sm:$0xff] %vm27, %v4473
  %4538 = vst.msk [vmem:[#allocation2 + $0x50] sm:$0xff] %vm27, %v4474
  %4539 = vst.msk [vmem:[#allocation2 + $0x58] sm:$0xff] %vm27, %v4475
  %4540 = vst.msk [vmem:[#allocation2 + $0x60] sm:$0xff] %vm27, %v4476
  %4541 = vst.msk [vmem:[#allocation2 + $0x68] sm:$0xff] %vm27, %v4477
  %4542 = vst.msk [vmem:[#allocation2 + $0x70] sm:$0xff] %vm27, %v4478
  %4543 = vst.msk [vmem:[#allocation2 + $0x78] sm:$0xff] %vm27, %v4479
  %4544 = vst.msk [vmem:[#allocation2 + $0x80] sm:$0xff] %vm27, %v4480
  %4545 = vst.msk [vmem:[#allocation2 + $0x88] sm:$0xff] %vm27, %v4481
  %4546 = vst.msk [vmem:[#allocation2 + $0x90] sm:$0xff] %vm27, %v4482
  %4547 = vst.msk [vmem:[#allocation2 + $0x98] sm:$0xff] %vm27, %v4483
  %4548 = vst.msk [vmem:[#allocation2 + $0xa0] sm:$0xff] %vm27, %v4484
  %4549 = vst.msk [vmem:[#allocation2 + $0xa8] sm:$0xff] %vm27, %v4485
  %4550 = vst.msk [vmem:[#allocation2 + $0xb0] sm:$0xff] %vm27, %v4486
  %4551 = vst.msk [vmem:[#allocation2 + $0xb8] sm:$0xff] %vm27, %v4487
  %4552 = vst.msk [vmem:[#allocation2 + $0xc0] sm:$0xff] %vm27, %v4488
  %4553 = vst.msk [vmem:[#allocation2 + $0xc8] sm:$0xff] %vm27, %v4489
  %4554 = vst.msk [vmem:[#allocation2 + $0xd0] sm:$0xff] %vm27, %v4490
  %4555 = vst.msk [vmem:[#allocation2 + $0xd8] sm:$0xff] %vm27, %v4491
  %4556 = vst.msk [vmem:[#allocation2 + $0xe0] sm:$0xff] %vm27, %v4492
  %4557 = vst.msk [vmem:[#allocation2 + $0xe8] sm:$0xff] %vm27, %v4493
  %4558 = vst.msk [vmem:[#allocation2 + $0xf0] sm:$0xff] %vm27, %v4494
  %4559 = vst.msk [vmem:[#allocation2 + $0xf8] sm:$0xff] %vm27, %v4495
  %4560 = vst.msk [vmem:[#allocation2 + $0x100] sm:$0xff] %vm27, %v4496
  %4561 = vst.msk [vmem:[#allocation2 + $0x108] sm:$0xff] %vm27, %v4497
  %4562 = vst.msk [vmem:[#allocation2 + $0x110] sm:$0xff] %vm27, %v4498
  %4563 = vst.msk [vmem:[#allocation2 + $0x128] sm:$0xff] %vm27, %v4499
  %4564 = vst.msk [vmem:[#allocation2 + $0x130] sm:$0xff] %vm27, %v4500
  %4565 = vst.msk [vmem:[#allocation2 + $0x138] sm:$0xff] %vm27, %v4501
  %4566 = vst.msk [vmem:[#allocation2 + $0x140] sm:$0xff] %vm27, %v4502
  %4567 = vst.msk [vmem:[#allocation2 + $0x148] sm:$0xff] %vm27, %v4503
  %4568 = vst.msk [vmem:[#allocation2 + $0x150] sm:$0xff] %vm27, %v4504
  %4569 = vst.msk [vmem:[#allocation2 + $0x158] sm:$0xff] %vm27, %v4505
  %4570 = vst.msk [vmem:[#allocation2 + $0x160] sm:$0xff] %vm27, %v4506
  %4571 = vst.msk [vmem:[#allocation2 + $0x168] sm:$0xff] %vm27, %v4507
  %4572 = vst.msk [vmem:[#allocation2 + $0x170] sm:$0xff] %vm27, %v4508
  %4573 = vst.msk [vmem:[#allocation2 + $0x178] sm:$0xff] %vm27, %v4509
  %4574 = vst.msk [vmem:[#allocation2 + $0x180] sm:$0xff] %vm27, %v4510
  %4575 = vst.msk [vmem:[#allocation2 + $0x188] sm:$0xff] %vm27, %v4511
  %4576 = vst.msk [vmem:[#allocation2 + $0x190] sm:$0xff] %vm27, %v4512
  %4577 = vst.msk [vmem:[#allocation2 + $0x198] sm:$0xff] %vm27, %v4513
  %4578 = vst.msk [vmem:[#allocation2 + $0x1a0] sm:$0xff] %vm27, %v4514
  %4579 = vst.msk [vmem:[#allocation2 + $0x1a8] sm:$0xff] %vm27, %v4515
  %4580 = vst.msk [vmem:[#allocation2 + $0x1b0] sm:$0xff] %vm27, %v4516
  %4581 = vst.msk [vmem:[#allocation2 + $0x1b8] sm:$0xff] %vm27, %v4517
  %4582 = vst.msk [vmem:[#allocation2 + $0x1c0] sm:$0xff] %vm27, %v4518
  %4583 = vst.msk [vmem:[#allocation2 + $0x1c8] sm:$0xff] %vm27, %v4519
  %4584 = vst.msk [vmem:[#allocation2 + $0x1d0] sm:$0xff] %vm27, %v4520
  %4585 = vst.msk [vmem:[#allocation2 + $0x1d8] sm:$0xff] %vm27, %v4521
  %4586 = vst.msk [vmem:[#allocation2 + $0x1e0] sm:$0xff] %vm27, %v4522
  %4587 = vst.msk [vmem:[#allocation2 + $0x1e8] sm:$0xff] %vm27, %v4523
  %4588 = vst.msk [vmem:[#allocation2 + $0x1f0] sm:$0xff] %vm27, %v4524
  %4589 = vst.msk [vmem:[#allocation2 + $0x1f8] sm:$0xff] %vm27, %v4525
  %4590 = vst.msk [vmem:[#allocation2 + $0x200] sm:$0xff] %vm27, %v4526
  %4591 = vst.msk [vmem:[#allocation2 + $0x208] sm:$0xff] %vm27, %v4527
  %4592 = vst.msk [vmem:[#allocation2 + $0x210] sm:$0xff] %vm27, %v4528
  %4593 = vst.msk [vmem:[#allocation2 + $0x218] sm:$0xff] %vm27, %v4529
  %4594 = vst.msk [vmem:[#allocation2 + $0x220] sm:$0xff] %vm27, %v4530
  %v4595 = vld [vmem:[#allocation2 + $0x8] sm:$0xff]
  %v4596 = vld [vmem:[#allocation2 + $0x10] sm:$0xff]
  %v4597 = vld [vmem:[#allocation2 + $0x18] sm:$0xff]
  %v4598 = vld [vmem:[#allocation2 + $0x20] sm:$0xff]
  %v4599 = vld [vmem:[#allocation2 + $0x28] sm:$0xff]
  %v4600 = vld [vmem:[#allocation2 + $0x30] sm:$0xff]
  %v4601 = vld [vmem:[#allocation2 + $0x38] sm:$0xff]
  %v4602 = vld [vmem:[#allocation2 + $0x40] sm:$0xff]
  %v4603 = vld [vmem:[#allocation2 + $0x48] sm:$0xff]
  %v4604 = vld [vmem:[#allocation2 + $0x50] sm:$0xff]
  %v4605 = vld [vmem:[#allocation2 + $0x58] sm:$0xff]
  %v4606 = vld [vmem:[#allocation2 + $0x60] sm:$0xff]
  %v4607 = vld [vmem:[#allocation2 + $0x68] sm:$0xff]
  %v4608 = vld [vmem:[#allocation2 + $0x70] sm:$0xff]
  %v4609 = vld [vmem:[#allocation2 + $0x78] sm:$0xff]
  %v4610 = vld [vmem:[#allocation2 + $0x80] sm:$0xff]
  %v4611 = vld [vmem:[#allocation2 + $0x88] sm:$0xff]
  %v4612 = vld [vmem:[#allocation2 + $0x90] sm:$0xff]
  %v4613 = vld [vmem:[#allocation2 + $0x98] sm:$0xff]
  %v4614 = vld [vmem:[#allocation2 + $0xa0] sm:$0xff]
  %v4615 = vld [vmem:[#allocation2 + $0xa8] sm:$0xff]
  %v4616 = vld [vmem:[#allocation2 + $0xb0] sm:$0xff]
  %v4617 = vld [vmem:[#allocation2 + $0xb8] sm:$0xff]
  %v4618 = vld [vmem:[#allocation2 + $0xc0] sm:$0xff]
  %v4619 = vld [vmem:[#allocation2 + $0xc8] sm:$0xff]
  %v4620 = vld [vmem:[#allocation2 + $0xd0] sm:$0xff]
  %v4621 = vld [vmem:[#allocation2 + $0xd8] sm:$0xff]
  %v4622 = vld [vmem:[#allocation2 + $0xe0] sm:$0xff]
  %v4623 = vld [vmem:[#allocation2 + $0xe8] sm:$0xff]
  %v4624 = vld [vmem:[#allocation2 + $0xf0] sm:$0xff]
  %v4625 = vld [vmem:[#allocation2 + $0xf8] sm:$0xff]
  %v4626 = vld [vmem:[#allocation2 + $0x100] sm:$0xff]
  %v4627 = vld [vmem:[#allocation2 + $0x108] sm:$0xff]
  %v4628 = vld [vmem:[#allocation2 + $0x110] sm:$0xff]
  %v4629 = vld [vmem:[#allocation2 + $0x118] sm:$0xff]
  %v4630 = vld [vmem:[#allocation2 + $0x120] sm:$0xff]
  %v4631 = vld [vmem:[#allocation2 + $0x128] sm:$0xff]
  %v4632 = vld [vmem:[#allocation2 + $0x130] sm:$0xff]
  %v4633 = vld [vmem:[#allocation2 + $0x138] sm:$0xff]
  %v4634 = vld [vmem:[#allocation2 + $0x140] sm:$0xff]
  %v4635 = vld [vmem:[#allocation2 + $0x148] sm:$0xff]
  %v4636 = vld [vmem:[#allocation2 + $0x150] sm:$0xff]
  %v4637 = vld [vmem:[#allocation2 + $0x158] sm:$0xff]
  %v4638 = vld [vmem:[#allocation2 + $0x160] sm:$0xff]
  %v4639 = vld [vmem:[#allocation2 + $0x168] sm:$0xff]
  %v4640 = vld [vmem:[#allocation2 + $0x170] sm:$0xff]
  %v4641 = vld [vmem:[#allocation2 + $0x178] sm:$0xff]
  %v4642 = vld [vmem:[#allocation2 + $0x180] sm:$0xff]
  %v4643 = vld [vmem:[#allocation2 + $0x188] sm:$0xff]
  %v4644 = vld [vmem:[#allocation2 + $0x190] sm:$0xff]
  %v4645 = vld [vmem:[#allocation2 + $0x198] sm:$0xff]
  %v4646 = vld [vmem:[#allocation2 + $0x1a0] sm:$0xff]
  %v4647 = vld [vmem:[#allocation2 + $0x1a8] sm:$0xff]
  %v4648 = vld [vmem:[#allocation2 + $0x1b0] sm:$0xff]
  %v4649 = vld [vmem:[#allocation2 + $0x1b8] sm:$0xff]
  %v4650 = vld [vmem:[#allocation2 + $0x1c0] sm:$0xff]
  %v4651 = vld [vmem:[#allocation2 + $0x1c8] sm:$0xff]
  %v4652 = vld [vmem:[#allocation2 + $0x1d0] sm:$0xff]
  %v4653 = vld [vmem:[#allocation2 + $0x1d8] sm:$0xff]
  %v4654 = vld [vmem:[#allocation2 + $0x1e0] sm:$0xff]
  %v4655 = vld [vmem:[#allocation2 + $0x1e8] sm:$0xff]
  %v4656 = vld [vmem:[#allocation2 + $0x1f0] sm:$0xff]
  %v4657 = vld [vmem:[#allocation2 + $0x1f8] sm:$0xff]
  %v4658 = vld [vmem:[#allocation2 + $0x200] sm:$0xff]
  %v4659 = vld [vmem:[#allocation2 + $0x208] sm:$0xff]
  %v4660 = vld [vmem:[#allocation2 + $0x210] sm:$0xff]
  %v4661 = vld [vmem:[#allocation2 + $0x218] sm:$0xff]
  %v4662 = vld [vmem:[#allocation2 + $0x220] sm:$0xff]
  %v4663 = vld [vmem:[#allocation2 + $0x228] sm:$0xff]
  %v4664 = vld [vmem:[#allocation2 + $0x230] sm:$0xff]
  %v4665 = vpack.c.bf16 %v4596, %v4595
  %v4666 = vpack.c.bf16 %v4598, %v4597
  %v4667 = vpack.c.bf16 %v4600, %v4599
  %v4668 = vpack.c.bf16 %v4602, %v4601
  %v4669 = vpack.c.bf16 %v4604, %v4603
  %v4670 = vpack.c.bf16 %v4606, %v4605
  %v4671 = vpack.c.bf16 %v4608, %v4607
  %v4672 = vpack.c.bf16 %v4610, %v4609
  %v4673 = vpack.c.bf16 %v4612, %v4611
  %v4674 = vpack.c.bf16 %v4614, %v4613
  %v4675 = vpack.c.bf16 %v4616, %v4615
  %v4676 = vpack.c.bf16 %v4618, %v4617
  %v4677 = vpack.c.bf16 %v4620, %v4619
  %v4678 = vpack.c.bf16 %v4622, %v4621
  %v4679 = vpack.c.bf16 %v4624, %v4623
  %v4680 = vpack.c.bf16 %v4626, %v4625
  %v4681 = vpack.c.bf16 %v4628, %v4627
  %v4682 = vpack.c.bf16 %v4630, %v4629
  %v4683 = vpack.c.bf16 %v4632, %v4631
  %v4684 = vpack.c.bf16 %v4634, %v4633
  %v4685 = vpack.c.bf16 %v4636, %v4635
  %v4686 = vpack.c.bf16 %v4638, %v4637
  %v4687 = vpack.c.bf16 %v4640, %v4639
  %v4688 = vpack.c.bf16 %v4642, %v4641
  %v4689 = vpack.c.bf16 %v4644, %v4643
  %v4690 = vpack.c.bf16 %v4646, %v4645
  %v4691 = vpack.c.bf16 %v4648, %v4647
  %v4692 = vpack.c.bf16 %v4650, %v4649
  %v4693 = vpack.c.bf16 %v4652, %v4651
  %v4694 = vpack.c.bf16 %v4654, %v4653
  %v4695 = vpack.c.bf16 %v4656, %v4655
  %v4696 = vpack.c.bf16 %v4658, %v4657
  %v4697 = vpack.c.bf16 %v4660, %v4659
  %v4698 = vpack.c.bf16 %v4662, %v4661
  %v4699 = vpack.c.bf16 %v4664, %v4663
  %v4700 = vld [vmem:[#allocation2 + $0x7] sm:$0xff]
  %v4701 = vld [vmem:[#allocation2 + $0xf] sm:$0xff]
  %v4702 = vld [vmem:[#allocation2 + $0x17] sm:$0xff]
  %v4703 = vld [vmem:[#allocation2 + $0x1f] sm:$0xff]
  %v4704 = vld [vmem:[#allocation2 + $0x27] sm:$0xff]
  %v4705 = vld [vmem:[#allocation2 + $0x2f] sm:$0xff]
  %v4706 = vld [vmem:[#allocation2 + $0x37] sm:$0xff]
  %v4707 = vld [vmem:[#allocation2 + $0x3f] sm:$0xff]
  %v4708 = vld [vmem:[#allocation2 + $0x47] sm:$0xff]
  %v4709 = vld [vmem:[#allocation2 + $0x4f] sm:$0xff]
  %v4710 = vld [vmem:[#allocation2 + $0x57] sm:$0xff]
  %v4711 = vld [vmem:[#allocation2 + $0x5f] sm:$0xff]
  %v4712 = vld [vmem:[#allocation2 + $0x67] sm:$0xff]
  %v4713 = vld [vmem:[#allocation2 + $0x6f] sm:$0xff]
  %v4714 = vld [vmem:[#allocation2 + $0x77] sm:$0xff]
  %v4715 = vld [vmem:[#allocation2 + $0x7f] sm:$0xff]
  %v4716 = vld [vmem:[#allocation2 + $0x87] sm:$0xff]
  %v4717 = vld [vmem:[#allocation2 + $0x8f] sm:$0xff]
  %v4718 = vld [vmem:[#allocation2 + $0x97] sm:$0xff]
  %v4719 = vld [vmem:[#allocation2 + $0x9f] sm:$0xff]
  %v4720 = vld [vmem:[#allocation2 + $0xa7] sm:$0xff]
  %v4721 = vld [vmem:[#allocation2 + $0xaf] sm:$0xff]
  %v4722 = vld [vmem:[#allocation2 + $0xb7] sm:$0xff]
  %v4723 = vld [vmem:[#allocation2 + $0xbf] sm:$0xff]
  %v4724 = vld [vmem:[#allocation2 + $0xc7] sm:$0xff]
  %v4725 = vld [vmem:[#allocation2 + $0xcf] sm:$0xff]
  %v4726 = vld [vmem:[#allocation2 + $0xd7] sm:$0xff]
  %v4727 = vld [vmem:[#allocation2 + $0xdf] sm:$0xff]
  %v4728 = vld [vmem:[#allocation2 + $0xe7] sm:$0xff]
  %v4729 = vld [vmem:[#allocation2 + $0xef] sm:$0xff]
  %v4730 = vld [vmem:[#allocation2 + $0xf7] sm:$0xff]
  %v4731 = vld [vmem:[#allocation2 + $0xff] sm:$0xff]
  %v4732 = vld [vmem:[#allocation2 + $0x107] sm:$0xff]
  %v4733 = vld [vmem:[#allocation2 + $0x10f] sm:$0xff]
  %v4734 = vld [vmem:[#allocation2 + $0x117] sm:$0xff]
  %v4735 = vld [vmem:[#allocation2 + $0x11f] sm:$0xff]
  %v4736 = vld [vmem:[#allocation2 + $0x127] sm:$0xff]
  %v4737 = vld [vmem:[#allocation2 + $0x12f] sm:$0xff]
  %v4738 = vld [vmem:[#allocation2 + $0x137] sm:$0xff]
  %v4739 = vld [vmem:[#allocation2 + $0x13f] sm:$0xff]
  %v4740 = vld [vmem:[#allocation2 + $0x147] sm:$0xff]
  %v4741 = vld [vmem:[#allocation2 + $0x14f] sm:$0xff]
  %v4742 = vld [vmem:[#allocation2 + $0x157] sm:$0xff]
  %v4743 = vld [vmem:[#allocation2 + $0x15f] sm:$0xff]
  %v4744 = vld [vmem:[#allocation2 + $0x167] sm:$0xff]
  %v4745 = vld [vmem:[#allocation2 + $0x16f] sm:$0xff]
  %v4746 = vld [vmem:[#allocation2 + $0x177] sm:$0xff]
  %v4747 = vld [vmem:[#allocation2 + $0x17f] sm:$0xff]
  %v4748 = vld [vmem:[#allocation2 + $0x187] sm:$0xff]
  %v4749 = vld [vmem:[#allocation2 + $0x18f] sm:$0xff]
  %v4750 = vld [vmem:[#allocation2 + $0x197] sm:$0xff]
  %v4751 = vld [vmem:[#allocation2 + $0x19f] sm:$0xff]
  %v4752 = vld [vmem:[#allocation2 + $0x1a7] sm:$0xff]
  %v4753 = vld [vmem:[#allocation2 + $0x1af] sm:$0xff]
  %v4754 = vld [vmem:[#allocation2 + $0x1b7] sm:$0xff]
  %v4755 = vld [vmem:[#allocation2 + $0x1bf] sm:$0xff]
  %v4756 = vld [vmem:[#allocation2 + $0x1c7] sm:$0xff]
  %v4757 = vld [vmem:[#allocation2 + $0x1cf] sm:$0xff]
  %v4758 = vld [vmem:[#allocation2 + $0x1d7] sm:$0xff]
  %v4759 = vld [vmem:[#allocation2 + $0x1df] sm:$0xff]
  %v4760 = vld [vmem:[#allocation2 + $0x1e7] sm:$0xff]
  %v4761 = vld [vmem:[#allocation2 + $0x1ef] sm:$0xff]
  %v4762 = vld [vmem:[#allocation2 + $0x1f7] sm:$0xff]
  %v4763 = vld [vmem:[#allocation2 + $0x1ff] sm:$0xff]
  %v4764 = vld [vmem:[#allocation2 + $0x207] sm:$0xff]
  %v4765 = vld [vmem:[#allocation2 + $0x20f] sm:$0xff]
  %v4766 = vld [vmem:[#allocation2 + $0x217] sm:$0xff]
  %v4767 = vld [vmem:[#allocation2 + $0x21f] sm:$0xff]
  %v4768 = vld [vmem:[#allocation2 + $0x227] sm:$0xff]
  %v4769 = vld [vmem:[#allocation2 + $0x22f] sm:$0xff]
  %v4770 = vmul.f32 %v4700, %v1087
  %v4771 = vmul.f32 %v4701, %v1088
  %v4772 = vmul.f32 %v4702, %v1089
  %v4773 = vmul.f32 %v4703, %v1090
  %v4774 = vmul.f32 %v4704, %v1091
  %v4775 = vmul.f32 %v4705, %v1092
  %v4776 = vmul.f32 %v4706, %v1093
  %v4777 = vmul.f32 %v4707, %v1094
  %v4778 = vmul.f32 %v4708, %v1095
  %v4779 = vmul.f32 %v4709, %v1096
  %v4780 = vmul.f32 %v4710, %v1097
  %v4781 = vmul.f32 %v4711, %v1098
  %v4782 = vmul.f32 %v4712, %v1099
  %v4783 = vmul.f32 %v4713, %v1100
  %v4784 = vmul.f32 %v4714, %v1101
  %v4785 = vmul.f32 %v4715, %v1102
  %v4786 = vmul.f32 %v4716, %v1103
  %v4787 = vmul.f32 %v4717, %v1104
  %v4788 = vmul.f32 %v4718, %v1105
  %v4789 = vmul.f32 %v4719, %v1106
  %v4790 = vmul.f32 %v4720, %v1107
  %v4791 = vmul.f32 %v4721, %v1108
  %v4792 = vmul.f32 %v4722, %v1109
  %v4793 = vmul.f32 %v4723, %v1110
  %v4794 = vmul.f32 %v4724, %v1111
  %v4795 = vmul.f32 %v4725, %v1112
  %v4796 = vmul.f32 %v4726, %v1113
  %v4797 = vmul.f32 %v4727, %v1114
  %v4798 = vmul.f32 %v4728, %v1115
  %v4799 = vmul.f32 %v4729, %v1116
  %v4800 = vmul.f32 %v4730, %v1117
  %v4801 = vmul.f32 %v4731, %v1118
  %v4802 = vmul.f32 %v4732, %v1119
  %v4803 = vmul.f32 %v4733, %v1120
  %v4804 = vmul.f32 %v4734, %v1121
  %v4805 = vmul.f32 %v4735, %v1122
  %v4806 = vmul.f32 %v4736, %v1123
  %v4807 = vmul.f32 %v4737, %v1124
  %v4808 = vmul.f32 %v4738, %v1125
  %v4809 = vmul.f32 %v4739, %v1126
  %v4810 = vmul.f32 %v4740, %v1127
  %v4811 = vmul.f32 %v4741, %v1128
  %v4812 = vmul.f32 %v4742, %v1129
  %v4813 = vmul.f32 %v4743, %v1130
  %v4814 = vmul.f32 %v4744, %v1131
  %v4815 = vmul.f32 %v4745, %v1132
  %v4816 = vmul.f32 %v4746, %v1133
  %v4817 = vmul.f32 %v4747, %v1134
  %v4818 = vmul.f32 %v4748, %v1135
  %v4819 = vmul.f32 %v4749, %v1136
  %v4820 = vmul.f32 %v4750, %v1137
  %v4821 = vmul.f32 %v4751, %v1138
  %v4822 = vmul.f32 %v4752, %v1139
  %v4823 = vmul.f32 %v4753, %v1140
  %v4824 = vmul.f32 %v4754, %v1141
  %v4825 = vmul.f32 %v4755, %v1142
  %v4826 = vmul.f32 %v4756, %v1143
  %v4827 = vmul.f32 %v4757, %v1144
  %v4828 = vmul.f32 %v4758, %v1145
  %v4829 = vmul.f32 %v4759, %v1146
  %v4830 = vmul.f32 %v4760, %v1147
  %v4831 = vmul.f32 %v4761, %v1148
  %v4832 = vmul.f32 %v4762, %v1149
  %v4833 = vmul.f32 %v4763, %v1150
  %v4834 = vmul.f32 %v4764, %v1151
  %v4835 = vmul.f32 %v4765, %v1152
  %v4836 = vmul.f32 %v4766, %v1153
  %v4837 = vmul.f32 %v4767, %v1154
  %v4838 = vmul.f32 %v4768, %v1155
  %v4839 = vmul.f32 %v4769, %v1156
  %v4840 = vpack.c.bf16 %v4771, %v4770
  %v4841 = vpack.c.bf16 %v4773, %v4772
  %v4842 = vpack.c.bf16 %v4775, %v4774
  %v4843 = vpack.c.bf16 %v4777, %v4776
  %v4844 = vpack.c.bf16 %v4779, %v4778
  %v4845 = vpack.c.bf16 %v4781, %v4780
  %v4846 = vpack.c.bf16 %v4783, %v4782
  %v4847 = vpack.c.bf16 %v4785, %v4784
  %v4848 = vpack.c.bf16 %v4787, %v4786
  %v4849 = vpack.c.bf16 %v4789, %v4788
  %v4850 = vpack.c.bf16 %v4791, %v4790
  %v4851 = vpack.c.bf16 %v4793, %v4792
  %v4852 = vpack.c.bf16 %v4795, %v4794
  %v4853 = vpack.c.bf16 %v4797, %v4796
  %v4854 = vpack.c.bf16 %v4799, %v4798
  %v4855 = vpack.c.bf16 %v4801, %v4800
  %v4856 = vpack.c.bf16 %v4803, %v4802
  %v4857 = vpack.c.bf16 %v4805, %v4804
  %v4858 = vpack.c.bf16 %v4807, %v4806
  %v4859 = vpack.c.bf16 %v4809, %v4808
  %v4860 = vpack.c.bf16 %v4811, %v4810
  %v4861 = vpack.c.bf16 %v4813, %v4812
  %v4862 = vpack.c.bf16 %v4815, %v4814
  %v4863 = vpack.c.bf16 %v4817, %v4816
  %v4864 = vpack.c.bf16 %v4819, %v4818
  %v4865 = vpack.c.bf16 %v4821, %v4820
  %v4866 = vpack.c.bf16 %v4823, %v4822
  %v4867 = vpack.c.bf16 %v4825, %v4824
  %v4868 = vpack.c.bf16 %v4827, %v4826
  %v4869 = vpack.c.bf16 %v4829, %v4828
  %v4870 = vpack.c.bf16 %v4831, %v4830
  %v4871 = vpack.c.bf16 %v4833, %v4832
  %v4872 = vpack.c.bf16 %v4835, %v4834
  %v4873 = vpack.c.bf16 %v4837, %v4836
  %v4874 = vpack.c.bf16 %v4839, %v4838
  %v4875 = vld [vmem:[#allocation2 + $0x9] sm:$0xff]
  %v4876 = vld [vmem:[#allocation2 + $0x11] sm:$0xff]
  %v4877 = vld [vmem:[#allocation2 + $0x19] sm:$0xff]
  %v4878 = vld [vmem:[#allocation2 + $0x21] sm:$0xff]
  %v4879 = vld [vmem:[#allocation2 + $0x29] sm:$0xff]
  %v4880 = vld [vmem:[#allocation2 + $0x31] sm:$0xff]
  %v4881 = vld [vmem:[#allocation2 + $0x39] sm:$0xff]
  %v4882 = vld [vmem:[#allocation2 + $0x41] sm:$0xff]
  %v4883 = vld [vmem:[#allocation2 + $0x49] sm:$0xff]
  %v4884 = vld [vmem:[#allocation2 + $0x51] sm:$0xff]
  %v4885 = vld [vmem:[#allocation2 + $0x59] sm:$0xff]
  %v4886 = vld [vmem:[#allocation2 + $0x61] sm:$0xff]
  %v4887 = vld [vmem:[#allocation2 + $0x69] sm:$0xff]
  %v4888 = vld [vmem:[#allocation2 + $0x71] sm:$0xff]
  %v4889 = vld [vmem:[#allocation2 + $0x79] sm:$0xff]
  %v4890 = vld [vmem:[#allocation2 + $0x81] sm:$0xff]
  %v4891 = vld [vmem:[#allocation2 + $0x89] sm:$0xff]
  %v4892 = vld [vmem:[#allocation2 + $0x91] sm:$0xff]
  %v4893 = vld [vmem:[#allocation2 + $0x99] sm:$0xff]
  %v4894 = vld [vmem:[#allocation2 + $0xa1] sm:$0xff]
  %v4895 = vld [vmem:[#allocation2 + $0xa9] sm:$0xff]
  %v4896 = vld [vmem:[#allocation2 + $0xb1] sm:$0xff]
  %v4897 = vld [vmem:[#allocation2 + $0xb9] sm:$0xff]
  %v4898 = vld [vmem:[#allocation2 + $0xc1] sm:$0xff]
  %v4899 = vld [vmem:[#allocation2 + $0xc9] sm:$0xff]
  %v4900 = vld [vmem:[#allocation2 + $0xd1] sm:$0xff]
  %v4901 = vld [vmem:[#allocation2 + $0xd9] sm:$0xff]
  %v4902 = vld [vmem:[#allocation2 + $0xe1] sm:$0xff]
  %v4903 = vld [vmem:[#allocation2 + $0xe9] sm:$0xff]
  %v4904 = vld [vmem:[#allocation2 + $0xf1] sm:$0xff]
  %v4905 = vld [vmem:[#allocation2 + $0xf9] sm:$0xff]
  %v4906 = vld [vmem:[#allocation2 + $0x101] sm:$0xff]
  %v4907 = vld [vmem:[#allocation2 + $0x109] sm:$0xff]
  %v4908 = vld [vmem:[#allocation2 + $0x111] sm:$0xff]
  %v4909 = vld [vmem:[#allocation2 + $0x119] sm:$0xff]
  %v4910 = vld [vmem:[#allocation2 + $0x121] sm:$0xff]
  %v4911 = vld [vmem:[#allocation2 + $0x129] sm:$0xff]
  %v4912 = vld [vmem:[#allocation2 + $0x131] sm:$0xff]
  %v4913 = vld [vmem:[#allocation2 + $0x139] sm:$0xff]
  %v4914 = vld [vmem:[#allocation2 + $0x141] sm:$0xff]
  %v4915 = vld [vmem:[#allocation2 + $0x149] sm:$0xff]
  %v4916 = vld [vmem:[#allocation2 + $0x151] sm:$0xff]
  %v4917 = vld [vmem:[#allocation2 + $0x159] sm:$0xff]
  %v4918 = vld [vmem:[#allocation2 + $0x161] sm:$0xff]
  %v4919 = vld [vmem:[#allocation2 + $0x169] sm:$0xff]
  %v4920 = vld [vmem:[#allocation2 + $0x171] sm:$0xff]
  %v4921 = vld [vmem:[#allocation2 + $0x179] sm:$0xff]
  %v4922 = vld [vmem:[#allocation2 + $0x181] sm:$0xff]
  %v4923 = vld [vmem:[#allocation2 + $0x189] sm:$0xff]
  %v4924 = vld [vmem:[#allocation2 + $0x191] sm:$0xff]
  %v4925 = vld [vmem:[#allocation2 + $0x199] sm:$0xff]
  %v4926 = vld [vmem:[#allocation2 + $0x1a1] sm:$0xff]
  %v4927 = vld [vmem:[#allocation2 + $0x1a9] sm:$0xff]
  %v4928 = vld [vmem:[#allocation2 + $0x1b1] sm:$0xff]
  %v4929 = vld [vmem:[#allocation2 + $0x1b9] sm:$0xff]
  %v4930 = vld [vmem:[#allocation2 + $0x1c1] sm:$0xff]
  %v4931 = vld [vmem:[#allocation2 + $0x1c9] sm:$0xff]
  %v4932 = vld [vmem:[#allocation2 + $0x1d1] sm:$0xff]
  %v4933 = vld [vmem:[#allocation2 + $0x1d9] sm:$0xff]
  %v4934 = vld [vmem:[#allocation2 + $0x1e1] sm:$0xff]
  %v4935 = vld [vmem:[#allocation2 + $0x1e9] sm:$0xff]
  %v4936 = vld [vmem:[#allocation2 + $0x1f1] sm:$0xff]
  %v4937 = vld [vmem:[#allocation2 + $0x1f9] sm:$0xff]
  %v4938 = vld [vmem:[#allocation2 + $0x201] sm:$0xff]
  %v4939 = vld [vmem:[#allocation2 + $0x209] sm:$0xff]
  %v4940 = vld [vmem:[#allocation2 + $0x211] sm:$0xff]
  %v4941 = vld [vmem:[#allocation2 + $0x219] sm:$0xff]
  %v4942 = vld [vmem:[#allocation2 + $0x221] sm:$0xff]
  %v4943 = vld [vmem:[#allocation2 + $0x229] sm:$0xff]
  %v4944 = vld [vmem:[#allocation2 + $0x231] sm:$0xff]
  %v4945 = vmul.f32 %v4875, %v1297
  %v4946 = vmul.f32 %v4876, %v1298
  %v4947 = vmul.f32 %v4877, %v1299
  %v4948 = vmul.f32 %v4878, %v1300
  %v4949 = vmul.f32 %v4879, %v1301
  %v4950 = vmul.f32 %v4880, %v1302
  %v4951 = vmul.f32 %v4881, %v1303
  %v4952 = vmul.f32 %v4882, %v1304
  %v4953 = vmul.f32 %v4883, %v1305
  %v4954 = vmul.f32 %v4884, %v1306
  %v4955 = vmul.f32 %v4885, %v1307
  %v4956 = vmul.f32 %v4886, %v1308
  %v4957 = vmul.f32 %v4887, %v1309
  %v4958 = vmul.f32 %v4888, %v1310
  %v4959 = vmul.f32 %v4889, %v1311
  %v4960 = vmul.f32 %v4890, %v1312
  %v4961 = vmul.f32 %v4891, %v1313
  %v4962 = vmul.f32 %v4892, %v1314
  %v4963 = vmul.f32 %v4893, %v1315
  %v4964 = vmul.f32 %v4894, %v1316
  %v4965 = vmul.f32 %v4895, %v1317
  %v4966 = vmul.f32 %v4896, %v1318
  %v4967 = vmul.f32 %v4897, %v1319
  %v4968 = vmul.f32 %v4898, %v1320
  %v4969 = vmul.f32 %v4899, %v1321
  %v4970 = vmul.f32 %v4900, %v1322
  %v4971 = vmul.f32 %v4901, %v1323
  %v4972 = vmul.f32 %v4902, %v1324
  %v4973 = vmul.f32 %v4903, %v1325
  %v4974 = vmul.f32 %v4904, %v1326
  %v4975 = vmul.f32 %v4905, %v1327
  %v4976 = vmul.f32 %v4906, %v1328
  %v4977 = vmul.f32 %v4907, %v1329
  %v4978 = vmul.f32 %v4908, %v1330
  %v4979 = vmul.f32 %v4909, %v1331
  %v4980 = vmul.f32 %v4910, %v1332
  %v4981 = vmul.f32 %v4911, %v1333
  %v4982 = vmul.f32 %v4912, %v1334
  %v4983 = vmul.f32 %v4913, %v1335
  %v4984 = vmul.f32 %v4914, %v1336
  %v4985 = vmul.f32 %v4915, %v1337
  %v4986 = vmul.f32 %v4916, %v1338
  %v4987 = vmul.f32 %v4917, %v1339
  %v4988 = vmul.f32 %v4918, %v1340
  %v4989 = vmul.f32 %v4919, %v1341
  %v4990 = vmul.f32 %v4920, %v1342
  %v4991 = vmul.f32 %v4921, %v1343
  %v4992 = vmul.f32 %v4922, %v1344
  %v4993 = vmul.f32 %v4923, %v1345
  %v4994 = vmul.f32 %v4924, %v1346
  %v4995 = vmul.f32 %v4925, %v1347
  %v4996 = vmul.f32 %v4926, %v1348
  %v4997 = vmul.f32 %v4927, %v1349
  %v4998 = vmul.f32 %v4928, %v1350
  %v4999 = vmul.f32 %v4929, %v1351
  %v5000 = vmul.f32 %v4930, %v1352
  %v5001 = vmul.f32 %v4931, %v1353
  %v5002 = vmul.f32 %v4932, %v1354
  %v5003 = vmul.f32 %v4933, %v1355
  %v5004 = vmul.f32 %v4934, %v1356
  %v5005 = vmul.f32 %v4935, %v1357
  %v5006 = vmul.f32 %v4936, %v1358
  %v5007 = vmul.f32 %v4937, %v1359
  %v5008 = vmul.f32 %v4938, %v1360
  %v5009 = vmul.f32 %v4939, %v1361
  %v5010 = vmul.f32 %v4940, %v1362
  %v5011 = vmul.f32 %v4941, %v1363
  %v5012 = vmul.f32 %v4942, %v1364
  %v5013 = vmul.f32 %v4943, %v1365
  %v5014 = vmul.f32 %v4944, %v1366
  %v5015 = vpack.c.bf16 %v4946, %v4945
  %v5016 = vpack.c.bf16 %v4948, %v4947
  %v5017 = vpack.c.bf16 %v4950, %v4949
  %v5018 = vpack.c.bf16 %v4952, %v4951
  %v5019 = vpack.c.bf16 %v4954, %v4953
  %v5020 = vpack.c.bf16 %v4956, %v4955
  %v5021 = vpack.c.bf16 %v4958, %v4957
  %v5022 = vpack.c.bf16 %v4960, %v4959
  %v5023 = vpack.c.bf16 %v4962, %v4961
  %v5024 = vpack.c.bf16 %v4964, %v4963
  %v5025 = vpack.c.bf16 %v4966, %v4965
  %v5026 = vpack.c.bf16 %v4968, %v4967
  %v5027 = vpack.c.bf16 %v4970, %v4969
  %v5028 = vpack.c.bf16 %v4972, %v4971
  %v5029 = vpack.c.bf16 %v4974, %v4973
  %v5030 = vpack.c.bf16 %v4976, %v4975
  %v5031 = vpack.c.bf16 %v4978, %v4977
  %v5032 = vpack.c.bf16 %v4980, %v4979
  %v5033 = vpack.c.bf16 %v4982, %v4981
  %v5034 = vpack.c.bf16 %v4984, %v4983
  %v5035 = vpack.c.bf16 %v4986, %v4985
  %v5036 = vpack.c.bf16 %v4988, %v4987
  %v5037 = vpack.c.bf16 %v4990, %v4989
  %v5038 = vpack.c.bf16 %v4992, %v4991
  %v5039 = vpack.c.bf16 %v4994, %v4993
  %v5040 = vpack.c.bf16 %v4996, %v4995
  %v5041 = vpack.c.bf16 %v4998, %v4997
  %v5042 = vpack.c.bf16 %v5000, %v4999
  %v5043 = vpack.c.bf16 %v5002, %v5001
  %v5044 = vpack.c.bf16 %v5004, %v5003
  %v5045 = vpack.c.bf16 %v5006, %v5005
  %v5046 = vpack.c.bf16 %v5008, %v5007
  %v5047 = vpack.c.bf16 %v5010, %v5009
  %v5048 = vpack.c.bf16 %v5012, %v5011
  %v5049 = vpack.c.bf16 %v5014, %v5013
  %5083 = vrot.lane.b32.xlu0 %v4665, 32
  %v5084 = vpop.permute.xlu0 %5083
  %5085 = vrot.lane.b32.xlu0 %v4666, 32
  %v5086 = vpop.permute.xlu0 %5085
  %5087 = vrot.lane.b32.xlu0 %v4667, 32
  %v5088 = vpop.permute.xlu0 %5087
  %5089 = vrot.lane.b32.xlu0 %v4668, 32
  %v5090 = vpop.permute.xlu0 %5089
  %5091 = vrot.lane.b32.xlu0 %v4669, 32
  %v5092 = vpop.permute.xlu0 %5091
  %5093 = vrot.lane.b32.xlu0 %v4670, 32
  %v5094 = vpop.permute.xlu0 %5093
  %5095 = vrot.lane.b32.xlu0 %v4671, 32
  %v5096 = vpop.permute.xlu0 %5095
  %5097 = vrot.lane.b32.xlu0 %v4672, 32
  %v5098 = vpop.permute.xlu0 %5097
  %5099 = vrot.lane.b32.xlu0 %v4673, 32
  %v5100 = vpop.permute.xlu0 %5099
  %5101 = vrot.lane.b32.xlu0 %v4674, 32
  %v5102 = vpop.permute.xlu0 %5101
  %5103 = vrot.lane.b32.xlu0 %v4675, 32
  %v5104 = vpop.permute.xlu0 %5103
  %5105 = vrot.lane.b32.xlu0 %v4676, 32
  %v5106 = vpop.permute.xlu0 %5105
  %5107 = vrot.lane.b32.xlu0 %v4677, 32
  %v5108 = vpop.permute.xlu0 %5107
  %5109 = vrot.lane.b32.xlu0 %v4678, 32
  %v5110 = vpop.permute.xlu0 %5109
  %5111 = vrot.lane.b32.xlu0 %v4679, 32
  %v5112 = vpop.permute.xlu0 %5111
  %5113 = vrot.lane.b32.xlu0 %v4680, 32
  %v5114 = vpop.permute.xlu0 %5113
  %5115 = vrot.lane.b32.xlu0 %v4681, 32
  %v5116 = vpop.permute.xlu0 %5115
  %5117 = vrot.lane.b32.xlu0 %v4682, 32
  %v5118 = vpop.permute.xlu0 %5117
  %5119 = vrot.lane.b32.xlu0 %v4683, 32
  %v5120 = vpop.permute.xlu0 %5119
  %5121 = vrot.lane.b32.xlu0 %v4684, 32
  %v5122 = vpop.permute.xlu0 %5121
  %5123 = vrot.lane.b32.xlu0 %v4685, 32
  %v5124 = vpop.permute.xlu0 %5123
  %5125 = vrot.lane.b32.xlu0 %v4686, 32
  %v5126 = vpop.permute.xlu0 %5125
  %5127 = vrot.lane.b32.xlu0 %v4687, 32
  %v5128 = vpop.permute.xlu0 %5127
  %5129 = vrot.lane.b32.xlu0 %v4688, 32
  %v5130 = vpop.permute.xlu0 %5129
  %5131 = vrot.lane.b32.xlu0 %v4689, 32
  %v5132 = vpop.permute.xlu0 %5131
  %5133 = vrot.lane.b32.xlu0 %v4690, 32
  %v5134 = vpop.permute.xlu0 %5133
  %5135 = vrot.lane.b32.xlu0 %v4691, 32
  %v5136 = vpop.permute.xlu0 %5135
  %5137 = vrot.lane.b32.xlu0 %v4692, 32
  %v5138 = vpop.permute.xlu0 %5137
  %5139 = vrot.lane.b32.xlu0 %v4693, 32
  %v5140 = vpop.permute.xlu0 %5139
  %5141 = vrot.lane.b32.xlu0 %v4694, 32
  %v5142 = vpop.permute.xlu0 %5141
  %5143 = vrot.lane.b32.xlu0 %v4695, 32
  %v5144 = vpop.permute.xlu0 %5143
  %5145 = vrot.lane.b32.xlu0 %v4696, 32
  %v5146 = vpop.permute.xlu0 %5145
  %5147 = vrot.lane.b32.xlu0 %v4697, 32
  %v5148 = vpop.permute.xlu0 %5147
  %5182 = vrot.lane.b32.xlu0 %v5015, 64
  %v5183 = vpop.permute.xlu0 %5182
  %5184 = vrot.lane.b32.xlu0 %v5016, 64
  %v5185 = vpop.permute.xlu0 %5184
  %5186 = vrot.lane.b32.xlu0 %v5017, 64
  %v5187 = vpop.permute.xlu0 %5186
  %5188 = vrot.lane.b32.xlu0 %v5018, 64
  %v5189 = vpop.permute.xlu0 %5188
  %5190 = vrot.lane.b32.xlu0 %v5019, 64
  %v5191 = vpop.permute.xlu0 %5190
  %5192 = vrot.lane.b32.xlu0 %v5020, 64
  %v5193 = vpop.permute.xlu0 %5192
  %5194 = vrot.lane.b32.xlu0 %v5021, 64
  %v5195 = vpop.permute.xlu0 %5194
  %5196 = vrot.lane.b32.xlu0 %v5022, 64
  %v5197 = vpop.permute.xlu0 %5196
  %5198 = vrot.lane.b32.xlu0 %v5023, 64
  %v5199 = vpop.permute.xlu0 %5198
  %5200 = vrot.lane.b32.xlu0 %v5024, 64
  %v5201 = vpop.permute.xlu0 %5200
  %5202 = vrot.lane.b32.xlu0 %v5025, 64
  %v5203 = vpop.permute.xlu0 %5202
  %5204 = vrot.lane.b32.xlu0 %v5026, 64
  %v5205 = vpop.permute.xlu0 %5204
  %5206 = vrot.lane.b32.xlu0 %v5027, 64
  %v5207 = vpop.permute.xlu0 %5206
  %5208 = vrot.lane.b32.xlu0 %v5028, 64
  %v5209 = vpop.permute.xlu0 %5208
  %5210 = vrot.lane.b32.xlu0 %v5029, 64
  %v5211 = vpop.permute.xlu0 %5210
  %5212 = vrot.lane.b32.xlu0 %v5030, 64
  %v5213 = vpop.permute.xlu0 %5212
  %5214 = vrot.lane.b32.xlu0 %v5031, 64
  %v5215 = vpop.permute.xlu0 %5214
  %5216 = vrot.lane.b32.xlu0 %v5032, 64
  %v5217 = vpop.permute.xlu0 %5216
  %5218 = vrot.lane.b32.xlu0 %v5033, 64
  %v5219 = vpop.permute.xlu0 %5218
  %5220 = vrot.lane.b32.xlu0 %v5034, 64
  %v5221 = vpop.permute.xlu0 %5220
  %5222 = vrot.lane.b32.xlu0 %v5035, 64
  %v5223 = vpop.permute.xlu0 %5222
  %5224 = vrot.lane.b32.xlu0 %v5036, 64
  %v5225 = vpop.permute.xlu0 %5224
  %5226 = vrot.lane.b32.xlu0 %v5037, 64
  %v5227 = vpop.permute.xlu0 %5226
  %5228 = vrot.lane.b32.xlu0 %v5038, 64
  %v5229 = vpop.permute.xlu0 %5228
  %5230 = vrot.lane.b32.xlu0 %v5039, 64
  %v5231 = vpop.permute.xlu0 %5230
  %5232 = vrot.lane.b32.xlu0 %v5040, 64
  %v5233 = vpop.permute.xlu0 %5232
  %5234 = vrot.lane.b32.xlu0 %v5041, 64
  %v5235 = vpop.permute.xlu0 %5234
  %5236 = vrot.lane.b32.xlu0 %v5042, 64
  %v5237 = vpop.permute.xlu0 %5236
  %5238 = vrot.lane.b32.xlu0 %v5043, 64
  %v5239 = vpop.permute.xlu0 %5238
  %5240 = vrot.lane.b32.xlu0 %v5044, 64
  %v5241 = vpop.permute.xlu0 %5240
  %5242 = vrot.lane.b32.xlu0 %v5045, 64
  %v5243 = vpop.permute.xlu0 %5242
  %5244 = vrot.lane.b32.xlu0 %v5046, 64
  %v5245 = vpop.permute.xlu0 %5244
  %5246 = vrot.lane.b32.xlu0 %v5047, 64
  %v5247 = vpop.permute.xlu0 %5246
  %5281 = vrot.lane.b32.xlu0 %v4841, 96
  %v5282 = vpop.permute.xlu0 %5281
  %5283 = vrot.lane.b32.xlu0 %v4842, 96
  %v5284 = vpop.permute.xlu0 %5283
  %5285 = vrot.lane.b32.xlu0 %v4843, 96
  %v5286 = vpop.permute.xlu0 %5285
  %5287 = vrot.lane.b32.xlu0 %v4844, 96
  %v5288 = vpop.permute.xlu0 %5287
  %5289 = vrot.lane.b32.xlu0 %v4845, 96
  %v5290 = vpop.permute.xlu0 %5289
  %5291 = vrot.lane.b32.xlu0 %v4846, 96
  %v5292 = vpop.permute.xlu0 %5291
  %5293 = vrot.lane.b32.xlu0 %v4847, 96
  %v5294 = vpop.permute.xlu0 %5293
  %5295 = vrot.lane.b32.xlu0 %v4848, 96
  %v5296 = vpop.permute.xlu0 %5295
  %5297 = vrot.lane.b32.xlu0 %v4849, 96
  %v5298 = vpop.permute.xlu0 %5297
  %5299 = vrot.lane.b32.xlu0 %v4850, 96
  %v5300 = vpop.permute.xlu0 %5299
  %5301 = vrot.lane.b32.xlu0 %v4851, 96
  %v5302 = vpop.permute.xlu0 %5301
  %5303 = vrot.lane.b32.xlu0 %v4852, 96
  %v5304 = vpop.permute.xlu0 %5303
  %5305 = vrot.lane.b32.xlu0 %v4853, 96
  %v5306 = vpop.permute.xlu0 %5305
  %5307 = vrot.lane.b32.xlu0 %v4854, 96
  %v5308 = vpop.permute.xlu0 %5307
  %5309 = vrot.lane.b32.xlu0 %v4855, 96
  %v5310 = vpop.permute.xlu0 %5309
  %5311 = vrot.lane.b32.xlu0 %v4856, 96
  %v5312 = vpop.permute.xlu0 %5311
  %5313 = vrot.lane.b32.xlu0 %v4857, 96
  %v5314 = vpop.permute.xlu0 %5313
  %5315 = vrot.lane.b32.xlu0 %v4858, 96
  %v5316 = vpop.permute.xlu0 %5315
  %5317 = vrot.lane.b32.xlu0 %v4859, 96
  %v5318 = vpop.permute.xlu0 %5317
  %5319 = vrot.lane.b32.xlu0 %v4860, 96
  %v5320 = vpop.permute.xlu0 %5319
  %5321 = vrot.lane.b32.xlu0 %v4861, 96
  %v5322 = vpop.permute.xlu0 %5321
  %5323 = vrot.lane.b32.xlu0 %v4862, 96
  %v5324 = vpop.permute.xlu0 %5323
  %5325 = vrot.lane.b32.xlu0 %v4863, 96
  %v5326 = vpop.permute.xlu0 %5325
  %5327 = vrot.lane.b32.xlu0 %v4864, 96
  %v5328 = vpop.permute.xlu0 %5327
  %5329 = vrot.lane.b32.xlu0 %v4865, 96
  %v5330 = vpop.permute.xlu0 %5329
  %5331 = vrot.lane.b32.xlu0 %v4866, 96
  %v5332 = vpop.permute.xlu0 %5331
  %5333 = vrot.lane.b32.xlu0 %v4867, 96
  %v5334 = vpop.permute.xlu0 %5333
  %5335 = vrot.lane.b32.xlu0 %v4868, 96
  %v5336 = vpop.permute.xlu0 %5335
  %5337 = vrot.lane.b32.xlu0 %v4869, 96
  %v5338 = vpop.permute.xlu0 %5337
  %5339 = vrot.lane.b32.xlu0 %v4870, 96
  %v5340 = vpop.permute.xlu0 %5339
  %5341 = vrot.lane.b32.xlu0 %v4871, 96
  %v5342 = vpop.permute.xlu0 %5341
  %5343 = vrot.lane.b32.xlu0 %v4872, 96
  %v5344 = vpop.permute.xlu0 %5343
  %5345 = vrot.lane.b32.xlu0 %v4873, 96
  %v5346 = vpop.permute.xlu0 %5345
  %5348 = vrot.lane.b32.xlu0 %v5016, 32
  %v5349 = vpop.permute.xlu0 %5348
  %5350 = vrot.lane.b32.xlu0 %v5017, 32
  %v5351 = vpop.permute.xlu0 %5350
  %5352 = vrot.lane.b32.xlu0 %v5018, 32
  %v5353 = vpop.permute.xlu0 %5352
  %5354 = vrot.lane.b32.xlu0 %v5019, 32
  %v5355 = vpop.permute.xlu0 %5354
  %5356 = vrot.lane.b32.xlu0 %v5020, 32
  %v5357 = vpop.permute.xlu0 %5356
  %5358 = vrot.lane.b32.xlu0 %v5021, 32
  %v5359 = vpop.permute.xlu0 %5358
  %5360 = vrot.lane.b32.xlu0 %v5022, 32
  %v5361 = vpop.permute.xlu0 %5360
  %5362 = vrot.lane.b32.xlu0 %v5023, 32
  %v5363 = vpop.permute.xlu0 %5362
  %5364 = vrot.lane.b32.xlu0 %v5024, 32
  %v5365 = vpop.permute.xlu0 %5364
  %5366 = vrot.lane.b32.xlu0 %v5025, 32
  %v5367 = vpop.permute.xlu0 %5366
  %5368 = vrot.lane.b32.xlu0 %v5026, 32
  %v5369 = vpop.permute.xlu0 %5368
  %5370 = vrot.lane.b32.xlu0 %v5027, 32
  %v5371 = vpop.permute.xlu0 %5370
  %5372 = vrot.lane.b32.xlu0 %v5028, 32
  %v5373 = vpop.permute.xlu0 %5372
  %5374 = vrot.lane.b32.xlu0 %v5029, 32
  %v5375 = vpop.permute.xlu0 %5374
  %5376 = vrot.lane.b32.xlu0 %v5030, 32
  %v5377 = vpop.permute.xlu0 %5376
  %5378 = vrot.lane.b32.xlu0 %v5031, 32
  %v5379 = vpop.permute.xlu0 %5378
  %5380 = vrot.lane.b32.xlu0 %v5032, 32
  %v5381 = vpop.permute.xlu0 %5380
  %5382 = vrot.lane.b32.xlu0 %v5033, 32
  %v5383 = vpop.permute.xlu0 %5382
  %5384 = vrot.lane.b32.xlu0 %v5034, 32
  %v5385 = vpop.permute.xlu0 %5384
  %5386 = vrot.lane.b32.xlu0 %v5035, 32
  %v5387 = vpop.permute.xlu0 %5386
  %5388 = vrot.lane.b32.xlu0 %v5036, 32
  %v5389 = vpop.permute.xlu0 %5388
  %5390 = vrot.lane.b32.xlu0 %v5037, 32
  %v5391 = vpop.permute.xlu0 %5390
  %5392 = vrot.lane.b32.xlu0 %v5038, 32
  %v5393 = vpop.permute.xlu0 %5392
  %5394 = vrot.lane.b32.xlu0 %v5039, 32
  %v5395 = vpop.permute.xlu0 %5394
  %5396 = vrot.lane.b32.xlu0 %v5040, 32
  %v5397 = vpop.permute.xlu0 %5396
  %5398 = vrot.lane.b32.xlu0 %v5041, 32
  %v5399 = vpop.permute.xlu0 %5398
  %5400 = vrot.lane.b32.xlu0 %v5042, 32
  %v5401 = vpop.permute.xlu0 %5400
  %5402 = vrot.lane.b32.xlu0 %v5043, 32
  %v5403 = vpop.permute.xlu0 %5402
  %5404 = vrot.lane.b32.xlu0 %v5044, 32
  %v5405 = vpop.permute.xlu0 %5404
  %5406 = vrot.lane.b32.xlu0 %v5045, 32
  %v5407 = vpop.permute.xlu0 %5406
  %5408 = vrot.lane.b32.xlu0 %v5046, 32
  %v5409 = vpop.permute.xlu0 %5408
  %5410 = vrot.lane.b32.xlu0 %v5047, 32
  %v5411 = vpop.permute.xlu0 %5410
  %5412 = vrot.lane.b32.xlu0 %v5048, 32
  %v5413 = vpop.permute.xlu0 %5412
  %5415 = vrot.lane.b32.xlu0 %v4842, 64
  %v5416 = vpop.permute.xlu0 %5415
  %5417 = vrot.lane.b32.xlu0 %v4843, 64
  %v5418 = vpop.permute.xlu0 %5417
  %5419 = vrot.lane.b32.xlu0 %v4844, 64
  %v5420 = vpop.permute.xlu0 %5419
  %5421 = vrot.lane.b32.xlu0 %v4845, 64
  %v5422 = vpop.permute.xlu0 %5421
  %5423 = vrot.lane.b32.xlu0 %v4846, 64
  %v5424 = vpop.permute.xlu0 %5423
  %5425 = vrot.lane.b32.xlu0 %v4847, 64
  %v5426 = vpop.permute.xlu0 %5425
  %5427 = vrot.lane.b32.xlu0 %v4848, 64
  %v5428 = vpop.permute.xlu0 %5427
  %5429 = vrot.lane.b32.xlu0 %v4849, 64
  %v5430 = vpop.permute.xlu0 %5429
  %5431 = vrot.lane.b32.xlu0 %v4850, 64
  %v5432 = vpop.permute.xlu0 %5431
  %5433 = vrot.lane.b32.xlu0 %v4851, 64
  %v5434 = vpop.permute.xlu0 %5433
  %5435 = vrot.lane.b32.xlu0 %v4852, 64
  %v5436 = vpop.permute.xlu0 %5435
  %5437 = vrot.lane.b32.xlu0 %v4853, 64
  %v5438 = vpop.permute.xlu0 %5437
  %5439 = vrot.lane.b32.xlu0 %v4854, 64
  %v5440 = vpop.permute.xlu0 %5439
  %5441 = vrot.lane.b32.xlu0 %v4855, 64
  %v5442 = vpop.permute.xlu0 %5441
  %5443 = vrot.lane.b32.xlu0 %v4856, 64
  %v5444 = vpop.permute.xlu0 %5443
  %5445 = vrot.lane.b32.xlu0 %v4857, 64
  %v5446 = vpop.permute.xlu0 %5445
  %5447 = vrot.lane.b32.xlu0 %v4858, 64
  %v5448 = vpop.permute.xlu0 %5447
  %5449 = vrot.lane.b32.xlu0 %v4859, 64
  %v5450 = vpop.permute.xlu0 %5449
  %5451 = vrot.lane.b32.xlu0 %v4860, 64
  %v5452 = vpop.permute.xlu0 %5451
  %5453 = vrot.lane.b32.xlu0 %v4861, 64
  %v5454 = vpop.permute.xlu0 %5453
  %5455 = vrot.lane.b32.xlu0 %v4862, 64
  %v5456 = vpop.permute.xlu0 %5455
  %5457 = vrot.lane.b32.xlu0 %v4863, 64
  %v5458 = vpop.permute.xlu0 %5457
  %5459 = vrot.lane.b32.xlu0 %v4864, 64
  %v5460 = vpop.permute.xlu0 %5459
  %5461 = vrot.lane.b32.xlu0 %v4865, 64
  %v5462 = vpop.permute.xlu0 %5461
  %5463 = vrot.lane.b32.xlu0 %v4866, 64
  %v5464 = vpop.permute.xlu0 %5463
  %5465 = vrot.lane.b32.xlu0 %v4867, 64
  %v5466 = vpop.permute.xlu0 %5465
  %5467 = vrot.lane.b32.xlu0 %v4868, 64
  %v5468 = vpop.permute.xlu0 %5467
  %5469 = vrot.lane.b32.xlu0 %v4869, 64
  %v5470 = vpop.permute.xlu0 %5469
  %5471 = vrot.lane.b32.xlu0 %v4870, 64
  %v5472 = vpop.permute.xlu0 %5471
  %5473 = vrot.lane.b32.xlu0 %v4871, 64
  %v5474 = vpop.permute.xlu0 %5473
  %5475 = vrot.lane.b32.xlu0 %v4872, 64
  %v5476 = vpop.permute.xlu0 %5475
  %5477 = vrot.lane.b32.xlu0 %v4873, 64
  %v5478 = vpop.permute.xlu0 %5477
  %5479 = vrot.lane.b32.xlu0 %v4874, 64
  %v5480 = vpop.permute.xlu0 %5479
  %5483 = vrot.lane.b32.xlu0 %v4667, 96
  %v5484 = vpop.permute.xlu0 %5483
  %5485 = vrot.lane.b32.xlu0 %v4668, 96
  %v5486 = vpop.permute.xlu0 %5485
  %5487 = vrot.lane.b32.xlu0 %v4669, 96
  %v5488 = vpop.permute.xlu0 %5487
  %5489 = vrot.lane.b32.xlu0 %v4670, 96
  %v5490 = vpop.permute.xlu0 %5489
  %5491 = vrot.lane.b32.xlu0 %v4671, 96
  %v5492 = vpop.permute.xlu0 %5491
  %5493 = vrot.lane.b32.xlu0 %v4672, 96
  %v5494 = vpop.permute.xlu0 %5493
  %5495 = vrot.lane.b32.xlu0 %v4673, 96
  %v5496 = vpop.permute.xlu0 %5495
  %5497 = vrot.lane.b32.xlu0 %v4674, 96
  %v5498 = vpop.permute.xlu0 %5497
  %5499 = vrot.lane.b32.xlu0 %v4675, 96
  %v5500 = vpop.permute.xlu0 %5499
  %5501 = vrot.lane.b32.xlu0 %v4676, 96
  %v5502 = vpop.permute.xlu0 %5501
  %5503 = vrot.lane.b32.xlu0 %v4677, 96
  %v5504 = vpop.permute.xlu0 %5503
  %5505 = vrot.lane.b32.xlu0 %v4678, 96
  %v5506 = vpop.permute.xlu0 %5505
  %5507 = vrot.lane.b32.xlu0 %v4679, 96
  %v5508 = vpop.permute.xlu0 %5507
  %5509 = vrot.lane.b32.xlu0 %v4680, 96
  %v5510 = vpop.permute.xlu0 %5509
  %5511 = vrot.lane.b32.xlu0 %v4681, 96
  %v5512 = vpop.permute.xlu0 %5511
  %5513 = vrot.lane.b32.xlu0 %v4682, 96
  %v5514 = vpop.permute.xlu0 %5513
  %5515 = vrot.lane.b32.xlu0 %v4683, 96
  %v5516 = vpop.permute.xlu0 %5515
  %5517 = vrot.lane.b32.xlu0 %v4684, 96
  %v5518 = vpop.permute.xlu0 %5517
  %5519 = vrot.lane.b32.xlu0 %v4685, 96
  %v5520 = vpop.permute.xlu0 %5519
  %5521 = vrot.lane.b32.xlu0 %v4686, 96
  %v5522 = vpop.permute.xlu0 %5521
  %5523 = vrot.lane.b32.xlu0 %v4687, 96
  %v5524 = vpop.permute.xlu0 %5523
  %5525 = vrot.lane.b32.xlu0 %v4688, 96
  %v5526 = vpop.permute.xlu0 %5525
  %5527 = vrot.lane.b32.xlu0 %v4689, 96
  %v5528 = vpop.permute.xlu0 %5527
  %5529 = vrot.lane.b32.xlu0 %v4690, 96
  %v5530 = vpop.permute.xlu0 %5529
  %5531 = vrot.lane.b32.xlu0 %v4691, 96
  %v5532 = vpop.permute.xlu0 %5531
  %5533 = vrot.lane.b32.xlu0 %v4692, 96
  %v5534 = vpop.permute.xlu0 %5533
  %5535 = vrot.lane.b32.xlu0 %v4693, 96
  %v5536 = vpop.permute.xlu0 %5535
  %5537 = vrot.lane.b32.xlu0 %v4694, 96
  %v5538 = vpop.permute.xlu0 %5537
  %5539 = vrot.lane.b32.xlu0 %v4695, 96
  %v5540 = vpop.permute.xlu0 %5539
  %5541 = vrot.lane.b32.xlu0 %v4696, 96
  %v5542 = vpop.permute.xlu0 %5541
  %5543 = vrot.lane.b32.xlu0 %v4697, 96
  %v5544 = vpop.permute.xlu0 %5543
  %5545 = vrot.lane.b32.xlu0 %v4698, 96
  %v5546 = vpop.permute.xlu0 %5545
  %5547 = vrot.lane.b32.xlu0 %v4699, 96
  %v5548 = vpop.permute.xlu0 %5547
  %v5551 = vsel %vm27, %v4840, %v5084
  %v5554 = vsel %vm27, %v4841, %v5086
  %v5557 = vsel %vm27, %v4842, %v5088
  %v5560 = vsel %vm27, %v4843, %v5090
  %v5563 = vsel %vm27, %v4844, %v5092
  %v5566 = vsel %vm27, %v4845, %v5094
  %v5569 = vsel %vm27, %v4846, %v5096
  %v5572 = vsel %vm27, %v4847, %v5098
  %v5575 = vsel %vm27, %v4848, %v5100
  %v5578 = vsel %vm27, %v4849, %v5102
  %v5581 = vsel %vm27, %v4850, %v5104
  %v5584 = vsel %vm27, %v4851, %v5106
  %v5587 = vsel %vm27, %v4852, %v5108
  %v5590 = vsel %vm27, %v4853, %v5110
  %v5593 = vsel %vm27, %v4854, %v5112
  %v5596 = vsel %vm27, %v4855, %v5114
  %v5599 = vsel %vm27, %v4856, %v5116
  %v5602 = vsel %vm27, %v4857, %v5118
  %v5605 = vsel %vm27, %v4858, %v5120
  %v5608 = vsel %vm27, %v4859, %v5122
  %v5611 = vsel %vm27, %v4860, %v5124
  %v5614 = vsel %vm27, %v4861, %v5126
  %v5617 = vsel %vm27, %v4862, %v5128
  %v5620 = vsel %vm27, %v4863, %v5130
  %v5623 = vsel %vm27, %v4864, %v5132
  %v5626 = vsel %vm27, %v4865, %v5134
  %v5629 = vsel %vm27, %v4866, %v5136
  %v5632 = vsel %vm27, %v4867, %v5138
  %v5635 = vsel %vm27, %v4868, %v5140
  %v5638 = vsel %vm27, %v4869, %v5142
  %v5641 = vsel %vm27, %v4870, %v5144
  %v5644 = vsel %vm27, %v4871, %v5146
  %v5647 = vsel %vm27, %v4872, %v5148
  %v5649 = vsel %vm1630, %v5551, %v5183
  %v5651 = vsel %vm1630, %v5554, %v5185
  %v5653 = vsel %vm1630, %v5557, %v5187
  %v5655 = vsel %vm1630, %v5560, %v5189
  %v5657 = vsel %vm1630, %v5563, %v5191
  %v5659 = vsel %vm1630, %v5566, %v5193
  %v5661 = vsel %vm1630, %v5569, %v5195
  %v5663 = vsel %vm1630, %v5572, %v5197
  %v5665 = vsel %vm1630, %v5575, %v5199
  %v5667 = vsel %vm1630, %v5578, %v5201
  %v5669 = vsel %vm1630, %v5581, %v5203
  %v5671 = vsel %vm1630, %v5584, %v5205
  %v5673 = vsel %vm1630, %v5587, %v5207
  %v5675 = vsel %vm1630, %v5590, %v5209
  %v5677 = vsel %vm1630, %v5593, %v5211
  %v5679 = vsel %vm1630, %v5596, %v5213
  %v5681 = vsel %vm1630, %v5599, %v5215
  %v5683 = vsel %vm1630, %v5602, %v5217
  %v5685 = vsel %vm1630, %v5605, %v5219
  %v5687 = vsel %vm1630, %v5608, %v5221
  %v5689 = vsel %vm1630, %v5611, %v5223
  %v5691 = vsel %vm1630, %v5614, %v5225
  %v5693 = vsel %vm1630, %v5617, %v5227
  %v5695 = vsel %vm1630, %v5620, %v5229
  %v5697 = vsel %vm1630, %v5623, %v5231
  %v5699 = vsel %vm1630, %v5626, %v5233
  %v5701 = vsel %vm1630, %v5629, %v5235
  %v5703 = vsel %vm1630, %v5632, %v5237
  %v5705 = vsel %vm1630, %v5635, %v5239
  %v5707 = vsel %vm1630, %v5638, %v5241
  %v5709 = vsel %vm1630, %v5641, %v5243
  %v5711 = vsel %vm1630, %v5644, %v5245
  %v5713 = vsel %vm1630, %v5647, %v5247
  %v5715 = vsel %vm3263, %v5649, %v5282
  %v5718 = vsel %vm3263, %v5651, %v5284
  %v5721 = vsel %vm3263, %v5653, %v5286
  %v5724 = vsel %vm3263, %v5655, %v5288
  %v5727 = vsel %vm3263, %v5657, %v5290
  %v5730 = vsel %vm3263, %v5659, %v5292
  %v5733 = vsel %vm3263, %v5661, %v5294
  %v5736 = vsel %vm3263, %v5663, %v5296
  %v5739 = vsel %vm3263, %v5665, %v5298
  %v5742 = vsel %vm3263, %v5667, %v5300
  %v5745 = vsel %vm3263, %v5669, %v5302
  %v5748 = vsel %vm3263, %v5671, %v5304
  %v5751 = vsel %vm3263, %v5673, %v5306
  %v5754 = vsel %vm3263, %v5675, %v5308
  %v5757 = vsel %vm3263, %v5677, %v5310
  %v5760 = vsel %vm3263, %v5679, %v5312
  %v5763 = vsel %vm3263, %v5681, %v5314
  %v5766 = vsel %vm3263, %v5683, %v5316
  %v5769 = vsel %vm3263, %v5685, %v5318
  %v5772 = vsel %vm3263, %v5687, %v5320
  %v5775 = vsel %vm3263, %v5689, %v5322
  %v5778 = vsel %vm3263, %v5691, %v5324
  %v5781 = vsel %vm3263, %v5693, %v5326
  %v5784 = vsel %vm3263, %v5695, %v5328
  %v5787 = vsel %vm3263, %v5697, %v5330
  %v5790 = vsel %vm3263, %v5699, %v5332
  %v5793 = vsel %vm3263, %v5701, %v5334
  %v5796 = vsel %vm3263, %v5703, %v5336
  %v5799 = vsel %vm3263, %v5705, %v5338
  %v5802 = vsel %vm3263, %v5707, %v5340
  %v5805 = vsel %vm3263, %v5709, %v5342
  %v5808 = vsel %vm3263, %v5711, %v5344
  %v5811 = vsel %vm3263, %v5713, %v5346
  %v5815 = vsel %vm27, %v4666, %v5349
  %v5818 = vsel %vm27, %v4667, %v5351
  %v5821 = vsel %vm27, %v4668, %v5353
  %v5824 = vsel %vm27, %v4669, %v5355
  %v5827 = vsel %vm27, %v4670, %v5357
  %v5830 = vsel %vm27, %v4671, %v5359
  %v5833 = vsel %vm27, %v4672, %v5361
  %v5836 = vsel %vm27, %v4673, %v5363
  %v5839 = vsel %vm27, %v4674, %v5365
  %v5842 = vsel %vm27, %v4675, %v5367
  %v5845 = vsel %vm27, %v4676, %v5369
  %v5848 = vsel %vm27, %v4677, %v5371
  %v5851 = vsel %vm27, %v4678, %v5373
  %v5854 = vsel %vm27, %v4679, %v5375
  %v5857 = vsel %vm27, %v4680, %v5377
  %v5860 = vsel %vm27, %v4681, %v5379
  %v5863 = vsel %vm27, %v4682, %v5381
  %v5866 = vsel %vm27, %v4683, %v5383
  %v5869 = vsel %vm27, %v4684, %v5385
  %v5872 = vsel %vm27, %v4685, %v5387
  %v5875 = vsel %vm27, %v4686, %v5389
  %v5878 = vsel %vm27, %v4687, %v5391
  %v5881 = vsel %vm27, %v4688, %v5393
  %v5884 = vsel %vm27, %v4689, %v5395
  %v5887 = vsel %vm27, %v4690, %v5397
  %v5890 = vsel %vm27, %v4691, %v5399
  %v5893 = vsel %vm27, %v4692, %v5401
  %v5896 = vsel %vm27, %v4693, %v5403
  %v5899 = vsel %vm27, %v4694, %v5405
  %v5902 = vsel %vm27, %v4695, %v5407
  %v5905 = vsel %vm27, %v4696, %v5409
  %v5908 = vsel %vm27, %v4697, %v5411
  %v5911 = vsel %vm27, %v4698, %v5413
  %v5913 = vsel %vm1630, %v5815, %v5416
  %v5915 = vsel %vm1630, %v5818, %v5418
  %v5917 = vsel %vm1630, %v5821, %v5420
  %v5919 = vsel %vm1630, %v5824, %v5422
  %v5921 = vsel %vm1630, %v5827, %v5424
  %v5923 = vsel %vm1630, %v5830, %v5426
  %v5925 = vsel %vm1630, %v5833, %v5428
  %v5927 = vsel %vm1630, %v5836, %v5430
  %v5929 = vsel %vm1630, %v5839, %v5432
  %v5931 = vsel %vm1630, %v5842, %v5434
  %v5933 = vsel %vm1630, %v5845, %v5436
  %v5935 = vsel %vm1630, %v5848, %v5438
  %v5937 = vsel %vm1630, %v5851, %v5440
  %v5939 = vsel %vm1630, %v5854, %v5442
  %v5941 = vsel %vm1630, %v5857, %v5444
  %v5943 = vsel %vm1630, %v5860, %v5446
  %v5945 = vsel %vm1630, %v5863, %v5448
  %v5947 = vsel %vm1630, %v5866, %v5450
  %v5949 = vsel %vm1630, %v5869, %v5452
  %v5951 = vsel %vm1630, %v5872, %v5454
  %v5953 = vsel %vm1630, %v5875, %v5456
  %v5955 = vsel %vm1630, %v5878, %v5458
  %v5957 = vsel %vm1630, %v5881, %v5460
  %v5959 = vsel %vm1630, %v5884, %v5462
  %v5961 = vsel %vm1630, %v5887, %v5464
  %v5963 = vsel %vm1630, %v5890, %v5466
  %v5965 = vsel %vm1630, %v5893, %v5468
  %v5967 = vsel %vm1630, %v5896, %v5470
  %v5969 = vsel %vm1630, %v5899, %v5472
  %v5971 = vsel %vm1630, %v5902, %v5474
  %v5973 = vsel %vm1630, %v5905, %v5476
  %v5975 = vsel %vm1630, %v5908, %v5478
  %v5977 = vsel %vm1630, %v5911, %v5480
  %v5979 = vsel %vm3263, %v5913, %v5484
  %v5982 = vsel %vm3263, %v5915, %v5486
  %v5985 = vsel %vm3263, %v5917, %v5488
  %v5988 = vsel %vm3263, %v5919, %v5490
  %v5991 = vsel %vm3263, %v5921, %v5492
  %v5994 = vsel %vm3263, %v5923, %v5494
  %v5997 = vsel %vm3263, %v5925, %v5496
  %v6000 = vsel %vm3263, %v5927, %v5498
  %v6003 = vsel %vm3263, %v5929, %v5500
  %v6006 = vsel %vm3263, %v5931, %v5502
  %v6009 = vsel %vm3263, %v5933, %v5504
  %v6012 = vsel %vm3263, %v5935, %v5506
  %v6015 = vsel %vm3263, %v5937, %v5508
  %v6018 = vsel %vm3263, %v5939, %v5510
  %v6021 = vsel %vm3263, %v5941, %v5512
  %v6024 = vsel %vm3263, %v5943, %v5514
  %v6027 = vsel %vm3263, %v5945, %v5516
  %v6030 = vsel %vm3263, %v5947, %v5518
  %v6033 = vsel %vm3263, %v5949, %v5520
  %v6036 = vsel %vm3263, %v5951, %v5522
  %v6039 = vsel %vm3263, %v5953, %v5524
  %v6042 = vsel %vm3263, %v5955, %v5526
  %v6045 = vsel %vm3263, %v5957, %v5528
  %v6048 = vsel %vm3263, %v5959, %v5530
  %v6051 = vsel %vm3263, %v5961, %v5532
  %v6054 = vsel %vm3263, %v5963, %v5534
  %v6057 = vsel %vm3263, %v5965, %v5536
  %v6060 = vsel %vm3263, %v5967, %v5538
  %v6063 = vsel %vm3263, %v5969, %v5540
  %v6066 = vsel %vm3263, %v5971, %v5542
  %v6069 = vsel %vm3263, %v5973, %v5544
  %v6072 = vsel %vm3263, %v5975, %v5546
  %v6075 = vsel %vm3263, %v5977, %v5548
  %v6077 = vld [vmem:[%s5] sm:$0xf]
  %v6078 = vld [vmem:[%s5 + $0x4] sm:$0xf]
  %v6079 = vld [vmem:[%s5 + $0x8] sm:$0xf]
  %v6080 = vld [vmem:[%s5 + $0xc] sm:$0xf]
  %v6081 = vld [vmem:[%s5 + $0x10] sm:$0xf]
  %v6082 = vld [vmem:[%s5 + $0x14] sm:$0xf]
  %v6083 = vld [vmem:[%s5 + $0x18] sm:$0xf]
  %v6084 = vld [vmem:[%s5 + $0x1c] sm:$0xf]
  %v6085 = vld [vmem:[%s5 + $0x20] sm:$0xf]
  %v6086 = vld [vmem:[%s5 + $0x24] sm:$0xf]
  %v6087 = vld [vmem:[%s5 + $0x28] sm:$0xf]
  %v6088 = vld [vmem:[%s5 + $0x2c] sm:$0xf]
  %v6089 = vld [vmem:[%s5 + $0x30] sm:$0xf]
  %v6090 = vld [vmem:[%s5 + $0x34] sm:$0xf]
  %v6091 = vld [vmem:[%s5 + $0x38] sm:$0xf]
  %v6092 = vld [vmem:[%s5 + $0x3c] sm:$0xf]
  %v6093 = vld [vmem:[%s5 + $0x40] sm:$0xf]
  %v6094 = vld [vmem:[%s5 + $0x44] sm:$0xf]
  %v6095 = vld [vmem:[%s5 + $0x48] sm:$0xf]
  %v6096 = vld [vmem:[%s5 + $0x4c] sm:$0xf]
  %v6097 = vld [vmem:[%s5 + $0x50] sm:$0xf]
  %v6098 = vld [vmem:[%s5 + $0x54] sm:$0xf]
  %v6099 = vld [vmem:[%s5 + $0x58] sm:$0xf]
  %v6100 = vld [vmem:[%s5 + $0x5c] sm:$0xf]
  %v6101 = vld [vmem:[%s5 + $0x60] sm:$0xf]
  %v6102 = vld [vmem:[%s5 + $0x64] sm:$0xf]
  %v6103 = vld [vmem:[%s5 + $0x68] sm:$0xf]
  %v6104 = vld [vmem:[%s5 + $0x6c] sm:$0xf]
  %v6105 = vld [vmem:[%s5 + $0x70] sm:$0xf]
  %v6106 = vld [vmem:[%s5 + $0x74] sm:$0xf]
  %v6107 = vld [vmem:[%s5 + $0x78] sm:$0xf]
  %v6108 = vld [vmem:[%s5 + $0x7c] sm:$0xf]
  %v6109 = vld [vmem:[%s5 + $0x80] sm:$0xf]
  %v6110 = vld [vmem:[%s5 + $0x84] sm:$0xf]
  %v6111 = vld [vmem:[%s5 + $0x88] sm:$0xf]
  %v6112 = vld [vmem:[%s5 + $0x8c] sm:$0xf]
  %v6113 = vld [vmem:[%s6] sm:$0x1]
  %v6115 = vlaneseq
  %v6116 = vshrl.u32 %v6115, 7
  %v6117 = vsub.s32 0, %v6116
  %v6118 = vrot.slane %v6113, %v6117
  %v6156 = vunpack.c.l.b16 %v6077
  %v6157 = vunpack.c.l.b16 %v6078
  %v6158 = vunpack.c.l.b16 %v6079
  %v6159 = vunpack.c.l.b16 %v6080
  %v6160 = vunpack.c.l.b16 %v6081
  %v6161 = vunpack.c.l.b16 %v6082
  %v6162 = vunpack.c.l.b16 %v6083
  %v6163 = vunpack.c.l.b16 %v6084
  %v6164 = vunpack.c.l.b16 %v6085
  %v6165 = vunpack.c.l.b16 %v6086
  %v6166 = vunpack.c.l.b16 %v6087
  %v6167 = vunpack.c.l.b16 %v6088
  %v6168 = vunpack.c.l.b16 %v6089
  %v6169 = vunpack.c.l.b16 %v6090
  %v6170 = vunpack.c.l.b16 %v6091
  %v6171 = vunpack.c.l.b16 %v6092
  %v6172 = vunpack.c.l.b16 %v6093
  %v6173 = vunpack.c.l.b16 %v6094
  %v6174 = vunpack.c.l.b16 %v6095
  %v6175 = vunpack.c.l.b16 %v6096
  %v6176 = vunpack.c.l.b16 %v6097
  %v6177 = vunpack.c.l.b16 %v6098
  %v6178 = vunpack.c.l.b16 %v6099
  %v6179 = vunpack.c.l.b16 %v6100
  %v6180 = vunpack.c.l.b16 %v6101
  %v6181 = vunpack.c.l.b16 %v6102
  %v6182 = vunpack.c.l.b16 %v6103
  %v6183 = vunpack.c.l.b16 %v6104
  %v6184 = vunpack.c.l.b16 %v6105
  %v6185 = vunpack.c.l.b16 %v6106
  %v6186 = vunpack.c.l.b16 %v6107
  %v6187 = vunpack.c.l.b16 %v6108
  %v6188 = vunpack.c.l.b16 %v6109
  %v6189 = vunpack.c.l.b16 %v6110
  %v6190 = vunpack.c.l.b16 %v6111
  %v6191 = vunpack.c.l.b16 %v6112
  %v6192 = vpack.c.b16 %v6157, %v6156
  %v6193 = vpack.c.b16 %v6159, %v6158
  %v6194 = vpack.c.b16 %v6161, %v6160
  %v6195 = vpack.c.b16 %v6163, %v6162
  %v6196 = vpack.c.b16 %v6165, %v6164
  %v6197 = vpack.c.b16 %v6167, %v6166
  %v6198 = vpack.c.b16 %v6169, %v6168
  %v6199 = vpack.c.b16 %v6171, %v6170
  %v6200 = vpack.c.b16 %v6173, %v6172
  %v6201 = vpack.c.b16 %v6175, %v6174
  %v6202 = vpack.c.b16 %v6177, %v6176
  %v6203 = vpack.c.b16 %v6179, %v6178
  %v6204 = vpack.c.b16 %v6181, %v6180
  %v6205 = vpack.c.b16 %v6183, %v6182
  %v6206 = vpack.c.b16 %v6185, %v6184
  %v6207 = vpack.c.b16 %v6187, %v6186
  %v6208 = vpack.c.b16 %v6189, %v6188
  %v6209 = vpack.c.b16 %v6191, %v6190
  %v6229 = vsel %vm27, %v5017, 0
  %v6232 = vsel %vm27, %v5018, 0
  %v6235 = vsel %vm27, %v5019, 0
  %v6238 = vsel %vm27, %v5020, 0
  %v6241 = vsel %vm27, %v5021, 0
  %v6244 = vsel %vm27, %v5022, 0
  %v6247 = vsel %vm27, %v5023, 0
  %v6250 = vsel %vm27, %v5024, 0
  %v6253 = vsel %vm27, %v5025, 0
  %v6256 = vsel %vm27, %v5026, 0
  %v6259 = vsel %vm27, %v5027, 0
  %v6262 = vsel %vm27, %v5028, 0
  %v6265 = vsel %vm27, %v5029, 0
  %v6268 = vsel %vm27, %v5030, 0
  %v6271 = vsel %vm27, %v5031, 0
  %v6274 = vsel %vm27, %v5032, 0
  %v6277 = vsel %vm27, %v5033, 0
  %v6280 = vsel %vm27, %v5034, 0
  %v6283 = vsel %vm27, %v5035, 0
  %v6286 = vsel %vm27, %v5036, 0
  %v6289 = vsel %vm27, %v5037, 0
  %v6292 = vsel %vm27, %v5038, 0
  %v6295 = vsel %vm27, %v5039, 0
  %v6298 = vsel %vm27, %v5040, 0
  %v6301 = vsel %vm27, %v5041, 0
  %v6304 = vsel %vm27, %v5042, 0
  %v6307 = vsel %vm27, %v5043, 0
  %v6310 = vsel %vm27, %v5044, 0
  %v6313 = vsel %vm27, %v5045, 0
  %v6316 = vsel %vm27, %v5046, 0
  %v6319 = vsel %vm27, %v5047, 0
  %v6322 = vsel %vm27, %v5048, 0
  %v6325 = vsel %vm27, %v5049, 0
  %6327 = vmatprep.subr.bf16.mxu0 0
  %6328 = vmatpush1.bf16.msra.mxu0 %v6192
  %6329 = vmatprep.subr.bf16.mxu0 0
  %6330 = vmatpush1.bf16.msra.mxu0 %v6193
  %6331 = vmatprep.subr.bf16.mxu0 0
  %6332 = vmatpush1.bf16.msra.mxu0 %v6194
  %6333 = vmatprep.subr.bf16.mxu0 0
  %6334 = vmatpush1.bf16.msra.mxu0 %v6195
  %6335 = vmatprep.subr.bf16.mxu0 0
  %6336 = vmatpush1.bf16.msra.mxu0 %v6196
  %6337 = vmatprep.subr.bf16.mxu0 0
  %6338 = vmatpush1.bf16.msra.mxu0 %v6197
  %6339 = vmatprep.subr.bf16.mxu0 0
  %6340 = vmatpush1.bf16.msra.mxu0 %v6198
  %6341 = vmatprep.subr.bf16.mxu0 0
  %6342 = vmatpush1.bf16.msra.mxu0 %v6199
  %6343 = vmatprep.subr.bf16.mxu0 0
  %6344 = vmatpush1.bf16.msra.mxu0 %v6200
  %6345 = vmatprep.subr.bf16.mxu0 0
  %6346 = vmatpush1.bf16.msra.mxu0 %v6201
  %6347 = vmatprep.subr.bf16.mxu0 0
  %6348 = vmatpush1.bf16.msra.mxu0 %v6202
  %6349 = vmatprep.subr.bf16.mxu0 0
  %6350 = vmatpush1.bf16.msra.mxu0 %v6203
  %6351 = vmatprep.subr.bf16.mxu0 0
  %6352 = vmatpush1.bf16.msra.mxu0 %v6204
  %6353 = vmatprep.subr.bf16.mxu0 0
  %6354 = vmatpush1.bf16.msra.mxu0 %v6205
  %6355 = vmatprep.subr.bf16.mxu0 0
  %6356 = vmatpush1.bf16.msra.mxu0 %v6206
  %6357 = vmatprep.subr.bf16.mxu0 0
  %6358 = vmatpush1.bf16.msra.mxu0 %v6207
  %6359 = vmatprep.mubr.bf16.mxu0 %v5979
  %6360 = vmatmul.mubr.bf16.gmra.mrb[0].mxu0 %v5715
  %v6361 = vpop.f32.mrb[0].mxu0
  %v6362 = vadd.f32 %v6118, %v6361
  %v6363 = vpop.f32.mrb[0].mxu0
  %v6364 = vpop.f32.mrb[0].mxu0
  %v6365 = vadd.f32 %v6118, %v6364
  %v6366 = vpop.f32.mrb[0].mxu0
  %6367 = vmatprep.mubr.bf16.mxu0 %v5982
  %6368 = vmatmul.mubr.bf16.gmra.mrb[0].mxu0 %v5718
  %v6369 = vpop.f32.mrb[0].mxu0
  %v6370 = vadd.f32 %v6118, %v6369
  %v6371 = vpop.f32.mrb[0].mxu0
  %v6372 = vpop.f32.mrb[0].mxu0
  %v6373 = vadd.f32 %v6118, %v6372
  %v6374 = vpop.f32.mrb[0].mxu0
  %6375 = vmatprep.mubr.bf16.mxu0 %v5985
  %6376 = vmatmul.mubr.bf16.gmra.mrb[0].mxu0 %v5721
  %v6377 = vpop.f32.mrb[0].mxu0
  %v6378 = vadd.f32 %v6118, %v6377
  %v6379 = vpop.f32.mrb[0].mxu0
  %v6380 = vpop.f32.mrb[0].mxu0
  %v6381 = vadd.f32 %v6118, %v6380
  %v6382 = vpop.f32.mrb[0].mxu0
  %6383 = vmatprep.mubr.bf16.mxu0 %v5988
  %6384 = vmatmul.mubr.bf16.gmra.mrb[0].mxu0 %v5724
  %v6385 = vpop.f32.mrb[0].mxu0
  %v6386 = vadd.f32 %v6118, %v6385
  %v6387 = vpop.f32.mrb[0].mxu0
  %v6388 = vpop.f32.mrb[0].mxu0
  %v6389 = vadd.f32 %v6118, %v6388
  %v6390 = vpop.f32.mrb[0].mxu0
  %6391 = vmatprep.mubr.bf16.mxu0 %v5991
  %6392 = vmatmul.mubr.bf16.gmra.mrb[0].mxu0 %v5727
  %v6393 = vpop.f32.mrb[0].mxu0
  %v6394 = vadd.f32 %v6118, %v6393
  %v6395 = vpop.f32.mrb[0].mxu0
  %v6396 = vpop.f32.mrb[0].mxu0
  %v6397 = vadd.f32 %v6118, %v6396
  %v6398 = vpop.f32.mrb[0].mxu0
  %6399 = vmatprep.mubr.bf16.mxu0 %v5994
  %6400 = vmatmul.mubr.bf16.gmra.mrb[0].mxu0 %v5730
  %v6401 = vpop.f32.mrb[0].mxu0
  %v6402 = vadd.f32 %v6118, %v6401
  %v6403 = vpop.f32.mrb[0].mxu0
  %v6404 = vpop.f32.mrb[0].mxu0
  %v6405 = vadd.f32 %v6118, %v6404
  %v6406 = vpop.f32.mrb[0].mxu0
  %6407 = vmatprep.mubr.bf16.mxu0 %v5997
  %6408 = vmatmul.mubr.bf16.gmra.mrb[0].mxu0 %v5733
  %v6409 = vpop.f32.mrb[0].mxu0
  %v6410 = vadd.f32 %v6118, %v6409
  %v6411 = vpop.f32.mrb[0].mxu0
  %v6412 = vpop.f32.mrb[0].mxu0
  %v6413 = vadd.f32 %v6118, %v6412
  %v6414 = vpop.f32.mrb[0].mxu0
  %6415 = vmatprep.mubr.bf16.mxu0 %v6000
  %6416 = vmatmul.mubr.bf16.gmra.mrb[0].mxu0 %v5736
  %v6417 = vpop.f32.mrb[0].mxu0
  %v6418 = vadd.f32 %v6118, %v6417
  %v6419 = vpop.f32.mrb[0].mxu0
  %v6420 = vpop.f32.mrb[0].mxu0
  %v6421 = vadd.f32 %v6118, %v6420
  %v6422 = vpop.f32.mrb[0].mxu0
  %6423 = vmatprep.mubr.bf16.mxu0 %v6003
  %6424 = vmatmul.mubr.bf16.gmra.mrb[0].mxu0 %v5739
  %v6425 = vpop.f32.mrb[0].mxu0
  %v6426 = vadd.f32 %v6118, %v6425
  %v6427 = vpop.f32.mrb[0].mxu0
  %v6428 = vpop.f32.mrb[0].mxu0
  %v6429 = vadd.f32 %v6118, %v6428
  %v6430 = vpop.f32.mrb[0].mxu0
  %6431 = vmatprep.mubr.bf16.mxu0 %v6006
  %6432 = vmatmul.mubr.bf16.gmra.mrb[0].mxu0 %v5742
  %v6433 = vpop.f32.mrb[0].mxu0
  %v6434 = vadd.f32 %v6118, %v6433
  %v6435 = vpop.f32.mrb[0].mxu0
  %v6436 = vpop.f32.mrb[0].mxu0
  %v6437 = vadd.f32 %v6118, %v6436
  %v6438 = vpop.f32.mrb[0].mxu0
  %6439 = vmatprep.mubr.bf16.mxu0 %v6009
  %6440 = vmatmul.mubr.bf16.gmra.mrb[0].mxu0 %v5745
  %v6441 = vpop.f32.mrb[0].mxu0
  %v6442 = vadd.f32 %v6118, %v6441
  %v6443 = vpop.f32.mrb[0].mxu0
  %v6444 = vpop.f32.mrb[0].mxu0
  %v6445 = vadd.f32 %v6118, %v6444
  %v6446 = vpop.f32.mrb[0].mxu0
  %6447 = vmatprep.mubr.bf16.mxu0 %v6012
  %6448 = vmatmul.mubr.bf16.gmra.mrb[0].mxu0 %v5748
  %v6449 = vpop.f32.mrb[0].mxu0
  %v6450 = vadd.f32 %v6118, %v6449
  %v6451 = vpop.f32.mrb[0].mxu0
  %v6452 = vpop.f32.mrb[0].mxu0
  %v6453 = vadd.f32 %v6118, %v6452
  %v6454 = vpop.f32.mrb[0].mxu0
  %6455 = vmatprep.mubr.bf16.mxu0 %v6015
  %6456 = vmatmul.mubr.bf16.gmra.mrb[0].mxu0 %v5751
  %v6457 = vpop.f32.mrb[0].mxu0
  %v6458 = vadd.f32 %v6118, %v6457
  %v6459 = vpop.f32.mrb[0].mxu0
  %v6460 = vpop.f32.mrb[0].mxu0
  %v6461 = vadd.f32 %v6118, %v6460
  %v6462 = vpop.f32.mrb[0].mxu0
  %6463 = vmatprep.mubr.bf16.mxu0 %v6018
  %6464 = vmatmul.mubr.bf16.gmra.mrb[0].mxu0 %v5754
  %v6465 = vpop.f32.mrb[0].mxu0
  %v6466 = vadd.f32 %v6118, %v6465
  %v6467 = vpop.f32.mrb[0].mxu0
  %v6468 = vpop.f32.mrb[0].mxu0
  %v6469 = vadd.f32 %v6118, %v6468
  %v6470 = vpop.f32.mrb[0].mxu0
  %6471 = vmatprep.mubr.bf16.mxu0 %v6021
  %6472 = vmatmul.mubr.bf16.gmra.mrb[0].mxu0 %v5757
  %v6473 = vpop.f32.mrb[0].mxu0
  %v6474 = vadd.f32 %v6118, %v6473
  %v6475 = vpop.f32.mrb[0].mxu0
  %v6476 = vpop.f32.mrb[0].mxu0
  %v6477 = vadd.f32 %v6118, %v6476
  %v6478 = vpop.f32.mrb[0].mxu0
  %6479 = vmatprep.mubr.bf16.mxu0 %v6024
  %6480 = vmatmul.mubr.bf16.gmra.mrb[0].mxu0 %v5760
  %v6481 = vpop.f32.mrb[0].mxu0
  %v6482 = vadd.f32 %v6118, %v6481
  %v6483 = vpop.f32.mrb[0].mxu0
  %v6484 = vpop.f32.mrb[0].mxu0
  %v6485 = vadd.f32 %v6118, %v6484
  %v6486 = vpop.f32.mrb[0].mxu0
  %6487 = vmatprep.mubr.bf16.mxu0 %v6027
  %6488 = vmatmul.mubr.bf16.gmra.mrb[0].mxu0 %v5763
  %v6489 = vpop.f32.mrb[0].mxu0
  %v6490 = vpop.f32.mrb[0].mxu0
  %v6491 = vpop.f32.mrb[0].mxu0
  %v6492 = vpop.f32.mrb[0].mxu0
  %6493 = vmatprep.mubr.bf16.mxu0 %v6030
  %6494 = vmatmul.mubr.bf16.gmra.mrb[0].mxu0 %v5766
  %v6495 = vpop.f32.mrb[0].mxu0
  %v6496 = vadd.f32 %v6118, %v6495
  %v6497 = vpop.f32.mrb[0].mxu0
  %v6498 = vpop.f32.mrb[0].mxu0
  %v6499 = vadd.f32 %v6118, %v6498
  %v6500 = vpop.f32.mrb[0].mxu0
  %6501 = vmatprep.mubr.bf16.mxu0 %v6033
  %6502 = vmatmul.mubr.bf16.gmra.mrb[0].mxu0 %v5769
  %v6503 = vpop.f32.mrb[0].mxu0
  %v6504 = vadd.f32 %v6118, %v6503
  %v6505 = vpop.f32.mrb[0].mxu0
  %v6506 = vpop.f32.mrb[0].mxu0
  %v6507 = vadd.f32 %v6118, %v6506
  %v6508 = vpop.f32.mrb[0].mxu0
  %6509 = vmatprep.mubr.bf16.mxu0 %v6036
  %6510 = vmatmul.mubr.bf16.gmra.mrb[0].mxu0 %v5772
  %v6511 = vpop.f32.mrb[0].mxu0
  %v6512 = vadd.f32 %v6118, %v6511
  %v6513 = vpop.f32.mrb[0].mxu0
  %v6514 = vpop.f32.mrb[0].mxu0
  %v6515 = vadd.f32 %v6118, %v6514
  %v6516 = vpop.f32.mrb[0].mxu0
  %6517 = vmatprep.mubr.bf16.mxu0 %v6039
  %6518 = vmatmul.mubr.bf16.gmra.mrb[0].mxu0 %v5775
  %v6519 = vpop.f32.mrb[0].mxu0
  %v6520 = vadd.f32 %v6118, %v6519
  %v6521 = vpop.f32.mrb[0].mxu0
  %v6522 = vpop.f32.mrb[0].mxu0
  %v6523 = vadd.f32 %v6118, %v6522
  %v6524 = vpop.f32.mrb[0].mxu0
  %6525 = vmatprep.mubr.bf16.mxu0 %v6042
  %6526 = vmatmul.mubr.bf16.gmra.mrb[0].mxu0 %v5778
  %v6527 = vpop.f32.mrb[0].mxu0
  %v6528 = vadd.f32 %v6118, %v6527
  %v6529 = vpop.f32.mrb[0].mxu0
  %v6530 = vpop.f32.mrb[0].mxu0
  %v6531 = vadd.f32 %v6118, %v6530
  %v6532 = vpop.f32.mrb[0].mxu0
  %6533 = vmatprep.mubr.bf16.mxu0 %v6045
  %6534 = vmatmul.mubr.bf16.gmra.mrb[0].mxu0 %v5781
  %v6535 = vpop.f32.mrb[0].mxu0
  %v6536 = vadd.f32 %v6118, %v6535
  %v6537 = vpop.f32.mrb[0].mxu0
  %v6538 = vpop.f32.mrb[0].mxu0
  %v6539 = vadd.f32 %v6118, %v6538
  %v6540 = vpop.f32.mrb[0].mxu0
  %6541 = vmatprep.mubr.bf16.mxu0 %v6048
  %6542 = vmatmul.mubr.bf16.gmra.mrb[0].mxu0 %v5784
  %v6543 = vpop.f32.mrb[0].mxu0
  %v6544 = vadd.f32 %v6118, %v6543
  %v6545 = vpop.f32.mrb[0].mxu0
  %v6546 = vpop.f32.mrb[0].mxu0
  %v6547 = vadd.f32 %v6118, %v6546
  %v6548 = vpop.f32.mrb[0].mxu0
  %6549 = vmatprep.mubr.bf16.mxu0 %v6051
  %6550 = vmatmul.mubr.bf16.gmra.mrb[0].mxu0 %v5787
  %v6551 = vpop.f32.mrb[0].mxu0
  %v6552 = vadd.f32 %v6118, %v6551
  %v6553 = vpop.f32.mrb[0].mxu0
  %v6554 = vpop.f32.mrb[0].mxu0
  %v6555 = vadd.f32 %v6118, %v6554
  %v6556 = vpop.f32.mrb[0].mxu0
  %6557 = vmatprep.mubr.bf16.mxu0 %v6054
  %6558 = vmatmul.mubr.bf16.gmra.mrb[0].mxu0 %v5790
  %v6559 = vpop.f32.mrb[0].mxu0
  %v6560 = vadd.f32 %v6118, %v6559
  %v6561 = vpop.f32.mrb[0].mxu0
  %v6562 = vpop.f32.mrb[0].mxu0
  %v6563 = vadd.f32 %v6118, %v6562
  %v6564 = vpop.f32.mrb[0].mxu0
  %6565 = vmatprep.mubr.bf16.mxu0 %v6057
  %6566 = vmatmul.mubr.bf16.gmra.mrb[0].mxu0 %v5793
  %v6567 = vpop.f32.mrb[0].mxu0
  %v6568 = vadd.f32 %v6118, %v6567
  %v6569 = vpop.f32.mrb[0].mxu0
  %v6570 = vpop.f32.mrb[0].mxu0
  %v6571 = vadd.f32 %v6118, %v6570
  %v6572 = vpop.f32.mrb[0].mxu0
  %6573 = vmatprep.mubr.bf16.mxu0 %v6060
  %6574 = vmatmul.mubr.bf16.gmra.mrb[0].mxu0 %v5796
  %v6575 = vpop.f32.mrb[0].mxu0
  %v6576 = vadd.f32 %v6118, %v6575
  %v6577 = vpop.f32.mrb[0].mxu0
  %v6578 = vpop.f32.mrb[0].mxu0
  %v6579 = vadd.f32 %v6118, %v6578
  %v6580 = vpop.f32.mrb[0].mxu0
  %6581 = vmatprep.mubr.bf16.mxu0 %v6063
  %6582 = vmatmul.mubr.bf16.gmra.mrb[0].mxu0 %v5799
  %v6583 = vpop.f32.mrb[0].mxu0
  %v6584 = vadd.f32 %v6118, %v6583
  %v6585 = vpop.f32.mrb[0].mxu0
  %v6586 = vpop.f32.mrb[0].mxu0
  %v6587 = vadd.f32 %v6118, %v6586
  %v6588 = vpop.f32.mrb[0].mxu0
  %6589 = vmatprep.mubr.bf16.mxu0 %v6066
  %6590 = vmatmul.mubr.bf16.gmra.mrb[0].mxu0 %v5802
  %v6591 = vpop.f32.mrb[0].mxu0
  %v6592 = vadd.f32 %v6118, %v6591
  %v6593 = vpop.f32.mrb[0].mxu0
  %v6594 = vpop.f32.mrb[0].mxu0
  %v6595 = vadd.f32 %v6118, %v6594
  %v6596 = vpop.f32.mrb[0].mxu0
  %6597 = vmatprep.mubr.bf16.mxu0 %v6069
  %6598 = vmatmul.mubr.bf16.gmra.mrb[0].mxu0 %v5805
  %v6599 = vpop.f32.mrb[0].mxu0
  %v6600 = vadd.f32 %v6118, %v6599
  %v6601 = vpop.f32.mrb[0].mxu0
  %v6602 = vpop.f32.mrb[0].mxu0
  %v6603 = vadd.f32 %v6118, %v6602
  %v6604 = vpop.f32.mrb[0].mxu0
  %6605 = vmatprep.mubr.bf16.mxu0 %v6072
  %6606 = vmatmul.mubr.bf16.gmra.mrb[0].mxu0 %v5808
  %v6607 = vpop.f32.mrb[0].mxu0
  %v6608 = vadd.f32 %v6118, %v6607
  %v6609 = vpop.f32.mrb[0].mxu0
  %v6610 = vpop.f32.mrb[0].mxu0
  %v6611 = vadd.f32 %v6118, %v6610
  %v6612 = vpop.f32.mrb[0].mxu0
  %6613 = vmatprep.mubr.bf16.mxu0 %v6075
  %6614 = vmatmul.mubr.bf16.gmra.mrb[0].mxu0 %v5811
  %v6615 = vpop.f32.mrb[0].mxu0
  %v6616 = vadd.f32 %v6118, %v6615
  %v6617 = vpop.f32.mrb[0].mxu0
  %v6618 = vpop.f32.mrb[0].mxu0
  %v6619 = vadd.f32 %v6118, %v6618
  %v6620 = vpop.f32.mrb[0].mxu0
  %6621 = vdwg.mxu0
  %6622 = vmatprep.subr.bf16.mxu0 0
  %6623 = vmatpush1.bf16.msra.mxu0 %v6208
  %6624 = vmatprep.subr.bf16.mxu0 0
  %6625 = vmatpush1.bf16.msra.mxu0 %v6209
  %6626 = vmatprep.subr.bf16.mxu0 0
  %6627 = vmatpush1.bf16.msra.mxu0 0
  %6628 = vmatprep.subr.bf16.mxu0 0
  %6629 = vmatpush1.bf16.msra.mxu0 0
  %6630 = vmatprep.subr.bf16.mxu0 0
  %6631 = vmatpush1.bf16.msra.mxu0 0
  %6632 = vmatprep.subr.bf16.mxu0 0
  %6633 = vmatpush1.bf16.msra.mxu0 0
  %6634 = vmatprep.subr.bf16.mxu0 0
  %6635 = vmatpush1.bf16.msra.mxu0 0
  %6636 = vmatprep.subr.bf16.mxu0 0
  %6637 = vmatpush1.bf16.msra.mxu0 0
  %6638 = vmatprep.subr.bf16.mxu0 0
  %6639 = vmatpush1.bf16.msra.mxu0 0
  %6640 = vmatprep.subr.bf16.mxu0 0
  %6641 = vmatpush1.bf16.msra.mxu0 0
  %6642 = vmatprep.subr.bf16.mxu0 0
  %6643 = vmatpush1.bf16.msra.mxu0 0
  %6644 = vmatprep.subr.bf16.mxu0 0
  %6645 = vmatpush1.bf16.msra.mxu0 0
  %6646 = vmatprep.subr.bf16.mxu0 0
  %6647 = vmatpush1.bf16.msra.mxu0 0
  %6648 = vmatprep.subr.bf16.mxu0 0
  %6649 = vmatpush1.bf16.msra.mxu0 0
  %6650 = vmatprep.subr.bf16.mxu0 0
  %6651 = vmatpush1.bf16.msra.mxu0 0
  %6652 = vmatprep.subr.bf16.mxu0 0
  %6653 = vmatpush1.bf16.msra.mxu0 0
  %6654 = vmatprep.mubr.bf16.mxu0 0
  %6655 = vmatmul.mubr.bf16.gmra.mrb[0].mxu0 %v6229
  %v6656 = vpop.f32.mrb[0].mxu0
  %v6657 = vadd.f32 %v6362, %v6656
  %v6658 = vpop.f32.mrb[0].mxu0
  %v6659 = vpop.f32.mrb[0].mxu0
  %v6660 = vadd.f32 %v6365, %v6659
  %v6661 = vpop.f32.mrb[0].mxu0
  %6662 = vmatprep.mubr.bf16.mxu0 0
  %6663 = vmatmul.mubr.bf16.gmra.mrb[0].mxu0 %v6232
  %v6664 = vpop.f32.mrb[0].mxu0
  %v6665 = vadd.f32 %v6370, %v6664
  %v6666 = vpop.f32.mrb[0].mxu0
  %v6667 = vpop.f32.mrb[0].mxu0
  %v6668 = vadd.f32 %v6373, %v6667
  %v6669 = vpop.f32.mrb[0].mxu0
  %6670 = vmatprep.mubr.bf16.mxu0 0
  %6671 = vmatmul.mubr.bf16.gmra.mrb[0].mxu0 %v6235
  %v6672 = vpop.f32.mrb[0].mxu0
  %v6673 = vadd.f32 %v6378, %v6672
  %v6674 = vpop.f32.mrb[0].mxu0
  %v6675 = vpop.f32.mrb[0].mxu0
  %v6676 = vadd.f32 %v6381, %v6675
  %v6677 = vpop.f32.mrb[0].mxu0
  %6678 = vmatprep.mubr.bf16.mxu0 0
  %6679 = vmatmul.mubr.bf16.gmra.mrb[0].mxu0 %v6238
  %v6680 = vpop.f32.mrb[0].mxu0
  %v6681 = vadd.f32 %v6386, %v6680
  %v6682 = vpop.f32.mrb[0].mxu0
  %v6683 = vpop.f32.mrb[0].mxu0
  %v6684 = vadd.f32 %v6389, %v6683
  %v6685 = vpop.f32.mrb[0].mxu0
  %6686 = vmatprep.mubr.bf16.mxu0 0
  %6687 = vmatmul.mubr.bf16.gmra.mrb[0].mxu0 %v6241
  %v6688 = vpop.f32.mrb[0].mxu0
  %v6689 = vadd.f32 %v6394, %v6688
  %v6690 = vpop.f32.mrb[0].mxu0
  %v6691 = vpop.f32.mrb[0].mxu0
  %v6692 = vadd.f32 %v6397, %v6691
  %v6693 = vpop.f32.mrb[0].mxu0
  %6694 = vmatprep.mubr.bf16.mxu0 0
  %6695 = vmatmul.mubr.bf16.gmra.mrb[0].mxu0 %v6244
  %v6696 = vpop.f32.mrb[0].mxu0
  %v6697 = vadd.f32 %v6402, %v6696
  %v6698 = vpop.f32.mrb[0].mxu0
  %v6699 = vpop.f32.mrb[0].mxu0
  %v6700 = vadd.f32 %v6405, %v6699
  %v6701 = vpop.f32.mrb[0].mxu0
  %6702 = vmatprep.mubr.bf16.mxu0 0
  %6703 = vmatmul.mubr.bf16.gmra.mrb[0].mxu0 %v6247
  %v6704 = vpop.f32.mrb[0].mxu0
  %v6705 = vadd.f32 %v6410, %v6704
  %v6706 = vpop.f32.mrb[0].mxu0
  %v6707 = vpop.f32.mrb[0].mxu0
  %v6708 = vadd.f32 %v6413, %v6707
  %v6709 = vpop.f32.mrb[0].mxu0
  %6710 = vmatprep.mubr.bf16.mxu0 0
  %6711 = vmatmul.mubr.bf16.gmra.mrb[0].mxu0 %v6250
  %v6712 = vpop.f32.mrb[0].mxu0
  %v6713 = vadd.f32 %v6418, %v6712
  %v6714 = vpop.f32.mrb[0].mxu0
  %v6715 = vpop.f32.mrb[0].mxu0
  %v6716 = vadd.f32 %v6421, %v6715
  %v6717 = vpop.f32.mrb[0].mxu0
  %6718 = vmatprep.mubr.bf16.mxu0 0
  %6719 = vmatmul.mubr.bf16.gmra.mrb[0].mxu0 %v6253
  %v6720 = vpop.f32.mrb[0].mxu0
  %v6721 = vadd.f32 %v6426, %v6720
  %v6722 = vpop.f32.mrb[0].mxu0
  %v6723 = vpop.f32.mrb[0].mxu0
  %v6724 = vadd.f32 %v6429, %v6723
  %v6725 = vpop.f32.mrb[0].mxu0
  %6726 = vmatprep.mubr.bf16.mxu0 0
  %6727 = vmatmul.mubr.bf16.gmra.mrb[0].mxu0 %v6256
  %v6728 = vpop.f32.mrb[0].mxu0
  %v6729 = vadd.f32 %v6434, %v6728
  %v6730 = vpop.f32.mrb[0].mxu0
  %v6731 = vpop.f32.mrb[0].mxu0
  %v6732 = vadd.f32 %v6437, %v6731
  %v6733 = vpop.f32.mrb[0].mxu0
  %6734 = vmatprep.mubr.bf16.mxu0 0
  %6735 = vmatmul.mubr.bf16.gmra.mrb[0].mxu0 %v6259
  %v6736 = vpop.f32.mrb[0].mxu0
  %v6737 = vadd.f32 %v6442, %v6736
  %v6738 = vpop.f32.mrb[0].mxu0
  %v6739 = vpop.f32.mrb[0].mxu0
  %v6740 = vadd.f32 %v6445, %v6739
  %v6741 = vpop.f32.mrb[0].mxu0
  %6742 = vmatprep.mubr.bf16.mxu0 0
  %6743 = vmatmul.mubr.bf16.gmra.mrb[0].mxu0 %v6262
  %v6744 = vpop.f32.mrb[0].mxu0
  %v6745 = vadd.f32 %v6450, %v6744
  %v6746 = vpop.f32.mrb[0].mxu0
  %v6747 = vpop.f32.mrb[0].mxu0
  %v6748 = vadd.f32 %v6453, %v6747
  %v6749 = vpop.f32.mrb[0].mxu0
  %6750 = vmatprep.mubr.bf16.mxu0 0
  %6751 = vmatmul.mubr.bf16.gmra.mrb[0].mxu0 %v6265
  %v6752 = vpop.f32.mrb[0].mxu0
  %v6753 = vadd.f32 %v6458, %v6752
  %v6754 = vpop.f32.mrb[0].mxu0
  %v6755 = vpop.f32.mrb[0].mxu0
  %v6756 = vadd.f32 %v6461, %v6755
  %v6757 = vpop.f32.mrb[0].mxu0
  %6758 = vmatprep.mubr.bf16.mxu0 0
  %6759 = vmatmul.mubr.bf16.gmra.mrb[0].mxu0 %v6268
  %v6760 = vpop.f32.mrb[0].mxu0
  %v6761 = vadd.f32 %v6466, %v6760
  %v6762 = vpop.f32.mrb[0].mxu0
  %v6763 = vpop.f32.mrb[0].mxu0
  %v6764 = vadd.f32 %v6469, %v6763
  %v6765 = vpop.f32.mrb[0].mxu0
  %6766 = vmatprep.mubr.bf16.mxu0 0
  %6767 = vmatmul.mubr.bf16.gmra.mrb[0].mxu0 %v6271
  %v6768 = vpop.f32.mrb[0].mxu0
  %v6769 = vadd.f32 %v6474, %v6768
  %v6770 = vpop.f32.mrb[0].mxu0
  %v6771 = vpop.f32.mrb[0].mxu0
  %v6772 = vadd.f32 %v6477, %v6771
  %v6773 = vpop.f32.mrb[0].mxu0
  %6774 = vmatprep.mubr.bf16.mxu0 0
  %6775 = vmatmul.mubr.bf16.gmra.mrb[0].mxu0 %v6274
  %v6776 = vpop.f32.mrb[0].mxu0
  %v6777 = vadd.f32 %v6482, %v6776
  %v6778 = vpop.f32.mrb[0].mxu0
  %v6779 = vpop.f32.mrb[0].mxu0
  %v6780 = vadd.f32 %v6485, %v6779
  %v6781 = vpop.f32.mrb[0].mxu0
  %6782 = vmatprep.mubr.bf16.mxu0 0
  %6783 = vmatmul.mubr.bf16.gmra.mrb[0].mxu0 %v6277
  %v6784 = vpop.f32.mrb[0].mxu0
  %v6785 = vpop.f32.mrb[0].mxu0
  %v6786 = vpop.f32.mrb[0].mxu0
  %v6787 = vpop.f32.mrb[0].mxu0
  %6788 = vmatprep.mubr.bf16.mxu0 0
  %6789 = vmatmul.mubr.bf16.gmra.mrb[0].mxu0 %v6280
  %v6790 = vpop.f32.mrb[0].mxu0
  %v6791 = vadd.f32 %v6496, %v6790
  %v6792 = vpop.f32.mrb[0].mxu0
  %v6793 = vpop.f32.mrb[0].mxu0
  %v6794 = vadd.f32 %v6499, %v6793
  %v6795 = vpop.f32.mrb[0].mxu0
  %6796 = vmatprep.mubr.bf16.mxu0 0
  %6797 = vmatmul.mubr.bf16.gmra.mrb[0].mxu0 %v6283
  %v6798 = vpop.f32.mrb[0].mxu0
  %v6799 = vadd.f32 %v6504, %v6798
  %v6800 = vpop.f32.mrb[0].mxu0
  %v6801 = vpop.f32.mrb[0].mxu0
  %v6802 = vadd.f32 %v6507, %v6801
  %v6803 = vpop.f32.mrb[0].mxu0
  %6804 = vmatprep.mubr.bf16.mxu0 0
  %6805 = vmatmul.mubr.bf16.gmra.mrb[0].mxu0 %v6286
  %v6806 = vpop.f32.mrb[0].mxu0
  %v6807 = vadd.f32 %v6512, %v6806
  %v6808 = vpop.f32.mrb[0].mxu0
  %v6809 = vpop.f32.mrb[0].mxu0
  %v6810 = vadd.f32 %v6515, %v6809
  %v6811 = vpop.f32.mrb[0].mxu0
  %6812 = vmatprep.mubr.bf16.mxu0 0
  %6813 = vmatmul.mubr.bf16.gmra.mrb[0].mxu0 %v6289
  %v6814 = vpop.f32.mrb[0].mxu0
  %v6815 = vadd.f32 %v6520, %v6814
  %v6816 = vpop.f32.mrb[0].mxu0
  %v6817 = vpop.f32.mrb[0].mxu0
  %v6818 = vadd.f32 %v6523, %v6817
  %v6819 = vpop.f32.mrb[0].mxu0
  %6820 = vmatprep.mubr.bf16.mxu0 0
  %6821 = vmatmul.mubr.bf16.gmra.mrb[0].mxu0 %v6292
  %v6822 = vpop.f32.mrb[0].mxu0
  %v6823 = vadd.f32 %v6528, %v6822
  %v6824 = vpop.f32.mrb[0].mxu0
  %v6825 = vpop.f32.mrb[0].mxu0
  %v6826 = vadd.f32 %v6531, %v6825
  %v6827 = vpop.f32.mrb[0].mxu0
  %6828 = vmatprep.mubr.bf16.mxu0 0
  %6829 = vmatmul.mubr.bf16.gmra.mrb[0].mxu0 %v6295
  %v6830 = vpop.f32.mrb[0].mxu0
  %v6831 = vadd.f32 %v6536, %v6830
  %v6832 = vpop.f32.mrb[0].mxu0
  %v6833 = vpop.f32.mrb[0].mxu0
  %v6834 = vadd.f32 %v6539, %v6833
  %v6835 = vpop.f32.mrb[0].mxu0
  %6836 = vmatprep.mubr.bf16.mxu0 0
  %6837 = vmatmul.mubr.bf16.gmra.mrb[0].mxu0 %v6298
  %v6838 = vpop.f32.mrb[0].mxu0
  %v6839 = vadd.f32 %v6544, %v6838
  %v6840 = vpop.f32.mrb[0].mxu0
  %v6841 = vpop.f32.mrb[0].mxu0
  %v6842 = vadd.f32 %v6547, %v6841
  %v6843 = vpop.f32.mrb[0].mxu0
  %6844 = vmatprep.mubr.bf16.mxu0 0
  %6845 = vmatmul.mubr.bf16.gmra.mrb[0].mxu0 %v6301
  %v6846 = vpop.f32.mrb[0].mxu0
  %v6847 = vadd.f32 %v6552, %v6846
  %v6848 = vpop.f32.mrb[0].mxu0
  %v6849 = vpop.f32.mrb[0].mxu0
  %v6850 = vadd.f32 %v6555, %v6849
  %v6851 = vpop.f32.mrb[0].mxu0
  %6852 = vmatprep.mubr.bf16.mxu0 0
  %6853 = vmatmul.mubr.bf16.gmra.mrb[0].mxu0 %v6304
  %v6854 = vpop.f32.mrb[0].mxu0
  %v6855 = vadd.f32 %v6560, %v6854
  %v6856 = vpop.f32.mrb[0].mxu0
  %v6857 = vpop.f32.mrb[0].mxu0
  %v6858 = vadd.f32 %v6563, %v6857
  %v6859 = vpop.f32.mrb[0].mxu0
  %6860 = vmatprep.mubr.bf16.mxu0 0
  %6861 = vmatmul.mubr.bf16.gmra.mrb[0].mxu0 %v6307
  %v6862 = vpop.f32.mrb[0].mxu0
  %v6863 = vadd.f32 %v6568, %v6862
  %v6864 = vpop.f32.mrb[0].mxu0
  %v6865 = vpop.f32.mrb[0].mxu0
  %v6866 = vadd.f32 %v6571, %v6865
  %v6867 = vpop.f32.mrb[0].mxu0
  %6868 = vmatprep.mubr.bf16.mxu0 0
  %6869 = vmatmul.mubr.bf16.gmra.mrb[0].mxu0 %v6310
  %v6870 = vpop.f32.mrb[0].mxu0
  %v6871 = vadd.f32 %v6576, %v6870
  %v6872 = vpop.f32.mrb[0].mxu0
  %v6873 = vpop.f32.mrb[0].mxu0
  %v6874 = vadd.f32 %v6579, %v6873
  %v6875 = vpop.f32.mrb[0].mxu0
  %6876 = vmatprep.mubr.bf16.mxu0 0
  %6877 = vmatmul.mubr.bf16.gmra.mrb[0].mxu0 %v6313
  %v6878 = vpop.f32.mrb[0].mxu0
  %v6879 = vadd.f32 %v6584, %v6878
  %v6880 = vpop.f32.mrb[0].mxu0
  %v6881 = vpop.f32.mrb[0].mxu0
  %v6882 = vadd.f32 %v6587, %v6881
  %v6883 = vpop.f32.mrb[0].mxu0
  %6884 = vmatprep.mubr.bf16.mxu0 0
  %6885 = vmatmul.mubr.bf16.gmra.mrb[0].mxu0 %v6316
  %v6886 = vpop.f32.mrb[0].mxu0
  %v6887 = vadd.f32 %v6592, %v6886
  %v6888 = vpop.f32.mrb[0].mxu0
  %v6889 = vpop.f32.mrb[0].mxu0
  %v6890 = vadd.f32 %v6595, %v6889
  %v6891 = vpop.f32.mrb[0].mxu0
  %6892 = vmatprep.mubr.bf16.mxu0 0
  %6893 = vmatmul.mubr.bf16.gmra.mrb[0].mxu0 %v6319
  %v6894 = vpop.f32.mrb[0].mxu0
  %v6895 = vadd.f32 %v6600, %v6894
  %v6896 = vpop.f32.mrb[0].mxu0
  %v6897 = vpop.f32.mrb[0].mxu0
  %v6898 = vadd.f32 %v6603, %v6897
  %v6899 = vpop.f32.mrb[0].mxu0
  %6900 = vmatprep.mubr.bf16.mxu0 0
  %6901 = vmatmul.mubr.bf16.gmra.mrb[0].mxu0 %v6322
  %v6902 = vpop.f32.mrb[0].mxu0
  %v6903 = vadd.f32 %v6608, %v6902
  %v6904 = vpop.f32.mrb[0].mxu0
  %v6905 = vpop.f32.mrb[0].mxu0
  %v6906 = vadd.f32 %v6611, %v6905
  %v6907 = vpop.f32.mrb[0].mxu0
  %6908 = vmatprep.mubr.bf16.mxu0 0
  %6909 = vmatmul.mubr.bf16.gmra.mrb[0].mxu0 %v6325
  %v6910 = vpop.f32.mrb[0].mxu0
  %v6911 = vadd.f32 %v6616, %v6910
  %v6912 = vpop.f32.mrb[0].mxu0
  %v6913 = vpop.f32.mrb[0].mxu0
  %v6914 = vadd.f32 %v6619, %v6913
  %v6915 = vpop.f32.mrb[0].mxu0
  %6916 = vdwg.mxu0
  %6917 = vst.msk [vmem:[%s7] sm:$0xff] %vm27, %v6657
  %6918 = vst.msk [vmem:[%s7 + $0x8] sm:$0xff] %vm27, %v6660
  %6919 = vst.msk [vmem:[%s7 + $0x10] sm:$0xff] %vm27, %v6665
  %6920 = vst.msk [vmem:[%s7 + $0x18] sm:$0xff] %vm27, %v6668
  %6921 = vst.msk [vmem:[%s7 + $0x20] sm:$0xff] %vm27, %v6673
  %6922 = vst.msk [vmem:[%s7 + $0x28] sm:$0xff] %vm27, %v6676
  %6923 = vst.msk [vmem:[%s7 + $0x30] sm:$0xff] %vm27, %v6681
  %6924 = vst.msk [vmem:[%s7 + $0x38] sm:$0xff] %vm27, %v6684
  %6925 = vst.msk [vmem:[%s7 + $0x40] sm:$0xff] %vm27, %v6689
  %6926 = vst.msk [vmem:[%s7 + $0x48] sm:$0xff] %vm27, %v6692
  %6927 = vst.msk [vmem:[%s7 + $0x50] sm:$0xff] %vm27, %v6697
  %6928 = vst.msk [vmem:[%s7 + $0x58] sm:$0xff] %vm27, %v6700
  %6929 = vst.msk [vmem:[%s7 + $0x60] sm:$0xff] %vm27, %v6705
  %6930 = vst.msk [vmem:[%s7 + $0x68] sm:$0xff] %vm27, %v6708
  %6931 = vst.msk [vmem:[%s7 + $0x70] sm:$0xff] %vm27, %v6713
  %6932 = vst.msk [vmem:[%s7 + $0x78] sm:$0xff] %vm27, %v6716
  %6933 = vst.msk [vmem:[%s7 + $0x80] sm:$0xff] %vm27, %v6721
  %6934 = vst.msk [vmem:[%s7 + $0x88] sm:$0xff] %vm27, %v6724
  %6935 = vst.msk [vmem:[%s7 + $0x90] sm:$0xff] %vm27, %v6729
  %6936 = vst.msk [vmem:[%s7 + $0x98] sm:$0xff] %vm27, %v6732
  %6937 = vst.msk [vmem:[%s7 + $0xa0] sm:$0xff] %vm27, %v6737
  %6938 = vst.msk [vmem:[%s7 + $0xa8] sm:$0xff] %vm27, %v6740
  %6939 = vst.msk [vmem:[%s7 + $0xb0] sm:$0xff] %vm27, %v6745
  %6940 = vst.msk [vmem:[%s7 + $0xb8] sm:$0xff] %vm27, %v6748
  %6941 = vst.msk [vmem:[%s7 + $0xc0] sm:$0xff] %vm27, %v6753
  %6942 = vst.msk [vmem:[%s7 + $0xc8] sm:$0xff] %vm27, %v6756
  %6943 = vst.msk [vmem:[%s7 + $0xd0] sm:$0xff] %vm27, %v6761
  %6944 = vst.msk [vmem:[%s7 + $0xd8] sm:$0xff] %vm27, %v6764
  %6945 = vst.msk [vmem:[%s7 + $0xe0] sm:$0xff] %vm27, %v6769
  %6946 = vst.msk [vmem:[%s7 + $0xe8] sm:$0xff] %vm27, %v6772
  %6947 = vst.msk [vmem:[%s7 + $0xf0] sm:$0xff] %vm27, %v6777
  %6948 = vst.msk [vmem:[%s7 + $0xf8] sm:$0xff] %vm27, %v6780
  %s6949 = scalar_lea.vmem %s7, 256
  %6950 = vst.msk [vmem:[%s6949] sm:$0xff] %vm27, %v6791
  %6951 = vst.msk [vmem:[%s6949 + $0x8] sm:$0xff] %vm27, %v6794
  %6952 = vst.msk [vmem:[%s6949 + $0x10] sm:$0xff] %vm27, %v6799
  %6953 = vst.msk [vmem:[%s6949 + $0x18] sm:$0xff] %vm27, %v6802
  %6954 = vst.msk [vmem:[%s6949 + $0x20] sm:$0xff] %vm27, %v6807
  %6955 = vst.msk [vmem:[%s6949 + $0x28] sm:$0xff] %vm27, %v6810
  %6956 = vst.msk [vmem:[%s6949 + $0x30] sm:$0xff] %vm27, %v6815
  %6957 = vst.msk [vmem:[%s6949 + $0x38] sm:$0xff] %vm27, %v6818
  %6958 = vst.msk [vmem:[%s6949 + $0x40] sm:$0xff] %vm27, %v6823
  %6959 = vst.msk [vmem:[%s6949 + $0x48] sm:$0xff] %vm27, %v6826
  %6960 = vst.msk [vmem:[%s6949 + $0x50] sm:$0xff] %vm27, %v6831
  %6961 = vst.msk [vmem:[%s6949 + $0x58] sm:$0xff] %vm27, %v6834
  %6962 = vst.msk [vmem:[%s6949 + $0x60] sm:$0xff] %vm27, %v6839
  %6963 = vst.msk [vmem:[%s6949 + $0x68] sm:$0xff] %vm27, %v6842
  %6964 = vst.msk [vmem:[%s6949 + $0x70] sm:$0xff] %vm27, %v6847
  %6965 = vst.msk [vmem:[%s6949 + $0x78] sm:$0xff] %vm27, %v6850
  %6966 = vst.msk [vmem:[%s6949 + $0x80] sm:$0xff] %vm27, %v6855
  %6967 = vst.msk [vmem:[%s6949 + $0x88] sm:$0xff] %vm27, %v6858
  %6968 = vst.msk [vmem:[%s6949 + $0x90] sm:$0xff] %vm27, %v6863
  %6969 = vst.msk [vmem:[%s6949 + $0x98] sm:$0xff] %vm27, %v6866
  %6970 = vst.msk [vmem:[%s6949 + $0xa0] sm:$0xff] %vm27, %v6871
  %6971 = vst.msk [vmem:[%s6949 + $0xa8] sm:$0xff] %vm27, %v6874
  %6972 = vst.msk [vmem:[%s6949 + $0xb0] sm:$0xff] %vm27, %v6879
  %6973 = vst.msk [vmem:[%s6949 + $0xb8] sm:$0xff] %vm27, %v6882
  %6974 = vst.msk [vmem:[%s6949 + $0xc0] sm:$0xff] %vm27, %v6887
  %6975 = vst.msk [vmem:[%s6949 + $0xc8] sm:$0xff] %vm27, %v6890
  %6976 = vst.msk [vmem:[%s6949 + $0xd0] sm:$0xff] %vm27, %v6895
  %6977 = vst.msk [vmem:[%s6949 + $0xd8] sm:$0xff] %vm27, %v6898
  %6978 = vst.msk [vmem:[%s6949 + $0xe0] sm:$0xff] %vm27, %v6903
  %6979 = vst.msk [vmem:[%s6949 + $0xe8] sm:$0xff] %vm27, %v6906
  %6980 = vst.msk [vmem:[%s6949 + $0xf0] sm:$0xff] %vm27, %v6911
  %6981 = vst.msk [vmem:[%s6949 + $0xf8] sm:$0xff] %vm27, %v6914
  // Predicated region
  $region30: #{classification_model_forward.1} parent=0 // pred_check
    _
  $region31: #{classification_model_forward.1} parent=0 // pred_check_branch
    %6983 = sbr.rel (0) target = $region33
  $region32: #{classification_model_forward.1} parent=0 // pred_region
    _
  $region33: #{classification_model_forward.1} parent=0 // pred_fallthru
    _
  // Predicated region
  $region34: #{classification_model_forward.1} parent=0 // pred_check
    _
  $region35: #{classification_model_forward.1} parent=0 // pred_check_branch
    %6985 = sbr.rel (0) target = $region37
  $region36: #{classification_model_forward.1} parent=0 // pred_region
    _
  $region37: #{classification_model_forward.1} parent=0 // pred_fallthru
    _

</llo_original>
